<compile_context>
chip_gen: v5e
topology: v5e:2x2
jax: 0.10.0
libtpu: 0.0.40
codegen_flags: <defaults>
</compile_context>

<pallas_src>
import jax
import jax.numpy as jnp
from jax import lax
from jax.experimental import pallas as pl
from jax.experimental.pallas import tpu as pltpu

# ----- synthetic, small configuration (args.window < 0 -> num_time_steps = T) -----
T = 8            # time steps
N = 16           # nodes per graph (identical across snapshots -> padding is a no-op)
F_IN = 8         # input node features
S_HEADS = 4      # structural_head_config = "4"
S_OUT = 16       # structural_layer_config = "16"  (per-head dim = 4)
T_HEADS = 4      # temporal_head_config  = "4"
F_T = S_OUT      # temporal_layer_config = "16"
NEG_SLOPE = 0.2  # LeakyReLU slope inside GAT

TN = T * N
C_S = S_OUT // S_HEADS   # structural per-head dim
C_T = F_T // T_HEADS     # temporal per-head dim


# ------------------------------------------------------------------ fused kernel
def dysat_kernel(x_ref, adjwt_ref, adjmt_ref, ws_ref, wres_ref, attl_ref, attr_ref,
                 pos_ref, perm_ref, wqkv_ref, wl_ref, bl_ref, o_ref):
    f32 = jnp.float32

    # ---------------- structural attention, all T snapshots at once -------------
    x2 = x_ref[...]                                                      # [T*N, F_in]
    adj_wT = adjwt_ref[...]                                              # [T, dst, src]
    adj_mT = adjmt_ref[...]                                              # [T, dst, src]

    h_all = jnp.dot(x2, ws_ref[...], preferred_element_type=f32)         # [T*N, F]
    res_all = jnp.dot(x2, wres_ref[...], preferred_element_type=f32)     # [T*N, F]
    al_all = jnp.dot(h_all, attl_ref[...], preferred_element_type=f32)   # [T*N, H]
    ar_all = jnp.dot(h_all, attr_ref[...], preferred_element_type=f32)   # [T*N, H]

    h3 = h_all.reshape(T, N, S_OUT)                                      # tile-aligned
    res3 = res_all.reshape(T, N, S_OUT)                                  # leading splits
    al3 = al_all.reshape(T, N, S_HEADS)
    ar3 = ar_all.reshape(T, N, S_HEADS)

    # hoisted constants
    rr = lax.broadcasted_iota(jnp.int32, (N, N), 0)
    cc = lax.broadcasted_iota(jnp.int32, (N, N), 1)
    eye3 = (rr == cc).astype(f32)[None, :, :]                            # [1, N, N]
    lane_s = lax.broadcasted_iota(jnp.int32, (1, S_OUT), 1)
    s_masks = [((lane_s >= hd * C_S) & (lane_s < (hd + 1) * C_S)).astype(f32)
               for hd in range(S_HEADS)]
    lane_t = lax.broadcasted_iota(jnp.int32, (1, F_T), 1)
    t_masks = [((lane_t >= hd * C_T) & (lane_t < (hd + 1) * C_T)).astype(f32)
               for hd in range(T_HEADS)]

    s_acc = jnp.zeros((T, N, S_OUT), f32)
    for hd in range(S_HEADS):
        ar_col = ar3[:, :, hd:hd + 1]                                    # [T, dst, 1]
        al_col = al3[:, :, hd:hd + 1]                                    # [T, src, 1]
        # move a_l to the lane axis with a mask+reduce (no transpose needed)
        al_lane = jnp.sum(eye3 * al_col, axis=1, keepdims=True)          # [T, 1, src]
        e = adj_wT * (ar_col + al_lane)                                  # [T, dst, src]
        e = jnp.where(e > 0, e, NEG_SLOPE * e)                           # LeakyReLU
        e = jnp.where(adj_mT > 0, e, f32(-1e9))                          # real edges only
        e = e - jnp.max(e, axis=-1, keepdims=True)                       # softmax over src
        p = jnp.exp(e)
        coef = p * pl.reciprocal(jnp.sum(p, axis=-1, keepdims=True), approx=False)
        # head-masked full-width aggregation: contributes only to this head's columns
        s_acc = s_acc + jnp.einsum('tds,tsc->tdc', coef, h3 * s_masks[hd],
                                   preferred_element_type=f32)
    s_out = jnp.where(s_acc > 0, s_acc, jnp.exp(s_acc) - 1.0) + res3     # ELU + residual

    # -------- [T,N,F] -> [N,T,F] pivot as a permutation matmul on the MXU --------
    ti_tm = s_out.reshape(TN, S_OUT) + pos_ref[...]                      # time-major rows
    perm = perm_ref[...]                                                 # exact 0/1 matrix
    hi = ti_tm.astype(jnp.bfloat16).astype(f32)                          # bf16-exact split
    lo = ti_tm - hi                                                      # keeps pivot exact
    ti = (jnp.dot(perm, hi, preferred_element_type=f32) +
          jnp.dot(perm, lo, preferred_element_type=f32))                 # node-major rows

    # ---------------- temporal multi-head causal self-attention ------------------
    qkv = jnp.dot(ti, wqkv_ref[...], preferred_element_type=f32)         # [N*T, 3F]
    q3 = qkv[:, 0:F_T].reshape(N, T, F_T)
    k3 = qkv[:, F_T:2 * F_T].reshape(N, T, F_T)
    v3 = qkv[:, 2 * F_T:3 * F_T].reshape(N, T, F_T)

    row = lax.broadcasted_iota(jnp.int32, (T, T), 0)
    col = lax.broadcasted_iota(jnp.int32, (T, T), 1)
    causal = (row >= col)[None, :, :]                                    # incl. diagonal
    neg = f32(-(2.0 ** 32) + 1.0)
    scale = f32(1.0 / (T ** 0.5))

    out_acc = jnp.zeros((N, T, F_T), f32)
    for hd in range(T_HEADS):
        km = k3 * t_masks[hd]
        vm = v3 * t_masks[hd]
        s = jnp.einsum('ntf,nsf->nts', q3, km, preferred_element_type=f32) * scale
        s = jnp.where(causal, s, neg)
        s = s - jnp.max(s, axis=-1, keepdims=True)
        p = jnp.exp(s)
        attn = p * pl.reciprocal(jnp.sum(p, axis=-1, keepdims=True), approx=False)
        # TODO(synk): attention dropout skipped (eval mode).
        out_acc = out_acc + jnp.einsum('nts,nsf->ntf', attn, vm,
                                       preferred_element_type=f32)

    out2 = out_acc.reshape(TN, F_T)
    ff = jnp.maximum(jnp.dot(out2, wl_ref[...], preferred_element_type=f32)
                     + bl_ref[...], 0.0)
    o_ref[...] = ff + out2 + ti                                          # ff + out + ti


# ------------------------------------------------------------------ wrapper (glue)
def _build_kernel_inputs(x_all, adj_w, adj_m, p):
    x2 = x_all.reshape(TN, F_IN)
    # dst-major adjacency so the structural softmax reduces over the lane axis
    adj_wT = jnp.swapaxes(adj_w, 1, 2)
    adj_mT = jnp.swapaxes(adj_m, 1, 2)
    # block-diagonal attention vectors -> one matmul computes all heads' scores
    eye_h = jnp.eye(S_HEADS, dtype=jnp.float32)
    attl_bd = (p['attl'][:, :, None] * eye_h[:, None, :]).reshape(S_OUT, S_HEADS)
    attr_bd = (p['attr'][:, :, None] * eye_h[:, None, :]).reshape(S_OUT, S_HEADS)
    # position embedding repeated to time-major row layout (row t*N+n -> pos[t])
    pos_rep = jnp.repeat(p['pos'], N, axis=0)                            # [T*N, F_T]
    # row permutation: node-major row n*T+t  <-  time-major row t*N+n
    i = jnp.arange(TN)
    perm = jax.nn.one_hot((i % T) * N + (i // T), TN, dtype=jnp.float32)
    # packed QKV projection
    wqkv = jnp.concatenate([p['Wq'], p['Wk'], p['Wv']], axis=1)          # [F_T, 3F_T]
    return x2, adj_wT, adj_mT, attl_bd, attr_bd, pos_rep, perm, wqkv


@jax.jit
def dysat_forward(x_all, adj_w, adj_m, params):
    (x2, adj_wT, adj_mT, attl_bd, attr_bd,
     pos_rep, perm, wqkv) = _build_kernel_inputs(x_all, adj_w, adj_m, params)

    full2 = lambda i: (0, 0)
    full3 = lambda i: (0, 0, 0)

    out2 = pl.pallas_call(
        dysat_kernel,
        out_shape=jax.ShapeDtypeStruct((TN, F_T), jnp.float32),
        grid_spec=pltpu.PrefetchScalarGridSpec(
            num_scalar_prefetch=0,
            grid=(1,),
            in_specs=[
                pl.BlockSpec((TN, F_IN), full2),           # x (flattened over time)
                pl.BlockSpec((T, N, N), full3),            # adj weights (dst, src)
                pl.BlockSpec((T, N, N), full3),            # adj mask    (dst, src)
                pl.BlockSpec((F_IN, S_OUT), full2),        # Ws
                pl.BlockSpec((F_IN, S_OUT), full2),        # Wres
                pl.BlockSpec((S_OUT, S_HEADS), full2),     # attl (block-diag)
                pl.BlockSpec((S_OUT, S_HEADS), full2),     # attr (block-diag)
                pl.BlockSpec((TN, F_T), full2),            # pos (repeated)
                pl.BlockSpec((TN, TN), full2),             # permutation matrix
                pl.BlockSpec((F_T, 3 * F_T), full2),       # packed Wq|Wk|Wv
                pl.BlockSpec((F_T, F_T), full2),           # Wl
                pl.BlockSpec((1, F_T), full2),             # bl
            ],
            out_specs=pl.BlockSpec((TN, F_T), full2),
        ),
        compiler_params=pltpu.CompilerParams(dimension_semantics=("arbitrary",)),
    )(x2, adj_wT, adj_mT, params['Ws'], params['Wres'], attl_bd, attr_bd,
      pos_rep, perm, wqkv, params['Wl'], params['bl'])

    return out2.reshape(N, T, F_T)


# ------------------------------------------------------------------ pure-JAX reference
def dysat_ref(x_all, adj_w, adj_m, p):
    C = S_OUT // S_HEADS
    s_outs = []
    for t in range(T):
        x, aw, am = x_all[t], adj_w[t], adj_m[t]
        h = x @ p['Ws']
        heads = []
        for hd in range(S_HEADS):
            hr = h[:, hd * C:(hd + 1) * C]
            al = (hr * p['attl'][hd]).sum(-1)
            ar = (hr * p['attr'][hd]).sum(-1)
            e = aw * (al[:, None] + ar[None, :])
            e = jnp.where(e > 0, e, NEG_SLOPE * e)
            e = jnp.where(am > 0, e, -1e9)
            coef = jax.nn.softmax(e, axis=0)
            heads.append(coef.T @ hr)
        out = jnp.concatenate(heads, -1)
        out = jnp.where(out > 0, out, jnp.exp(out) - 1.0)
        s_outs.append(out + x @ p['Wres'])
    ti = jnp.stack(s_outs, axis=1) + p['pos'][None]                      # [N, T, F]
    q, k, v = ti @ p['Wq'], ti @ p['Wk'], ti @ p['Wv']
    d = F_T // T_HEADS
    mask = jnp.tril(jnp.ones((T, T)))[None]
    heads = []
    for hd in range(T_HEADS):
        qh, kh, vh = (a[:, :, hd * d:(hd + 1) * d] for a in (q, k, v))
        s = jnp.einsum('ntd,nsd->nts', qh, kh) / (T ** 0.5)
        s = jnp.where(mask == 0, -(2.0 ** 32) + 1.0, s)
        heads.append(jnp.einsum('nts,nsd->ntd', jax.nn.softmax(s, -1), vh))
    out = jnp.concatenate(heads, -1)
    ff = jax.nn.relu(out @ p['Wl'] + p['bl'][0])
    return ff + out + ti


# ------------------------------------------------------------------ main
if __name__ == "__main__":
    key = jax.random.PRNGKey(0)
    ks = jax.random.split(key, 12)

    def xavier(k, shape):
        fan_in, fan_out = shape[0], shape[-1]
        return jax.random.normal(k, shape, jnp.float32) * (2.0 / (fan_in + fan_out)) ** 0.5

    params = {
        'Ws':   xavier(ks[0], (F_IN, S_OUT)),
        'attl': xavier(ks[1], (S_HEADS, S_OUT // S_HEADS)),
        'attr': xavier(ks[2], (S_HEADS, S_OUT // S_HEADS)),
        'Wres': xavier(ks[3], (F_IN, S_OUT)),
        'pos':  xavier(ks[4], (T, F_T)),
        'Wq':   xavier(ks[5], (F_T, F_T)),
        'Wk':   xavier(ks[6], (F_T, F_T)),
        'Wv':   xavier(ks[7], (F_T, F_T)),
        'Wl':   xavier(ks[8], (F_T, F_T)),
        'bl':   jnp.zeros((1, F_T), jnp.float32),
    }

    # per-snapshot node features and weighted adjacency (with self-loops)
    x_all = jax.random.normal(ks[9], (T, N, F_IN), jnp.float32)
    adj_m = (jax.random.uniform(ks[10], (T, N, N)) < 0.4).astype(jnp.float32)
    adj_m = jnp.maximum(adj_m, jnp.eye(N, dtype=jnp.float32)[None])      # self-loops
    adj_w = adj_m * jax.random.uniform(ks[11], (T, N, N), jnp.float32, 0.5, 1.5)

    out = dysat_forward(x_all, adj_w, adj_m, params)
    jax.block_until_ready(out)

    ref = dysat_ref(x_all, adj_w, adj_m, params)
    assert out.shape == (N, T, F_T)
    assert jnp.allclose(out, ref, atol=1e-3, rtol=1e-3), "mismatch vs reference"

    print("KERNEL_OK")
</pallas_src>

<mosaic_0001>
module attributes {stable_mosaic.version = 11 : i64} {
  func.func @dysat_kernel(%arg0: i32, %arg1: memref<128x8xf32, #tpu.memory_space<vmem>>, %arg2: memref<8x16x16xf32, #tpu.memory_space<vmem>>, %arg3: memref<8x16x16xf32, #tpu.memory_space<vmem>>, %arg4: memref<8x16xf32, #tpu.memory_space<vmem>>, %arg5: memref<8x16xf32, #tpu.memory_space<vmem>>, %arg6: memref<16x4xf32, #tpu.memory_space<vmem>>, %arg7: memref<16x4xf32, #tpu.memory_space<vmem>>, %arg8: memref<128x16xf32, #tpu.memory_space<vmem>>, %arg9: memref<128x128xf32, #tpu.memory_space<vmem>>, %arg10: memref<16x48xf32, #tpu.memory_space<vmem>>, %arg11: memref<16x16xf32, #tpu.memory_space<vmem>>, %arg12: memref<1x16xf32, #tpu.memory_space<vmem>>, %arg13: memref<128x16xf32, #tpu.memory_space<vmem>>) attributes {dimension_semantics = [#tpu.dimension_semantics<arbitrary>], iteration_bounds = array<i64: 1>, scalar_prefetch = 0 : i64, scratch_operands = 0 : i64, tpu.core_type = #tpu.core_type<tc>, window_params = [{pipeline_mode = #tpu.pipeline_mode<synchronous>, transform_indices = @transform_0, window_bounds = array<i64: 128, 8>}, {pipeline_mode = #tpu.pipeline_mode<synchronous>, transform_indices = @transform_1, window_bounds = array<i64: 8, 16, 16>}, {pipeline_mode = #tpu.pipeline_mode<synchronous>, transform_indices = @transform_2, window_bounds = array<i64: 8, 16, 16>}, {pipeline_mode = #tpu.pipeline_mode<synchronous>, transform_indices = @transform_3, window_bounds = array<i64: 8, 16>}, {pipeline_mode = #tpu.pipeline_mode<synchronous>, transform_indices = @transform_4, window_bounds = array<i64: 8, 16>}, {pipeline_mode = #tpu.pipeline_mode<synchronous>, transform_indices = @transform_5, window_bounds = array<i64: 16, 4>}, {pipeline_mode = #tpu.pipeline_mode<synchronous>, transform_indices = @transform_6, window_bounds = array<i64: 16, 4>}, {pipeline_mode = #tpu.pipeline_mode<synchronous>, transform_indices = @transform_7, window_bounds = array<i64: 128, 16>}, {pipeline_mode = #tpu.pipeline_mode<synchronous>, transform_indices = @transform_8, window_bounds = array<i64: 128, 128>}, {pipeline_mode = #tpu.pipeline_mode<synchronous>, transform_indices = @transform_9, window_bounds = array<i64: 16, 48>}, {pipeline_mode = #tpu.pipeline_mode<synchronous>, transform_indices = @transform_10, window_bounds = array<i64: 16, 16>}, {pipeline_mode = #tpu.pipeline_mode<synchronous>, transform_indices = @transform_11, window_bounds = array<i64: 1, 16>}, {pipeline_mode = #tpu.pipeline_mode<synchronous>, transform_indices = @transform_12, window_bounds = array<i64: 128, 16>}]} {
    %c0 = arith.constant 0 : index
    %c0_0 = arith.constant 0 : index
    %0 = vector.load %arg1[%c0, %c0_0] : memref<128x8xf32, #tpu.memory_space<vmem>>, vector<128x8xf32>
    %c0_1 = arith.constant 0 : index
    %c0_2 = arith.constant 0 : index
    %c0_3 = arith.constant 0 : index
    %1 = vector.load %arg2[%c0_1, %c0_2, %c0_3] : memref<8x16x16xf32, #tpu.memory_space<vmem>>, vector<8x16x16xf32>
    %c0_4 = arith.constant 0 : index
    %c0_5 = arith.constant 0 : index
    %c0_6 = arith.constant 0 : index
    %2 = vector.load %arg3[%c0_4, %c0_5, %c0_6] : memref<8x16x16xf32, #tpu.memory_space<vmem>>, vector<8x16x16xf32>
    %c0_7 = arith.constant 0 : index
    %c0_8 = arith.constant 0 : index
    %3 = vector.load %arg4[%c0_7, %c0_8] : memref<8x16xf32, #tpu.memory_space<vmem>>, vector<8x16xf32>
    %cst = arith.constant dense<0.000000e+00> : vector<128x16xf32>
    %4 = tpu.matmul %0, %3, %cst {dimension_numbers = #tpu.dot_dimension_numbers<[1], [0], [0], [1], [0, 0, 1, 1], [], []>} : vector<128x8xf32>, vector<8x16xf32>, vector<128x16xf32> -> vector<128x16xf32>
    %c0_9 = arith.constant 0 : index
    %c0_10 = arith.constant 0 : index
    %5 = vector.load %arg5[%c0_9, %c0_10] : memref<8x16xf32, #tpu.memory_space<vmem>>, vector<8x16xf32>
    %cst_11 = arith.constant dense<0.000000e+00> : vector<128x16xf32>
    %6 = tpu.matmul %0, %5, %cst_11 {dimension_numbers = #tpu.dot_dimension_numbers<[1], [0], [0], [1], [0, 0, 1, 1], [], []>} : vector<128x8xf32>, vector<8x16xf32>, vector<128x16xf32> -> vector<128x16xf32>
    %c0_12 = arith.constant 0 : index
    %c0_13 = arith.constant 0 : index
    %7 = vector.load %arg6[%c0_12, %c0_13] : memref<16x4xf32, #tpu.memory_space<vmem>>, vector<16x4xf32>
    %cst_14 = arith.constant dense<0.000000e+00> : vector<128x4xf32>
    %8 = tpu.matmul %4, %7, %cst_14 {dimension_numbers = #tpu.dot_dimension_numbers<[1], [0], [0], [1], [0, 0, 1, 1], [], []>} : vector<128x16xf32>, vector<16x4xf32>, vector<128x4xf32> -> vector<128x4xf32>
    %c0_15 = arith.constant 0 : index
    %c0_16 = arith.constant 0 : index
    %9 = vector.load %arg7[%c0_15, %c0_16] : memref<16x4xf32, #tpu.memory_space<vmem>>, vector<16x4xf32>
    %cst_17 = arith.constant dense<0.000000e+00> : vector<128x4xf32>
    %10 = tpu.matmul %4, %9, %cst_17 {dimension_numbers = #tpu.dot_dimension_numbers<[1], [0], [0], [1], [0, 0, 1, 1], [], []>} : vector<128x16xf32>, vector<16x4xf32>, vector<128x4xf32> -> vector<128x4xf32>
    %11 = vector.shape_cast %4 : vector<128x16xf32> to vector<8x16x16xf32>
    %12 = vector.shape_cast %6 : vector<128x16xf32> to vector<8x16x16xf32>
    %13 = vector.shape_cast %8 : vector<128x4xf32> to vector<8x16x4xf32>
    %14 = vector.shape_cast %10 : vector<128x4xf32> to vector<8x16x4xf32>
    %15 = tpu.iota {dimensions = array<i32: 0>} : vector<16x16xi32>
    %16 = tpu.iota {dimensions = array<i32: 1>} : vector<16x16xi32>
    %17 = arith.cmpi eq, %15, %16 : vector<16x16xi32>
    %18 = arith.extui %17 : vector<16x16xi1> to vector<16x16xi32>
    %19 = arith.sitofp %18 : vector<16x16xi32> to vector<16x16xf32>
    %20 = vector.shape_cast %19 : vector<16x16xf32> to vector<1x16x16xf32>
    %21 = tpu.iota {dimensions = array<i32: 1>} : vector<1x16xi32>
    %c0_i32 = arith.constant 0 : i32
    %22 = vector.broadcast %c0_i32 : i32 to vector<1x16xi32>
    %23 = arith.cmpi sge, %21, %22 : vector<1x16xi32>
    %c4_i32 = arith.constant 4 : i32
    %24 = vector.broadcast %c4_i32 : i32 to vector<1x16xi32>
    %25 = arith.cmpi slt, %21, %24 : vector<1x16xi32>
    %26 = arith.andi %23, %25 : vector<1x16xi1>
    %27 = arith.extui %26 : vector<1x16xi1> to vector<1x16xi32>
    %28 = arith.sitofp %27 : vector<1x16xi32> to vector<1x16xf32>
    %c4_i32_18 = arith.constant 4 : i32
    %29 = vector.broadcast %c4_i32_18 : i32 to vector<1x16xi32>
    %30 = arith.cmpi sge, %21, %29 : vector<1x16xi32>
    %c8_i32 = arith.constant 8 : i32
    %31 = vector.broadcast %c8_i32 : i32 to vector<1x16xi32>
    %32 = arith.cmpi slt, %21, %31 : vector<1x16xi32>
    %33 = arith.andi %30, %32 : vector<1x16xi1>
    %34 = arith.extui %33 : vector<1x16xi1> to vector<1x16xi32>
    %35 = arith.sitofp %34 : vector<1x16xi32> to vector<1x16xf32>
    %c8_i32_19 = arith.constant 8 : i32
    %36 = vector.broadcast %c8_i32_19 : i32 to vector<1x16xi32>
    %37 = arith.cmpi sge, %21, %36 : vector<1x16xi32>
    %c12_i32 = arith.constant 12 : i32
    %38 = vector.broadcast %c12_i32 : i32 to vector<1x16xi32>
    %39 = arith.cmpi slt, %21, %38 : vector<1x16xi32>
    %40 = arith.andi %37, %39 : vector<1x16xi1>
    %41 = arith.extui %40 : vector<1x16xi1> to vector<1x16xi32>
    %42 = arith.sitofp %41 : vector<1x16xi32> to vector<1x16xf32>
    %c12_i32_20 = arith.constant 12 : i32
    %43 = vector.broadcast %c12_i32_20 : i32 to vector<1x16xi32>
    %44 = arith.cmpi sge, %21, %43 : vector<1x16xi32>
    %c16_i32 = arith.constant 16 : i32
    %45 = vector.broadcast %c16_i32 : i32 to vector<1x16xi32>
    %46 = arith.cmpi slt, %21, %45 : vector<1x16xi32>
    %47 = arith.andi %44, %46 : vector<1x16xi1>
    %48 = arith.extui %47 : vector<1x16xi1> to vector<1x16xi32>
    %49 = arith.sitofp %48 : vector<1x16xi32> to vector<1x16xf32>
    %50 = tpu.iota {dimensions = array<i32: 1>} : vector<1x16xi32>
    %c0_i32_21 = arith.constant 0 : i32
    %51 = vector.broadcast %c0_i32_21 : i32 to vector<1x16xi32>
    %52 = arith.cmpi sge, %50, %51 : vector<1x16xi32>
    %c4_i32_22 = arith.constant 4 : i32
    %53 = vector.broadcast %c4_i32_22 : i32 to vector<1x16xi32>
    %54 = arith.cmpi slt, %50, %53 : vector<1x16xi32>
    %55 = arith.andi %52, %54 : vector<1x16xi1>
    %56 = arith.extui %55 : vector<1x16xi1> to vector<1x16xi32>
    %57 = arith.sitofp %56 : vector<1x16xi32> to vector<1x16xf32>
    %c4_i32_23 = arith.constant 4 : i32
    %58 = vector.broadcast %c4_i32_23 : i32 to vector<1x16xi32>
    %59 = arith.cmpi sge, %50, %58 : vector<1x16xi32>
    %c8_i32_24 = arith.constant 8 : i32
    %60 = vector.broadcast %c8_i32_24 : i32 to vector<1x16xi32>
    %61 = arith.cmpi slt, %50, %60 : vector<1x16xi32>
    %62 = arith.andi %59, %61 : vector<1x16xi1>
    %63 = arith.extui %62 : vector<1x16xi1> to vector<1x16xi32>
    %64 = arith.sitofp %63 : vector<1x16xi32> to vector<1x16xf32>
    %c8_i32_25 = arith.constant 8 : i32
    %65 = vector.broadcast %c8_i32_25 : i32 to vector<1x16xi32>
    %66 = arith.cmpi sge, %50, %65 : vector<1x16xi32>
    %c12_i32_26 = arith.constant 12 : i32
    %67 = vector.broadcast %c12_i32_26 : i32 to vector<1x16xi32>
    %68 = arith.cmpi slt, %50, %67 : vector<1x16xi32>
    %69 = arith.andi %66, %68 : vector<1x16xi1>
    %70 = arith.extui %69 : vector<1x16xi1> to vector<1x16xi32>
    %71 = arith.sitofp %70 : vector<1x16xi32> to vector<1x16xf32>
    %c12_i32_27 = arith.constant 12 : i32
    %72 = vector.broadcast %c12_i32_27 : i32 to vector<1x16xi32>
    %73 = arith.cmpi sge, %50, %72 : vector<1x16xi32>
    %c16_i32_28 = arith.constant 16 : i32
    %74 = vector.broadcast %c16_i32_28 : i32 to vector<1x16xi32>
    %75 = arith.cmpi slt, %50, %74 : vector<1x16xi32>
    %76 = arith.andi %73, %75 : vector<1x16xi1>
    %77 = arith.extui %76 : vector<1x16xi1> to vector<1x16xi32>
    %78 = arith.sitofp %77 : vector<1x16xi32> to vector<1x16xf32>
    %cst_29 = arith.constant 0.000000e+00 : f32
    %79 = vector.broadcast %cst_29 : f32 to vector<8x16x16xf32>
    %80 = vector.extract_strided_slice %14 {offsets = [0, 0, 0], sizes = [8, 16, 1], strides = [1, 1, 1]} : vector<8x16x4xf32> to vector<8x16x1xf32>
    %81 = vector.extract_strided_slice %13 {offsets = [0, 0, 0], sizes = [8, 16, 1], strides = [1, 1, 1]} : vector<8x16x4xf32> to vector<8x16x1xf32>
    %82 = vector.broadcast %20 : vector<1x16x16xf32> to vector<8x16x16xf32>
    %83 = vector.broadcast %81 : vector<8x16x1xf32> to vector<8x16x16xf32>
    %84 = arith.mulf %82, %83 : vector<8x16x16xf32>
    %cst_30 = arith.constant dense<0.000000e+00> : vector<8x16xf32>
    %85 = vector.multi_reduction <add>, %84, %cst_30 [1] : vector<8x16x16xf32> to vector<8x16xf32>
    %86 = vector.shape_cast %85 : vector<8x16xf32> to vector<8x1x16xf32>
    %87 = vector.broadcast %80 : vector<8x16x1xf32> to vector<8x16x16xf32>
    %88 = vector.broadcast %86 : vector<8x1x16xf32> to vector<8x16x16xf32>
    %89 = arith.addf %87, %88 : vector<8x16x16xf32>
    %90 = arith.mulf %1, %89 : vector<8x16x16xf32>
    %cst_31 = arith.constant 0.000000e+00 : f32
    %91 = vector.broadcast %cst_31 : f32 to vector<8x16x16xf32>
    %92 = arith.cmpf ogt, %90, %91 : vector<8x16x16xf32>
    %cst_32 = arith.constant 2.000000e-01 : f32
    %93 = vector.broadcast %cst_32 : f32 to vector<8x16x16xf32>
    %94 = arith.mulf %93, %90 : vector<8x16x16xf32>
    %95 = arith.select %92, %90, %94 : vector<8x16x16xi1>, vector<8x16x16xf32>
    %cst_33 = arith.constant 0.000000e+00 : f32
    %96 = vector.broadcast %cst_33 : f32 to vector<8x16x16xf32>
    %97 = arith.cmpf ogt, %2, %96 : vector<8x16x16xf32>
    %cst_34 = arith.constant -1.000000e+09 : f32
    %98 = vector.broadcast %cst_34 : f32 to vector<8x16x16xf32>
    %99 = arith.select %97, %95, %98 : vector<8x16x16xi1>, vector<8x16x16xf32>
    %cst_35 = arith.constant dense<0xFF800000> : vector<8x16xf32>
    %100 = vector.multi_reduction <maximumf>, %99, %cst_35 [2] : vector<8x16x16xf32> to vector<8x16xf32>
    %101 = vector.shape_cast %100 : vector<8x16xf32> to vector<8x16x1xf32>
    %102 = vector.broadcast %101 : vector<8x16x1xf32> to vector<8x16x16xf32>
    %103 = arith.subf %99, %102 : vector<8x16x16xf32>
    %104 = math.exp %103 : vector<8x16x16xf32>
    %cst_36 = arith.constant dense<0.000000e+00> : vector<8x16xf32>
    %105 = vector.multi_reduction <add>, %104, %cst_36 [2] : vector<8x16x16xf32> to vector<8x16xf32>
    %106 = vector.shape_cast %105 : vector<8x16xf32> to vector<8x16x1xf32>
    %107 = tpu.reciprocal %106 : vector<8x16x1xf32> -> vector<8x16x1xf32>
    %108 = vector.broadcast %107 : vector<8x16x1xf32> to vector<8x16x16xf32>
    %109 = arith.mulf %104, %108 : vector<8x16x16xf32>
    %110 = vector.shape_cast %28 : vector<1x16xf32> to vector<1x1x16xf32>
    %111 = vector.broadcast %110 : vector<1x1x16xf32> to vector<8x16x16xf32>
    %112 = arith.mulf %11, %111 : vector<8x16x16xf32>
    "tpu.trace_start"() <{level = 10 : i32, message = "tds,tsc->tdc"}> : () -> ()
    %cst_37 = arith.constant dense<0.000000e+00> : vector<8x16x16xf32>
    %113 = tpu.matmul %109, %112, %cst_37 {dimension_numbers = #tpu.dot_dimension_numbers<[2], [1], [1], [2], [0, 0, 0, 1, 1, 2], [0], [0]>} : vector<8x16x16xf32>, vector<8x16x16xf32>, vector<8x16x16xf32> -> vector<8x16x16xf32>
    "tpu.trace_stop"() : () -> ()
    %114 = arith.addf %79, %113 : vector<8x16x16xf32>
    %115 = vector.extract_strided_slice %14 {offsets = [0, 0, 1], sizes = [8, 16, 1], strides = [1, 1, 1]} : vector<8x16x4xf32> to vector<8x16x1xf32>
    %116 = vector.extract_strided_slice %13 {offsets = [0, 0, 1], sizes = [8, 16, 1], strides = [1, 1, 1]} : vector<8x16x4xf32> to vector<8x16x1xf32>
    %117 = vector.broadcast %20 : vector<1x16x16xf32> to vector<8x16x16xf32>
    %118 = vector.broadcast %116 : vector<8x16x1xf32> to vector<8x16x16xf32>
    %119 = arith.mulf %117, %118 : vector<8x16x16xf32>
    %cst_38 = arith.constant dense<0.000000e+00> : vector<8x16xf32>
    %120 = vector.multi_reduction <add>, %119, %cst_38 [1] : vector<8x16x16xf32> to vector<8x16xf32>
    %121 = vector.shape_cast %120 : vector<8x16xf32> to vector<8x1x16xf32>
    %122 = vector.broadcast %115 : vector<8x16x1xf32> to vector<8x16x16xf32>
    %123 = vector.broadcast %121 : vector<8x1x16xf32> to vector<8x16x16xf32>
    %124 = arith.addf %122, %123 : vector<8x16x16xf32>
    %125 = arith.mulf %1, %124 : vector<8x16x16xf32>
    %cst_39 = arith.constant 0.000000e+00 : f32
    %126 = vector.broadcast %cst_39 : f32 to vector<8x16x16xf32>
    %127 = arith.cmpf ogt, %125, %126 : vector<8x16x16xf32>
    %cst_40 = arith.constant 2.000000e-01 : f32
    %128 = vector.broadcast %cst_40 : f32 to vector<8x16x16xf32>
    %129 = arith.mulf %128, %125 : vector<8x16x16xf32>
    %130 = arith.select %127, %125, %129 : vector<8x16x16xi1>, vector<8x16x16xf32>
    %cst_41 = arith.constant 0.000000e+00 : f32
    %131 = vector.broadcast %cst_41 : f32 to vector<8x16x16xf32>
    %132 = arith.cmpf ogt, %2, %131 : vector<8x16x16xf32>
    %cst_42 = arith.constant -1.000000e+09 : f32
    %133 = vector.broadcast %cst_42 : f32 to vector<8x16x16xf32>
    %134 = arith.select %132, %130, %133 : vector<8x16x16xi1>, vector<8x16x16xf32>
    %cst_43 = arith.constant dense<0xFF800000> : vector<8x16xf32>
    %135 = vector.multi_reduction <maximumf>, %134, %cst_43 [2] : vector<8x16x16xf32> to vector<8x16xf32>
    %136 = vector.shape_cast %135 : vector<8x16xf32> to vector<8x16x1xf32>
    %137 = vector.broadcast %136 : vector<8x16x1xf32> to vector<8x16x16xf32>
    %138 = arith.subf %134, %137 : vector<8x16x16xf32>
    %139 = math.exp %138 : vector<8x16x16xf32>
    %cst_44 = arith.constant dense<0.000000e+00> : vector<8x16xf32>
    %140 = vector.multi_reduction <add>, %139, %cst_44 [2] : vector<8x16x16xf32> to vector<8x16xf32>
    %141 = vector.shape_cast %140 : vector<8x16xf32> to vector<8x16x1xf32>
    %142 = tpu.reciprocal %141 : vector<8x16x1xf32> -> vector<8x16x1xf32>
    %143 = vector.broadcast %142 : vector<8x16x1xf32> to vector<8x16x16xf32>
    %144 = arith.mulf %139, %143 : vector<8x16x16xf32>
    %145 = vector.shape_cast %35 : vector<1x16xf32> to vector<1x1x16xf32>
    %146 = vector.broadcast %145 : vector<1x1x16xf32> to vector<8x16x16xf32>
    %147 = arith.mulf %11, %146 : vector<8x16x16xf32>
    "tpu.trace_start"() <{level = 10 : i32, message = "tds,tsc->tdc"}> : () -> ()
    %cst_45 = arith.constant dense<0.000000e+00> : vector<8x16x16xf32>
    %148 = tpu.matmul %144, %147, %cst_45 {dimension_numbers = #tpu.dot_dimension_numbers<[2], [1], [1], [2], [0, 0, 0, 1, 1, 2], [0], [0]>} : vector<8x16x16xf32>, vector<8x16x16xf32>, vector<8x16x16xf32> -> vector<8x16x16xf32>
    "tpu.trace_stop"() : () -> ()
    %149 = arith.addf %114, %148 : vector<8x16x16xf32>
    %150 = vector.extract_strided_slice %14 {offsets = [0, 0, 2], sizes = [8, 16, 1], strides = [1, 1, 1]} : vector<8x16x4xf32> to vector<8x16x1xf32>
    %151 = vector.extract_strided_slice %13 {offsets = [0, 0, 2], sizes = [8, 16, 1], strides = [1, 1, 1]} : vector<8x16x4xf32> to vector<8x16x1xf32>
    %152 = vector.broadcast %20 : vector<1x16x16xf32> to vector<8x16x16xf32>
    %153 = vector.broadcast %151 : vector<8x16x1xf32> to vector<8x16x16xf32>
    %154 = arith.mulf %152, %153 : vector<8x16x16xf32>
    %cst_46 = arith.constant dense<0.000000e+00> : vector<8x16xf32>
    %155 = vector.multi_reduction <add>, %154, %cst_46 [1] : vector<8x16x16xf32> to vector<8x16xf32>
    %156 = vector.shape_cast %155 : vector<8x16xf32> to vector<8x1x16xf32>
    %157 = vector.broadcast %150 : vector<8x16x1xf32> to vector<8x16x16xf32>
    %158 = vector.broadcast %156 : vector<8x1x16xf32> to vector<8x16x16xf32>
    %159 = arith.addf %157, %158 : vector<8x16x16xf32>
    %160 = arith.mulf %1, %159 : vector<8x16x16xf32>
    %cst_47 = arith.constant 0.000000e+00 : f32
    %161 = vector.broadcast %cst_47 : f32 to vector<8x16x16xf32>
    %162 = arith.cmpf ogt, %160, %161 : vector<8x16x16xf32>
    %cst_48 = arith.constant 2.000000e-01 : f32
    %163 = vector.broadcast %cst_48 : f32 to vector<8x16x16xf32>
    %164 = arith.mulf %163, %160 : vector<8x16x16xf32>
    %165 = arith.select %162, %160, %164 : vector<8x16x16xi1>, vector<8x16x16xf32>
    %cst_49 = arith.constant 0.000000e+00 : f32
    %166 = vector.broadcast %cst_49 : f32 to vector<8x16x16xf32>
    %167 = arith.cmpf ogt, %2, %166 : vector<8x16x16xf32>
    %cst_50 = arith.constant -1.000000e+09 : f32
    %168 = vector.broadcast %cst_50 : f32 to vector<8x16x16xf32>
    %169 = arith.select %167, %165, %168 : vector<8x16x16xi1>, vector<8x16x16xf32>
    %cst_51 = arith.constant dense<0xFF800000> : vector<8x16xf32>
    %170 = vector.multi_reduction <maximumf>, %169, %cst_51 [2] : vector<8x16x16xf32> to vector<8x16xf32>
    %171 = vector.shape_cast %170 : vector<8x16xf32> to vector<8x16x1xf32>
    %172 = vector.broadcast %171 : vector<8x16x1xf32> to vector<8x16x16xf32>
    %173 = arith.subf %169, %172 : vector<8x16x16xf32>
    %174 = math.exp %173 : vector<8x16x16xf32>
    %cst_52 = arith.constant dense<0.000000e+00> : vector<8x16xf32>
    %175 = vector.multi_reduction <add>, %174, %cst_52 [2] : vector<8x16x16xf32> to vector<8x16xf32>
    %176 = vector.shape_cast %175 : vector<8x16xf32> to vector<8x16x1xf32>
    %177 = tpu.reciprocal %176 : vector<8x16x1xf32> -> vector<8x16x1xf32>
    %178 = vector.broadcast %177 : vector<8x16x1xf32> to vector<8x16x16xf32>
    %179 = arith.mulf %174, %178 : vector<8x16x16xf32>
    %180 = vector.shape_cast %42 : vector<1x16xf32> to vector<1x1x16xf32>
    %181 = vector.broadcast %180 : vector<1x1x16xf32> to vector<8x16x16xf32>
    %182 = arith.mulf %11, %181 : vector<8x16x16xf32>
    "tpu.trace_start"() <{level = 10 : i32, message = "tds,tsc->tdc"}> : () -> ()
    %cst_53 = arith.constant dense<0.000000e+00> : vector<8x16x16xf32>
    %183 = tpu.matmul %179, %182, %cst_53 {dimension_numbers = #tpu.dot_dimension_numbers<[2], [1], [1], [2], [0, 0, 0, 1, 1, 2], [0], [0]>} : vector<8x16x16xf32>, vector<8x16x16xf32>, vector<8x16x16xf32> -> vector<8x16x16xf32>
    "tpu.trace_stop"() : () -> ()
    %184 = arith.addf %149, %183 : vector<8x16x16xf32>
    %185 = vector.extract_strided_slice %14 {offsets = [0, 0, 3], sizes = [8, 16, 1], strides = [1, 1, 1]} : vector<8x16x4xf32> to vector<8x16x1xf32>
    %186 = vector.extract_strided_slice %13 {offsets = [0, 0, 3], sizes = [8, 16, 1], strides = [1, 1, 1]} : vector<8x16x4xf32> to vector<8x16x1xf32>
    %187 = vector.broadcast %20 : vector<1x16x16xf32> to vector<8x16x16xf32>
    %188 = vector.broadcast %186 : vector<8x16x1xf32> to vector<8x16x16xf32>
    %189 = arith.mulf %187, %188 : vector<8x16x16xf32>
    %cst_54 = arith.constant dense<0.000000e+00> : vector<8x16xf32>
    %190 = vector.multi_reduction <add>, %189, %cst_54 [1] : vector<8x16x16xf32> to vector<8x16xf32>
    %191 = vector.shape_cast %190 : vector<8x16xf32> to vector<8x1x16xf32>
    %192 = vector.broadcast %185 : vector<8x16x1xf32> to vector<8x16x16xf32>
    %193 = vector.broadcast %191 : vector<8x1x16xf32> to vector<8x16x16xf32>
    %194 = arith.addf %192, %193 : vector<8x16x16xf32>
    %195 = arith.mulf %1, %194 : vector<8x16x16xf32>
    %cst_55 = arith.constant 0.000000e+00 : f32
    %196 = vector.broadcast %cst_55 : f32 to vector<8x16x16xf32>
    %197 = arith.cmpf ogt, %195, %196 : vector<8x16x16xf32>
    %cst_56 = arith.constant 2.000000e-01 : f32
    %198 = vector.broadcast %cst_56 : f32 to vector<8x16x16xf32>
    %199 = arith.mulf %198, %195 : vector<8x16x16xf32>
    %200 = arith.select %197, %195, %199 : vector<8x16x16xi1>, vector<8x16x16xf32>
    %cst_57 = arith.constant 0.000000e+00 : f32
    %201 = vector.broadcast %cst_57 : f32 to vector<8x16x16xf32>
    %202 = arith.cmpf ogt, %2, %201 : vector<8x16x16xf32>
    %cst_58 = arith.constant -1.000000e+09 : f32
    %203 = vector.broadcast %cst_58 : f32 to vector<8x16x16xf32>
    %204 = arith.select %202, %200, %203 : vector<8x16x16xi1>, vector<8x16x16xf32>
    %cst_59 = arith.constant dense<0xFF800000> : vector<8x16xf32>
    %205 = vector.multi_reduction <maximumf>, %204, %cst_59 [2] : vector<8x16x16xf32> to vector<8x16xf32>
    %206 = vector.shape_cast %205 : vector<8x16xf32> to vector<8x16x1xf32>
    %207 = vector.broadcast %206 : vector<8x16x1xf32> to vector<8x16x16xf32>
    %208 = arith.subf %204, %207 : vector<8x16x16xf32>
    %209 = math.exp %208 : vector<8x16x16xf32>
    %cst_60 = arith.constant dense<0.000000e+00> : vector<8x16xf32>
    %210 = vector.multi_reduction <add>, %209, %cst_60 [2] : vector<8x16x16xf32> to vector<8x16xf32>
    %211 = vector.shape_cast %210 : vector<8x16xf32> to vector<8x16x1xf32>
    %212 = tpu.reciprocal %211 : vector<8x16x1xf32> -> vector<8x16x1xf32>
    %213 = vector.broadcast %212 : vector<8x16x1xf32> to vector<8x16x16xf32>
    %214 = arith.mulf %209, %213 : vector<8x16x16xf32>
    %215 = vector.shape_cast %49 : vector<1x16xf32> to vector<1x1x16xf32>
    %216 = vector.broadcast %215 : vector<1x1x16xf32> to vector<8x16x16xf32>
    %217 = arith.mulf %11, %216 : vector<8x16x16xf32>
    "tpu.trace_start"() <{level = 10 : i32, message = "tds,tsc->tdc"}> : () -> ()
    %cst_61 = arith.constant dense<0.000000e+00> : vector<8x16x16xf32>
    %218 = tpu.matmul %214, %217, %cst_61 {dimension_numbers = #tpu.dot_dimension_numbers<[2], [1], [1], [2], [0, 0, 0, 1, 1, 2], [0], [0]>} : vector<8x16x16xf32>, vector<8x16x16xf32>, vector<8x16x16xf32> -> vector<8x16x16xf32>
    "tpu.trace_stop"() : () -> ()
    %219 = arith.addf %184, %218 : vector<8x16x16xf32>
    %cst_62 = arith.constant 0.000000e+00 : f32
    %220 = vector.broadcast %cst_62 : f32 to vector<8x16x16xf32>
    %221 = arith.cmpf ogt, %219, %220 : vector<8x16x16xf32>
    %222 = math.exp %219 : vector<8x16x16xf32>
    %cst_63 = arith.constant 1.000000e+00 : f32
    %223 = vector.broadcast %cst_63 : f32 to vector<8x16x16xf32>
    %224 = arith.subf %222, %223 : vector<8x16x16xf32>
    %225 = arith.select %221, %219, %224 : vector<8x16x16xi1>, vector<8x16x16xf32>
    %226 = arith.addf %225, %12 : vector<8x16x16xf32>
    %227 = vector.shape_cast %226 : vector<8x16x16xf32> to vector<128x16xf32>
    %c0_64 = arith.constant 0 : index
    %c0_65 = arith.constant 0 : index
    %228 = vector.load %arg8[%c0_64, %c0_65] : memref<128x16xf32, #tpu.memory_space<vmem>>, vector<128x16xf32>
    %229 = arith.addf %227, %228 : vector<128x16xf32>
    %c0_66 = arith.constant 0 : index
    %c0_67 = arith.constant 0 : index
    %230 = vector.load %arg9[%c0_66, %c0_67] : memref<128x128xf32, #tpu.memory_space<vmem>>, vector<128x128xf32>
    %231 = arith.truncf %229 : vector<128x16xf32> to vector<128x16xbf16>
    %232 = arith.extf %231 : vector<128x16xbf16> to vector<128x16xf32>
    %233 = arith.subf %229, %232 : vector<128x16xf32>
    %cst_68 = arith.constant dense<0.000000e+00> : vector<128x16xf32>
    %234 = tpu.matmul %230, %232, %cst_68 {dimension_numbers = #tpu.dot_dimension_numbers<[1], [0], [0], [1], [0, 0, 1, 1], [], []>} : vector<128x128xf32>, vector<128x16xf32>, vector<128x16xf32> -> vector<128x16xf32>
    %cst_69 = arith.constant dense<0.000000e+00> : vector<128x16xf32>
    %235 = tpu.matmul %230, %233, %cst_69 {dimension_numbers = #tpu.dot_dimension_numbers<[1], [0], [0], [1], [0, 0, 1, 1], [], []>} : vector<128x128xf32>, vector<128x16xf32>, vector<128x16xf32> -> vector<128x16xf32>
    %236 = arith.addf %234, %235 : vector<128x16xf32>
    %c0_70 = arith.constant 0 : index
    %c0_71 = arith.constant 0 : index
    %237 = vector.load %arg10[%c0_70, %c0_71] : memref<16x48xf32, #tpu.memory_space<vmem>>, vector<16x48xf32>
    %cst_72 = arith.constant dense<0.000000e+00> : vector<128x48xf32>
    %238 = tpu.matmul %236, %237, %cst_72 {dimension_numbers = #tpu.dot_dimension_numbers<[1], [0], [0], [1], [0, 0, 1, 1], [], []>} : vector<128x16xf32>, vector<16x48xf32>, vector<128x48xf32> -> vector<128x48xf32>
    %239 = vector.extract_strided_slice %238 {offsets = [0, 0], sizes = [128, 16], strides = [1, 1]} : vector<128x48xf32> to vector<128x16xf32>
    %240 = vector.shape_cast %239 : vector<128x16xf32> to vector<16x8x16xf32>
    %241 = vector.extract_strided_slice %238 {offsets = [0, 16], sizes = [128, 16], strides = [1, 1]} : vector<128x48xf32> to vector<128x16xf32>
    %242 = vector.shape_cast %241 : vector<128x16xf32> to vector<16x8x16xf32>
    %243 = vector.extract_strided_slice %238 {offsets = [0, 32], sizes = [128, 16], strides = [1, 1]} : vector<128x48xf32> to vector<128x16xf32>
    %244 = vector.shape_cast %243 : vector<128x16xf32> to vector<16x8x16xf32>
    %245 = tpu.iota {dimensions = array<i32: 0>} : vector<8x8xi32>
    %246 = tpu.iota {dimensions = array<i32: 1>} : vector<8x8xi32>
    %247 = arith.cmpi sge, %245, %246 : vector<8x8xi32>
    %248 = vector.shape_cast %247 : vector<8x8xi1> to vector<1x8x8xi1>
    %cst_73 = arith.constant 0.000000e+00 : f32
    %249 = vector.broadcast %cst_73 : f32 to vector<16x8x16xf32>
    %250 = vector.shape_cast %57 : vector<1x16xf32> to vector<1x1x16xf32>
    %251 = vector.broadcast %250 : vector<1x1x16xf32> to vector<16x8x16xf32>
    %252 = arith.mulf %242, %251 : vector<16x8x16xf32>
    %253 = vector.shape_cast %57 : vector<1x16xf32> to vector<1x1x16xf32>
    %254 = vector.broadcast %253 : vector<1x1x16xf32> to vector<16x8x16xf32>
    %255 = arith.mulf %244, %254 : vector<16x8x16xf32>
    "tpu.trace_start"() <{level = 10 : i32, message = "ntf,nsf->nts"}> : () -> ()
    %cst_74 = arith.constant dense<0.000000e+00> : vector<16x8x8xf32>
    %256 = tpu.matmul %240, %252, %cst_74 {dimension_numbers = #tpu.dot_dimension_numbers<[2], [2], [1], [1], [0, 0, 0, 1, 1, 1], [0], [0]>} : vector<16x8x16xf32>, vector<16x8x16xf32>, vector<16x8x8xf32> -> vector<16x8x8xf32>
    "tpu.trace_stop"() : () -> ()
    %cst_75 = arith.constant 0.353553385 : f32
    %257 = vector.broadcast %cst_75 : f32 to vector<16x8x8xf32>
    %258 = arith.mulf %256, %257 : vector<16x8x8xf32>
    %cst_76 = arith.constant -4.2949673E+9 : f32
    %259 = vector.shape_cast %248 : vector<1x8x8xi1> to vector<1x8x8xi1>
    %260 = vector.broadcast %259 : vector<1x8x8xi1> to vector<16x8x8xi1>
    %261 = vector.broadcast %cst_76 : f32 to vector<16x8x8xf32>
    %262 = arith.select %260, %258, %261 : vector<16x8x8xi1>, vector<16x8x8xf32>
    %cst_77 = arith.constant dense<0xFF800000> : vector<16x8xf32>
    %263 = vector.multi_reduction <maximumf>, %262, %cst_77 [2] : vector<16x8x8xf32> to vector<16x8xf32>
    %264 = vector.shape_cast %263 : vector<16x8xf32> to vector<16x8x1xf32>
    %265 = vector.broadcast %264 : vector<16x8x1xf32> to vector<16x8x8xf32>
    %266 = arith.subf %262, %265 : vector<16x8x8xf32>
    %267 = math.exp %266 : vector<16x8x8xf32>
    %cst_78 = arith.constant dense<0.000000e+00> : vector<16x8xf32>
    %268 = vector.multi_reduction <add>, %267, %cst_78 [2] : vector<16x8x8xf32> to vector<16x8xf32>
    %269 = vector.shape_cast %268 : vector<16x8xf32> to vector<16x8x1xf32>
    %270 = tpu.reciprocal %269 : vector<16x8x1xf32> -> vector<16x8x1xf32>
    %271 = vector.broadcast %270 : vector<16x8x1xf32> to vector<16x8x8xf32>
    %272 = arith.mulf %267, %271 : vector<16x8x8xf32>
    "tpu.trace_start"() <{level = 10 : i32, message = "nts,nsf->ntf"}> : () -> ()
    %cst_79 = arith.constant dense<0.000000e+00> : vector<16x8x16xf32>
    %273 = tpu.matmul %272, %255, %cst_79 {dimension_numbers = #tpu.dot_dimension_numbers<[2], [1], [1], [2], [0, 0, 0, 1, 1, 2], [0], [0]>} : vector<16x8x8xf32>, vector<16x8x16xf32>, vector<16x8x16xf32> -> vector<16x8x16xf32>
    "tpu.trace_stop"() : () -> ()
    %274 = arith.addf %249, %273 : vector<16x8x16xf32>
    %275 = vector.shape_cast %64 : vector<1x16xf32> to vector<1x1x16xf32>
    %276 = vector.broadcast %275 : vector<1x1x16xf32> to vector<16x8x16xf32>
    %277 = arith.mulf %242, %276 : vector<16x8x16xf32>
    %278 = vector.shape_cast %64 : vector<1x16xf32> to vector<1x1x16xf32>
    %279 = vector.broadcast %278 : vector<1x1x16xf32> to vector<16x8x16xf32>
    %280 = arith.mulf %244, %279 : vector<16x8x16xf32>
    "tpu.trace_start"() <{level = 10 : i32, message = "ntf,nsf->nts"}> : () -> ()
    %cst_80 = arith.constant dense<0.000000e+00> : vector<16x8x8xf32>
    %281 = tpu.matmul %240, %277, %cst_80 {dimension_numbers = #tpu.dot_dimension_numbers<[2], [2], [1], [1], [0, 0, 0, 1, 1, 1], [0], [0]>} : vector<16x8x16xf32>, vector<16x8x16xf32>, vector<16x8x8xf32> -> vector<16x8x8xf32>
    "tpu.trace_stop"() : () -> ()
    %cst_81 = arith.constant 0.353553385 : f32
    %282 = vector.broadcast %cst_81 : f32 to vector<16x8x8xf32>
    %283 = arith.mulf %281, %282 : vector<16x8x8xf32>
    %cst_82 = arith.constant -4.2949673E+9 : f32
    %284 = vector.shape_cast %248 : vector<1x8x8xi1> to vector<1x8x8xi1>
    %285 = vector.broadcast %284 : vector<1x8x8xi1> to vector<16x8x8xi1>
    %286 = vector.broadcast %cst_82 : f32 to vector<16x8x8xf32>
    %287 = arith.select %285, %283, %286 : vector<16x8x8xi1>, vector<16x8x8xf32>
    %cst_83 = arith.constant dense<0xFF800000> : vector<16x8xf32>
    %288 = vector.multi_reduction <maximumf>, %287, %cst_83 [2] : vector<16x8x8xf32> to vector<16x8xf32>
    %289 = vector.shape_cast %288 : vector<16x8xf32> to vector<16x8x1xf32>
    %290 = vector.broadcast %289 : vector<16x8x1xf32> to vector<16x8x8xf32>
    %291 = arith.subf %287, %290 : vector<16x8x8xf32>
    %292 = math.exp %291 : vector<16x8x8xf32>
    %cst_84 = arith.constant dense<0.000000e+00> : vector<16x8xf32>
    %293 = vector.multi_reduction <add>, %292, %cst_84 [2] : vector<16x8x8xf32> to vector<16x8xf32>
    %294 = vector.shape_cast %293 : vector<16x8xf32> to vector<16x8x1xf32>
    %295 = tpu.reciprocal %294 : vector<16x8x1xf32> -> vector<16x8x1xf32>
    %296 = vector.broadcast %295 : vector<16x8x1xf32> to vector<16x8x8xf32>
    %297 = arith.mulf %292, %296 : vector<16x8x8xf32>
    "tpu.trace_start"() <{level = 10 : i32, message = "nts,nsf->ntf"}> : () -> ()
    %cst_85 = arith.constant dense<0.000000e+00> : vector<16x8x16xf32>
    %298 = tpu.matmul %297, %280, %cst_85 {dimension_numbers = #tpu.dot_dimension_numbers<[2], [1], [1], [2], [0, 0, 0, 1, 1, 2], [0], [0]>} : vector<16x8x8xf32>, vector<16x8x16xf32>, vector<16x8x16xf32> -> vector<16x8x16xf32>
    "tpu.trace_stop"() : () -> ()
    %299 = arith.addf %274, %298 : vector<16x8x16xf32>
    %300 = vector.shape_cast %71 : vector<1x16xf32> to vector<1x1x16xf32>
    %301 = vector.broadcast %300 : vector<1x1x16xf32> to vector<16x8x16xf32>
    %302 = arith.mulf %242, %301 : vector<16x8x16xf32>
    %303 = vector.shape_cast %71 : vector<1x16xf32> to vector<1x1x16xf32>
    %304 = vector.broadcast %303 : vector<1x1x16xf32> to vector<16x8x16xf32>
    %305 = arith.mulf %244, %304 : vector<16x8x16xf32>
    "tpu.trace_start"() <{level = 10 : i32, message = "ntf,nsf->nts"}> : () -> ()
    %cst_86 = arith.constant dense<0.000000e+00> : vector<16x8x8xf32>
    %306 = tpu.matmul %240, %302, %cst_86 {dimension_numbers = #tpu.dot_dimension_numbers<[2], [2], [1], [1], [0, 0, 0, 1, 1, 1], [0], [0]>} : vector<16x8x16xf32>, vector<16x8x16xf32>, vector<16x8x8xf32> -> vector<16x8x8xf32>
    "tpu.trace_stop"() : () -> ()
    %cst_87 = arith.constant 0.353553385 : f32
    %307 = vector.broadcast %cst_87 : f32 to vector<16x8x8xf32>
    %308 = arith.mulf %306, %307 : vector<16x8x8xf32>
    %cst_88 = arith.constant -4.2949673E+9 : f32
    %309 = vector.shape_cast %248 : vector<1x8x8xi1> to vector<1x8x8xi1>
    %310 = vector.broadcast %309 : vector<1x8x8xi1> to vector<16x8x8xi1>
    %311 = vector.broadcast %cst_88 : f32 to vector<16x8x8xf32>
    %312 = arith.select %310, %308, %311 : vector<16x8x8xi1>, vector<16x8x8xf32>
    %cst_89 = arith.constant dense<0xFF800000> : vector<16x8xf32>
    %313 = vector.multi_reduction <maximumf>, %312, %cst_89 [2] : vector<16x8x8xf32> to vector<16x8xf32>
    %314 = vector.shape_cast %313 : vector<16x8xf32> to vector<16x8x1xf32>
    %315 = vector.broadcast %314 : vector<16x8x1xf32> to vector<16x8x8xf32>
    %316 = arith.subf %312, %315 : vector<16x8x8xf32>
    %317 = math.exp %316 : vector<16x8x8xf32>
    %cst_90 = arith.constant dense<0.000000e+00> : vector<16x8xf32>
    %318 = vector.multi_reduction <add>, %317, %cst_90 [2] : vector<16x8x8xf32> to vector<16x8xf32>
    %319 = vector.shape_cast %318 : vector<16x8xf32> to vector<16x8x1xf32>
    %320 = tpu.reciprocal %319 : vector<16x8x1xf32> -> vector<16x8x1xf32>
    %321 = vector.broadcast %320 : vector<16x8x1xf32> to vector<16x8x8xf32>
    %322 = arith.mulf %317, %321 : vector<16x8x8xf32>
    "tpu.trace_start"() <{level = 10 : i32, message = "nts,nsf->ntf"}> : () -> ()
    %cst_91 = arith.constant dense<0.000000e+00> : vector<16x8x16xf32>
    %323 = tpu.matmul %322, %305, %cst_91 {dimension_numbers = #tpu.dot_dimension_numbers<[2], [1], [1], [2], [0, 0, 0, 1, 1, 2], [0], [0]>} : vector<16x8x8xf32>, vector<16x8x16xf32>, vector<16x8x16xf32> -> vector<16x8x16xf32>
    "tpu.trace_stop"() : () -> ()
    %324 = arith.addf %299, %323 : vector<16x8x16xf32>
    %325 = vector.shape_cast %78 : vector<1x16xf32> to vector<1x1x16xf32>
    %326 = vector.broadcast %325 : vector<1x1x16xf32> to vector<16x8x16xf32>
    %327 = arith.mulf %242, %326 : vector<16x8x16xf32>
    %328 = vector.shape_cast %78 : vector<1x16xf32> to vector<1x1x16xf32>
    %329 = vector.broadcast %328 : vector<1x1x16xf32> to vector<16x8x16xf32>
    %330 = arith.mulf %244, %329 : vector<16x8x16xf32>
    "tpu.trace_start"() <{level = 10 : i32, message = "ntf,nsf->nts"}> : () -> ()
    %cst_92 = arith.constant dense<0.000000e+00> : vector<16x8x8xf32>
    %331 = tpu.matmul %240, %327, %cst_92 {dimension_numbers = #tpu.dot_dimension_numbers<[2], [2], [1], [1], [0, 0, 0, 1, 1, 1], [0], [0]>} : vector<16x8x16xf32>, vector<16x8x16xf32>, vector<16x8x8xf32> -> vector<16x8x8xf32>
    "tpu.trace_stop"() : () -> ()
    %cst_93 = arith.constant 0.353553385 : f32
    %332 = vector.broadcast %cst_93 : f32 to vector<16x8x8xf32>
    %333 = arith.mulf %331, %332 : vector<16x8x8xf32>
    %cst_94 = arith.constant -4.2949673E+9 : f32
    %334 = vector.shape_cast %248 : vector<1x8x8xi1> to vector<1x8x8xi1>
    %335 = vector.broadcast %334 : vector<1x8x8xi1> to vector<16x8x8xi1>
    %336 = vector.broadcast %cst_94 : f32 to vector<16x8x8xf32>
    %337 = arith.select %335, %333, %336 : vector<16x8x8xi1>, vector<16x8x8xf32>
    %cst_95 = arith.constant dense<0xFF800000> : vector<16x8xf32>
    %338 = vector.multi_reduction <maximumf>, %337, %cst_95 [2] : vector<16x8x8xf32> to vector<16x8xf32>
    %339 = vector.shape_cast %338 : vector<16x8xf32> to vector<16x8x1xf32>
    %340 = vector.broadcast %339 : vector<16x8x1xf32> to vector<16x8x8xf32>
    %341 = arith.subf %337, %340 : vector<16x8x8xf32>
    %342 = math.exp %341 : vector<16x8x8xf32>
    %cst_96 = arith.constant dense<0.000000e+00> : vector<16x8xf32>
    %343 = vector.multi_reduction <add>, %342, %cst_96 [2] : vector<16x8x8xf32> to vector<16x8xf32>
    %344 = vector.shape_cast %343 : vector<16x8xf32> to vector<16x8x1xf32>
    %345 = tpu.reciprocal %344 : vector<16x8x1xf32> -> vector<16x8x1xf32>
    %346 = vector.broadcast %345 : vector<16x8x1xf32> to vector<16x8x8xf32>
    %347 = arith.mulf %342, %346 : vector<16x8x8xf32>
    "tpu.trace_start"() <{level = 10 : i32, message = "nts,nsf->ntf"}> : () -> ()
    %cst_97 = arith.constant dense<0.000000e+00> : vector<16x8x16xf32>
    %348 = tpu.matmul %347, %330, %cst_97 {dimension_numbers = #tpu.dot_dimension_numbers<[2], [1], [1], [2], [0, 0, 0, 1, 1, 2], [0], [0]>} : vector<16x8x8xf32>, vector<16x8x16xf32>, vector<16x8x16xf32> -> vector<16x8x16xf32>
    "tpu.trace_stop"() : () -> ()
    %349 = arith.addf %324, %348 : vector<16x8x16xf32>
    %350 = vector.shape_cast %349 : vector<16x8x16xf32> to vector<128x16xf32>
    %c0_98 = arith.constant 0 : index
    %c0_99 = arith.constant 0 : index
    %351 = vector.load %arg11[%c0_98, %c0_99] : memref<16x16xf32, #tpu.memory_space<vmem>>, vector<16x16xf32>
    %cst_100 = arith.constant dense<0.000000e+00> : vector<128x16xf32>
    %352 = tpu.matmul %350, %351, %cst_100 {dimension_numbers = #tpu.dot_dimension_numbers<[1], [0], [0], [1], [0, 0, 1, 1], [], []>} : vector<128x16xf32>, vector<16x16xf32>, vector<128x16xf32> -> vector<128x16xf32>
    %c0_101 = arith.constant 0 : index
    %c0_102 = arith.constant 0 : index
    %353 = vector.load %arg12[%c0_101, %c0_102] : memref<1x16xf32, #tpu.memory_space<vmem>>, vector<1x16xf32>
    %354 = vector.broadcast %353 : vector<1x16xf32> to vector<128x16xf32>
    %355 = arith.addf %352, %354 : vector<128x16xf32>
    %cst_103 = arith.constant 0.000000e+00 : f32
    %356 = vector.broadcast %cst_103 : f32 to vector<128x16xf32>
    %357 = arith.maximumf %355, %356 : vector<128x16xf32>
    %358 = arith.addf %357, %350 : vector<128x16xf32>
    %359 = arith.addf %358, %236 : vector<128x16xf32>
    %c0_104 = arith.constant 0 : index
    %c0_105 = arith.constant 0 : index
    %360 = vector.load %arg13[%c0_104, %c0_105] : memref<128x16xf32, #tpu.memory_space<vmem>>, vector<128x16xf32>
    tpu.vector_store %arg13[%c0_104, %c0_105], %359 {strides = array<i32>} : memref<128x16xf32, #tpu.memory_space<vmem>>, vector<128x16xf32>,
    return
  }
  func.func @transform_0(%arg0: i32) -> (i32, i32) {
    %c0_i32 = arith.constant 0 : i32
    %c0_i32_0 = arith.constant 0 : i32
    %c0_i32_1 = arith.constant 0 : i32
    return %c0_i32, %c0_i32_0 : i32, i32
  }
  func.func @transform_1(%arg0: i32) -> (i32, i32, i32) {
    %c0_i32 = arith.constant 0 : i32
    %c0_i32_0 = arith.constant 0 : i32
    %c0_i32_1 = arith.constant 0 : i32
    %c0_i32_2 = arith.constant 0 : i32
    return %c0_i32, %c0_i32_0, %c0_i32_1 : i32, i32, i32
  }
  func.func @transform_2(%arg0: i32) -> (i32, i32, i32) {
    %c0_i32 = arith.constant 0 : i32
    %c0_i32_0 = arith.constant 0 : i32
    %c0_i32_1 = arith.constant 0 : i32
    %c0_i32_2 = arith.constant 0 : i32
    return %c0_i32, %c0_i32_0, %c0_i32_1 : i32, i32, i32
  }
  func.func @transform_3(%arg0: i32) -> (i32, i32) {
    %c0_i32 = arith.constant 0 : i32
    %c0_i32_0 = arith.constant 0 : i32
    %c0_i32_1 = arith.constant 0 : i32
    return %c0_i32, %c0_i32_0 : i32, i32
  }
  func.func @transform_4(%arg0: i32) -> (i32, i32) {
    %c0_i32 = arith.constant 0 : i32
    %c0_i32_0 = arith.constant 0 : i32
    %c0_i32_1 = arith.constant 0 : i32
    return %c0_i32, %c0_i32_0 : i32, i32
  }
  func.func @transform_5(%arg0: i32) -> (i32, i32) {
    %c0_i32 = arith.constant 0 : i32
    %c0_i32_0 = arith.constant 0 : i32
    %c0_i32_1 = arith.constant 0 : i32
    return %c0_i32, %c0_i32_0 : i32, i32
  }
  func.func @transform_6(%arg0: i32) -> (i32, i32) {
    %c0_i32 = arith.constant 0 : i32
    %c0_i32_0 = arith.constant 0 : i32
    %c0_i32_1 = arith.constant 0 : i32
    return %c0_i32, %c0_i32_0 : i32, i32
  }
  func.func @transform_7(%arg0: i32) -> (i32, i32) {
    %c0_i32 = arith.constant 0 : i32
    %c0_i32_0 = arith.constant 0 : i32
    %c0_i32_1 = arith.constant 0 : i32
    return %c0_i32, %c0_i32_0 : i32, i32
  }
  func.func @transform_8(%arg0: i32) -> (i32, i32) {
    %c0_i32 = arith.constant 0 : i32
    %c0_i32_0 = arith.constant 0 : i32
    %c0_i32_1 = arith.constant 0 : i32
    return %c0_i32, %c0_i32_0 : i32, i32
  }
  func.func @transform_9(%arg0: i32) -> (i32, i32) {
    %c0_i32 = arith.constant 0 : i32
    %c0_i32_0 = arith.constant 0 : i32
    %c0_i32_1 = arith.constant 0 : i32
    return %c0_i32, %c0_i32_0 : i32, i32
  }
  func.func @transform_10(%arg0: i32) -> (i32, i32) {
    %c0_i32 = arith.constant 0 : i32
    %c0_i32_0 = arith.constant 0 : i32
    %c0_i32_1 = arith.constant 0 : i32
    return %c0_i32, %c0_i32_0 : i32, i32
  }
  func.func @transform_11(%arg0: i32) -> (i32, i32) {
    %c0_i32 = arith.constant 0 : i32
    %c0_i32_0 = arith.constant 0 : i32
    %c0_i32_1 = arith.constant 0 : i32
    return %c0_i32, %c0_i32_0 : i32, i32
  }
  func.func @transform_12(%arg0: i32) -> (i32, i32) {
    %c0_i32 = arith.constant 0 : i32
    %c0_i32_0 = arith.constant 0 : i32
    %c0_i32_1 = arith.constant 0 : i32
    return %c0_i32, %c0_i32_0 : i32, i32
  }
}

</mosaic_0001>

<llo_original>
// kernel: dysat_forward.1
$region0: #{dysat_forward.1}
  #allocation0 [shape = 'u32[]', space=smem, size = 0x4, offset = 0x4, fixed_abs, tag = 'smem constant byte address 0x4 - core index']
  #allocation1 [shape = 'u32[72,128]{1,0:T(1,128)}', space=vmem, size = 0x9000, scoped, tag = 'internal scratch']
  %s0 = inlined_call_operand.vmem [shape: f32[128,8], index: 0, kind: input, shape index: {}]
  %s1 = inlined_call_operand.vmem [shape: f32[8,16,16], index: 1, kind: input, shape index: {}]
  %s2 = inlined_call_operand.vmem [shape: f32[8,16,16], index: 2, kind: input, shape index: {}]
  %s3 = inlined_call_operand.vmem [shape: f32[8,16], index: 3, kind: input, shape index: {}]
  %s4 = inlined_call_operand.vmem [shape: f32[8,16], index: 4, kind: input, shape index: {}]
  %s5 = inlined_call_operand.vmem [shape: f32[16,4], index: 5, kind: input, shape index: {}]
  %s6 = inlined_call_operand.vmem [shape: f32[16,4], index: 6, kind: input, shape index: {}]
  %s7 = inlined_call_operand.vmem [shape: f32[128,16], index: 7, kind: input, shape index: {}]
  %s8 = inlined_call_operand.vmem [shape: f32[128,128], index: 8, kind: input, shape index: {}]
  %s9 = inlined_call_operand.vmem [shape: f32[16,48], index: 9, kind: input, shape index: {}]
  %s10 = inlined_call_operand.vmem [shape: f32[16,16], index: 10, kind: input, shape index: {}]
  %s11 = inlined_call_operand.vmem [shape: f32[1,16], index: 11, kind: input, shape index: {}]
  %s12 = inlined_call_operand.hbm [shape: f32[128,16], index: 12, kind: output, shape index: {}]
  %s13 = sld [smem:[#allocation0]]
  $region58: #{dysat_forward.1} parent=0
    _
  %s15 = ssub.s32 1, %s13
  %s16 = scalar_select 0, %s15, %s13
  $region1: #{dysat_forward.1} parent=0
    #allocation2 [shape = 'u8[65536]{0}', space=vmem, size = 0x10000, scoped, tag = 'output window, operand 0, single buffered']
    #allocation3 [shape = 's32[1]{0}', space=sflag, size = 0x4, scoped, tag = 'scoped memory for dysat_forward.1']
    %17 = vsyncpa [#allocation3], 0
    // Predicated region
    $region2: #{dysat_forward.1} parent=1 // pred_check
      _
    $region3: #{dysat_forward.1} parent=1 // pred_check_branch
      %19 = sbr.rel (0) target = $region5
    $region4: #{dysat_forward.1} parent=1 // pred_region
      _
    $region5: #{dysat_forward.1} parent=1 // pred_fallthru
      _
    // Predicated region
    $region6: #{dysat_forward.1} parent=1 // pred_check
      _
    $region7: #{dysat_forward.1} parent=1 // pred_check_branch
      %21 = sbr.rel (0) target = $region9
    $region8: #{dysat_forward.1} parent=1 // pred_region
      _
    $region9: #{dysat_forward.1} parent=1 // pred_fallthru
      _
    // Predicated region
    $region10: #{dysat_forward.1} parent=1 // pred_check
      _
    $region11: #{dysat_forward.1} parent=1 // pred_check_branch
      %23 = sbr.rel (0) target = $region13
    $region12: #{dysat_forward.1} parent=1 // pred_region
      _
    $region13: #{dysat_forward.1} parent=1 // pred_fallthru
      _
    // Predicated region
    $region14: #{dysat_forward.1} parent=1 // pred_check
      _
    $region15: #{dysat_forward.1} parent=1 // pred_check_branch
      %25 = sbr.rel (0) target = $region17
    $region16: #{dysat_forward.1} parent=1 // pred_region
      _
    $region17: #{dysat_forward.1} parent=1 // pred_fallthru
      _
    // Predicated region
    $region18: #{dysat_forward.1} parent=1 // pred_check
      _
    $region19: #{dysat_forward.1} parent=1 // pred_check_branch
      %27 = sbr.rel (0) target = $region21
    $region20: #{dysat_forward.1} parent=1 // pred_region
      _
    $region21: #{dysat_forward.1} parent=1 // pred_fallthru
      _
    // Predicated region
    $region22: #{dysat_forward.1} parent=1 // pred_check
      _
    $region23: #{dysat_forward.1} parent=1 // pred_check_branch
      %29 = sbr.rel (0) target = $region25
    $region24: #{dysat_forward.1} parent=1 // pred_region
      _
    $region25: #{dysat_forward.1} parent=1 // pred_fallthru
      _
    // Predicated region
    $region26: #{dysat_forward.1} parent=1 // pred_check
      _
    $region27: #{dysat_forward.1} parent=1 // pred_check_branch
      %31 = sbr.rel (0) target = $region29
    $region28: #{dysat_forward.1} parent=1 // pred_region
      _
    $region29: #{dysat_forward.1} parent=1 // pred_fallthru
      _
    // Predicated region
    $region30: #{dysat_forward.1} parent=1 // pred_check
      _
    $region31: #{dysat_forward.1} parent=1 // pred_check_branch
      %33 = sbr.rel (0) target = $region33
    $region32: #{dysat_forward.1} parent=1 // pred_region
      _
    $region33: #{dysat_forward.1} parent=1 // pred_fallthru
      _
    // Predicated region
    $region34: #{dysat_forward.1} parent=1 // pred_check
      _
    $region35: #{dysat_forward.1} parent=1 // pred_check_branch
      %35 = sbr.rel (0) target = $region37
    $region36: #{dysat_forward.1} parent=1 // pred_region
      _
    $region37: #{dysat_forward.1} parent=1 // pred_fallthru
      _
    // Predicated region
    $region38: #{dysat_forward.1} parent=1 // pred_check
      _
    $region39: #{dysat_forward.1} parent=1 // pred_check_branch
      %37 = sbr.rel (0) target = $region41
    $region40: #{dysat_forward.1} parent=1 // pred_region
      _
    $region41: #{dysat_forward.1} parent=1 // pred_fallthru
      _
    // Predicated region
    $region42: #{dysat_forward.1} parent=1 // pred_check
      _
    $region43: #{dysat_forward.1} parent=1 // pred_check_branch
      %39 = sbr.rel (0) target = $region45
    $region44: #{dysat_forward.1} parent=1 // pred_region
      _
    $region45: #{dysat_forward.1} parent=1 // pred_fallthru
      _
    // Predicated region
    $region46: #{dysat_forward.1} parent=1 // pred_check
      _
    $region47: #{dysat_forward.1} parent=1 // pred_check_branch
      %41 = sbr.rel (0) target = $region49
    $region48: #{dysat_forward.1} parent=1 // pred_region
      _
    $region49: #{dysat_forward.1} parent=1 // pred_fallthru
      _
    %v42 = vld [vmem:[%s0] sm:$0xff]
    %v43 = vld [vmem:[%s0 + $0x8] sm:$0xff]
    %v44 = vld [vmem:[%s0 + $0x10] sm:$0xff]
    %v45 = vld [vmem:[%s0 + $0x18] sm:$0xff]
    %v46 = vld [vmem:[%s0 + $0x20] sm:$0xff]
    %v47 = vld [vmem:[%s0 + $0x28] sm:$0xff]
    %v48 = vld [vmem:[%s0 + $0x30] sm:$0xff]
    %v49 = vld [vmem:[%s0 + $0x38] sm:$0xff]
    %v50 = vld [vmem:[%s0 + $0x40] sm:$0xff]
    %v51 = vld [vmem:[%s0 + $0x48] sm:$0xff]
    %v52 = vld [vmem:[%s0 + $0x50] sm:$0xff]
    %v53 = vld [vmem:[%s0 + $0x58] sm:$0xff]
    %v54 = vld [vmem:[%s0 + $0x60] sm:$0xff]
    %v55 = vld [vmem:[%s0 + $0x68] sm:$0xff]
    %v56 = vld [vmem:[%s0 + $0x70] sm:$0xff]
    %v57 = vld [vmem:[%s0 + $0x78] sm:$0xff]
    %v58 = vld [vmem:[%s1] sm:$0xff]
    %v59 = vld [vmem:[%s1 + $0x8] sm:$0xff]
    %v60 = vld [vmem:[%s1 + $0x10] sm:$0xff]
    %v61 = vld [vmem:[%s1 + $0x18] sm:$0xff]
    %v62 = vld [vmem:[%s1 + $0x20] sm:$0xff]
    %v63 = vld [vmem:[%s1 + $0x28] sm:$0xff]
    %v64 = vld [vmem:[%s1 + $0x30] sm:$0xff]
    %v65 = vld [vmem:[%s1 + $0x38] sm:$0xff]
    %v66 = vld [vmem:[%s1 + $0x40] sm:$0xff]
    %v67 = vld [vmem:[%s1 + $0x48] sm:$0xff]
    %v68 = vld [vmem:[%s1 + $0x50] sm:$0xff]
    %v69 = vld [vmem:[%s1 + $0x58] sm:$0xff]
    %v70 = vld [vmem:[%s1 + $0x60] sm:$0xff]
    %v71 = vld [vmem:[%s1 + $0x68] sm:$0xff]
    %v72 = vld [vmem:[%s1 + $0x70] sm:$0xff]
    %v73 = vld [vmem:[%s1 + $0x78] sm:$0xff]
    %v74 = vld [vmem:[%s2] sm:$0xff]
    %v75 = vld [vmem:[%s2 + $0x8] sm:$0xff]
    %v76 = vld [vmem:[%s2 + $0x10] sm:$0xff]
    %v77 = vld [vmem:[%s2 + $0x18] sm:$0xff]
    %v78 = vld [vmem:[%s2 + $0x20] sm:$0xff]
    %v79 = vld [vmem:[%s2 + $0x28] sm:$0xff]
    %v80 = vld [vmem:[%s2 + $0x30] sm:$0xff]
    %v81 = vld [vmem:[%s2 + $0x38] sm:$0xff]
    %v82 = vld [vmem:[%s2 + $0x40] sm:$0xff]
    %v83 = vld [vmem:[%s2 + $0x48] sm:$0xff]
    %v84 = vld [vmem:[%s2 + $0x50] sm:$0xff]
    %v85 = vld [vmem:[%s2 + $0x58] sm:$0xff]
    %v86 = vld [vmem:[%s2 + $0x60] sm:$0xff]
    %v87 = vld [vmem:[%s2 + $0x68] sm:$0xff]
    %v88 = vld [vmem:[%s2 + $0x70] sm:$0xff]
    %v89 = vld [vmem:[%s2 + $0x78] sm:$0xff]
    %v90 = vld [vmem:[%s3] sm:$0xff]
    %vm91 = vcmask 64512
    %v93 = vsel %vm91, %v42, 0
    %v96 = vsel %vm91, %v43, 0
    %v99 = vsel %vm91, %v44, 0
    %v102 = vsel %vm91, %v45, 0
    %v105 = vsel %vm91, %v46, 0
    %v108 = vsel %vm91, %v47, 0
    %v111 = vsel %vm91, %v48, 0
    %v114 = vsel %vm91, %v49, 0
    %v117 = vsel %vm91, %v50, 0
    %v120 = vsel %vm91, %v51, 0
    %v123 = vsel %vm91, %v52, 0
    %v126 = vsel %vm91, %v53, 0
    %v129 = vsel %vm91, %v54, 0
    %v132 = vsel %vm91, %v55, 0
    %v135 = vsel %vm91, %v56, 0
    %v138 = vsel %vm91, %v57, 0
    %140 = vmatpush.msra.mxu0 0.0
    %141 = vmatpush.msra.mxu0 0.0
    %142 = vmatpush.msra.mxu0 0.0
    %143 = vmatpush.msra.mxu0 0.0
    %144 = vmatpush.msra.mxu0 0.0
    %145 = vmatpush.msra.mxu0 0.0
    %146 = vmatpush.msra.mxu0 0.0
    %147 = vmatpush.msra.mxu0 0.0
    %148 = vmatpush.msra.mxu0 0.0
    %149 = vmatpush.msra.mxu0 0.0
    %150 = vmatpush.msra.mxu0 0.0
    %151 = vmatpush.msra.mxu0 0.0
    %152 = vmatpush.msra.mxu0 0.0
    %153 = vmatpush.msra.mxu0 0.0
    %154 = vmatpush.msra.mxu0 0.0
    %155 = vmatpush.msra.mxu0 %v90
    %156 = vmatmul.f32.gmra.mxu0 %v93
    %v157 = vpop.f32.mrf.mxu0
    %v158 = vadd.f32 0.0, %v157
    %159 = vmatmul.f32.gmra.mxu0 %v96
    %v160 = vpop.f32.mrf.mxu0
    %v161 = vadd.f32 0.0, %v160
    %162 = vmatmul.f32.gmra.mxu0 %v99
    %v163 = vpop.f32.mrf.mxu0
    %v164 = vadd.f32 0.0, %v163
    %165 = vmatmul.f32.gmra.mxu0 %v102
    %v166 = vpop.f32.mrf.mxu0
    %v167 = vadd.f32 0.0, %v166
    %168 = vmatmul.f32.gmra.mxu0 %v105
    %v169 = vpop.f32.mrf.mxu0
    %v170 = vadd.f32 0.0, %v169
    %171 = vmatmul.f32.gmra.mxu0 %v108
    %v172 = vpop.f32.mrf.mxu0
    %v173 = vadd.f32 0.0, %v172
    %174 = vmatmul.f32.gmra.mxu0 %v111
    %v175 = vpop.f32.mrf.mxu0
    %v176 = vadd.f32 0.0, %v175
    %177 = vmatmul.f32.gmra.mxu0 %v114
    %v178 = vpop.f32.mrf.mxu0
    %v179 = vadd.f32 0.0, %v178
    %180 = vmatmul.f32.gmra.mxu0 %v117
    %v181 = vpop.f32.mrf.mxu0
    %v182 = vadd.f32 0.0, %v181
    %183 = vmatmul.f32.gmra.mxu0 %v120
    %v184 = vpop.f32.mrf.mxu0
    %v185 = vadd.f32 0.0, %v184
    %186 = vmatmul.f32.gmra.mxu0 %v123
    %v187 = vpop.f32.mrf.mxu0
    %v188 = vadd.f32 0.0, %v187
    %189 = vmatmul.f32.gmra.mxu0 %v126
    %v190 = vpop.f32.mrf.mxu0
    %v191 = vadd.f32 0.0, %v190
    %192 = vmatmul.f32.gmra.mxu0 %v129
    %v193 = vpop.f32.mrf.mxu0
    %v194 = vadd.f32 0.0, %v193
    %195 = vmatmul.f32.gmra.mxu0 %v132
    %v196 = vpop.f32.mrf.mxu0
    %v197 = vadd.f32 0.0, %v196
    %198 = vmatmul.f32.gmra.mxu0 %v135
    %v199 = vpop.f32.mrf.mxu0
    %v200 = vadd.f32 0.0, %v199
    %201 = vmatmul.f32.gmra.mxu0 %v138
    %v202 = vpop.f32.mrf.mxu0
    %v203 = vadd.f32 0.0, %v202
    %204 = vdwg.mxu0
    %v205 = vld [vmem:[%s4] sm:$0xff]
    %206 = vmatpush.msra.mxu0 0.0
    %207 = vmatpush.msra.mxu0 0.0
    %208 = vmatpush.msra.mxu0 0.0
    %209 = vmatpush.msra.mxu0 0.0
    %210 = vmatpush.msra.mxu0 0.0
    %211 = vmatpush.msra.mxu0 0.0
    %212 = vmatpush.msra.mxu0 0.0
    %213 = vmatpush.msra.mxu0 0.0
    %214 = vmatpush.msra.mxu0 0.0
    %215 = vmatpush.msra.mxu0 0.0
    %216 = vmatpush.msra.mxu0 0.0
    %217 = vmatpush.msra.mxu0 0.0
    %218 = vmatpush.msra.mxu0 0.0
    %219 = vmatpush.msra.mxu0 0.0
    %220 = vmatpush.msra.mxu0 0.0
    %221 = vmatpush.msra.mxu0 %v205
    %222 = vmatmul.f32.gmra.mxu0 %v93
    %v223 = vpop.f32.mrf.mxu0
    %v224 = vadd.f32 0.0, %v223
    %225 = vmatmul.f32.gmra.mxu0 %v96
    %v226 = vpop.f32.mrf.mxu0
    %v227 = vadd.f32 0.0, %v226
    %228 = vmatmul.f32.gmra.mxu0 %v99
    %v229 = vpop.f32.mrf.mxu0
    %v230 = vadd.f32 0.0, %v229
    %231 = vmatmul.f32.gmra.mxu0 %v102
    %v232 = vpop.f32.mrf.mxu0
    %v233 = vadd.f32 0.0, %v232
    %234 = vmatmul.f32.gmra.mxu0 %v105
    %v235 = vpop.f32.mrf.mxu0
    %v236 = vadd.f32 0.0, %v235
    %237 = vmatmul.f32.gmra.mxu0 %v108
    %v238 = vpop.f32.mrf.mxu0
    %v239 = vadd.f32 0.0, %v238
    %240 = vmatmul.f32.gmra.mxu0 %v111
    %v241 = vpop.f32.mrf.mxu0
    %v242 = vadd.f32 0.0, %v241
    %243 = vmatmul.f32.gmra.mxu0 %v114
    %v244 = vpop.f32.mrf.mxu0
    %v245 = vadd.f32 0.0, %v244
    %246 = vmatmul.f32.gmra.mxu0 %v117
    %v247 = vpop.f32.mrf.mxu0
    %v248 = vadd.f32 0.0, %v247
    %249 = vmatmul.f32.gmra.mxu0 %v120
    %v250 = vpop.f32.mrf.mxu0
    %v251 = vadd.f32 0.0, %v250
    %252 = vmatmul.f32.gmra.mxu0 %v123
    %v253 = vpop.f32.mrf.mxu0
    %v254 = vadd.f32 0.0, %v253
    %255 = vmatmul.f32.gmra.mxu0 %v126
    %v256 = vpop.f32.mrf.mxu0
    %v257 = vadd.f32 0.0, %v256
    %258 = vmatmul.f32.gmra.mxu0 %v129
    %v259 = vpop.f32.mrf.mxu0
    %v260 = vadd.f32 0.0, %v259
    %261 = vmatmul.f32.gmra.mxu0 %v132
    %v262 = vpop.f32.mrf.mxu0
    %v263 = vadd.f32 0.0, %v262
    %264 = vmatmul.f32.gmra.mxu0 %v135
    %v265 = vpop.f32.mrf.mxu0
    %v266 = vadd.f32 0.0, %v265
    %267 = vmatmul.f32.gmra.mxu0 %v138
    %v268 = vpop.f32.mrf.mxu0
    %v269 = vadd.f32 0.0, %v268
    %270 = vdwg.mxu0
    %v271 = vld [vmem:[%s5] sm:$0xff]
    %v272 = vld [vmem:[%s5 + $0x8] sm:$0xff]
    %vm273 = vcmask 130048
    %v275 = vsel %vm273, %v158, 0
    %v278 = vsel %vm273, %v161, 0
    %v281 = vsel %vm273, %v164, 0
    %v284 = vsel %vm273, %v167, 0
    %v287 = vsel %vm273, %v170, 0
    %v290 = vsel %vm273, %v173, 0
    %v293 = vsel %vm273, %v176, 0
    %v296 = vsel %vm273, %v179, 0
    %v299 = vsel %vm273, %v182, 0
    %v302 = vsel %vm273, %v185, 0
    %v305 = vsel %vm273, %v188, 0
    %v308 = vsel %vm273, %v191, 0
    %v311 = vsel %vm273, %v194, 0
    %v314 = vsel %vm273, %v197, 0
    %v317 = vsel %vm273, %v200, 0
    %v320 = vsel %vm273, %v203, 0
    %322 = vmatpush.msra.mxu0 0.0
    %323 = vmatpush.msra.mxu0 0.0
    %324 = vmatpush.msra.mxu0 0.0
    %325 = vmatpush.msra.mxu0 0.0
    %326 = vmatpush.msra.mxu0 0.0
    %327 = vmatpush.msra.mxu0 0.0
    %328 = vmatpush.msra.mxu0 0.0
    %329 = vmatpush.msra.mxu0 0.0
    %330 = vmatpush.msra.mxu0 0.0
    %331 = vmatpush.msra.mxu0 0.0
    %332 = vmatpush.msra.mxu0 0.0
    %333 = vmatpush.msra.mxu0 0.0
    %334 = vmatpush.msra.mxu0 0.0
    %335 = vmatpush.msra.mxu0 0.0
    %336 = vmatpush.msra.mxu0 %v272
    %337 = vmatpush.msra.mxu0 %v271
    %338 = vmatmul.f32.gmra.mxu0 %v275
    %v339 = vpop.f32.mrf.mxu0
    %v340 = vadd.f32 0.0, %v339
    %341 = vmatmul.f32.gmra.mxu0 %v278
    %v342 = vpop.f32.mrf.mxu0
    %v343 = vadd.f32 0.0, %v342
    %344 = vmatmul.f32.gmra.mxu0 %v281
    %v345 = vpop.f32.mrf.mxu0
    %v346 = vadd.f32 0.0, %v345
    %347 = vmatmul.f32.gmra.mxu0 %v284
    %v348 = vpop.f32.mrf.mxu0
    %v349 = vadd.f32 0.0, %v348
    %350 = vmatmul.f32.gmra.mxu0 %v287
    %v351 = vpop.f32.mrf.mxu0
    %v352 = vadd.f32 0.0, %v351
    %353 = vmatmul.f32.gmra.mxu0 %v290
    %v354 = vpop.f32.mrf.mxu0
    %v355 = vadd.f32 0.0, %v354
    %356 = vmatmul.f32.gmra.mxu0 %v293
    %v357 = vpop.f32.mrf.mxu0
    %v358 = vadd.f32 0.0, %v357
    %359 = vmatmul.f32.gmra.mxu0 %v296
    %v360 = vpop.f32.mrf.mxu0
    %v361 = vadd.f32 0.0, %v360
    %362 = vmatmul.f32.gmra.mxu0 %v299
    %v363 = vpop.f32.mrf.mxu0
    %v364 = vadd.f32 0.0, %v363
    %365 = vmatmul.f32.gmra.mxu0 %v302
    %v366 = vpop.f32.mrf.mxu0
    %v367 = vadd.f32 0.0, %v366
    %368 = vmatmul.f32.gmra.mxu0 %v305
    %v369 = vpop.f32.mrf.mxu0
    %v370 = vadd.f32 0.0, %v369
    %371 = vmatmul.f32.gmra.mxu0 %v308
    %v372 = vpop.f32.mrf.mxu0
    %v373 = vadd.f32 0.0, %v372
    %374 = vmatmul.f32.gmra.mxu0 %v311
    %v375 = vpop.f32.mrf.mxu0
    %v376 = vadd.f32 0.0, %v375
    %377 = vmatmul.f32.gmra.mxu0 %v314
    %v378 = vpop.f32.mrf.mxu0
    %v379 = vadd.f32 0.0, %v378
    %380 = vmatmul.f32.gmra.mxu0 %v317
    %v381 = vpop.f32.mrf.mxu0
    %v382 = vadd.f32 0.0, %v381
    %383 = vmatmul.f32.gmra.mxu0 %v320
    %v384 = vpop.f32.mrf.mxu0
    %v385 = vadd.f32 0.0, %v384
    %386 = vdwg.mxu0
    %v387 = vld [vmem:[%s6] sm:$0xff]
    %v388 = vld [vmem:[%s6 + $0x8] sm:$0xff]
    %389 = vmatpush.msra.mxu0 0.0
    %390 = vmatpush.msra.mxu0 0.0
    %391 = vmatpush.msra.mxu0 0.0
    %392 = vmatpush.msra.mxu0 0.0
    %393 = vmatpush.msra.mxu0 0.0
    %394 = vmatpush.msra.mxu0 0.0
    %395 = vmatpush.msra.mxu0 0.0
    %396 = vmatpush.msra.mxu0 0.0
    %397 = vmatpush.msra.mxu0 0.0
    %398 = vmatpush.msra.mxu0 0.0
    %399 = vmatpush.msra.mxu0 0.0
    %400 = vmatpush.msra.mxu0 0.0
    %401 = vmatpush.msra.mxu0 0.0
    %402 = vmatpush.msra.mxu0 0.0
    %403 = vmatpush.msra.mxu0 %v388
    %404 = vmatpush.msra.mxu0 %v387
    %405 = vmatmul.f32.gmra.mxu0 %v275
    %v406 = vpop.f32.mrf.mxu0
    %v407 = vadd.f32 0.0, %v406
    %408 = vmatmul.f32.gmra.mxu0 %v278
    %v409 = vpop.f32.mrf.mxu0
    %v410 = vadd.f32 0.0, %v409
    %411 = vmatmul.f32.gmra.mxu0 %v281
    %v412 = vpop.f32.mrf.mxu0
    %v413 = vadd.f32 0.0, %v412
    %414 = vmatmul.f32.gmra.mxu0 %v284
    %v415 = vpop.f32.mrf.mxu0
    %v416 = vadd.f32 0.0, %v415
    %417 = vmatmul.f32.gmra.mxu0 %v287
    %v418 = vpop.f32.mrf.mxu0
    %v419 = vadd.f32 0.0, %v418
    %420 = vmatmul.f32.gmra.mxu0 %v290
    %v421 = vpop.f32.mrf.mxu0
    %v422 = vadd.f32 0.0, %v421
    %423 = vmatmul.f32.gmra.mxu0 %v293
    %v424 = vpop.f32.mrf.mxu0
    %v425 = vadd.f32 0.0, %v424
    %426 = vmatmul.f32.gmra.mxu0 %v296
    %v427 = vpop.f32.mrf.mxu0
    %v428 = vadd.f32 0.0, %v427
    %429 = vmatmul.f32.gmra.mxu0 %v299
    %v430 = vpop.f32.mrf.mxu0
    %v431 = vadd.f32 0.0, %v430
    %432 = vmatmul.f32.gmra.mxu0 %v302
    %v433 = vpop.f32.mrf.mxu0
    %v434 = vadd.f32 0.0, %v433
    %435 = vmatmul.f32.gmra.mxu0 %v305
    %v436 = vpop.f32.mrf.mxu0
    %v437 = vadd.f32 0.0, %v436
    %438 = vmatmul.f32.gmra.mxu0 %v308
    %v439 = vpop.f32.mrf.mxu0
    %v440 = vadd.f32 0.0, %v439
    %441 = vmatmul.f32.gmra.mxu0 %v311
    %v442 = vpop.f32.mrf.mxu0
    %v443 = vadd.f32 0.0, %v442
    %444 = vmatmul.f32.gmra.mxu0 %v314
    %v445 = vpop.f32.mrf.mxu0
    %v446 = vadd.f32 0.0, %v445
    %447 = vmatmul.f32.gmra.mxu0 %v317
    %v448 = vpop.f32.mrf.mxu0
    %v449 = vadd.f32 0.0, %v448
    %450 = vmatmul.f32.gmra.mxu0 %v320
    %v451 = vpop.f32.mrf.mxu0
    %v452 = vadd.f32 0.0, %v451
    %453 = vdwg.mxu0
    %v454 = vlaneseq
    %v455 = vshrl.u32 %v454, 7
    %v456 = vadd.s32 %v455, 8
    %v457 = vlaneseq
    %v458 = vand.u32 %v457, 127
    %vm459 = vcmp.eq.s32.totalorder %v455, %v458
    %vm460 = vcmp.eq.s32.totalorder %v456, %v458
    %v461 = vsel %vm459, 1, 0
    %v462 = vsel %vm460, 1, 0
    %v463 = vcvt.s32.f32 %v461
    %v464 = vcvt.s32.f32 %v462
    %vm465 = vcmp.ge.s32.totalorder %v458, 0
    %vm466 = vcmp.lt.s32.totalorder %v458, 4
    %vm467 = vmand %vm465, %vm466
    %v468 = vsel %vm467, 1, 0
    %v469 = vcvt.s32.f32 %v468
    %vm470 = vcmp.ge.s32.totalorder %v458, 4
    %vm471 = vcmp.lt.s32.totalorder %v458, 8
    %vm472 = vmand %vm470, %vm471
    %v473 = vsel %vm472, 1, 0
    %v474 = vcvt.s32.f32 %v473
    %vm475 = vcmp.ge.s32.totalorder %v458, 8
    %vm476 = vcmp.lt.s32.totalorder %v458, 12
    %vm477 = vmand %vm475, %vm476
    %v478 = vsel %vm477, 1, 0
    %v479 = vcvt.s32.f32 %v478
    %vm480 = vcmp.ge.s32.totalorder %v458, 12
    %vm481 = vcmp.lt.s32.totalorder %v458, 16
    %vm482 = vmand %vm480, %vm481
    %v483 = vsel %vm482, 1, 0
    %v484 = vcvt.s32.f32 %v483
    %486 = vset.pattern.permute.xlu0 0
    %487 = vperm.xlu0 %486, %v340
    %v488 = vpop.permute.xlu0 %487
    %491 = vset.pattern.permute.xlu0 0
    %492 = vperm.xlu0 %491, %v343
    %v493 = vpop.permute.xlu0 %492
    %496 = vset.pattern.permute.xlu0 0
    %497 = vperm.xlu0 %496, %v346
    %v498 = vpop.permute.xlu0 %497
    %501 = vset.pattern.permute.xlu0 0
    %502 = vperm.xlu0 %501, %v349
    %v503 = vpop.permute.xlu0 %502
    %506 = vset.pattern.permute.xlu0 0
    %507 = vperm.xlu0 %506, %v352
    %v508 = vpop.permute.xlu0 %507
    %511 = vset.pattern.permute.xlu0 0
    %512 = vperm.xlu0 %511, %v355
    %v513 = vpop.permute.xlu0 %512
    %516 = vset.pattern.permute.xlu0 0
    %517 = vperm.xlu0 %516, %v358
    %v518 = vpop.permute.xlu0 %517
    %521 = vset.pattern.permute.xlu0 0
    %522 = vperm.xlu0 %521, %v361
    %v523 = vpop.permute.xlu0 %522
    %526 = vset.pattern.permute.xlu0 0
    %527 = vperm.xlu0 %526, %v364
    %v528 = vpop.permute.xlu0 %527
    %531 = vset.pattern.permute.xlu0 0
    %532 = vperm.xlu0 %531, %v367
    %v533 = vpop.permute.xlu0 %532
    %536 = vset.pattern.permute.xlu0 0
    %537 = vperm.xlu0 %536, %v370
    %v538 = vpop.permute.xlu0 %537
    %541 = vset.pattern.permute.xlu0 0
    %542 = vperm.xlu0 %541, %v373
    %v543 = vpop.permute.xlu0 %542
    %546 = vset.pattern.permute.xlu0 0
    %547 = vperm.xlu0 %546, %v376
    %v548 = vpop.permute.xlu0 %547
    %551 = vset.pattern.permute.xlu0 0
    %552 = vperm.xlu0 %551, %v379
    %v553 = vpop.permute.xlu0 %552
    %556 = vset.pattern.permute.xlu0 0
    %557 = vperm.xlu0 %556, %v382
    %v558 = vpop.permute.xlu0 %557
    %561 = vset.pattern.permute.xlu0 0
    %562 = vperm.xlu0 %561, %v385
    %v563 = vpop.permute.xlu0 %562
    %v565 = vmul.f32 %v463, %v488
    %v566 = vmul.f32 %v464, %v493
    %v567 = vmul.f32 %v463, %v498
    %v568 = vmul.f32 %v464, %v503
    %v569 = vmul.f32 %v463, %v508
    %v570 = vmul.f32 %v464, %v513
    %v571 = vmul.f32 %v463, %v518
    %v572 = vmul.f32 %v464, %v523
    %v573 = vmul.f32 %v463, %v528
    %v574 = vmul.f32 %v464, %v533
    %v575 = vmul.f32 %v463, %v538
    %v576 = vmul.f32 %v464, %v543
    %v577 = vmul.f32 %v463, %v548
    %v578 = vmul.f32 %v464, %v553
    %v579 = vmul.f32 %v463, %v558
    %v580 = vmul.f32 %v464, %v563
    %v581 = vsel %vm273, %v565, 0.0
    %v582 = vsel %vm273, %v566, 0.0
    %v583 = vadd.f32 %v581, %v582
    %v584 = vrot.slane %v583, 4
    %v585 = vadd.f32 %v583, %v584
    %v586 = vrot.slane %v585, 2
    %v587 = vadd.f32 %v585, %v586
    %v588 = vrot.slane %v587, 1
    %v589 = vadd.f32 %v587, %v588
    %v590 = vsel %vm273, %v567, 0.0
    %v591 = vsel %vm273, %v568, 0.0
    %v592 = vadd.f32 %v590, %v591
    %v593 = vrot.slane %v592, 4
    %v594 = vadd.f32 %v592, %v593
    %v595 = vrot.slane %v594, 2
    %v596 = vadd.f32 %v594, %v595
    %v597 = vrot.slane %v596, 1
    %v598 = vadd.f32 %v596, %v597
    %v599 = vsel %vm273, %v569, 0.0
    %v600 = vsel %vm273, %v570, 0.0
    %v601 = vadd.f32 %v599, %v600
    %v602 = vrot.slane %v601, 4
    %v603 = vadd.f32 %v601, %v602
    %v604 = vrot.slane %v603, 2
    %v605 = vadd.f32 %v603, %v604
    %v606 = vrot.slane %v605, 1
    %v607 = vadd.f32 %v605, %v606
    %v608 = vsel %vm273, %v571, 0.0
    %v609 = vsel %vm273, %v572, 0.0
    %v610 = vadd.f32 %v608, %v609
    %v611 = vrot.slane %v610, 4
    %v612 = vadd.f32 %v610, %v611
    %v613 = vrot.slane %v612, 2
    %v614 = vadd.f32 %v612, %v613
    %v615 = vrot.slane %v614, 1
    %v616 = vadd.f32 %v614, %v615
    %v617 = vsel %vm273, %v573, 0.0
    %v618 = vsel %vm273, %v574, 0.0
    %v619 = vadd.f32 %v617, %v618
    %v620 = vrot.slane %v619, 4
    %v621 = vadd.f32 %v619, %v620
    %v622 = vrot.slane %v621, 2
    %v623 = vadd.f32 %v621, %v622
    %v624 = vrot.slane %v623, 1
    %v625 = vadd.f32 %v623, %v624
    %v626 = vsel %vm273, %v575, 0.0
    %v627 = vsel %vm273, %v576, 0.0
    %v628 = vadd.f32 %v626, %v627
    %v629 = vrot.slane %v628, 4
    %v630 = vadd.f32 %v628, %v629
    %v631 = vrot.slane %v630, 2
    %v632 = vadd.f32 %v630, %v631
    %v633 = vrot.slane %v632, 1
    %v634 = vadd.f32 %v632, %v633
    %v635 = vsel %vm273, %v577, 0.0
    %v636 = vsel %vm273, %v578, 0.0
    %v637 = vadd.f32 %v635, %v636
    %v638 = vrot.slane %v637, 4
    %v639 = vadd.f32 %v637, %v638
    %v640 = vrot.slane %v639, 2
    %v641 = vadd.f32 %v639, %v640
    %v642 = vrot.slane %v641, 1
    %v643 = vadd.f32 %v641, %v642
    %v644 = vsel %vm273, %v579, 0.0
    %v645 = vsel %vm273, %v580, 0.0
    %v646 = vadd.f32 %v644, %v645
    %v647 = vrot.slane %v646, 4
    %v648 = vadd.f32 %v646, %v647
    %v649 = vrot.slane %v648, 2
    %v650 = vadd.f32 %v648, %v649
    %v651 = vrot.slane %v650, 1
    %v652 = vadd.f32 %v650, %v651
    %654 = vset.pattern.permute.xlu0 0
    %655 = vperm.xlu0 %654, %v407
    %v656 = vpop.permute.xlu0 %655
    %659 = vset.pattern.permute.xlu0 0
    %660 = vperm.xlu0 %659, %v410
    %v661 = vpop.permute.xlu0 %660
    %664 = vset.pattern.permute.xlu0 0
    %665 = vperm.xlu0 %664, %v413
    %v666 = vpop.permute.xlu0 %665
    %669 = vset.pattern.permute.xlu0 0
    %670 = vperm.xlu0 %669, %v416
    %v671 = vpop.permute.xlu0 %670
    %674 = vset.pattern.permute.xlu0 0
    %675 = vperm.xlu0 %674, %v419
    %v676 = vpop.permute.xlu0 %675
    %679 = vset.pattern.permute.xlu0 0
    %680 = vperm.xlu0 %679, %v422
    %v681 = vpop.permute.xlu0 %680
    %684 = vset.pattern.permute.xlu0 0
    %685 = vperm.xlu0 %684, %v425
    %v686 = vpop.permute.xlu0 %685
    %689 = vset.pattern.permute.xlu0 0
    %690 = vperm.xlu0 %689, %v428
    %v691 = vpop.permute.xlu0 %690
    %694 = vset.pattern.permute.xlu0 0
    %695 = vperm.xlu0 %694, %v431
    %v696 = vpop.permute.xlu0 %695
    %699 = vset.pattern.permute.xlu0 0
    %700 = vperm.xlu0 %699, %v434
    %v701 = vpop.permute.xlu0 %700
    %704 = vset.pattern.permute.xlu0 0
    %705 = vperm.xlu0 %704, %v437
    %v706 = vpop.permute.xlu0 %705
    %709 = vset.pattern.permute.xlu0 0
    %710 = vperm.xlu0 %709, %v440
    %v711 = vpop.permute.xlu0 %710
    %714 = vset.pattern.permute.xlu0 0
    %715 = vperm.xlu0 %714, %v443
    %v716 = vpop.permute.xlu0 %715
    %719 = vset.pattern.permute.xlu0 0
    %720 = vperm.xlu0 %719, %v446
    %v721 = vpop.permute.xlu0 %720
    %724 = vset.pattern.permute.xlu0 0
    %725 = vperm.xlu0 %724, %v449
    %v726 = vpop.permute.xlu0 %725
    %729 = vset.pattern.permute.xlu0 0
    %730 = vperm.xlu0 %729, %v452
    %v731 = vpop.permute.xlu0 %730
    %v733 = vadd.f32 %v656, %v589
    %v734 = vadd.f32 %v661, %v589
    %v735 = vadd.f32 %v666, %v598
    %v736 = vadd.f32 %v671, %v598
    %v737 = vadd.f32 %v676, %v607
    %v738 = vadd.f32 %v681, %v607
    %v739 = vadd.f32 %v686, %v616
    %v740 = vadd.f32 %v691, %v616
    %v741 = vadd.f32 %v696, %v625
    %v742 = vadd.f32 %v701, %v625
    %v743 = vadd.f32 %v706, %v634
    %v744 = vadd.f32 %v711, %v634
    %v745 = vadd.f32 %v716, %v643
    %v746 = vadd.f32 %v721, %v643
    %v747 = vadd.f32 %v726, %v652
    %v748 = vadd.f32 %v731, %v652
    %v749 = vmul.f32 %v58, %v733
    %v750 = vmul.f32 %v59, %v734
    %v751 = vmul.f32 %v60, %v735
    %v752 = vmul.f32 %v61, %v736
    %v753 = vmul.f32 %v62, %v737
    %v754 = vmul.f32 %v63, %v738
    %v755 = vmul.f32 %v64, %v739
    %v756 = vmul.f32 %v65, %v740
    %v757 = vmul.f32 %v66, %v741
    %v758 = vmul.f32 %v67, %v742
    %v759 = vmul.f32 %v68, %v743
    %v760 = vmul.f32 %v69, %v744
    %v761 = vmul.f32 %v70, %v745
    %v762 = vmul.f32 %v71, %v746
    %v763 = vmul.f32 %v72, %v747
    %v764 = vmul.f32 %v73, %v748
    %vm765 = vcmp.gt.f32.partialorder %v749, 0.0
    %vm766 = vcmp.gt.f32.partialorder %v750, 0.0
    %vm767 = vcmp.gt.f32.partialorder %v751, 0.0
    %vm768 = vcmp.gt.f32.partialorder %v752, 0.0
    %vm769 = vcmp.gt.f32.partialorder %v753, 0.0
    %vm770 = vcmp.gt.f32.partialorder %v754, 0.0
    %vm771 = vcmp.gt.f32.partialorder %v755, 0.0
    %vm772 = vcmp.gt.f32.partialorder %v756, 0.0
    %vm773 = vcmp.gt.f32.partialorder %v757, 0.0
    %vm774 = vcmp.gt.f32.partialorder %v758, 0.0
    %vm775 = vcmp.gt.f32.partialorder %v759, 0.0
    %vm776 = vcmp.gt.f32.partialorder %v760, 0.0
    %vm777 = vcmp.gt.f32.partialorder %v761, 0.0
    %vm778 = vcmp.gt.f32.partialorder %v762, 0.0
    %vm779 = vcmp.gt.f32.partialorder %v763, 0.0
    %vm780 = vcmp.gt.f32.partialorder %v764, 0.0
    %v781 = vmul.f32 %v749, 0.2
    %v782 = vmul.f32 %v750, 0.2
    %v783 = vmul.f32 %v751, 0.2
    %v784 = vmul.f32 %v752, 0.2
    %v785 = vmul.f32 %v753, 0.2
    %v786 = vmul.f32 %v754, 0.2
    %v787 = vmul.f32 %v755, 0.2
    %v788 = vmul.f32 %v756, 0.2
    %v789 = vmul.f32 %v757, 0.2
    %v790 = vmul.f32 %v758, 0.2
    %v791 = vmul.f32 %v759, 0.2
    %v792 = vmul.f32 %v760, 0.2
    %v793 = vmul.f32 %v761, 0.2
    %v794 = vmul.f32 %v762, 0.2
    %v795 = vmul.f32 %v763, 0.2
    %v796 = vmul.f32 %v764, 0.2
    %v797 = vsel %vm765, %v749, %v781
    %v798 = vsel %vm766, %v750, %v782
    %v799 = vsel %vm767, %v751, %v783
    %v800 = vsel %vm768, %v752, %v784
    %v801 = vsel %vm769, %v753, %v785
    %v802 = vsel %vm770, %v754, %v786
    %v803 = vsel %vm771, %v755, %v787
    %v804 = vsel %vm772, %v756, %v788
    %v805 = vsel %vm773, %v757, %v789
    %v806 = vsel %vm774, %v758, %v790
    %v807 = vsel %vm775, %v759, %v791
    %v808 = vsel %vm776, %v760, %v792
    %v809 = vsel %vm777, %v761, %v793
    %v810 = vsel %vm778, %v762, %v794
    %v811 = vsel %vm779, %v763, %v795
    %v812 = vsel %vm780, %v764, %v796
    %vm813 = vcmp.gt.f32.partialorder %v74, 0.0
    %vm814 = vcmp.gt.f32.partialorder %v75, 0.0
    %vm815 = vcmp.gt.f32.partialorder %v76, 0.0
    %vm816 = vcmp.gt.f32.partialorder %v77, 0.0
    %vm817 = vcmp.gt.f32.partialorder %v78, 0.0
    %vm818 = vcmp.gt.f32.partialorder %v79, 0.0
    %vm819 = vcmp.gt.f32.partialorder %v80, 0.0
    %vm820 = vcmp.gt.f32.partialorder %v81, 0.0
    %vm821 = vcmp.gt.f32.partialorder %v82, 0.0
    %vm822 = vcmp.gt.f32.partialorder %v83, 0.0
    %vm823 = vcmp.gt.f32.partialorder %v84, 0.0
    %vm824 = vcmp.gt.f32.partialorder %v85, 0.0
    %vm825 = vcmp.gt.f32.partialorder %v86, 0.0
    %vm826 = vcmp.gt.f32.partialorder %v87, 0.0
    %vm827 = vcmp.gt.f32.partialorder %v88, 0.0
    %vm828 = vcmp.gt.f32.partialorder %v89, 0.0
    %v829 = vsel %vm813, %v797, -1e+09
    %v830 = vsel %vm814, %v798, -1e+09
    %v831 = vsel %vm815, %v799, -1e+09
    %v832 = vsel %vm816, %v800, -1e+09
    %v833 = vsel %vm817, %v801, -1e+09
    %v834 = vsel %vm818, %v802, -1e+09
    %v835 = vsel %vm819, %v803, -1e+09
    %v836 = vsel %vm820, %v804, -1e+09
    %v837 = vsel %vm821, %v805, -1e+09
    %v838 = vsel %vm822, %v806, -1e+09
    %v839 = vsel %vm823, %v807, -1e+09
    %v840 = vsel %vm824, %v808, -1e+09
    %v841 = vsel %vm825, %v809, -1e+09
    %v842 = vsel %vm826, %v810, -1e+09
    %v843 = vsel %vm827, %v811, -1e+09
    %v844 = vsel %vm828, %v812, -1e+09
    %v845 = vsel %vm273, %v829, -inf
    %846 = vmax.xlane.f32.xlu0 %v845
    %v847 = vpop.xlane.xlu0 %846
    %v848 = vsel %vm273, %v830, -inf
    %849 = vmax.xlane.f32.xlu0 %v848
    %v850 = vpop.xlane.xlu0 %849
    %v851 = vsel %vm273, %v831, -inf
    %852 = vmax.xlane.f32.xlu0 %v851
    %v853 = vpop.xlane.xlu0 %852
    %v854 = vsel %vm273, %v832, -inf
    %855 = vmax.xlane.f32.xlu0 %v854
    %v856 = vpop.xlane.xlu0 %855
    %v857 = vsel %vm273, %v833, -inf
    %858 = vmax.xlane.f32.xlu0 %v857
    %v859 = vpop.xlane.xlu0 %858
    %v860 = vsel %vm273, %v834, -inf
    %861 = vmax.xlane.f32.xlu0 %v860
    %v862 = vpop.xlane.xlu0 %861
    %v863 = vsel %vm273, %v835, -inf
    %864 = vmax.xlane.f32.xlu0 %v863
    %v865 = vpop.xlane.xlu0 %864
    %v866 = vsel %vm273, %v836, -inf
    %867 = vmax.xlane.f32.xlu0 %v866
    %v868 = vpop.xlane.xlu0 %867
    %v869 = vsel %vm273, %v837, -inf
    %870 = vmax.xlane.f32.xlu0 %v869
    %v871 = vpop.xlane.xlu0 %870
    %v872 = vsel %vm273, %v838, -inf
    %873 = vmax.xlane.f32.xlu0 %v872
    %v874 = vpop.xlane.xlu0 %873
    %v875 = vsel %vm273, %v839, -inf
    %876 = vmax.xlane.f32.xlu0 %v875
    %v877 = vpop.xlane.xlu0 %876
    %v878 = vsel %vm273, %v840, -inf
    %879 = vmax.xlane.f32.xlu0 %v878
    %v880 = vpop.xlane.xlu0 %879
    %v881 = vsel %vm273, %v841, -inf
    %882 = vmax.xlane.f32.xlu0 %v881
    %v883 = vpop.xlane.xlu0 %882
    %v884 = vsel %vm273, %v842, -inf
    %885 = vmax.xlane.f32.xlu0 %v884
    %v886 = vpop.xlane.xlu0 %885
    %v887 = vsel %vm273, %v843, -inf
    %888 = vmax.xlane.f32.xlu0 %v887
    %v889 = vpop.xlane.xlu0 %888
    %v890 = vsel %vm273, %v844, -inf
    %891 = vmax.xlane.f32.xlu0 %v890
    %v892 = vpop.xlane.xlu0 %891
    %v893 = vsub.f32 %v829, %v847
    %v894 = vsub.f32 %v830, %v850
    %v895 = vsub.f32 %v831, %v853
    %v896 = vsub.f32 %v832, %v856
    %v897 = vsub.f32 %v833, %v859
    %v898 = vsub.f32 %v834, %v862
    %v899 = vsub.f32 %v835, %v865
    %v900 = vsub.f32 %v836, %v868
    %v901 = vsub.f32 %v837, %v871
    %v902 = vsub.f32 %v838, %v874
    %v903 = vsub.f32 %v839, %v877
    %v904 = vsub.f32 %v840, %v880
    %v905 = vsub.f32 %v841, %v883
    %v906 = vsub.f32 %v842, %v886
    %v907 = vsub.f32 %v843, %v889
    %v908 = vsub.f32 %v844, %v892
    %v909 = vmul.f32 %v893, 1.442695
    %v910 = vpow.pop %v909
    %v911 = vmul.f32 %v894, 1.442695
    %v912 = vpow.pop %v911
    %v913 = vmul.f32 %v895, 1.442695
    %v914 = vpow.pop %v913
    %v915 = vmul.f32 %v896, 1.442695
    %v916 = vpow.pop %v915
    %v917 = vmul.f32 %v897, 1.442695
    %v918 = vpow.pop %v917
    %v919 = vmul.f32 %v898, 1.442695
    %v920 = vpow.pop %v919
    %v921 = vmul.f32 %v899, 1.442695
    %v922 = vpow.pop %v921
    %v923 = vmul.f32 %v900, 1.442695
    %v924 = vpow.pop %v923
    %v925 = vmul.f32 %v901, 1.442695
    %v926 = vpow.pop %v925
    %v927 = vmul.f32 %v902, 1.442695
    %v928 = vpow.pop %v927
    %v929 = vmul.f32 %v903, 1.442695
    %v930 = vpow.pop %v929
    %v931 = vmul.f32 %v904, 1.442695
    %v932 = vpow.pop %v931
    %v933 = vmul.f32 %v905, 1.442695
    %v934 = vpow.pop %v933
    %v935 = vmul.f32 %v906, 1.442695
    %v936 = vpow.pop %v935
    %v937 = vmul.f32 %v907, 1.442695
    %v938 = vpow.pop %v937
    %v939 = vmul.f32 %v908, 1.442695
    %v940 = vpow.pop %v939
    %v941 = vsel %vm273, %v910, 0.0
    %942 = vadd.xlane.f32.xlu0 %v941
    %v943 = vpop.xlane.xlu0 %942
    %v944 = vsel %vm273, %v912, 0.0
    %945 = vadd.xlane.f32.xlu0 %v944
    %v946 = vpop.xlane.xlu0 %945
    %v947 = vsel %vm273, %v914, 0.0
    %948 = vadd.xlane.f32.xlu0 %v947
    %v949 = vpop.xlane.xlu0 %948
    %v950 = vsel %vm273, %v916, 0.0
    %951 = vadd.xlane.f32.xlu0 %v950
    %v952 = vpop.xlane.xlu0 %951
    %v953 = vsel %vm273, %v918, 0.0
    %954 = vadd.xlane.f32.xlu0 %v953
    %v955 = vpop.xlane.xlu0 %954
    %v956 = vsel %vm273, %v920, 0.0
    %957 = vadd.xlane.f32.xlu0 %v956
    %v958 = vpop.xlane.xlu0 %957
    %v959 = vsel %vm273, %v922, 0.0
    %960 = vadd.xlane.f32.xlu0 %v959
    %v961 = vpop.xlane.xlu0 %960
    %v962 = vsel %vm273, %v924, 0.0
    %963 = vadd.xlane.f32.xlu0 %v962
    %v964 = vpop.xlane.xlu0 %963
    %v965 = vsel %vm273, %v926, 0.0
    %966 = vadd.xlane.f32.xlu0 %v965
    %v967 = vpop.xlane.xlu0 %966
    %v968 = vsel %vm273, %v928, 0.0
    %969 = vadd.xlane.f32.xlu0 %v968
    %v970 = vpop.xlane.xlu0 %969
    %v971 = vsel %vm273, %v930, 0.0
    %972 = vadd.xlane.f32.xlu0 %v971
    %v973 = vpop.xlane.xlu0 %972
    %v974 = vsel %vm273, %v932, 0.0
    %975 = vadd.xlane.f32.xlu0 %v974
    %v976 = vpop.xlane.xlu0 %975
    %v977 = vsel %vm273, %v934, 0.0
    %978 = vadd.xlane.f32.xlu0 %v977
    %v979 = vpop.xlane.xlu0 %978
    %v980 = vsel %vm273, %v936, 0.0
    %981 = vadd.xlane.f32.xlu0 %v980
    %v982 = vpop.xlane.xlu0 %981
    %v983 = vsel %vm273, %v938, 0.0
    %984 = vadd.xlane.f32.xlu0 %v983
    %v985 = vpop.xlane.xlu0 %984
    %v986 = vsel %vm273, %v940, 0.0
    %987 = vadd.xlane.f32.xlu0 %v986
    %v988 = vpop.xlane.xlu0 %987
    %v989 = vrcp.pop %v943
    %v990 = vmul.f32 %v943, %v989
    %v991 = vsub.f32 1.0, %v990
    %v992 = vmul.f32 %v989, %v991
    %v993 = vadd.f32 %v989, %v992
    %vm994 = vweird.f32 %v943
    %vm995 = vweird.f32 %v989
    %vm996 = vmor %vm994, %vm995
    %v997 = vsel %vm996, %v989, %v993
    %v998 = vand.u32 2147483647, %v943
    %vm999 = vcmp.eq.f32.partialorder %v998, 8.507059e+37
    %v1000 = vand.u32 %v943, 2147483648
    %v1001 = vor.u32 1.1754944e-38, %v1000
    %v1002 = vsel %vm999, %v1001, %v997
    %v1003 = vrcp.pop %v946
    %v1004 = vmul.f32 %v946, %v1003
    %v1005 = vsub.f32 1.0, %v1004
    %v1006 = vmul.f32 %v1003, %v1005
    %v1007 = vadd.f32 %v1003, %v1006
    %vm1008 = vweird.f32 %v946
    %vm1009 = vweird.f32 %v1003
    %vm1010 = vmor %vm1008, %vm1009
    %v1011 = vsel %vm1010, %v1003, %v1007
    %v1012 = vand.u32 2147483647, %v946
    %vm1013 = vcmp.eq.f32.partialorder %v1012, 8.507059e+37
    %v1014 = vand.u32 %v946, 2147483648
    %v1015 = vor.u32 1.1754944e-38, %v1014
    %v1016 = vsel %vm1013, %v1015, %v1011
    %v1017 = vrcp.pop %v949
    %v1018 = vmul.f32 %v949, %v1017
    %v1019 = vsub.f32 1.0, %v1018
    %v1020 = vmul.f32 %v1017, %v1019
    %v1021 = vadd.f32 %v1017, %v1020
    %vm1022 = vweird.f32 %v949
    %vm1023 = vweird.f32 %v1017
    %vm1024 = vmor %vm1022, %vm1023
    %v1025 = vsel %vm1024, %v1017, %v1021
    %v1026 = vand.u32 2147483647, %v949
    %vm1027 = vcmp.eq.f32.partialorder %v1026, 8.507059e+37
    %v1028 = vand.u32 %v949, 2147483648
    %v1029 = vor.u32 1.1754944e-38, %v1028
    %v1030 = vsel %vm1027, %v1029, %v1025
    %v1031 = vrcp.pop %v952
    %v1032 = vmul.f32 %v952, %v1031
    %v1033 = vsub.f32 1.0, %v1032
    %v1034 = vmul.f32 %v1031, %v1033
    %v1035 = vadd.f32 %v1031, %v1034
    %vm1036 = vweird.f32 %v952
    %vm1037 = vweird.f32 %v1031
    %vm1038 = vmor %vm1036, %vm1037
    %v1039 = vsel %vm1038, %v1031, %v1035
    %v1040 = vand.u32 2147483647, %v952
    %vm1041 = vcmp.eq.f32.partialorder %v1040, 8.507059e+37
    %v1042 = vand.u32 %v952, 2147483648
    %v1043 = vor.u32 1.1754944e-38, %v1042
    %v1044 = vsel %vm1041, %v1043, %v1039
    %v1045 = vrcp.pop %v955
    %v1046 = vmul.f32 %v955, %v1045
    %v1047 = vsub.f32 1.0, %v1046
    %v1048 = vmul.f32 %v1045, %v1047
    %v1049 = vadd.f32 %v1045, %v1048
    %vm1050 = vweird.f32 %v955
    %vm1051 = vweird.f32 %v1045
    %vm1052 = vmor %vm1050, %vm1051
    %v1053 = vsel %vm1052, %v1045, %v1049
    %v1054 = vand.u32 2147483647, %v955
    %vm1055 = vcmp.eq.f32.partialorder %v1054, 8.507059e+37
    %v1056 = vand.u32 %v955, 2147483648
    %v1057 = vor.u32 1.1754944e-38, %v1056
    %v1058 = vsel %vm1055, %v1057, %v1053
    %v1059 = vrcp.pop %v958
    %v1060 = vmul.f32 %v958, %v1059
    %v1061 = vsub.f32 1.0, %v1060
    %v1062 = vmul.f32 %v1059, %v1061
    %v1063 = vadd.f32 %v1059, %v1062
    %vm1064 = vweird.f32 %v958
    %vm1065 = vweird.f32 %v1059
    %vm1066 = vmor %vm1064, %vm1065
    %v1067 = vsel %vm1066, %v1059, %v1063
    %v1068 = vand.u32 2147483647, %v958
    %vm1069 = vcmp.eq.f32.partialorder %v1068, 8.507059e+37
    %v1070 = vand.u32 %v958, 2147483648
    %v1071 = vor.u32 1.1754944e-38, %v1070
    %v1072 = vsel %vm1069, %v1071, %v1067
    %v1073 = vrcp.pop %v961
    %v1074 = vmul.f32 %v961, %v1073
    %v1075 = vsub.f32 1.0, %v1074
    %v1076 = vmul.f32 %v1073, %v1075
    %v1077 = vadd.f32 %v1073, %v1076
    %vm1078 = vweird.f32 %v961
    %vm1079 = vweird.f32 %v1073
    %vm1080 = vmor %vm1078, %vm1079
    %v1081 = vsel %vm1080, %v1073, %v1077
    %v1082 = vand.u32 2147483647, %v961
    %vm1083 = vcmp.eq.f32.partialorder %v1082, 8.507059e+37
    %v1084 = vand.u32 %v961, 2147483648
    %v1085 = vor.u32 1.1754944e-38, %v1084
    %v1086 = vsel %vm1083, %v1085, %v1081
    %v1087 = vrcp.pop %v964
    %v1088 = vmul.f32 %v964, %v1087
    %v1089 = vsub.f32 1.0, %v1088
    %v1090 = vmul.f32 %v1087, %v1089
    %v1091 = vadd.f32 %v1087, %v1090
    %vm1092 = vweird.f32 %v964
    %vm1093 = vweird.f32 %v1087
    %vm1094 = vmor %vm1092, %vm1093
    %v1095 = vsel %vm1094, %v1087, %v1091
    %v1096 = vand.u32 2147483647, %v964
    %vm1097 = vcmp.eq.f32.partialorder %v1096, 8.507059e+37
    %v1098 = vand.u32 %v964, 2147483648
    %v1099 = vor.u32 1.1754944e-38, %v1098
    %v1100 = vsel %vm1097, %v1099, %v1095
    %v1101 = vrcp.pop %v967
    %v1102 = vmul.f32 %v967, %v1101
    %v1103 = vsub.f32 1.0, %v1102
    %v1104 = vmul.f32 %v1101, %v1103
    %v1105 = vadd.f32 %v1101, %v1104
    %vm1106 = vweird.f32 %v967
    %vm1107 = vweird.f32 %v1101
    %vm1108 = vmor %vm1106, %vm1107
    %v1109 = vsel %vm1108, %v1101, %v1105
    %v1110 = vand.u32 2147483647, %v967
    %vm1111 = vcmp.eq.f32.partialorder %v1110, 8.507059e+37
    %v1112 = vand.u32 %v967, 2147483648
    %v1113 = vor.u32 1.1754944e-38, %v1112
    %v1114 = vsel %vm1111, %v1113, %v1109
    %v1115 = vrcp.pop %v970
    %v1116 = vmul.f32 %v970, %v1115
    %v1117 = vsub.f32 1.0, %v1116
    %v1118 = vmul.f32 %v1115, %v1117
    %v1119 = vadd.f32 %v1115, %v1118
    %vm1120 = vweird.f32 %v970
    %vm1121 = vweird.f32 %v1115
    %vm1122 = vmor %vm1120, %vm1121
    %v1123 = vsel %vm1122, %v1115, %v1119
    %v1124 = vand.u32 2147483647, %v970
    %vm1125 = vcmp.eq.f32.partialorder %v1124, 8.507059e+37
    %v1126 = vand.u32 %v970, 2147483648
    %v1127 = vor.u32 1.1754944e-38, %v1126
    %v1128 = vsel %vm1125, %v1127, %v1123
    %v1129 = vrcp.pop %v973
    %v1130 = vmul.f32 %v973, %v1129
    %v1131 = vsub.f32 1.0, %v1130
    %v1132 = vmul.f32 %v1129, %v1131
    %v1133 = vadd.f32 %v1129, %v1132
    %vm1134 = vweird.f32 %v973
    %vm1135 = vweird.f32 %v1129
    %vm1136 = vmor %vm1134, %vm1135
    %v1137 = vsel %vm1136, %v1129, %v1133
    %v1138 = vand.u32 2147483647, %v973
    %vm1139 = vcmp.eq.f32.partialorder %v1138, 8.507059e+37
    %v1140 = vand.u32 %v973, 2147483648
    %v1141 = vor.u32 1.1754944e-38, %v1140
    %v1142 = vsel %vm1139, %v1141, %v1137
    %v1143 = vrcp.pop %v976
    %v1144 = vmul.f32 %v976, %v1143
    %v1145 = vsub.f32 1.0, %v1144
    %v1146 = vmul.f32 %v1143, %v1145
    %v1147 = vadd.f32 %v1143, %v1146
    %vm1148 = vweird.f32 %v976
    %vm1149 = vweird.f32 %v1143
    %vm1150 = vmor %vm1148, %vm1149
    %v1151 = vsel %vm1150, %v1143, %v1147
    %v1152 = vand.u32 2147483647, %v976
    %vm1153 = vcmp.eq.f32.partialorder %v1152, 8.507059e+37
    %v1154 = vand.u32 %v976, 2147483648
    %v1155 = vor.u32 1.1754944e-38, %v1154
    %v1156 = vsel %vm1153, %v1155, %v1151
    %v1157 = vrcp.pop %v979
    %v1158 = vmul.f32 %v979, %v1157
    %v1159 = vsub.f32 1.0, %v1158
    %v1160 = vmul.f32 %v1157, %v1159
    %v1161 = vadd.f32 %v1157, %v1160
    %vm1162 = vweird.f32 %v979
    %vm1163 = vweird.f32 %v1157
    %vm1164 = vmor %vm1162, %vm1163
    %v1165 = vsel %vm1164, %v1157, %v1161
    %v1166 = vand.u32 2147483647, %v979
    %vm1167 = vcmp.eq.f32.partialorder %v1166, 8.507059e+37
    %v1168 = vand.u32 %v979, 2147483648
    %v1169 = vor.u32 1.1754944e-38, %v1168
    %v1170 = vsel %vm1167, %v1169, %v1165
    %v1171 = vrcp.pop %v982
    %v1172 = vmul.f32 %v982, %v1171
    %v1173 = vsub.f32 1.0, %v1172
    %v1174 = vmul.f32 %v1171, %v1173
    %v1175 = vadd.f32 %v1171, %v1174
    %vm1176 = vweird.f32 %v982
    %vm1177 = vweird.f32 %v1171
    %vm1178 = vmor %vm1176, %vm1177
    %v1179 = vsel %vm1178, %v1171, %v1175
    %v1180 = vand.u32 2147483647, %v982
    %vm1181 = vcmp.eq.f32.partialorder %v1180, 8.507059e+37
    %v1182 = vand.u32 %v982, 2147483648
    %v1183 = vor.u32 1.1754944e-38, %v1182
    %v1184 = vsel %vm1181, %v1183, %v1179
    %v1185 = vrcp.pop %v985
    %v1186 = vmul.f32 %v985, %v1185
    %v1187 = vsub.f32 1.0, %v1186
    %v1188 = vmul.f32 %v1185, %v1187
    %v1189 = vadd.f32 %v1185, %v1188
    %vm1190 = vweird.f32 %v985
    %vm1191 = vweird.f32 %v1185
    %vm1192 = vmor %vm1190, %vm1191
    %v1193 = vsel %vm1192, %v1185, %v1189
    %v1194 = vand.u32 2147483647, %v985
    %vm1195 = vcmp.eq.f32.partialorder %v1194, 8.507059e+37
    %v1196 = vand.u32 %v985, 2147483648
    %v1197 = vor.u32 1.1754944e-38, %v1196
    %v1198 = vsel %vm1195, %v1197, %v1193
    %v1199 = vrcp.pop %v988
    %v1200 = vmul.f32 %v988, %v1199
    %v1201 = vsub.f32 1.0, %v1200
    %v1202 = vmul.f32 %v1199, %v1201
    %v1203 = vadd.f32 %v1199, %v1202
    %vm1204 = vweird.f32 %v988
    %vm1205 = vweird.f32 %v1199
    %vm1206 = vmor %vm1204, %vm1205
    %v1207 = vsel %vm1206, %v1199, %v1203
    %v1208 = vand.u32 2147483647, %v988
    %vm1209 = vcmp.eq.f32.partialorder %v1208, 8.507059e+37
    %v1210 = vand.u32 %v988, 2147483648
    %v1211 = vor.u32 1.1754944e-38, %v1210
    %v1212 = vsel %vm1209, %v1211, %v1207
    %v1213 = vmul.f32 %v910, %v1002
    %v1214 = vmul.f32 %v912, %v1016
    %v1215 = vmul.f32 %v914, %v1030
    %v1216 = vmul.f32 %v916, %v1044
    %v1217 = vmul.f32 %v918, %v1058
    %v1218 = vmul.f32 %v920, %v1072
    %v1219 = vmul.f32 %v922, %v1086
    %v1220 = vmul.f32 %v924, %v1100
    %v1221 = vmul.f32 %v926, %v1114
    %v1222 = vmul.f32 %v928, %v1128
    %v1223 = vmul.f32 %v930, %v1142
    %v1224 = vmul.f32 %v932, %v1156
    %v1225 = vmul.f32 %v934, %v1170
    %v1226 = vmul.f32 %v936, %v1184
    %v1227 = vmul.f32 %v938, %v1198
    %v1228 = vmul.f32 %v940, %v1212
    %v1229 = vmul.f32 %v158, %v469
    %v1230 = vmul.f32 %v161, %v469
    %v1231 = vmul.f32 %v164, %v469
    %v1232 = vmul.f32 %v167, %v469
    %v1233 = vmul.f32 %v170, %v469
    %v1234 = vmul.f32 %v173, %v469
    %v1235 = vmul.f32 %v176, %v469
    %v1236 = vmul.f32 %v179, %v469
    %v1237 = vmul.f32 %v182, %v469
    %v1238 = vmul.f32 %v185, %v469
    %v1239 = vmul.f32 %v188, %v469
    %v1240 = vmul.f32 %v191, %v469
    %v1241 = vmul.f32 %v194, %v469
    %v1242 = vmul.f32 %v197, %v469
    %v1243 = vmul.f32 %v200, %v469
    %v1244 = vmul.f32 %v203, %v469
    %1245 = vset.pattern.permute.xlu0 1
    %1246 = vperm.xlu0 %1245, %v340
    %v1247 = vpop.permute.xlu0 %1246
    %1249 = vset.pattern.permute.xlu0 1
    %1250 = vperm.xlu0 %1249, %v343
    %v1251 = vpop.permute.xlu0 %1250
    %1253 = vset.pattern.permute.xlu0 1
    %1254 = vperm.xlu0 %1253, %v346
    %v1255 = vpop.permute.xlu0 %1254
    %1257 = vset.pattern.permute.xlu0 1
    %1258 = vperm.xlu0 %1257, %v349
    %v1259 = vpop.permute.xlu0 %1258
    %1261 = vset.pattern.permute.xlu0 1
    %1262 = vperm.xlu0 %1261, %v352
    %v1263 = vpop.permute.xlu0 %1262
    %1265 = vset.pattern.permute.xlu0 1
    %1266 = vperm.xlu0 %1265, %v355
    %v1267 = vpop.permute.xlu0 %1266
    %1269 = vset.pattern.permute.xlu0 1
    %1270 = vperm.xlu0 %1269, %v358
    %v1271 = vpop.permute.xlu0 %1270
    %1273 = vset.pattern.permute.xlu0 1
    %1274 = vperm.xlu0 %1273, %v361
    %v1275 = vpop.permute.xlu0 %1274
    %1277 = vset.pattern.permute.xlu0 1
    %1278 = vperm.xlu0 %1277, %v364
    %v1279 = vpop.permute.xlu0 %1278
    %1281 = vset.pattern.permute.xlu0 1
    %1282 = vperm.xlu0 %1281, %v367
    %v1283 = vpop.permute.xlu0 %1282
    %1285 = vset.pattern.permute.xlu0 1
    %1286 = vperm.xlu0 %1285, %v370
    %v1287 = vpop.permute.xlu0 %1286
    %1289 = vset.pattern.permute.xlu0 1
    %1290 = vperm.xlu0 %1289, %v373
    %v1291 = vpop.permute.xlu0 %1290
    %1293 = vset.pattern.permute.xlu0 1
    %1294 = vperm.xlu0 %1293, %v376
    %v1295 = vpop.permute.xlu0 %1294
    %1297 = vset.pattern.permute.xlu0 1
    %1298 = vperm.xlu0 %1297, %v379
    %v1299 = vpop.permute.xlu0 %1298
    %1301 = vset.pattern.permute.xlu0 1
    %1302 = vperm.xlu0 %1301, %v382
    %v1303 = vpop.permute.xlu0 %1302
    %1305 = vset.pattern.permute.xlu0 1
    %1306 = vperm.xlu0 %1305, %v385
    %v1307 = vpop.permute.xlu0 %1306
    %v1309 = vmul.f32 %v463, %v1247
    %v1310 = vmul.f32 %v464, %v1251
    %v1311 = vmul.f32 %v463, %v1255
    %v1312 = vmul.f32 %v464, %v1259
    %v1313 = vmul.f32 %v463, %v1263
    %v1314 = vmul.f32 %v464, %v1267
    %v1315 = vmul.f32 %v463, %v1271
    %v1316 = vmul.f32 %v464, %v1275
    %v1317 = vmul.f32 %v463, %v1279
    %v1318 = vmul.f32 %v464, %v1283
    %v1319 = vmul.f32 %v463, %v1287
    %v1320 = vmul.f32 %v464, %v1291
    %v1321 = vmul.f32 %v463, %v1295
    %v1322 = vmul.f32 %v464, %v1299
    %v1323 = vmul.f32 %v463, %v1303
    %v1324 = vmul.f32 %v464, %v1307
    %v1325 = vsel %vm273, %v1309, 0.0
    %v1326 = vsel %vm273, %v1310, 0.0
    %v1327 = vadd.f32 %v1325, %v1326
    %v1328 = vrot.slane %v1327, 4
    %v1329 = vadd.f32 %v1327, %v1328
    %v1330 = vrot.slane %v1329, 2
    %v1331 = vadd.f32 %v1329, %v1330
    %v1332 = vrot.slane %v1331, 1
    %v1333 = vadd.f32 %v1331, %v1332
    %v1334 = vsel %vm273, %v1311, 0.0
    %v1335 = vsel %vm273, %v1312, 0.0
    %v1336 = vadd.f32 %v1334, %v1335
    %v1337 = vrot.slane %v1336, 4
    %v1338 = vadd.f32 %v1336, %v1337
    %v1339 = vrot.slane %v1338, 2
    %v1340 = vadd.f32 %v1338, %v1339
    %v1341 = vrot.slane %v1340, 1
    %v1342 = vadd.f32 %v1340, %v1341
    %v1343 = vsel %vm273, %v1313, 0.0
    %v1344 = vsel %vm273, %v1314, 0.0
    %v1345 = vadd.f32 %v1343, %v1344
    %v1346 = vrot.slane %v1345, 4
    %v1347 = vadd.f32 %v1345, %v1346
    %v1348 = vrot.slane %v1347, 2
    %v1349 = vadd.f32 %v1347, %v1348
    %v1350 = vrot.slane %v1349, 1
    %v1351 = vadd.f32 %v1349, %v1350
    %v1352 = vsel %vm273, %v1315, 0.0
    %v1353 = vsel %vm273, %v1316, 0.0
    %v1354 = vadd.f32 %v1352, %v1353
    %v1355 = vrot.slane %v1354, 4
    %v1356 = vadd.f32 %v1354, %v1355
    %v1357 = vrot.slane %v1356, 2
    %v1358 = vadd.f32 %v1356, %v1357
    %v1359 = vrot.slane %v1358, 1
    %v1360 = vadd.f32 %v1358, %v1359
    %v1361 = vsel %vm273, %v1317, 0.0
    %v1362 = vsel %vm273, %v1318, 0.0
    %v1363 = vadd.f32 %v1361, %v1362
    %v1364 = vrot.slane %v1363, 4
    %v1365 = vadd.f32 %v1363, %v1364
    %v1366 = vrot.slane %v1365, 2
    %v1367 = vadd.f32 %v1365, %v1366
    %v1368 = vrot.slane %v1367, 1
    %v1369 = vadd.f32 %v1367, %v1368
    %v1370 = vsel %vm273, %v1319, 0.0
    %v1371 = vsel %vm273, %v1320, 0.0
    %v1372 = vadd.f32 %v1370, %v1371
    %v1373 = vrot.slane %v1372, 4
    %v1374 = vadd.f32 %v1372, %v1373
    %v1375 = vrot.slane %v1374, 2
    %v1376 = vadd.f32 %v1374, %v1375
    %v1377 = vrot.slane %v1376, 1
    %v1378 = vadd.f32 %v1376, %v1377
    %v1379 = vsel %vm273, %v1321, 0.0
    %v1380 = vsel %vm273, %v1322, 0.0
    %v1381 = vadd.f32 %v1379, %v1380
    %v1382 = vrot.slane %v1381, 4
    %v1383 = vadd.f32 %v1381, %v1382
    %v1384 = vrot.slane %v1383, 2
    %v1385 = vadd.f32 %v1383, %v1384
    %v1386 = vrot.slane %v1385, 1
    %v1387 = vadd.f32 %v1385, %v1386
    %v1388 = vsel %vm273, %v1323, 0.0
    %v1389 = vsel %vm273, %v1324, 0.0
    %v1390 = vadd.f32 %v1388, %v1389
    %v1391 = vrot.slane %v1390, 4
    %v1392 = vadd.f32 %v1390, %v1391
    %v1393 = vrot.slane %v1392, 2
    %v1394 = vadd.f32 %v1392, %v1393
    %v1395 = vrot.slane %v1394, 1
    %v1396 = vadd.f32 %v1394, %v1395
    %1397 = vset.pattern.permute.xlu0 1
    %1398 = vperm.xlu0 %1397, %v407
    %v1399 = vpop.permute.xlu0 %1398
    %1401 = vset.pattern.permute.xlu0 1
    %1402 = vperm.xlu0 %1401, %v410
    %v1403 = vpop.permute.xlu0 %1402
    %1405 = vset.pattern.permute.xlu0 1
    %1406 = vperm.xlu0 %1405, %v413
    %v1407 = vpop.permute.xlu0 %1406
    %1409 = vset.pattern.permute.xlu0 1
    %1410 = vperm.xlu0 %1409, %v416
    %v1411 = vpop.permute.xlu0 %1410
    %1413 = vset.pattern.permute.xlu0 1
    %1414 = vperm.xlu0 %1413, %v419
    %v1415 = vpop.permute.xlu0 %1414
    %1417 = vset.pattern.permute.xlu0 1
    %1418 = vperm.xlu0 %1417, %v422
    %v1419 = vpop.permute.xlu0 %1418
    %1421 = vset.pattern.permute.xlu0 1
    %1422 = vperm.xlu0 %1421, %v425
    %v1423 = vpop.permute.xlu0 %1422
    %1425 = vset.pattern.permute.xlu0 1
    %1426 = vperm.xlu0 %1425, %v428
    %v1427 = vpop.permute.xlu0 %1426
    %1429 = vset.pattern.permute.xlu0 1
    %1430 = vperm.xlu0 %1429, %v431
    %v1431 = vpop.permute.xlu0 %1430
    %1433 = vset.pattern.permute.xlu0 1
    %1434 = vperm.xlu0 %1433, %v434
    %v1435 = vpop.permute.xlu0 %1434
    %1437 = vset.pattern.permute.xlu0 1
    %1438 = vperm.xlu0 %1437, %v437
    %v1439 = vpop.permute.xlu0 %1438
    %1441 = vset.pattern.permute.xlu0 1
    %1442 = vperm.xlu0 %1441, %v440
    %v1443 = vpop.permute.xlu0 %1442
    %1445 = vset.pattern.permute.xlu0 1
    %1446 = vperm.xlu0 %1445, %v443
    %v1447 = vpop.permute.xlu0 %1446
    %1449 = vset.pattern.permute.xlu0 1
    %1450 = vperm.xlu0 %1449, %v446
    %v1451 = vpop.permute.xlu0 %1450
    %1453 = vset.pattern.permute.xlu0 1
    %1454 = vperm.xlu0 %1453, %v449
    %v1455 = vpop.permute.xlu0 %1454
    %1457 = vset.pattern.permute.xlu0 1
    %1458 = vperm.xlu0 %1457, %v452
    %v1459 = vpop.permute.xlu0 %1458
    %v1461 = vadd.f32 %v1399, %v1333
    %v1462 = vadd.f32 %v1403, %v1333
    %v1463 = vadd.f32 %v1407, %v1342
    %v1464 = vadd.f32 %v1411, %v1342
    %v1465 = vadd.f32 %v1415, %v1351
    %v1466 = vadd.f32 %v1419, %v1351
    %v1467 = vadd.f32 %v1423, %v1360
    %v1468 = vadd.f32 %v1427, %v1360
    %v1469 = vadd.f32 %v1431, %v1369
    %v1470 = vadd.f32 %v1435, %v1369
    %v1471 = vadd.f32 %v1439, %v1378
    %v1472 = vadd.f32 %v1443, %v1378
    %v1473 = vadd.f32 %v1447, %v1387
    %v1474 = vadd.f32 %v1451, %v1387
    %v1475 = vadd.f32 %v1455, %v1396
    %v1476 = vadd.f32 %v1459, %v1396
    %v1477 = vmul.f32 %v58, %v1461
    %v1478 = vmul.f32 %v59, %v1462
    %v1479 = vmul.f32 %v60, %v1463
    %v1480 = vmul.f32 %v61, %v1464
    %v1481 = vmul.f32 %v62, %v1465
    %v1482 = vmul.f32 %v63, %v1466
    %v1483 = vmul.f32 %v64, %v1467
    %v1484 = vmul.f32 %v65, %v1468
    %v1485 = vmul.f32 %v66, %v1469
    %v1486 = vmul.f32 %v67, %v1470
    %v1487 = vmul.f32 %v68, %v1471
    %v1488 = vmul.f32 %v69, %v1472
    %v1489 = vmul.f32 %v70, %v1473
    %v1490 = vmul.f32 %v71, %v1474
    %v1491 = vmul.f32 %v72, %v1475
    %v1492 = vmul.f32 %v73, %v1476
    %vm1493 = vcmp.gt.f32.partialorder %v1477, 0.0
    %vm1494 = vcmp.gt.f32.partialorder %v1478, 0.0
    %vm1495 = vcmp.gt.f32.partialorder %v1479, 0.0
    %vm1496 = vcmp.gt.f32.partialorder %v1480, 0.0
    %vm1497 = vcmp.gt.f32.partialorder %v1481, 0.0
    %vm1498 = vcmp.gt.f32.partialorder %v1482, 0.0
    %vm1499 = vcmp.gt.f32.partialorder %v1483, 0.0
    %vm1500 = vcmp.gt.f32.partialorder %v1484, 0.0
    %vm1501 = vcmp.gt.f32.partialorder %v1485, 0.0
    %vm1502 = vcmp.gt.f32.partialorder %v1486, 0.0
    %vm1503 = vcmp.gt.f32.partialorder %v1487, 0.0
    %vm1504 = vcmp.gt.f32.partialorder %v1488, 0.0
    %vm1505 = vcmp.gt.f32.partialorder %v1489, 0.0
    %vm1506 = vcmp.gt.f32.partialorder %v1490, 0.0
    %vm1507 = vcmp.gt.f32.partialorder %v1491, 0.0
    %vm1508 = vcmp.gt.f32.partialorder %v1492, 0.0
    %v1509 = vmul.f32 %v1477, 0.2
    %v1510 = vmul.f32 %v1478, 0.2
    %v1511 = vmul.f32 %v1479, 0.2
    %v1512 = vmul.f32 %v1480, 0.2
    %v1513 = vmul.f32 %v1481, 0.2
    %v1514 = vmul.f32 %v1482, 0.2
    %v1515 = vmul.f32 %v1483, 0.2
    %v1516 = vmul.f32 %v1484, 0.2
    %v1517 = vmul.f32 %v1485, 0.2
    %v1518 = vmul.f32 %v1486, 0.2
    %v1519 = vmul.f32 %v1487, 0.2
    %v1520 = vmul.f32 %v1488, 0.2
    %v1521 = vmul.f32 %v1489, 0.2
    %v1522 = vmul.f32 %v1490, 0.2
    %v1523 = vmul.f32 %v1491, 0.2
    %v1524 = vmul.f32 %v1492, 0.2
    %v1525 = vsel %vm1493, %v1477, %v1509
    %v1526 = vsel %vm1494, %v1478, %v1510
    %v1527 = vsel %vm1495, %v1479, %v1511
    %v1528 = vsel %vm1496, %v1480, %v1512
    %v1529 = vsel %vm1497, %v1481, %v1513
    %v1530 = vsel %vm1498, %v1482, %v1514
    %v1531 = vsel %vm1499, %v1483, %v1515
    %v1532 = vsel %vm1500, %v1484, %v1516
    %v1533 = vsel %vm1501, %v1485, %v1517
    %v1534 = vsel %vm1502, %v1486, %v1518
    %v1535 = vsel %vm1503, %v1487, %v1519
    %v1536 = vsel %vm1504, %v1488, %v1520
    %v1537 = vsel %vm1505, %v1489, %v1521
    %v1538 = vsel %vm1506, %v1490, %v1522
    %v1539 = vsel %vm1507, %v1491, %v1523
    %v1540 = vsel %vm1508, %v1492, %v1524
    %v1541 = vsel %vm813, %v1525, -1e+09
    %v1542 = vsel %vm814, %v1526, -1e+09
    %v1543 = vsel %vm815, %v1527, -1e+09
    %v1544 = vsel %vm816, %v1528, -1e+09
    %v1545 = vsel %vm817, %v1529, -1e+09
    %v1546 = vsel %vm818, %v1530, -1e+09
    %v1547 = vsel %vm819, %v1531, -1e+09
    %v1548 = vsel %vm820, %v1532, -1e+09
    %v1549 = vsel %vm821, %v1533, -1e+09
    %v1550 = vsel %vm822, %v1534, -1e+09
    %v1551 = vsel %vm823, %v1535, -1e+09
    %v1552 = vsel %vm824, %v1536, -1e+09
    %v1553 = vsel %vm825, %v1537, -1e+09
    %v1554 = vsel %vm826, %v1538, -1e+09
    %v1555 = vsel %vm827, %v1539, -1e+09
    %v1556 = vsel %vm828, %v1540, -1e+09
    %v1557 = vsel %vm273, %v1541, -inf
    %1558 = vmax.xlane.f32.xlu0 %v1557
    %v1559 = vpop.xlane.xlu0 %1558
    %v1560 = vsel %vm273, %v1542, -inf
    %1561 = vmax.xlane.f32.xlu0 %v1560
    %v1562 = vpop.xlane.xlu0 %1561
    %v1563 = vsel %vm273, %v1543, -inf
    %1564 = vmax.xlane.f32.xlu0 %v1563
    %v1565 = vpop.xlane.xlu0 %1564
    %v1566 = vsel %vm273, %v1544, -inf
    %1567 = vmax.xlane.f32.xlu0 %v1566
    %v1568 = vpop.xlane.xlu0 %1567
    %v1569 = vsel %vm273, %v1545, -inf
    %1570 = vmax.xlane.f32.xlu0 %v1569
    %v1571 = vpop.xlane.xlu0 %1570
    %v1572 = vsel %vm273, %v1546, -inf
    %1573 = vmax.xlane.f32.xlu0 %v1572
    %v1574 = vpop.xlane.xlu0 %1573
    %v1575 = vsel %vm273, %v1547, -inf
    %1576 = vmax.xlane.f32.xlu0 %v1575
    %v1577 = vpop.xlane.xlu0 %1576
    %v1578 = vsel %vm273, %v1548, -inf
    %1579 = vmax.xlane.f32.xlu0 %v1578
    %v1580 = vpop.xlane.xlu0 %1579
    %v1581 = vsel %vm273, %v1549, -inf
    %1582 = vmax.xlane.f32.xlu0 %v1581
    %v1583 = vpop.xlane.xlu0 %1582
    %v1584 = vsel %vm273, %v1550, -inf
    %1585 = vmax.xlane.f32.xlu0 %v1584
    %v1586 = vpop.xlane.xlu0 %1585
    %v1587 = vsel %vm273, %v1551, -inf
    %1588 = vmax.xlane.f32.xlu0 %v1587
    %v1589 = vpop.xlane.xlu0 %1588
    %v1590 = vsel %vm273, %v1552, -inf
    %1591 = vmax.xlane.f32.xlu0 %v1590
    %v1592 = vpop.xlane.xlu0 %1591
    %v1593 = vsel %vm273, %v1553, -inf
    %1594 = vmax.xlane.f32.xlu0 %v1593
    %v1595 = vpop.xlane.xlu0 %1594
    %v1596 = vsel %vm273, %v1554, -inf
    %1597 = vmax.xlane.f32.xlu0 %v1596
    %v1598 = vpop.xlane.xlu0 %1597
    %v1599 = vsel %vm273, %v1555, -inf
    %1600 = vmax.xlane.f32.xlu0 %v1599
    %v1601 = vpop.xlane.xlu0 %1600
    %v1602 = vsel %vm273, %v1556, -inf
    %1603 = vmax.xlane.f32.xlu0 %v1602
    %v1604 = vpop.xlane.xlu0 %1603
    %v1605 = vsub.f32 %v1541, %v1559
    %v1606 = vsub.f32 %v1542, %v1562
    %v1607 = vsub.f32 %v1543, %v1565
    %v1608 = vsub.f32 %v1544, %v1568
    %v1609 = vsub.f32 %v1545, %v1571
    %v1610 = vsub.f32 %v1546, %v1574
    %v1611 = vsub.f32 %v1547, %v1577
    %v1612 = vsub.f32 %v1548, %v1580
    %v1613 = vsub.f32 %v1549, %v1583
    %v1614 = vsub.f32 %v1550, %v1586
    %v1615 = vsub.f32 %v1551, %v1589
    %v1616 = vsub.f32 %v1552, %v1592
    %v1617 = vsub.f32 %v1553, %v1595
    %v1618 = vsub.f32 %v1554, %v1598
    %v1619 = vsub.f32 %v1555, %v1601
    %v1620 = vsub.f32 %v1556, %v1604
    %v1621 = vmul.f32 %v1605, 1.442695
    %v1622 = vpow.pop %v1621
    %v1623 = vmul.f32 %v1606, 1.442695
    %v1624 = vpow.pop %v1623
    %v1625 = vmul.f32 %v1607, 1.442695
    %v1626 = vpow.pop %v1625
    %v1627 = vmul.f32 %v1608, 1.442695
    %v1628 = vpow.pop %v1627
    %v1629 = vmul.f32 %v1609, 1.442695
    %v1630 = vpow.pop %v1629
    %v1631 = vmul.f32 %v1610, 1.442695
    %v1632 = vpow.pop %v1631
    %v1633 = vmul.f32 %v1611, 1.442695
    %v1634 = vpow.pop %v1633
    %v1635 = vmul.f32 %v1612, 1.442695
    %v1636 = vpow.pop %v1635
    %v1637 = vmul.f32 %v1613, 1.442695
    %v1638 = vpow.pop %v1637
    %v1639 = vmul.f32 %v1614, 1.442695
    %v1640 = vpow.pop %v1639
    %v1641 = vmul.f32 %v1615, 1.442695
    %v1642 = vpow.pop %v1641
    %v1643 = vmul.f32 %v1616, 1.442695
    %v1644 = vpow.pop %v1643
    %v1645 = vmul.f32 %v1617, 1.442695
    %v1646 = vpow.pop %v1645
    %v1647 = vmul.f32 %v1618, 1.442695
    %v1648 = vpow.pop %v1647
    %v1649 = vmul.f32 %v1619, 1.442695
    %v1650 = vpow.pop %v1649
    %v1651 = vmul.f32 %v1620, 1.442695
    %v1652 = vpow.pop %v1651
    %v1653 = vsel %vm273, %v1622, 0.0
    %1654 = vadd.xlane.f32.xlu0 %v1653
    %v1655 = vpop.xlane.xlu0 %1654
    %v1656 = vsel %vm273, %v1624, 0.0
    %1657 = vadd.xlane.f32.xlu0 %v1656
    %v1658 = vpop.xlane.xlu0 %1657
    %v1659 = vsel %vm273, %v1626, 0.0
    %1660 = vadd.xlane.f32.xlu0 %v1659
    %v1661 = vpop.xlane.xlu0 %1660
    %v1662 = vsel %vm273, %v1628, 0.0
    %1663 = vadd.xlane.f32.xlu0 %v1662
    %v1664 = vpop.xlane.xlu0 %1663
    %v1665 = vsel %vm273, %v1630, 0.0
    %1666 = vadd.xlane.f32.xlu0 %v1665
    %v1667 = vpop.xlane.xlu0 %1666
    %v1668 = vsel %vm273, %v1632, 0.0
    %1669 = vadd.xlane.f32.xlu0 %v1668
    %v1670 = vpop.xlane.xlu0 %1669
    %v1671 = vsel %vm273, %v1634, 0.0
    %1672 = vadd.xlane.f32.xlu0 %v1671
    %v1673 = vpop.xlane.xlu0 %1672
    %v1674 = vsel %vm273, %v1636, 0.0
    %1675 = vadd.xlane.f32.xlu0 %v1674
    %v1676 = vpop.xlane.xlu0 %1675
    %v1677 = vsel %vm273, %v1638, 0.0
    %1678 = vadd.xlane.f32.xlu0 %v1677
    %v1679 = vpop.xlane.xlu0 %1678
    %v1680 = vsel %vm273, %v1640, 0.0
    %1681 = vadd.xlane.f32.xlu0 %v1680
    %v1682 = vpop.xlane.xlu0 %1681
    %v1683 = vsel %vm273, %v1642, 0.0
    %1684 = vadd.xlane.f32.xlu0 %v1683
    %v1685 = vpop.xlane.xlu0 %1684
    %v1686 = vsel %vm273, %v1644, 0.0
    %1687 = vadd.xlane.f32.xlu0 %v1686
    %v1688 = vpop.xlane.xlu0 %1687
    %v1689 = vsel %vm273, %v1646, 0.0
    %1690 = vadd.xlane.f32.xlu0 %v1689
    %v1691 = vpop.xlane.xlu0 %1690
    %v1692 = vsel %vm273, %v1648, 0.0
    %1693 = vadd.xlane.f32.xlu0 %v1692
    %v1694 = vpop.xlane.xlu0 %1693
    %v1695 = vsel %vm273, %v1650, 0.0
    %1696 = vadd.xlane.f32.xlu0 %v1695
    %v1697 = vpop.xlane.xlu0 %1696
    %v1698 = vsel %vm273, %v1652, 0.0
    %1699 = vadd.xlane.f32.xlu0 %v1698
    %v1700 = vpop.xlane.xlu0 %1699
    %v1701 = vrcp.pop %v1655
    %v1702 = vmul.f32 %v1655, %v1701
    %v1703 = vsub.f32 1.0, %v1702
    %v1704 = vmul.f32 %v1701, %v1703
    %v1705 = vadd.f32 %v1701, %v1704
    %vm1706 = vweird.f32 %v1655
    %vm1707 = vweird.f32 %v1701
    %vm1708 = vmor %vm1706, %vm1707
    %v1709 = vsel %vm1708, %v1701, %v1705
    %v1710 = vand.u32 2147483647, %v1655
    %vm1711 = vcmp.eq.f32.partialorder %v1710, 8.507059e+37
    %v1712 = vand.u32 %v1655, 2147483648
    %v1713 = vor.u32 1.1754944e-38, %v1712
    %v1714 = vsel %vm1711, %v1713, %v1709
    %v1715 = vrcp.pop %v1658
    %v1716 = vmul.f32 %v1658, %v1715
    %v1717 = vsub.f32 1.0, %v1716
    %v1718 = vmul.f32 %v1715, %v1717
    %v1719 = vadd.f32 %v1715, %v1718
    %vm1720 = vweird.f32 %v1658
    %vm1721 = vweird.f32 %v1715
    %vm1722 = vmor %vm1720, %vm1721
    %v1723 = vsel %vm1722, %v1715, %v1719
    %v1724 = vand.u32 2147483647, %v1658
    %vm1725 = vcmp.eq.f32.partialorder %v1724, 8.507059e+37
    %v1726 = vand.u32 %v1658, 2147483648
    %v1727 = vor.u32 1.1754944e-38, %v1726
    %v1728 = vsel %vm1725, %v1727, %v1723
    %v1729 = vrcp.pop %v1661
    %v1730 = vmul.f32 %v1661, %v1729
    %v1731 = vsub.f32 1.0, %v1730
    %v1732 = vmul.f32 %v1729, %v1731
    %v1733 = vadd.f32 %v1729, %v1732
    %vm1734 = vweird.f32 %v1661
    %vm1735 = vweird.f32 %v1729
    %vm1736 = vmor %vm1734, %vm1735
    %v1737 = vsel %vm1736, %v1729, %v1733
    %v1738 = vand.u32 2147483647, %v1661
    %vm1739 = vcmp.eq.f32.partialorder %v1738, 8.507059e+37
    %v1740 = vand.u32 %v1661, 2147483648
    %v1741 = vor.u32 1.1754944e-38, %v1740
    %v1742 = vsel %vm1739, %v1741, %v1737
    %v1743 = vrcp.pop %v1664
    %v1744 = vmul.f32 %v1664, %v1743
    %v1745 = vsub.f32 1.0, %v1744
    %v1746 = vmul.f32 %v1743, %v1745
    %v1747 = vadd.f32 %v1743, %v1746
    %vm1748 = vweird.f32 %v1664
    %vm1749 = vweird.f32 %v1743
    %vm1750 = vmor %vm1748, %vm1749
    %v1751 = vsel %vm1750, %v1743, %v1747
    %v1752 = vand.u32 2147483647, %v1664
    %vm1753 = vcmp.eq.f32.partialorder %v1752, 8.507059e+37
    %v1754 = vand.u32 %v1664, 2147483648
    %v1755 = vor.u32 1.1754944e-38, %v1754
    %v1756 = vsel %vm1753, %v1755, %v1751
    %v1757 = vrcp.pop %v1667
    %v1758 = vmul.f32 %v1667, %v1757
    %v1759 = vsub.f32 1.0, %v1758
    %v1760 = vmul.f32 %v1757, %v1759
    %v1761 = vadd.f32 %v1757, %v1760
    %vm1762 = vweird.f32 %v1667
    %vm1763 = vweird.f32 %v1757
    %vm1764 = vmor %vm1762, %vm1763
    %v1765 = vsel %vm1764, %v1757, %v1761
    %v1766 = vand.u32 2147483647, %v1667
    %vm1767 = vcmp.eq.f32.partialorder %v1766, 8.507059e+37
    %v1768 = vand.u32 %v1667, 2147483648
    %v1769 = vor.u32 1.1754944e-38, %v1768
    %v1770 = vsel %vm1767, %v1769, %v1765
    %v1771 = vrcp.pop %v1670
    %v1772 = vmul.f32 %v1670, %v1771
    %v1773 = vsub.f32 1.0, %v1772
    %v1774 = vmul.f32 %v1771, %v1773
    %v1775 = vadd.f32 %v1771, %v1774
    %vm1776 = vweird.f32 %v1670
    %vm1777 = vweird.f32 %v1771
    %vm1778 = vmor %vm1776, %vm1777
    %v1779 = vsel %vm1778, %v1771, %v1775
    %v1780 = vand.u32 2147483647, %v1670
    %vm1781 = vcmp.eq.f32.partialorder %v1780, 8.507059e+37
    %v1782 = vand.u32 %v1670, 2147483648
    %v1783 = vor.u32 1.1754944e-38, %v1782
    %v1784 = vsel %vm1781, %v1783, %v1779
    %v1785 = vrcp.pop %v1673
    %v1786 = vmul.f32 %v1673, %v1785
    %v1787 = vsub.f32 1.0, %v1786
    %v1788 = vmul.f32 %v1785, %v1787
    %v1789 = vadd.f32 %v1785, %v1788
    %vm1790 = vweird.f32 %v1673
    %vm1791 = vweird.f32 %v1785
    %vm1792 = vmor %vm1790, %vm1791
    %v1793 = vsel %vm1792, %v1785, %v1789
    %v1794 = vand.u32 2147483647, %v1673
    %vm1795 = vcmp.eq.f32.partialorder %v1794, 8.507059e+37
    %v1796 = vand.u32 %v1673, 2147483648
    %v1797 = vor.u32 1.1754944e-38, %v1796
    %v1798 = vsel %vm1795, %v1797, %v1793
    %v1799 = vrcp.pop %v1676
    %v1800 = vmul.f32 %v1676, %v1799
    %v1801 = vsub.f32 1.0, %v1800
    %v1802 = vmul.f32 %v1799, %v1801
    %v1803 = vadd.f32 %v1799, %v1802
    %vm1804 = vweird.f32 %v1676
    %vm1805 = vweird.f32 %v1799
    %vm1806 = vmor %vm1804, %vm1805
    %v1807 = vsel %vm1806, %v1799, %v1803
    %v1808 = vand.u32 2147483647, %v1676
    %vm1809 = vcmp.eq.f32.partialorder %v1808, 8.507059e+37
    %v1810 = vand.u32 %v1676, 2147483648
    %v1811 = vor.u32 1.1754944e-38, %v1810
    %v1812 = vsel %vm1809, %v1811, %v1807
    %v1813 = vrcp.pop %v1679
    %v1814 = vmul.f32 %v1679, %v1813
    %v1815 = vsub.f32 1.0, %v1814
    %v1816 = vmul.f32 %v1813, %v1815
    %v1817 = vadd.f32 %v1813, %v1816
    %vm1818 = vweird.f32 %v1679
    %vm1819 = vweird.f32 %v1813
    %vm1820 = vmor %vm1818, %vm1819
    %v1821 = vsel %vm1820, %v1813, %v1817
    %v1822 = vand.u32 2147483647, %v1679
    %vm1823 = vcmp.eq.f32.partialorder %v1822, 8.507059e+37
    %v1824 = vand.u32 %v1679, 2147483648
    %v1825 = vor.u32 1.1754944e-38, %v1824
    %v1826 = vsel %vm1823, %v1825, %v1821
    %v1827 = vrcp.pop %v1682
    %v1828 = vmul.f32 %v1682, %v1827
    %v1829 = vsub.f32 1.0, %v1828
    %v1830 = vmul.f32 %v1827, %v1829
    %v1831 = vadd.f32 %v1827, %v1830
    %vm1832 = vweird.f32 %v1682
    %vm1833 = vweird.f32 %v1827
    %vm1834 = vmor %vm1832, %vm1833
    %v1835 = vsel %vm1834, %v1827, %v1831
    %v1836 = vand.u32 2147483647, %v1682
    %vm1837 = vcmp.eq.f32.partialorder %v1836, 8.507059e+37
    %v1838 = vand.u32 %v1682, 2147483648
    %v1839 = vor.u32 1.1754944e-38, %v1838
    %v1840 = vsel %vm1837, %v1839, %v1835
    %v1841 = vrcp.pop %v1685
    %v1842 = vmul.f32 %v1685, %v1841
    %v1843 = vsub.f32 1.0, %v1842
    %v1844 = vmul.f32 %v1841, %v1843
    %v1845 = vadd.f32 %v1841, %v1844
    %vm1846 = vweird.f32 %v1685
    %vm1847 = vweird.f32 %v1841
    %vm1848 = vmor %vm1846, %vm1847
    %v1849 = vsel %vm1848, %v1841, %v1845
    %v1850 = vand.u32 2147483647, %v1685
    %vm1851 = vcmp.eq.f32.partialorder %v1850, 8.507059e+37
    %v1852 = vand.u32 %v1685, 2147483648
    %v1853 = vor.u32 1.1754944e-38, %v1852
    %v1854 = vsel %vm1851, %v1853, %v1849
    %v1855 = vrcp.pop %v1688
    %v1856 = vmul.f32 %v1688, %v1855
    %v1857 = vsub.f32 1.0, %v1856
    %v1858 = vmul.f32 %v1855, %v1857
    %v1859 = vadd.f32 %v1855, %v1858
    %vm1860 = vweird.f32 %v1688
    %vm1861 = vweird.f32 %v1855
    %vm1862 = vmor %vm1860, %vm1861
    %v1863 = vsel %vm1862, %v1855, %v1859
    %v1864 = vand.u32 2147483647, %v1688
    %vm1865 = vcmp.eq.f32.partialorder %v1864, 8.507059e+37
    %v1866 = vand.u32 %v1688, 2147483648
    %v1867 = vor.u32 1.1754944e-38, %v1866
    %v1868 = vsel %vm1865, %v1867, %v1863
    %v1869 = vrcp.pop %v1691
    %v1870 = vmul.f32 %v1691, %v1869
    %v1871 = vsub.f32 1.0, %v1870
    %v1872 = vmul.f32 %v1869, %v1871
    %v1873 = vadd.f32 %v1869, %v1872
    %vm1874 = vweird.f32 %v1691
    %vm1875 = vweird.f32 %v1869
    %vm1876 = vmor %vm1874, %vm1875
    %v1877 = vsel %vm1876, %v1869, %v1873
    %v1878 = vand.u32 2147483647, %v1691
    %vm1879 = vcmp.eq.f32.partialorder %v1878, 8.507059e+37
    %v1880 = vand.u32 %v1691, 2147483648
    %v1881 = vor.u32 1.1754944e-38, %v1880
    %v1882 = vsel %vm1879, %v1881, %v1877
    %v1883 = vrcp.pop %v1694
    %v1884 = vmul.f32 %v1694, %v1883
    %v1885 = vsub.f32 1.0, %v1884
    %v1886 = vmul.f32 %v1883, %v1885
    %v1887 = vadd.f32 %v1883, %v1886
    %vm1888 = vweird.f32 %v1694
    %vm1889 = vweird.f32 %v1883
    %vm1890 = vmor %vm1888, %vm1889
    %v1891 = vsel %vm1890, %v1883, %v1887
    %v1892 = vand.u32 2147483647, %v1694
    %vm1893 = vcmp.eq.f32.partialorder %v1892, 8.507059e+37
    %v1894 = vand.u32 %v1694, 2147483648
    %v1895 = vor.u32 1.1754944e-38, %v1894
    %v1896 = vsel %vm1893, %v1895, %v1891
    %v1897 = vrcp.pop %v1697
    %v1898 = vmul.f32 %v1697, %v1897
    %v1899 = vsub.f32 1.0, %v1898
    %v1900 = vmul.f32 %v1897, %v1899
    %v1901 = vadd.f32 %v1897, %v1900
    %vm1902 = vweird.f32 %v1697
    %vm1903 = vweird.f32 %v1897
    %vm1904 = vmor %vm1902, %vm1903
    %v1905 = vsel %vm1904, %v1897, %v1901
    %v1906 = vand.u32 2147483647, %v1697
    %vm1907 = vcmp.eq.f32.partialorder %v1906, 8.507059e+37
    %v1908 = vand.u32 %v1697, 2147483648
    %v1909 = vor.u32 1.1754944e-38, %v1908
    %v1910 = vsel %vm1907, %v1909, %v1905
    %v1911 = vrcp.pop %v1700
    %v1912 = vmul.f32 %v1700, %v1911
    %v1913 = vsub.f32 1.0, %v1912
    %v1914 = vmul.f32 %v1911, %v1913
    %v1915 = vadd.f32 %v1911, %v1914
    %vm1916 = vweird.f32 %v1700
    %vm1917 = vweird.f32 %v1911
    %vm1918 = vmor %vm1916, %vm1917
    %v1919 = vsel %vm1918, %v1911, %v1915
    %v1920 = vand.u32 2147483647, %v1700
    %vm1921 = vcmp.eq.f32.partialorder %v1920, 8.507059e+37
    %v1922 = vand.u32 %v1700, 2147483648
    %v1923 = vor.u32 1.1754944e-38, %v1922
    %v1924 = vsel %vm1921, %v1923, %v1919
    %v1925 = vmul.f32 %v1622, %v1714
    %v1926 = vmul.f32 %v1624, %v1728
    %v1927 = vmul.f32 %v1626, %v1742
    %v1928 = vmul.f32 %v1628, %v1756
    %v1929 = vmul.f32 %v1630, %v1770
    %v1930 = vmul.f32 %v1632, %v1784
    %v1931 = vmul.f32 %v1634, %v1798
    %v1932 = vmul.f32 %v1636, %v1812
    %v1933 = vmul.f32 %v1638, %v1826
    %v1934 = vmul.f32 %v1640, %v1840
    %v1935 = vmul.f32 %v1642, %v1854
    %v1936 = vmul.f32 %v1644, %v1868
    %v1937 = vmul.f32 %v1646, %v1882
    %v1938 = vmul.f32 %v1648, %v1896
    %v1939 = vmul.f32 %v1650, %v1910
    %v1940 = vmul.f32 %v1652, %v1924
    %v1941 = vmul.f32 %v158, %v474
    %v1942 = vmul.f32 %v161, %v474
    %v1943 = vmul.f32 %v164, %v474
    %v1944 = vmul.f32 %v167, %v474
    %v1945 = vmul.f32 %v170, %v474
    %v1946 = vmul.f32 %v173, %v474
    %v1947 = vmul.f32 %v176, %v474
    %v1948 = vmul.f32 %v179, %v474
    %v1949 = vmul.f32 %v182, %v474
    %v1950 = vmul.f32 %v185, %v474
    %v1951 = vmul.f32 %v188, %v474
    %v1952 = vmul.f32 %v191, %v474
    %v1953 = vmul.f32 %v194, %v474
    %v1954 = vmul.f32 %v197, %v474
    %v1955 = vmul.f32 %v200, %v474
    %v1956 = vmul.f32 %v203, %v474
    %v1958 = vsel %vm273, %v1925, 0
    %v1961 = vsel %vm273, %v1926, 0
    %1963 = vmatpush.msra.mxu0 0.0
    %1964 = vmatpush.msra.mxu0 0.0
    %1965 = vmatpush.msra.mxu0 0.0
    %1966 = vmatpush.msra.mxu0 0.0
    %1967 = vmatpush.msra.mxu0 0.0
    %1968 = vmatpush.msra.mxu0 0.0
    %1969 = vmatpush.msra.mxu0 0.0
    %1970 = vmatpush.msra.mxu0 0.0
    %1971 = vmatpush.msra.mxu0 0.0
    %1972 = vmatpush.msra.mxu0 0.0
    %1973 = vmatpush.msra.mxu0 0.0
    %1974 = vmatpush.msra.mxu0 0.0
    %1975 = vmatpush.msra.mxu0 0.0
    %1976 = vmatpush.msra.mxu0 0.0
    %1977 = vmatpush.msra.mxu0 %v1942
    %1978 = vmatpush.msra.mxu0 %v1941
    %1979 = vmatmul.f32.gmra.mxu0 %v1958
    %v1980 = vpop.f32.mrf.mxu0
    %v1981 = vadd.f32 0.0, %v1980
    %1982 = vmatmul.f32.gmra.mxu0 %v1961
    %v1983 = vpop.f32.mrf.mxu0
    %v1984 = vadd.f32 0.0, %v1983
    %1985 = vdwg.mxu0
    %v1987 = vsel %vm273, %v1927, 0
    %v1990 = vsel %vm273, %v1928, 0
    %1992 = vmatpush.msra.mxu0 0.0
    %1993 = vmatpush.msra.mxu0 0.0
    %1994 = vmatpush.msra.mxu0 0.0
    %1995 = vmatpush.msra.mxu0 0.0
    %1996 = vmatpush.msra.mxu0 0.0
    %1997 = vmatpush.msra.mxu0 0.0
    %1998 = vmatpush.msra.mxu0 0.0
    %1999 = vmatpush.msra.mxu0 0.0
    %2000 = vmatpush.msra.mxu0 0.0
    %2001 = vmatpush.msra.mxu0 0.0
    %2002 = vmatpush.msra.mxu0 0.0
    %2003 = vmatpush.msra.mxu0 0.0
    %2004 = vmatpush.msra.mxu0 0.0
    %2005 = vmatpush.msra.mxu0 0.0
    %2006 = vmatpush.msra.mxu0 %v1944
    %2007 = vmatpush.msra.mxu0 %v1943
    %2008 = vmatmul.f32.gmra.mxu0 %v1987
    %v2009 = vpop.f32.mrf.mxu0
    %v2010 = vadd.f32 0.0, %v2009
    %2011 = vmatmul.f32.gmra.mxu0 %v1990
    %v2012 = vpop.f32.mrf.mxu0
    %v2013 = vadd.f32 0.0, %v2012
    %2014 = vdwg.mxu0
    %v2016 = vsel %vm273, %v1929, 0
    %v2019 = vsel %vm273, %v1930, 0
    %2021 = vmatpush.msra.mxu0 0.0
    %2022 = vmatpush.msra.mxu0 0.0
    %2023 = vmatpush.msra.mxu0 0.0
    %2024 = vmatpush.msra.mxu0 0.0
    %2025 = vmatpush.msra.mxu0 0.0
    %2026 = vmatpush.msra.mxu0 0.0
    %2027 = vmatpush.msra.mxu0 0.0
    %2028 = vmatpush.msra.mxu0 0.0
    %2029 = vmatpush.msra.mxu0 0.0
    %2030 = vmatpush.msra.mxu0 0.0
    %2031 = vmatpush.msra.mxu0 0.0
    %2032 = vmatpush.msra.mxu0 0.0
    %2033 = vmatpush.msra.mxu0 0.0
    %2034 = vmatpush.msra.mxu0 0.0
    %2035 = vmatpush.msra.mxu0 %v1946
    %2036 = vmatpush.msra.mxu0 %v1945
    %2037 = vmatmul.f32.gmra.mxu0 %v2016
    %v2038 = vpop.f32.mrf.mxu0
    %v2039 = vadd.f32 0.0, %v2038
    %2040 = vmatmul.f32.gmra.mxu0 %v2019
    %v2041 = vpop.f32.mrf.mxu0
    %v2042 = vadd.f32 0.0, %v2041
    %2043 = vdwg.mxu0
    %v2045 = vsel %vm273, %v1931, 0
    %v2048 = vsel %vm273, %v1932, 0
    %2050 = vmatpush.msra.mxu0 0.0
    %2051 = vmatpush.msra.mxu0 0.0
    %2052 = vmatpush.msra.mxu0 0.0
    %2053 = vmatpush.msra.mxu0 0.0
    %2054 = vmatpush.msra.mxu0 0.0
    %2055 = vmatpush.msra.mxu0 0.0
    %2056 = vmatpush.msra.mxu0 0.0
    %2057 = vmatpush.msra.mxu0 0.0
    %2058 = vmatpush.msra.mxu0 0.0
    %2059 = vmatpush.msra.mxu0 0.0
    %2060 = vmatpush.msra.mxu0 0.0
    %2061 = vmatpush.msra.mxu0 0.0
    %2062 = vmatpush.msra.mxu0 0.0
    %2063 = vmatpush.msra.mxu0 0.0
    %2064 = vmatpush.msra.mxu0 %v1948
    %2065 = vmatpush.msra.mxu0 %v1947
    %2066 = vmatmul.f32.gmra.mxu0 %v2045
    %v2067 = vpop.f32.mrf.mxu0
    %v2068 = vadd.f32 0.0, %v2067
    %2069 = vmatmul.f32.gmra.mxu0 %v2048
    %v2070 = vpop.f32.mrf.mxu0
    %v2071 = vadd.f32 0.0, %v2070
    %2072 = vdwg.mxu0
    %v2074 = vsel %vm273, %v1933, 0
    %v2077 = vsel %vm273, %v1934, 0
    %2079 = vmatpush.msra.mxu0 0.0
    %2080 = vmatpush.msra.mxu0 0.0
    %2081 = vmatpush.msra.mxu0 0.0
    %2082 = vmatpush.msra.mxu0 0.0
    %2083 = vmatpush.msra.mxu0 0.0
    %2084 = vmatpush.msra.mxu0 0.0
    %2085 = vmatpush.msra.mxu0 0.0
    %2086 = vmatpush.msra.mxu0 0.0
    %2087 = vmatpush.msra.mxu0 0.0
    %2088 = vmatpush.msra.mxu0 0.0
    %2089 = vmatpush.msra.mxu0 0.0
    %2090 = vmatpush.msra.mxu0 0.0
    %2091 = vmatpush.msra.mxu0 0.0
    %2092 = vmatpush.msra.mxu0 0.0
    %2093 = vmatpush.msra.mxu0 %v1950
    %2094 = vmatpush.msra.mxu0 %v1949
    %2095 = vmatmul.f32.gmra.mxu0 %v2074
    %v2096 = vpop.f32.mrf.mxu0
    %v2097 = vadd.f32 0.0, %v2096
    %2098 = vmatmul.f32.gmra.mxu0 %v2077
    %v2099 = vpop.f32.mrf.mxu0
    %v2100 = vadd.f32 0.0, %v2099
    %2101 = vdwg.mxu0
    %v2103 = vsel %vm273, %v1935, 0
    %v2106 = vsel %vm273, %v1936, 0
    %2108 = vmatpush.msra.mxu0 0.0
    %2109 = vmatpush.msra.mxu0 0.0
    %2110 = vmatpush.msra.mxu0 0.0
    %2111 = vmatpush.msra.mxu0 0.0
    %2112 = vmatpush.msra.mxu0 0.0
    %2113 = vmatpush.msra.mxu0 0.0
    %2114 = vmatpush.msra.mxu0 0.0
    %2115 = vmatpush.msra.mxu0 0.0
    %2116 = vmatpush.msra.mxu0 0.0
    %2117 = vmatpush.msra.mxu0 0.0
    %2118 = vmatpush.msra.mxu0 0.0
    %2119 = vmatpush.msra.mxu0 0.0
    %2120 = vmatpush.msra.mxu0 0.0
    %2121 = vmatpush.msra.mxu0 0.0
    %2122 = vmatpush.msra.mxu0 %v1952
    %2123 = vmatpush.msra.mxu0 %v1951
    %2124 = vmatmul.f32.gmra.mxu0 %v2103
    %v2125 = vpop.f32.mrf.mxu0
    %v2126 = vadd.f32 0.0, %v2125
    %2127 = vmatmul.f32.gmra.mxu0 %v2106
    %v2128 = vpop.f32.mrf.mxu0
    %v2129 = vadd.f32 0.0, %v2128
    %2130 = vdwg.mxu0
    %v2132 = vsel %vm273, %v1937, 0
    %v2135 = vsel %vm273, %v1938, 0
    %2137 = vmatpush.msra.mxu0 0.0
    %2138 = vmatpush.msra.mxu0 0.0
    %2139 = vmatpush.msra.mxu0 0.0
    %2140 = vmatpush.msra.mxu0 0.0
    %2141 = vmatpush.msra.mxu0 0.0
    %2142 = vmatpush.msra.mxu0 0.0
    %2143 = vmatpush.msra.mxu0 0.0
    %2144 = vmatpush.msra.mxu0 0.0
    %2145 = vmatpush.msra.mxu0 0.0
    %2146 = vmatpush.msra.mxu0 0.0
    %2147 = vmatpush.msra.mxu0 0.0
    %2148 = vmatpush.msra.mxu0 0.0
    %2149 = vmatpush.msra.mxu0 0.0
    %2150 = vmatpush.msra.mxu0 0.0
    %2151 = vmatpush.msra.mxu0 %v1954
    %2152 = vmatpush.msra.mxu0 %v1953
    %2153 = vmatmul.f32.gmra.mxu0 %v2132
    %v2154 = vpop.f32.mrf.mxu0
    %v2155 = vadd.f32 0.0, %v2154
    %2156 = vmatmul.f32.gmra.mxu0 %v2135
    %v2157 = vpop.f32.mrf.mxu0
    %v2158 = vadd.f32 0.0, %v2157
    %2159 = vdwg.mxu0
    %v2161 = vsel %vm273, %v1939, 0
    %v2164 = vsel %vm273, %v1940, 0
    %2166 = vmatpush.msra.mxu0 0.0
    %2167 = vmatpush.msra.mxu0 0.0
    %2168 = vmatpush.msra.mxu0 0.0
    %2169 = vmatpush.msra.mxu0 0.0
    %2170 = vmatpush.msra.mxu0 0.0
    %2171 = vmatpush.msra.mxu0 0.0
    %2172 = vmatpush.msra.mxu0 0.0
    %2173 = vmatpush.msra.mxu0 0.0
    %2174 = vmatpush.msra.mxu0 0.0
    %2175 = vmatpush.msra.mxu0 0.0
    %2176 = vmatpush.msra.mxu0 0.0
    %2177 = vmatpush.msra.mxu0 0.0
    %2178 = vmatpush.msra.mxu0 0.0
    %2179 = vmatpush.msra.mxu0 0.0
    %2180 = vmatpush.msra.mxu0 %v1956
    %2181 = vmatpush.msra.mxu0 %v1955
    %2182 = vmatmul.f32.gmra.mxu0 %v2161
    %v2183 = vpop.f32.mrf.mxu0
    %v2184 = vadd.f32 0.0, %v2183
    %2185 = vmatmul.f32.gmra.mxu0 %v2164
    %v2186 = vpop.f32.mrf.mxu0
    %v2187 = vadd.f32 0.0, %v2186
    %2188 = vdwg.mxu0
    %v2190 = vsel %vm273, %v1213, 0
    %v2193 = vsel %vm273, %v1214, 0
    %2195 = vmatpush.msra.mxu0 0.0
    %2196 = vmatpush.msra.mxu0 0.0
    %2197 = vmatpush.msra.mxu0 0.0
    %2198 = vmatpush.msra.mxu0 0.0
    %2199 = vmatpush.msra.mxu0 0.0
    %2200 = vmatpush.msra.mxu0 0.0
    %2201 = vmatpush.msra.mxu0 0.0
    %2202 = vmatpush.msra.mxu0 0.0
    %2203 = vmatpush.msra.mxu0 0.0
    %2204 = vmatpush.msra.mxu0 0.0
    %2205 = vmatpush.msra.mxu0 0.0
    %2206 = vmatpush.msra.mxu0 0.0
    %2207 = vmatpush.msra.mxu0 0.0
    %2208 = vmatpush.msra.mxu0 0.0
    %2209 = vmatpush.msra.mxu0 %v1230
    %2210 = vmatpush.msra.mxu0 %v1229
    %2211 = vmatmul.f32.gmra.mxu0 %v2190
    %v2212 = vpop.f32.mrf.mxu0
    %v2213 = vadd.f32 %v1981, %v2212
    %2214 = vmatmul.f32.gmra.mxu0 %v2193
    %v2215 = vpop.f32.mrf.mxu0
    %v2216 = vadd.f32 %v1984, %v2215
    %2217 = vdwg.mxu0
    %v2219 = vsel %vm273, %v1215, 0
    %v2222 = vsel %vm273, %v1216, 0
    %2224 = vmatpush.msra.mxu0 0.0
    %2225 = vmatpush.msra.mxu0 0.0
    %2226 = vmatpush.msra.mxu0 0.0
    %2227 = vmatpush.msra.mxu0 0.0
    %2228 = vmatpush.msra.mxu0 0.0
    %2229 = vmatpush.msra.mxu0 0.0
    %2230 = vmatpush.msra.mxu0 0.0
    %2231 = vmatpush.msra.mxu0 0.0
    %2232 = vmatpush.msra.mxu0 0.0
    %2233 = vmatpush.msra.mxu0 0.0
    %2234 = vmatpush.msra.mxu0 0.0
    %2235 = vmatpush.msra.mxu0 0.0
    %2236 = vmatpush.msra.mxu0 0.0
    %2237 = vmatpush.msra.mxu0 0.0
    %2238 = vmatpush.msra.mxu0 %v1232
    %2239 = vmatpush.msra.mxu0 %v1231
    %2240 = vmatmul.f32.gmra.mxu0 %v2219
    %v2241 = vpop.f32.mrf.mxu0
    %v2242 = vadd.f32 %v2010, %v2241
    %2243 = vmatmul.f32.gmra.mxu0 %v2222
    %v2244 = vpop.f32.mrf.mxu0
    %v2245 = vadd.f32 %v2013, %v2244
    %2246 = vdwg.mxu0
    %v2248 = vsel %vm273, %v1217, 0
    %v2251 = vsel %vm273, %v1218, 0
    %2253 = vmatpush.msra.mxu0 0.0
    %2254 = vmatpush.msra.mxu0 0.0
    %2255 = vmatpush.msra.mxu0 0.0
    %2256 = vmatpush.msra.mxu0 0.0
    %2257 = vmatpush.msra.mxu0 0.0
    %2258 = vmatpush.msra.mxu0 0.0
    %2259 = vmatpush.msra.mxu0 0.0
    %2260 = vmatpush.msra.mxu0 0.0
    %2261 = vmatpush.msra.mxu0 0.0
    %2262 = vmatpush.msra.mxu0 0.0
    %2263 = vmatpush.msra.mxu0 0.0
    %2264 = vmatpush.msra.mxu0 0.0
    %2265 = vmatpush.msra.mxu0 0.0
    %2266 = vmatpush.msra.mxu0 0.0
    %2267 = vmatpush.msra.mxu0 %v1234
    %2268 = vmatpush.msra.mxu0 %v1233
    %2269 = vmatmul.f32.gmra.mxu0 %v2248
    %v2270 = vpop.f32.mrf.mxu0
    %v2271 = vadd.f32 %v2039, %v2270
    %2272 = vmatmul.f32.gmra.mxu0 %v2251
    %v2273 = vpop.f32.mrf.mxu0
    %v2274 = vadd.f32 %v2042, %v2273
    %2275 = vdwg.mxu0
    %v2277 = vsel %vm273, %v1219, 0
    %v2280 = vsel %vm273, %v1220, 0
    %2282 = vmatpush.msra.mxu0 0.0
    %2283 = vmatpush.msra.mxu0 0.0
    %2284 = vmatpush.msra.mxu0 0.0
    %2285 = vmatpush.msra.mxu0 0.0
    %2286 = vmatpush.msra.mxu0 0.0
    %2287 = vmatpush.msra.mxu0 0.0
    %2288 = vmatpush.msra.mxu0 0.0
    %2289 = vmatpush.msra.mxu0 0.0
    %2290 = vmatpush.msra.mxu0 0.0
    %2291 = vmatpush.msra.mxu0 0.0
    %2292 = vmatpush.msra.mxu0 0.0
    %2293 = vmatpush.msra.mxu0 0.0
    %2294 = vmatpush.msra.mxu0 0.0
    %2295 = vmatpush.msra.mxu0 0.0
    %2296 = vmatpush.msra.mxu0 %v1236
    %2297 = vmatpush.msra.mxu0 %v1235
    %2298 = vmatmul.f32.gmra.mxu0 %v2277
    %v2299 = vpop.f32.mrf.mxu0
    %v2300 = vadd.f32 %v2068, %v2299
    %2301 = vmatmul.f32.gmra.mxu0 %v2280
    %v2302 = vpop.f32.mrf.mxu0
    %v2303 = vadd.f32 %v2071, %v2302
    %2304 = vdwg.mxu0
    %v2306 = vsel %vm273, %v1221, 0
    %v2309 = vsel %vm273, %v1222, 0
    %2311 = vmatpush.msra.mxu0 0.0
    %2312 = vmatpush.msra.mxu0 0.0
    %2313 = vmatpush.msra.mxu0 0.0
    %2314 = vmatpush.msra.mxu0 0.0
    %2315 = vmatpush.msra.mxu0 0.0
    %2316 = vmatpush.msra.mxu0 0.0
    %2317 = vmatpush.msra.mxu0 0.0
    %2318 = vmatpush.msra.mxu0 0.0
    %2319 = vmatpush.msra.mxu0 0.0
    %2320 = vmatpush.msra.mxu0 0.0
    %2321 = vmatpush.msra.mxu0 0.0
    %2322 = vmatpush.msra.mxu0 0.0
    %2323 = vmatpush.msra.mxu0 0.0
    %2324 = vmatpush.msra.mxu0 0.0
    %2325 = vmatpush.msra.mxu0 %v1238
    %2326 = vmatpush.msra.mxu0 %v1237
    %2327 = vmatmul.f32.gmra.mxu0 %v2306
    %v2328 = vpop.f32.mrf.mxu0
    %v2329 = vadd.f32 %v2097, %v2328
    %2330 = vmatmul.f32.gmra.mxu0 %v2309
    %v2331 = vpop.f32.mrf.mxu0
    %v2332 = vadd.f32 %v2100, %v2331
    %2333 = vdwg.mxu0
    %v2335 = vsel %vm273, %v1223, 0
    %v2338 = vsel %vm273, %v1224, 0
    %2340 = vmatpush.msra.mxu0 0.0
    %2341 = vmatpush.msra.mxu0 0.0
    %2342 = vmatpush.msra.mxu0 0.0
    %2343 = vmatpush.msra.mxu0 0.0
    %2344 = vmatpush.msra.mxu0 0.0
    %2345 = vmatpush.msra.mxu0 0.0
    %2346 = vmatpush.msra.mxu0 0.0
    %2347 = vmatpush.msra.mxu0 0.0
    %2348 = vmatpush.msra.mxu0 0.0
    %2349 = vmatpush.msra.mxu0 0.0
    %2350 = vmatpush.msra.mxu0 0.0
    %2351 = vmatpush.msra.mxu0 0.0
    %2352 = vmatpush.msra.mxu0 0.0
    %2353 = vmatpush.msra.mxu0 0.0
    %2354 = vmatpush.msra.mxu0 %v1240
    %2355 = vmatpush.msra.mxu0 %v1239
    %2356 = vmatmul.f32.gmra.mxu0 %v2335
    %v2357 = vpop.f32.mrf.mxu0
    %v2358 = vadd.f32 %v2126, %v2357
    %2359 = vmatmul.f32.gmra.mxu0 %v2338
    %v2360 = vpop.f32.mrf.mxu0
    %v2361 = vadd.f32 %v2129, %v2360
    %2362 = vdwg.mxu0
    %v2364 = vsel %vm273, %v1225, 0
    %v2367 = vsel %vm273, %v1226, 0
    %2369 = vmatpush.msra.mxu0 0.0
    %2370 = vmatpush.msra.mxu0 0.0
    %2371 = vmatpush.msra.mxu0 0.0
    %2372 = vmatpush.msra.mxu0 0.0
    %2373 = vmatpush.msra.mxu0 0.0
    %2374 = vmatpush.msra.mxu0 0.0
    %2375 = vmatpush.msra.mxu0 0.0
    %2376 = vmatpush.msra.mxu0 0.0
    %2377 = vmatpush.msra.mxu0 0.0
    %2378 = vmatpush.msra.mxu0 0.0
    %2379 = vmatpush.msra.mxu0 0.0
    %2380 = vmatpush.msra.mxu0 0.0
    %2381 = vmatpush.msra.mxu0 0.0
    %2382 = vmatpush.msra.mxu0 0.0
    %2383 = vmatpush.msra.mxu0 %v1242
    %2384 = vmatpush.msra.mxu0 %v1241
    %2385 = vmatmul.f32.gmra.mxu0 %v2364
    %v2386 = vpop.f32.mrf.mxu0
    %v2387 = vadd.f32 %v2155, %v2386
    %2388 = vmatmul.f32.gmra.mxu0 %v2367
    %v2389 = vpop.f32.mrf.mxu0
    %v2390 = vadd.f32 %v2158, %v2389
    %2391 = vdwg.mxu0
    %v2393 = vsel %vm273, %v1227, 0
    %v2396 = vsel %vm273, %v1228, 0
    %2398 = vmatpush.msra.mxu0 0.0
    %2399 = vmatpush.msra.mxu0 0.0
    %2400 = vmatpush.msra.mxu0 0.0
    %2401 = vmatpush.msra.mxu0 0.0
    %2402 = vmatpush.msra.mxu0 0.0
    %2403 = vmatpush.msra.mxu0 0.0
    %2404 = vmatpush.msra.mxu0 0.0
    %2405 = vmatpush.msra.mxu0 0.0
    %2406 = vmatpush.msra.mxu0 0.0
    %2407 = vmatpush.msra.mxu0 0.0
    %2408 = vmatpush.msra.mxu0 0.0
    %2409 = vmatpush.msra.mxu0 0.0
    %2410 = vmatpush.msra.mxu0 0.0
    %2411 = vmatpush.msra.mxu0 0.0
    %2412 = vmatpush.msra.mxu0 %v1244
    %2413 = vmatpush.msra.mxu0 %v1243
    %2414 = vmatmul.f32.gmra.mxu0 %v2393
    %v2415 = vpop.f32.mrf.mxu0
    %v2416 = vadd.f32 %v2184, %v2415
    %2417 = vmatmul.f32.gmra.mxu0 %v2396
    %v2418 = vpop.f32.mrf.mxu0
    %v2419 = vadd.f32 %v2187, %v2418
    %2420 = vdwg.mxu0
    %2421 = vset.pattern.permute.xlu0 2
    %2422 = vperm.xlu0 %2421, %v340
    %v2423 = vpop.permute.xlu0 %2422
    %2425 = vset.pattern.permute.xlu0 2
    %2426 = vperm.xlu0 %2425, %v343
    %v2427 = vpop.permute.xlu0 %2426
    %2429 = vset.pattern.permute.xlu0 2
    %2430 = vperm.xlu0 %2429, %v346
    %v2431 = vpop.permute.xlu0 %2430
    %2433 = vset.pattern.permute.xlu0 2
    %2434 = vperm.xlu0 %2433, %v349
    %v2435 = vpop.permute.xlu0 %2434
    %2437 = vset.pattern.permute.xlu0 2
    %2438 = vperm.xlu0 %2437, %v352
    %v2439 = vpop.permute.xlu0 %2438
    %2441 = vset.pattern.permute.xlu0 2
    %2442 = vperm.xlu0 %2441, %v355
    %v2443 = vpop.permute.xlu0 %2442
    %2445 = vset.pattern.permute.xlu0 2
    %2446 = vperm.xlu0 %2445, %v358
    %v2447 = vpop.permute.xlu0 %2446
    %2449 = vset.pattern.permute.xlu0 2
    %2450 = vperm.xlu0 %2449, %v361
    %v2451 = vpop.permute.xlu0 %2450
    %2453 = vset.pattern.permute.xlu0 2
    %2454 = vperm.xlu0 %2453, %v364
    %v2455 = vpop.permute.xlu0 %2454
    %2457 = vset.pattern.permute.xlu0 2
    %2458 = vperm.xlu0 %2457, %v367
    %v2459 = vpop.permute.xlu0 %2458
    %2461 = vset.pattern.permute.xlu0 2
    %2462 = vperm.xlu0 %2461, %v370
    %v2463 = vpop.permute.xlu0 %2462
    %2465 = vset.pattern.permute.xlu0 2
    %2466 = vperm.xlu0 %2465, %v373
    %v2467 = vpop.permute.xlu0 %2466
    %2469 = vset.pattern.permute.xlu0 2
    %2470 = vperm.xlu0 %2469, %v376
    %v2471 = vpop.permute.xlu0 %2470
    %2473 = vset.pattern.permute.xlu0 2
    %2474 = vperm.xlu0 %2473, %v379
    %v2475 = vpop.permute.xlu0 %2474
    %2477 = vset.pattern.permute.xlu0 2
    %2478 = vperm.xlu0 %2477, %v382
    %v2479 = vpop.permute.xlu0 %2478
    %2481 = vset.pattern.permute.xlu0 2
    %2482 = vperm.xlu0 %2481, %v385
    %v2483 = vpop.permute.xlu0 %2482
    %v2485 = vmul.f32 %v463, %v2423
    %v2486 = vmul.f32 %v464, %v2427
    %v2487 = vmul.f32 %v463, %v2431
    %v2488 = vmul.f32 %v464, %v2435
    %v2489 = vmul.f32 %v463, %v2439
    %v2490 = vmul.f32 %v464, %v2443
    %v2491 = vmul.f32 %v463, %v2447
    %v2492 = vmul.f32 %v464, %v2451
    %v2493 = vmul.f32 %v463, %v2455
    %v2494 = vmul.f32 %v464, %v2459
    %v2495 = vmul.f32 %v463, %v2463
    %v2496 = vmul.f32 %v464, %v2467
    %v2497 = vmul.f32 %v463, %v2471
    %v2498 = vmul.f32 %v464, %v2475
    %v2499 = vmul.f32 %v463, %v2479
    %v2500 = vmul.f32 %v464, %v2483
    %v2501 = vsel %vm273, %v2485, 0.0
    %v2502 = vsel %vm273, %v2486, 0.0
    %v2503 = vadd.f32 %v2501, %v2502
    %v2504 = vrot.slane %v2503, 4
    %v2505 = vadd.f32 %v2503, %v2504
    %v2506 = vrot.slane %v2505, 2
    %v2507 = vadd.f32 %v2505, %v2506
    %v2508 = vrot.slane %v2507, 1
    %v2509 = vadd.f32 %v2507, %v2508
    %v2510 = vsel %vm273, %v2487, 0.0
    %v2511 = vsel %vm273, %v2488, 0.0
    %v2512 = vadd.f32 %v2510, %v2511
    %v2513 = vrot.slane %v2512, 4
    %v2514 = vadd.f32 %v2512, %v2513
    %v2515 = vrot.slane %v2514, 2
    %v2516 = vadd.f32 %v2514, %v2515
    %v2517 = vrot.slane %v2516, 1
    %v2518 = vadd.f32 %v2516, %v2517
    %v2519 = vsel %vm273, %v2489, 0.0
    %v2520 = vsel %vm273, %v2490, 0.0
    %v2521 = vadd.f32 %v2519, %v2520
    %v2522 = vrot.slane %v2521, 4
    %v2523 = vadd.f32 %v2521, %v2522
    %v2524 = vrot.slane %v2523, 2
    %v2525 = vadd.f32 %v2523, %v2524
    %v2526 = vrot.slane %v2525, 1
    %v2527 = vadd.f32 %v2525, %v2526
    %v2528 = vsel %vm273, %v2491, 0.0
    %v2529 = vsel %vm273, %v2492, 0.0
    %v2530 = vadd.f32 %v2528, %v2529
    %v2531 = vrot.slane %v2530, 4
    %v2532 = vadd.f32 %v2530, %v2531
    %v2533 = vrot.slane %v2532, 2
    %v2534 = vadd.f32 %v2532, %v2533
    %v2535 = vrot.slane %v2534, 1
    %v2536 = vadd.f32 %v2534, %v2535
    %v2537 = vsel %vm273, %v2493, 0.0
    %v2538 = vsel %vm273, %v2494, 0.0
    %v2539 = vadd.f32 %v2537, %v2538
    %v2540 = vrot.slane %v2539, 4
    %v2541 = vadd.f32 %v2539, %v2540
    %v2542 = vrot.slane %v2541, 2
    %v2543 = vadd.f32 %v2541, %v2542
    %v2544 = vrot.slane %v2543, 1
    %v2545 = vadd.f32 %v2543, %v2544
    %v2546 = vsel %vm273, %v2495, 0.0
    %v2547 = vsel %vm273, %v2496, 0.0
    %v2548 = vadd.f32 %v2546, %v2547
    %v2549 = vrot.slane %v2548, 4
    %v2550 = vadd.f32 %v2548, %v2549
    %v2551 = vrot.slane %v2550, 2
    %v2552 = vadd.f32 %v2550, %v2551
    %v2553 = vrot.slane %v2552, 1
    %v2554 = vadd.f32 %v2552, %v2553
    %v2555 = vsel %vm273, %v2497, 0.0
    %v2556 = vsel %vm273, %v2498, 0.0
    %v2557 = vadd.f32 %v2555, %v2556
    %v2558 = vrot.slane %v2557, 4
    %v2559 = vadd.f32 %v2557, %v2558
    %v2560 = vrot.slane %v2559, 2
    %v2561 = vadd.f32 %v2559, %v2560
    %v2562 = vrot.slane %v2561, 1
    %v2563 = vadd.f32 %v2561, %v2562
    %v2564 = vsel %vm273, %v2499, 0.0
    %v2565 = vsel %vm273, %v2500, 0.0
    %v2566 = vadd.f32 %v2564, %v2565
    %v2567 = vrot.slane %v2566, 4
    %v2568 = vadd.f32 %v2566, %v2567
    %v2569 = vrot.slane %v2568, 2
    %v2570 = vadd.f32 %v2568, %v2569
    %v2571 = vrot.slane %v2570, 1
    %v2572 = vadd.f32 %v2570, %v2571
    %2573 = vset.pattern.permute.xlu0 2
    %2574 = vperm.xlu0 %2573, %v407
    %v2575 = vpop.permute.xlu0 %2574
    %2577 = vset.pattern.permute.xlu0 2
    %2578 = vperm.xlu0 %2577, %v410
    %v2579 = vpop.permute.xlu0 %2578
    %2581 = vset.pattern.permute.xlu0 2
    %2582 = vperm.xlu0 %2581, %v413
    %v2583 = vpop.permute.xlu0 %2582
    %2585 = vset.pattern.permute.xlu0 2
    %2586 = vperm.xlu0 %2585, %v416
    %v2587 = vpop.permute.xlu0 %2586
    %2589 = vset.pattern.permute.xlu0 2
    %2590 = vperm.xlu0 %2589, %v419
    %v2591 = vpop.permute.xlu0 %2590
    %2593 = vset.pattern.permute.xlu0 2
    %2594 = vperm.xlu0 %2593, %v422
    %v2595 = vpop.permute.xlu0 %2594
    %2597 = vset.pattern.permute.xlu0 2
    %2598 = vperm.xlu0 %2597, %v425
    %v2599 = vpop.permute.xlu0 %2598
    %2601 = vset.pattern.permute.xlu0 2
    %2602 = vperm.xlu0 %2601, %v428
    %v2603 = vpop.permute.xlu0 %2602
    %2605 = vset.pattern.permute.xlu0 2
    %2606 = vperm.xlu0 %2605, %v431
    %v2607 = vpop.permute.xlu0 %2606
    %2609 = vset.pattern.permute.xlu0 2
    %2610 = vperm.xlu0 %2609, %v434
    %v2611 = vpop.permute.xlu0 %2610
    %2613 = vset.pattern.permute.xlu0 2
    %2614 = vperm.xlu0 %2613, %v437
    %v2615 = vpop.permute.xlu0 %2614
    %2617 = vset.pattern.permute.xlu0 2
    %2618 = vperm.xlu0 %2617, %v440
    %v2619 = vpop.permute.xlu0 %2618
    %2621 = vset.pattern.permute.xlu0 2
    %2622 = vperm.xlu0 %2621, %v443
    %v2623 = vpop.permute.xlu0 %2622
    %2625 = vset.pattern.permute.xlu0 2
    %2626 = vperm.xlu0 %2625, %v446
    %v2627 = vpop.permute.xlu0 %2626
    %2629 = vset.pattern.permute.xlu0 2
    %2630 = vperm.xlu0 %2629, %v449
    %v2631 = vpop.permute.xlu0 %2630
    %2633 = vset.pattern.permute.xlu0 2
    %2634 = vperm.xlu0 %2633, %v452
    %v2635 = vpop.permute.xlu0 %2634
    %v2637 = vadd.f32 %v2575, %v2509
    %v2638 = vadd.f32 %v2579, %v2509
    %v2639 = vadd.f32 %v2583, %v2518
    %v2640 = vadd.f32 %v2587, %v2518
    %v2641 = vadd.f32 %v2591, %v2527
    %v2642 = vadd.f32 %v2595, %v2527
    %v2643 = vadd.f32 %v2599, %v2536
    %v2644 = vadd.f32 %v2603, %v2536
    %v2645 = vadd.f32 %v2607, %v2545
    %v2646 = vadd.f32 %v2611, %v2545
    %v2647 = vadd.f32 %v2615, %v2554
    %v2648 = vadd.f32 %v2619, %v2554
    %v2649 = vadd.f32 %v2623, %v2563
    %v2650 = vadd.f32 %v2627, %v2563
    %v2651 = vadd.f32 %v2631, %v2572
    %v2652 = vadd.f32 %v2635, %v2572
    %v2653 = vmul.f32 %v58, %v2637
    %v2654 = vmul.f32 %v59, %v2638
    %v2655 = vmul.f32 %v60, %v2639
    %v2656 = vmul.f32 %v61, %v2640
    %v2657 = vmul.f32 %v62, %v2641
    %v2658 = vmul.f32 %v63, %v2642
    %v2659 = vmul.f32 %v64, %v2643
    %v2660 = vmul.f32 %v65, %v2644
    %v2661 = vmul.f32 %v66, %v2645
    %v2662 = vmul.f32 %v67, %v2646
    %v2663 = vmul.f32 %v68, %v2647
    %v2664 = vmul.f32 %v69, %v2648
    %v2665 = vmul.f32 %v70, %v2649
    %v2666 = vmul.f32 %v71, %v2650
    %v2667 = vmul.f32 %v72, %v2651
    %v2668 = vmul.f32 %v73, %v2652
    %vm2669 = vcmp.gt.f32.partialorder %v2653, 0.0
    %vm2670 = vcmp.gt.f32.partialorder %v2654, 0.0
    %vm2671 = vcmp.gt.f32.partialorder %v2655, 0.0
    %vm2672 = vcmp.gt.f32.partialorder %v2656, 0.0
    %vm2673 = vcmp.gt.f32.partialorder %v2657, 0.0
    %vm2674 = vcmp.gt.f32.partialorder %v2658, 0.0
    %vm2675 = vcmp.gt.f32.partialorder %v2659, 0.0
    %vm2676 = vcmp.gt.f32.partialorder %v2660, 0.0
    %vm2677 = vcmp.gt.f32.partialorder %v2661, 0.0
    %vm2678 = vcmp.gt.f32.partialorder %v2662, 0.0
    %vm2679 = vcmp.gt.f32.partialorder %v2663, 0.0
    %vm2680 = vcmp.gt.f32.partialorder %v2664, 0.0
    %vm2681 = vcmp.gt.f32.partialorder %v2665, 0.0
    %vm2682 = vcmp.gt.f32.partialorder %v2666, 0.0
    %vm2683 = vcmp.gt.f32.partialorder %v2667, 0.0
    %vm2684 = vcmp.gt.f32.partialorder %v2668, 0.0
    %v2685 = vmul.f32 %v2653, 0.2
    %v2686 = vmul.f32 %v2654, 0.2
    %v2687 = vmul.f32 %v2655, 0.2
    %v2688 = vmul.f32 %v2656, 0.2
    %v2689 = vmul.f32 %v2657, 0.2
    %v2690 = vmul.f32 %v2658, 0.2
    %v2691 = vmul.f32 %v2659, 0.2
    %v2692 = vmul.f32 %v2660, 0.2
    %v2693 = vmul.f32 %v2661, 0.2
    %v2694 = vmul.f32 %v2662, 0.2
    %v2695 = vmul.f32 %v2663, 0.2
    %v2696 = vmul.f32 %v2664, 0.2
    %v2697 = vmul.f32 %v2665, 0.2
    %v2698 = vmul.f32 %v2666, 0.2
    %v2699 = vmul.f32 %v2667, 0.2
    %v2700 = vmul.f32 %v2668, 0.2
    %v2701 = vsel %vm2669, %v2653, %v2685
    %v2702 = vsel %vm2670, %v2654, %v2686
    %v2703 = vsel %vm2671, %v2655, %v2687
    %v2704 = vsel %vm2672, %v2656, %v2688
    %v2705 = vsel %vm2673, %v2657, %v2689
    %v2706 = vsel %vm2674, %v2658, %v2690
    %v2707 = vsel %vm2675, %v2659, %v2691
    %v2708 = vsel %vm2676, %v2660, %v2692
    %v2709 = vsel %vm2677, %v2661, %v2693
    %v2710 = vsel %vm2678, %v2662, %v2694
    %v2711 = vsel %vm2679, %v2663, %v2695
    %v2712 = vsel %vm2680, %v2664, %v2696
    %v2713 = vsel %vm2681, %v2665, %v2697
    %v2714 = vsel %vm2682, %v2666, %v2698
    %v2715 = vsel %vm2683, %v2667, %v2699
    %v2716 = vsel %vm2684, %v2668, %v2700
    %v2717 = vsel %vm813, %v2701, -1e+09
    %v2718 = vsel %vm814, %v2702, -1e+09
    %v2719 = vsel %vm815, %v2703, -1e+09
    %v2720 = vsel %vm816, %v2704, -1e+09
    %v2721 = vsel %vm817, %v2705, -1e+09
    %v2722 = vsel %vm818, %v2706, -1e+09
    %v2723 = vsel %vm819, %v2707, -1e+09
    %v2724 = vsel %vm820, %v2708, -1e+09
    %v2725 = vsel %vm821, %v2709, -1e+09
    %v2726 = vsel %vm822, %v2710, -1e+09
    %v2727 = vsel %vm823, %v2711, -1e+09
    %v2728 = vsel %vm824, %v2712, -1e+09
    %v2729 = vsel %vm825, %v2713, -1e+09
    %v2730 = vsel %vm826, %v2714, -1e+09
    %v2731 = vsel %vm827, %v2715, -1e+09
    %v2732 = vsel %vm828, %v2716, -1e+09
    %v2733 = vsel %vm273, %v2717, -inf
    %2734 = vmax.xlane.f32.xlu0 %v2733
    %v2735 = vpop.xlane.xlu0 %2734
    %v2736 = vsel %vm273, %v2718, -inf
    %2737 = vmax.xlane.f32.xlu0 %v2736
    %v2738 = vpop.xlane.xlu0 %2737
    %v2739 = vsel %vm273, %v2719, -inf
    %2740 = vmax.xlane.f32.xlu0 %v2739
    %v2741 = vpop.xlane.xlu0 %2740
    %v2742 = vsel %vm273, %v2720, -inf
    %2743 = vmax.xlane.f32.xlu0 %v2742
    %v2744 = vpop.xlane.xlu0 %2743
    %v2745 = vsel %vm273, %v2721, -inf
    %2746 = vmax.xlane.f32.xlu0 %v2745
    %v2747 = vpop.xlane.xlu0 %2746
    %v2748 = vsel %vm273, %v2722, -inf
    %2749 = vmax.xlane.f32.xlu0 %v2748
    %v2750 = vpop.xlane.xlu0 %2749
    %v2751 = vsel %vm273, %v2723, -inf
    %2752 = vmax.xlane.f32.xlu0 %v2751
    %v2753 = vpop.xlane.xlu0 %2752
    %v2754 = vsel %vm273, %v2724, -inf
    %2755 = vmax.xlane.f32.xlu0 %v2754
    %v2756 = vpop.xlane.xlu0 %2755
    %v2757 = vsel %vm273, %v2725, -inf
    %2758 = vmax.xlane.f32.xlu0 %v2757
    %v2759 = vpop.xlane.xlu0 %2758
    %v2760 = vsel %vm273, %v2726, -inf
    %2761 = vmax.xlane.f32.xlu0 %v2760
    %v2762 = vpop.xlane.xlu0 %2761
    %v2763 = vsel %vm273, %v2727, -inf
    %2764 = vmax.xlane.f32.xlu0 %v2763
    %v2765 = vpop.xlane.xlu0 %2764
    %v2766 = vsel %vm273, %v2728, -inf
    %2767 = vmax.xlane.f32.xlu0 %v2766
    %v2768 = vpop.xlane.xlu0 %2767
    %v2769 = vsel %vm273, %v2729, -inf
    %2770 = vmax.xlane.f32.xlu0 %v2769
    %v2771 = vpop.xlane.xlu0 %2770
    %v2772 = vsel %vm273, %v2730, -inf
    %2773 = vmax.xlane.f32.xlu0 %v2772
    %v2774 = vpop.xlane.xlu0 %2773
    %v2775 = vsel %vm273, %v2731, -inf
    %2776 = vmax.xlane.f32.xlu0 %v2775
    %v2777 = vpop.xlane.xlu0 %2776
    %v2778 = vsel %vm273, %v2732, -inf
    %2779 = vmax.xlane.f32.xlu0 %v2778
    %v2780 = vpop.xlane.xlu0 %2779
    %v2781 = vsub.f32 %v2717, %v2735
    %v2782 = vsub.f32 %v2718, %v2738
    %v2783 = vsub.f32 %v2719, %v2741
    %v2784 = vsub.f32 %v2720, %v2744
    %v2785 = vsub.f32 %v2721, %v2747
    %v2786 = vsub.f32 %v2722, %v2750
    %v2787 = vsub.f32 %v2723, %v2753
    %v2788 = vsub.f32 %v2724, %v2756
    %v2789 = vsub.f32 %v2725, %v2759
    %v2790 = vsub.f32 %v2726, %v2762
    %v2791 = vsub.f32 %v2727, %v2765
    %v2792 = vsub.f32 %v2728, %v2768
    %v2793 = vsub.f32 %v2729, %v2771
    %v2794 = vsub.f32 %v2730, %v2774
    %v2795 = vsub.f32 %v2731, %v2777
    %v2796 = vsub.f32 %v2732, %v2780
    %v2797 = vmul.f32 %v2781, 1.442695
    %v2798 = vpow.pop %v2797
    %v2799 = vmul.f32 %v2782, 1.442695
    %v2800 = vpow.pop %v2799
    %v2801 = vmul.f32 %v2783, 1.442695
    %v2802 = vpow.pop %v2801
    %v2803 = vmul.f32 %v2784, 1.442695
    %v2804 = vpow.pop %v2803
    %v2805 = vmul.f32 %v2785, 1.442695
    %v2806 = vpow.pop %v2805
    %v2807 = vmul.f32 %v2786, 1.442695
    %v2808 = vpow.pop %v2807
    %v2809 = vmul.f32 %v2787, 1.442695
    %v2810 = vpow.pop %v2809
    %v2811 = vmul.f32 %v2788, 1.442695
    %v2812 = vpow.pop %v2811
    %v2813 = vmul.f32 %v2789, 1.442695
    %v2814 = vpow.pop %v2813
    %v2815 = vmul.f32 %v2790, 1.442695
    %v2816 = vpow.pop %v2815
    %v2817 = vmul.f32 %v2791, 1.442695
    %v2818 = vpow.pop %v2817
    %v2819 = vmul.f32 %v2792, 1.442695
    %v2820 = vpow.pop %v2819
    %v2821 = vmul.f32 %v2793, 1.442695
    %v2822 = vpow.pop %v2821
    %v2823 = vmul.f32 %v2794, 1.442695
    %v2824 = vpow.pop %v2823
    %v2825 = vmul.f32 %v2795, 1.442695
    %v2826 = vpow.pop %v2825
    %v2827 = vmul.f32 %v2796, 1.442695
    %v2828 = vpow.pop %v2827
    %v2829 = vsel %vm273, %v2798, 0.0
    %2830 = vadd.xlane.f32.xlu0 %v2829
    %v2831 = vpop.xlane.xlu0 %2830
    %v2832 = vsel %vm273, %v2800, 0.0
    %2833 = vadd.xlane.f32.xlu0 %v2832
    %v2834 = vpop.xlane.xlu0 %2833
    %v2835 = vsel %vm273, %v2802, 0.0
    %2836 = vadd.xlane.f32.xlu0 %v2835
    %v2837 = vpop.xlane.xlu0 %2836
    %v2838 = vsel %vm273, %v2804, 0.0
    %2839 = vadd.xlane.f32.xlu0 %v2838
    %v2840 = vpop.xlane.xlu0 %2839
    %v2841 = vsel %vm273, %v2806, 0.0
    %2842 = vadd.xlane.f32.xlu0 %v2841
    %v2843 = vpop.xlane.xlu0 %2842
    %v2844 = vsel %vm273, %v2808, 0.0
    %2845 = vadd.xlane.f32.xlu0 %v2844
    %v2846 = vpop.xlane.xlu0 %2845
    %v2847 = vsel %vm273, %v2810, 0.0
    %2848 = vadd.xlane.f32.xlu0 %v2847
    %v2849 = vpop.xlane.xlu0 %2848
    %v2850 = vsel %vm273, %v2812, 0.0
    %2851 = vadd.xlane.f32.xlu0 %v2850
    %v2852 = vpop.xlane.xlu0 %2851
    %v2853 = vsel %vm273, %v2814, 0.0
    %2854 = vadd.xlane.f32.xlu0 %v2853
    %v2855 = vpop.xlane.xlu0 %2854
    %v2856 = vsel %vm273, %v2816, 0.0
    %2857 = vadd.xlane.f32.xlu0 %v2856
    %v2858 = vpop.xlane.xlu0 %2857
    %v2859 = vsel %vm273, %v2818, 0.0
    %2860 = vadd.xlane.f32.xlu0 %v2859
    %v2861 = vpop.xlane.xlu0 %2860
    %v2862 = vsel %vm273, %v2820, 0.0
    %2863 = vadd.xlane.f32.xlu0 %v2862
    %v2864 = vpop.xlane.xlu0 %2863
    %v2865 = vsel %vm273, %v2822, 0.0
    %2866 = vadd.xlane.f32.xlu0 %v2865
    %v2867 = vpop.xlane.xlu0 %2866
    %v2868 = vsel %vm273, %v2824, 0.0
    %2869 = vadd.xlane.f32.xlu0 %v2868
    %v2870 = vpop.xlane.xlu0 %2869
    %v2871 = vsel %vm273, %v2826, 0.0
    %2872 = vadd.xlane.f32.xlu0 %v2871
    %v2873 = vpop.xlane.xlu0 %2872
    %v2874 = vsel %vm273, %v2828, 0.0
    %2875 = vadd.xlane.f32.xlu0 %v2874
    %v2876 = vpop.xlane.xlu0 %2875
    %v2877 = vrcp.pop %v2831
    %v2878 = vmul.f32 %v2831, %v2877
    %v2879 = vsub.f32 1.0, %v2878
    %v2880 = vmul.f32 %v2877, %v2879
    %v2881 = vadd.f32 %v2877, %v2880
    %vm2882 = vweird.f32 %v2831
    %vm2883 = vweird.f32 %v2877
    %vm2884 = vmor %vm2882, %vm2883
    %v2885 = vsel %vm2884, %v2877, %v2881
    %v2886 = vand.u32 2147483647, %v2831
    %vm2887 = vcmp.eq.f32.partialorder %v2886, 8.507059e+37
    %v2888 = vand.u32 %v2831, 2147483648
    %v2889 = vor.u32 1.1754944e-38, %v2888
    %v2890 = vsel %vm2887, %v2889, %v2885
    %v2891 = vrcp.pop %v2834
    %v2892 = vmul.f32 %v2834, %v2891
    %v2893 = vsub.f32 1.0, %v2892
    %v2894 = vmul.f32 %v2891, %v2893
    %v2895 = vadd.f32 %v2891, %v2894
    %vm2896 = vweird.f32 %v2834
    %vm2897 = vweird.f32 %v2891
    %vm2898 = vmor %vm2896, %vm2897
    %v2899 = vsel %vm2898, %v2891, %v2895
    %v2900 = vand.u32 2147483647, %v2834
    %vm2901 = vcmp.eq.f32.partialorder %v2900, 8.507059e+37
    %v2902 = vand.u32 %v2834, 2147483648
    %v2903 = vor.u32 1.1754944e-38, %v2902
    %v2904 = vsel %vm2901, %v2903, %v2899
    %v2905 = vrcp.pop %v2837
    %v2906 = vmul.f32 %v2837, %v2905
    %v2907 = vsub.f32 1.0, %v2906
    %v2908 = vmul.f32 %v2905, %v2907
    %v2909 = vadd.f32 %v2905, %v2908
    %vm2910 = vweird.f32 %v2837
    %vm2911 = vweird.f32 %v2905
    %vm2912 = vmor %vm2910, %vm2911
    %v2913 = vsel %vm2912, %v2905, %v2909
    %v2914 = vand.u32 2147483647, %v2837
    %vm2915 = vcmp.eq.f32.partialorder %v2914, 8.507059e+37
    %v2916 = vand.u32 %v2837, 2147483648
    %v2917 = vor.u32 1.1754944e-38, %v2916
    %v2918 = vsel %vm2915, %v2917, %v2913
    %v2919 = vrcp.pop %v2840
    %v2920 = vmul.f32 %v2840, %v2919
    %v2921 = vsub.f32 1.0, %v2920
    %v2922 = vmul.f32 %v2919, %v2921
    %v2923 = vadd.f32 %v2919, %v2922
    %vm2924 = vweird.f32 %v2840
    %vm2925 = vweird.f32 %v2919
    %vm2926 = vmor %vm2924, %vm2925
    %v2927 = vsel %vm2926, %v2919, %v2923
    %v2928 = vand.u32 2147483647, %v2840
    %vm2929 = vcmp.eq.f32.partialorder %v2928, 8.507059e+37
    %v2930 = vand.u32 %v2840, 2147483648
    %v2931 = vor.u32 1.1754944e-38, %v2930
    %v2932 = vsel %vm2929, %v2931, %v2927
    %v2933 = vrcp.pop %v2843
    %v2934 = vmul.f32 %v2843, %v2933
    %v2935 = vsub.f32 1.0, %v2934
    %v2936 = vmul.f32 %v2933, %v2935
    %v2937 = vadd.f32 %v2933, %v2936
    %vm2938 = vweird.f32 %v2843
    %vm2939 = vweird.f32 %v2933
    %vm2940 = vmor %vm2938, %vm2939
    %v2941 = vsel %vm2940, %v2933, %v2937
    %v2942 = vand.u32 2147483647, %v2843
    %vm2943 = vcmp.eq.f32.partialorder %v2942, 8.507059e+37
    %v2944 = vand.u32 %v2843, 2147483648
    %v2945 = vor.u32 1.1754944e-38, %v2944
    %v2946 = vsel %vm2943, %v2945, %v2941
    %v2947 = vrcp.pop %v2846
    %v2948 = vmul.f32 %v2846, %v2947
    %v2949 = vsub.f32 1.0, %v2948
    %v2950 = vmul.f32 %v2947, %v2949
    %v2951 = vadd.f32 %v2947, %v2950
    %vm2952 = vweird.f32 %v2846
    %vm2953 = vweird.f32 %v2947
    %vm2954 = vmor %vm2952, %vm2953
    %v2955 = vsel %vm2954, %v2947, %v2951
    %v2956 = vand.u32 2147483647, %v2846
    %vm2957 = vcmp.eq.f32.partialorder %v2956, 8.507059e+37
    %v2958 = vand.u32 %v2846, 2147483648
    %v2959 = vor.u32 1.1754944e-38, %v2958
    %v2960 = vsel %vm2957, %v2959, %v2955
    %v2961 = vrcp.pop %v2849
    %v2962 = vmul.f32 %v2849, %v2961
    %v2963 = vsub.f32 1.0, %v2962
    %v2964 = vmul.f32 %v2961, %v2963
    %v2965 = vadd.f32 %v2961, %v2964
    %vm2966 = vweird.f32 %v2849
    %vm2967 = vweird.f32 %v2961
    %vm2968 = vmor %vm2966, %vm2967
    %v2969 = vsel %vm2968, %v2961, %v2965
    %v2970 = vand.u32 2147483647, %v2849
    %vm2971 = vcmp.eq.f32.partialorder %v2970, 8.507059e+37
    %v2972 = vand.u32 %v2849, 2147483648
    %v2973 = vor.u32 1.1754944e-38, %v2972
    %v2974 = vsel %vm2971, %v2973, %v2969
    %v2975 = vrcp.pop %v2852
    %v2976 = vmul.f32 %v2852, %v2975
    %v2977 = vsub.f32 1.0, %v2976
    %v2978 = vmul.f32 %v2975, %v2977
    %v2979 = vadd.f32 %v2975, %v2978
    %vm2980 = vweird.f32 %v2852
    %vm2981 = vweird.f32 %v2975
    %vm2982 = vmor %vm2980, %vm2981
    %v2983 = vsel %vm2982, %v2975, %v2979
    %v2984 = vand.u32 2147483647, %v2852
    %vm2985 = vcmp.eq.f32.partialorder %v2984, 8.507059e+37
    %v2986 = vand.u32 %v2852, 2147483648
    %v2987 = vor.u32 1.1754944e-38, %v2986
    %v2988 = vsel %vm2985, %v2987, %v2983
    %v2989 = vrcp.pop %v2855
    %v2990 = vmul.f32 %v2855, %v2989
    %v2991 = vsub.f32 1.0, %v2990
    %v2992 = vmul.f32 %v2989, %v2991
    %v2993 = vadd.f32 %v2989, %v2992
    %vm2994 = vweird.f32 %v2855
    %vm2995 = vweird.f32 %v2989
    %vm2996 = vmor %vm2994, %vm2995
    %v2997 = vsel %vm2996, %v2989, %v2993
    %v2998 = vand.u32 2147483647, %v2855
    %vm2999 = vcmp.eq.f32.partialorder %v2998, 8.507059e+37
    %v3000 = vand.u32 %v2855, 2147483648
    %v3001 = vor.u32 1.1754944e-38, %v3000
    %v3002 = vsel %vm2999, %v3001, %v2997
    %v3003 = vrcp.pop %v2858
    %v3004 = vmul.f32 %v2858, %v3003
    %v3005 = vsub.f32 1.0, %v3004
    %v3006 = vmul.f32 %v3003, %v3005
    %v3007 = vadd.f32 %v3003, %v3006
    %vm3008 = vweird.f32 %v2858
    %vm3009 = vweird.f32 %v3003
    %vm3010 = vmor %vm3008, %vm3009
    %v3011 = vsel %vm3010, %v3003, %v3007
    %v3012 = vand.u32 2147483647, %v2858
    %vm3013 = vcmp.eq.f32.partialorder %v3012, 8.507059e+37
    %v3014 = vand.u32 %v2858, 2147483648
    %v3015 = vor.u32 1.1754944e-38, %v3014
    %v3016 = vsel %vm3013, %v3015, %v3011
    %v3017 = vrcp.pop %v2861
    %v3018 = vmul.f32 %v2861, %v3017
    %v3019 = vsub.f32 1.0, %v3018
    %v3020 = vmul.f32 %v3017, %v3019
    %v3021 = vadd.f32 %v3017, %v3020
    %vm3022 = vweird.f32 %v2861
    %vm3023 = vweird.f32 %v3017
    %vm3024 = vmor %vm3022, %vm3023
    %v3025 = vsel %vm3024, %v3017, %v3021
    %v3026 = vand.u32 2147483647, %v2861
    %vm3027 = vcmp.eq.f32.partialorder %v3026, 8.507059e+37
    %v3028 = vand.u32 %v2861, 2147483648
    %v3029 = vor.u32 1.1754944e-38, %v3028
    %v3030 = vsel %vm3027, %v3029, %v3025
    %v3031 = vrcp.pop %v2864
    %v3032 = vmul.f32 %v2864, %v3031
    %v3033 = vsub.f32 1.0, %v3032
    %v3034 = vmul.f32 %v3031, %v3033
    %v3035 = vadd.f32 %v3031, %v3034
    %vm3036 = vweird.f32 %v2864
    %vm3037 = vweird.f32 %v3031
    %vm3038 = vmor %vm3036, %vm3037
    %v3039 = vsel %vm3038, %v3031, %v3035
    %v3040 = vand.u32 2147483647, %v2864
    %vm3041 = vcmp.eq.f32.partialorder %v3040, 8.507059e+37
    %v3042 = vand.u32 %v2864, 2147483648
    %v3043 = vor.u32 1.1754944e-38, %v3042
    %v3044 = vsel %vm3041, %v3043, %v3039
    %v3045 = vrcp.pop %v2867
    %v3046 = vmul.f32 %v2867, %v3045
    %v3047 = vsub.f32 1.0, %v3046
    %v3048 = vmul.f32 %v3045, %v3047
    %v3049 = vadd.f32 %v3045, %v3048
    %vm3050 = vweird.f32 %v2867
    %vm3051 = vweird.f32 %v3045
    %vm3052 = vmor %vm3050, %vm3051
    %v3053 = vsel %vm3052, %v3045, %v3049
    %v3054 = vand.u32 2147483647, %v2867
    %vm3055 = vcmp.eq.f32.partialorder %v3054, 8.507059e+37
    %v3056 = vand.u32 %v2867, 2147483648
    %v3057 = vor.u32 1.1754944e-38, %v3056
    %v3058 = vsel %vm3055, %v3057, %v3053
    %v3059 = vrcp.pop %v2870
    %v3060 = vmul.f32 %v2870, %v3059
    %v3061 = vsub.f32 1.0, %v3060
    %v3062 = vmul.f32 %v3059, %v3061
    %v3063 = vadd.f32 %v3059, %v3062
    %vm3064 = vweird.f32 %v2870
    %vm3065 = vweird.f32 %v3059
    %vm3066 = vmor %vm3064, %vm3065
    %v3067 = vsel %vm3066, %v3059, %v3063
    %v3068 = vand.u32 2147483647, %v2870
    %vm3069 = vcmp.eq.f32.partialorder %v3068, 8.507059e+37
    %v3070 = vand.u32 %v2870, 2147483648
    %v3071 = vor.u32 1.1754944e-38, %v3070
    %v3072 = vsel %vm3069, %v3071, %v3067
    %v3073 = vrcp.pop %v2873
    %v3074 = vmul.f32 %v2873, %v3073
    %v3075 = vsub.f32 1.0, %v3074
    %v3076 = vmul.f32 %v3073, %v3075
    %v3077 = vadd.f32 %v3073, %v3076
    %vm3078 = vweird.f32 %v2873
    %vm3079 = vweird.f32 %v3073
    %vm3080 = vmor %vm3078, %vm3079
    %v3081 = vsel %vm3080, %v3073, %v3077
    %v3082 = vand.u32 2147483647, %v2873
    %vm3083 = vcmp.eq.f32.partialorder %v3082, 8.507059e+37
    %v3084 = vand.u32 %v2873, 2147483648
    %v3085 = vor.u32 1.1754944e-38, %v3084
    %v3086 = vsel %vm3083, %v3085, %v3081
    %v3087 = vrcp.pop %v2876
    %v3088 = vmul.f32 %v2876, %v3087
    %v3089 = vsub.f32 1.0, %v3088
    %v3090 = vmul.f32 %v3087, %v3089
    %v3091 = vadd.f32 %v3087, %v3090
    %vm3092 = vweird.f32 %v2876
    %vm3093 = vweird.f32 %v3087
    %vm3094 = vmor %vm3092, %vm3093
    %v3095 = vsel %vm3094, %v3087, %v3091
    %v3096 = vand.u32 2147483647, %v2876
    %vm3097 = vcmp.eq.f32.partialorder %v3096, 8.507059e+37
    %v3098 = vand.u32 %v2876, 2147483648
    %v3099 = vor.u32 1.1754944e-38, %v3098
    %v3100 = vsel %vm3097, %v3099, %v3095
    %v3101 = vmul.f32 %v2798, %v2890
    %v3102 = vmul.f32 %v2800, %v2904
    %v3103 = vmul.f32 %v2802, %v2918
    %v3104 = vmul.f32 %v2804, %v2932
    %v3105 = vmul.f32 %v2806, %v2946
    %v3106 = vmul.f32 %v2808, %v2960
    %v3107 = vmul.f32 %v2810, %v2974
    %v3108 = vmul.f32 %v2812, %v2988
    %v3109 = vmul.f32 %v2814, %v3002
    %v3110 = vmul.f32 %v2816, %v3016
    %v3111 = vmul.f32 %v2818, %v3030
    %v3112 = vmul.f32 %v2820, %v3044
    %v3113 = vmul.f32 %v2822, %v3058
    %v3114 = vmul.f32 %v2824, %v3072
    %v3115 = vmul.f32 %v2826, %v3086
    %v3116 = vmul.f32 %v2828, %v3100
    %v3117 = vmul.f32 %v158, %v479
    %v3118 = vmul.f32 %v161, %v479
    %v3119 = vmul.f32 %v164, %v479
    %v3120 = vmul.f32 %v167, %v479
    %v3121 = vmul.f32 %v170, %v479
    %v3122 = vmul.f32 %v173, %v479
    %v3123 = vmul.f32 %v176, %v479
    %v3124 = vmul.f32 %v179, %v479
    %v3125 = vmul.f32 %v182, %v479
    %v3126 = vmul.f32 %v185, %v479
    %v3127 = vmul.f32 %v188, %v479
    %v3128 = vmul.f32 %v191, %v479
    %v3129 = vmul.f32 %v194, %v479
    %v3130 = vmul.f32 %v197, %v479
    %v3131 = vmul.f32 %v200, %v479
    %v3132 = vmul.f32 %v203, %v479
    %v3134 = vsel %vm273, %v3101, 0
    %v3137 = vsel %vm273, %v3102, 0
    %3139 = vmatpush.msra.mxu0 0.0
    %3140 = vmatpush.msra.mxu0 0.0
    %3141 = vmatpush.msra.mxu0 0.0
    %3142 = vmatpush.msra.mxu0 0.0
    %3143 = vmatpush.msra.mxu0 0.0
    %3144 = vmatpush.msra.mxu0 0.0
    %3145 = vmatpush.msra.mxu0 0.0
    %3146 = vmatpush.msra.mxu0 0.0
    %3147 = vmatpush.msra.mxu0 0.0
    %3148 = vmatpush.msra.mxu0 0.0
    %3149 = vmatpush.msra.mxu0 0.0
    %3150 = vmatpush.msra.mxu0 0.0
    %3151 = vmatpush.msra.mxu0 0.0
    %3152 = vmatpush.msra.mxu0 0.0
    %3153 = vmatpush.msra.mxu0 %v3118
    %3154 = vmatpush.msra.mxu0 %v3117
    %3155 = vmatmul.f32.gmra.mxu0 %v3134
    %v3156 = vpop.f32.mrf.mxu0
    %v3157 = vadd.f32 0.0, %v3156
    %3158 = vmatmul.f32.gmra.mxu0 %v3137
    %v3159 = vpop.f32.mrf.mxu0
    %v3160 = vadd.f32 0.0, %v3159
    %3161 = vdwg.mxu0
    %v3163 = vsel %vm273, %v3103, 0
    %v3166 = vsel %vm273, %v3104, 0
    %3168 = vmatpush.msra.mxu0 0.0
    %3169 = vmatpush.msra.mxu0 0.0
    %3170 = vmatpush.msra.mxu0 0.0
    %3171 = vmatpush.msra.mxu0 0.0
    %3172 = vmatpush.msra.mxu0 0.0
    %3173 = vmatpush.msra.mxu0 0.0
    %3174 = vmatpush.msra.mxu0 0.0
    %3175 = vmatpush.msra.mxu0 0.0
    %3176 = vmatpush.msra.mxu0 0.0
    %3177 = vmatpush.msra.mxu0 0.0
    %3178 = vmatpush.msra.mxu0 0.0
    %3179 = vmatpush.msra.mxu0 0.0
    %3180 = vmatpush.msra.mxu0 0.0
    %3181 = vmatpush.msra.mxu0 0.0
    %3182 = vmatpush.msra.mxu0 %v3120
    %3183 = vmatpush.msra.mxu0 %v3119
    %3184 = vmatmul.f32.gmra.mxu0 %v3163
    %v3185 = vpop.f32.mrf.mxu0
    %v3186 = vadd.f32 0.0, %v3185
    %3187 = vmatmul.f32.gmra.mxu0 %v3166
    %v3188 = vpop.f32.mrf.mxu0
    %v3189 = vadd.f32 0.0, %v3188
    %3190 = vdwg.mxu0
    %v3192 = vsel %vm273, %v3105, 0
    %v3195 = vsel %vm273, %v3106, 0
    %3197 = vmatpush.msra.mxu0 0.0
    %3198 = vmatpush.msra.mxu0 0.0
    %3199 = vmatpush.msra.mxu0 0.0
    %3200 = vmatpush.msra.mxu0 0.0
    %3201 = vmatpush.msra.mxu0 0.0
    %3202 = vmatpush.msra.mxu0 0.0
    %3203 = vmatpush.msra.mxu0 0.0
    %3204 = vmatpush.msra.mxu0 0.0
    %3205 = vmatpush.msra.mxu0 0.0
    %3206 = vmatpush.msra.mxu0 0.0
    %3207 = vmatpush.msra.mxu0 0.0
    %3208 = vmatpush.msra.mxu0 0.0
    %3209 = vmatpush.msra.mxu0 0.0
    %3210 = vmatpush.msra.mxu0 0.0
    %3211 = vmatpush.msra.mxu0 %v3122
    %3212 = vmatpush.msra.mxu0 %v3121
    %3213 = vmatmul.f32.gmra.mxu0 %v3192
    %v3214 = vpop.f32.mrf.mxu0
    %v3215 = vadd.f32 0.0, %v3214
    %3216 = vmatmul.f32.gmra.mxu0 %v3195
    %v3217 = vpop.f32.mrf.mxu0
    %v3218 = vadd.f32 0.0, %v3217
    %3219 = vdwg.mxu0
    %v3221 = vsel %vm273, %v3107, 0
    %v3224 = vsel %vm273, %v3108, 0
    %3226 = vmatpush.msra.mxu0 0.0
    %3227 = vmatpush.msra.mxu0 0.0
    %3228 = vmatpush.msra.mxu0 0.0
    %3229 = vmatpush.msra.mxu0 0.0
    %3230 = vmatpush.msra.mxu0 0.0
    %3231 = vmatpush.msra.mxu0 0.0
    %3232 = vmatpush.msra.mxu0 0.0
    %3233 = vmatpush.msra.mxu0 0.0
    %3234 = vmatpush.msra.mxu0 0.0
    %3235 = vmatpush.msra.mxu0 0.0
    %3236 = vmatpush.msra.mxu0 0.0
    %3237 = vmatpush.msra.mxu0 0.0
    %3238 = vmatpush.msra.mxu0 0.0
    %3239 = vmatpush.msra.mxu0 0.0
    %3240 = vmatpush.msra.mxu0 %v3124
    %3241 = vmatpush.msra.mxu0 %v3123
    %3242 = vmatmul.f32.gmra.mxu0 %v3221
    %v3243 = vpop.f32.mrf.mxu0
    %v3244 = vadd.f32 0.0, %v3243
    %3245 = vmatmul.f32.gmra.mxu0 %v3224
    %v3246 = vpop.f32.mrf.mxu0
    %v3247 = vadd.f32 0.0, %v3246
    %3248 = vdwg.mxu0
    %v3250 = vsel %vm273, %v3109, 0
    %v3253 = vsel %vm273, %v3110, 0
    %3255 = vmatpush.msra.mxu0 0.0
    %3256 = vmatpush.msra.mxu0 0.0
    %3257 = vmatpush.msra.mxu0 0.0
    %3258 = vmatpush.msra.mxu0 0.0
    %3259 = vmatpush.msra.mxu0 0.0
    %3260 = vmatpush.msra.mxu0 0.0
    %3261 = vmatpush.msra.mxu0 0.0
    %3262 = vmatpush.msra.mxu0 0.0
    %3263 = vmatpush.msra.mxu0 0.0
    %3264 = vmatpush.msra.mxu0 0.0
    %3265 = vmatpush.msra.mxu0 0.0
    %3266 = vmatpush.msra.mxu0 0.0
    %3267 = vmatpush.msra.mxu0 0.0
    %3268 = vmatpush.msra.mxu0 0.0
    %3269 = vmatpush.msra.mxu0 %v3126
    %3270 = vmatpush.msra.mxu0 %v3125
    %3271 = vmatmul.f32.gmra.mxu0 %v3250
    %v3272 = vpop.f32.mrf.mxu0
    %v3273 = vadd.f32 0.0, %v3272
    %3274 = vmatmul.f32.gmra.mxu0 %v3253
    %v3275 = vpop.f32.mrf.mxu0
    %v3276 = vadd.f32 0.0, %v3275
    %3277 = vdwg.mxu0
    %v3279 = vsel %vm273, %v3111, 0
    %v3282 = vsel %vm273, %v3112, 0
    %3284 = vmatpush.msra.mxu0 0.0
    %3285 = vmatpush.msra.mxu0 0.0
    %3286 = vmatpush.msra.mxu0 0.0
    %3287 = vmatpush.msra.mxu0 0.0
    %3288 = vmatpush.msra.mxu0 0.0
    %3289 = vmatpush.msra.mxu0 0.0
    %3290 = vmatpush.msra.mxu0 0.0
    %3291 = vmatpush.msra.mxu0 0.0
    %3292 = vmatpush.msra.mxu0 0.0
    %3293 = vmatpush.msra.mxu0 0.0
    %3294 = vmatpush.msra.mxu0 0.0
    %3295 = vmatpush.msra.mxu0 0.0
    %3296 = vmatpush.msra.mxu0 0.0
    %3297 = vmatpush.msra.mxu0 0.0
    %3298 = vmatpush.msra.mxu0 %v3128
    %3299 = vmatpush.msra.mxu0 %v3127
    %3300 = vmatmul.f32.gmra.mxu0 %v3279
    %v3301 = vpop.f32.mrf.mxu0
    %v3302 = vadd.f32 0.0, %v3301
    %3303 = vmatmul.f32.gmra.mxu0 %v3282
    %v3304 = vpop.f32.mrf.mxu0
    %v3305 = vadd.f32 0.0, %v3304
    %3306 = vdwg.mxu0
    %v3308 = vsel %vm273, %v3113, 0
    %v3311 = vsel %vm273, %v3114, 0
    %3313 = vmatpush.msra.mxu0 0.0
    %3314 = vmatpush.msra.mxu0 0.0
    %3315 = vmatpush.msra.mxu0 0.0
    %3316 = vmatpush.msra.mxu0 0.0
    %3317 = vmatpush.msra.mxu0 0.0
    %3318 = vmatpush.msra.mxu0 0.0
    %3319 = vmatpush.msra.mxu0 0.0
    %3320 = vmatpush.msra.mxu0 0.0
    %3321 = vmatpush.msra.mxu0 0.0
    %3322 = vmatpush.msra.mxu0 0.0
    %3323 = vmatpush.msra.mxu0 0.0
    %3324 = vmatpush.msra.mxu0 0.0
    %3325 = vmatpush.msra.mxu0 0.0
    %3326 = vmatpush.msra.mxu0 0.0
    %3327 = vmatpush.msra.mxu0 %v3130
    %3328 = vmatpush.msra.mxu0 %v3129
    %3329 = vmatmul.f32.gmra.mxu0 %v3308
    %v3330 = vpop.f32.mrf.mxu0
    %v3331 = vadd.f32 0.0, %v3330
    %3332 = vmatmul.f32.gmra.mxu0 %v3311
    %v3333 = vpop.f32.mrf.mxu0
    %v3334 = vadd.f32 0.0, %v3333
    %3335 = vdwg.mxu0
    %v3337 = vsel %vm273, %v3115, 0
    %v3340 = vsel %vm273, %v3116, 0
    %3342 = vmatpush.msra.mxu0 0.0
    %3343 = vmatpush.msra.mxu0 0.0
    %3344 = vmatpush.msra.mxu0 0.0
    %3345 = vmatpush.msra.mxu0 0.0
    %3346 = vmatpush.msra.mxu0 0.0
    %3347 = vmatpush.msra.mxu0 0.0
    %3348 = vmatpush.msra.mxu0 0.0
    %3349 = vmatpush.msra.mxu0 0.0
    %3350 = vmatpush.msra.mxu0 0.0
    %3351 = vmatpush.msra.mxu0 0.0
    %3352 = vmatpush.msra.mxu0 0.0
    %3353 = vmatpush.msra.mxu0 0.0
    %3354 = vmatpush.msra.mxu0 0.0
    %3355 = vmatpush.msra.mxu0 0.0
    %3356 = vmatpush.msra.mxu0 %v3132
    %3357 = vmatpush.msra.mxu0 %v3131
    %3358 = vmatmul.f32.gmra.mxu0 %v3337
    %v3359 = vpop.f32.mrf.mxu0
    %v3360 = vadd.f32 0.0, %v3359
    %3361 = vmatmul.f32.gmra.mxu0 %v3340
    %v3362 = vpop.f32.mrf.mxu0
    %v3363 = vadd.f32 0.0, %v3362
    %3364 = vdwg.mxu0
    %v3365 = vadd.f32 %v2213, %v3157
    %v3366 = vadd.f32 %v2216, %v3160
    %v3367 = vadd.f32 %v2242, %v3186
    %v3368 = vadd.f32 %v2245, %v3189
    %v3369 = vadd.f32 %v2271, %v3215
    %v3370 = vadd.f32 %v2274, %v3218
    %v3371 = vadd.f32 %v2300, %v3244
    %v3372 = vadd.f32 %v2303, %v3247
    %v3373 = vadd.f32 %v2329, %v3273
    %v3374 = vadd.f32 %v2332, %v3276
    %v3375 = vadd.f32 %v2358, %v3302
    %v3376 = vadd.f32 %v2361, %v3305
    %v3377 = vadd.f32 %v2387, %v3331
    %v3378 = vadd.f32 %v2390, %v3334
    %v3379 = vadd.f32 %v2416, %v3360
    %v3380 = vadd.f32 %v2419, %v3363
    %3381 = vset.pattern.permute.xlu0 3
    %3382 = vperm.xlu0 %3381, %v340
    %v3383 = vpop.permute.xlu0 %3382
    %3385 = vset.pattern.permute.xlu0 3
    %3386 = vperm.xlu0 %3385, %v343
    %v3387 = vpop.permute.xlu0 %3386
    %3389 = vset.pattern.permute.xlu0 3
    %3390 = vperm.xlu0 %3389, %v346
    %v3391 = vpop.permute.xlu0 %3390
    %3393 = vset.pattern.permute.xlu0 3
    %3394 = vperm.xlu0 %3393, %v349
    %v3395 = vpop.permute.xlu0 %3394
    %3397 = vset.pattern.permute.xlu0 3
    %3398 = vperm.xlu0 %3397, %v352
    %v3399 = vpop.permute.xlu0 %3398
    %3401 = vset.pattern.permute.xlu0 3
    %3402 = vperm.xlu0 %3401, %v355
    %v3403 = vpop.permute.xlu0 %3402
    %3405 = vset.pattern.permute.xlu0 3
    %3406 = vperm.xlu0 %3405, %v358
    %v3407 = vpop.permute.xlu0 %3406
    %3409 = vset.pattern.permute.xlu0 3
    %3410 = vperm.xlu0 %3409, %v361
    %v3411 = vpop.permute.xlu0 %3410
    %3413 = vset.pattern.permute.xlu0 3
    %3414 = vperm.xlu0 %3413, %v364
    %v3415 = vpop.permute.xlu0 %3414
    %3417 = vset.pattern.permute.xlu0 3
    %3418 = vperm.xlu0 %3417, %v367
    %v3419 = vpop.permute.xlu0 %3418
    %3421 = vset.pattern.permute.xlu0 3
    %3422 = vperm.xlu0 %3421, %v370
    %v3423 = vpop.permute.xlu0 %3422
    %3425 = vset.pattern.permute.xlu0 3
    %3426 = vperm.xlu0 %3425, %v373
    %v3427 = vpop.permute.xlu0 %3426
    %3429 = vset.pattern.permute.xlu0 3
    %3430 = vperm.xlu0 %3429, %v376
    %v3431 = vpop.permute.xlu0 %3430
    %3433 = vset.pattern.permute.xlu0 3
    %3434 = vperm.xlu0 %3433, %v379
    %v3435 = vpop.permute.xlu0 %3434
    %3437 = vset.pattern.permute.xlu0 3
    %3438 = vperm.xlu0 %3437, %v382
    %v3439 = vpop.permute.xlu0 %3438
    %3441 = vset.pattern.permute.xlu0 3
    %3442 = vperm.xlu0 %3441, %v385
    %v3443 = vpop.permute.xlu0 %3442
    %v3445 = vmul.f32 %v463, %v3383
    %v3446 = vmul.f32 %v464, %v3387
    %v3447 = vmul.f32 %v463, %v3391
    %v3448 = vmul.f32 %v464, %v3395
    %v3449 = vmul.f32 %v463, %v3399
    %v3450 = vmul.f32 %v464, %v3403
    %v3451 = vmul.f32 %v463, %v3407
    %v3452 = vmul.f32 %v464, %v3411
    %v3453 = vmul.f32 %v463, %v3415
    %v3454 = vmul.f32 %v464, %v3419
    %v3455 = vmul.f32 %v463, %v3423
    %v3456 = vmul.f32 %v464, %v3427
    %v3457 = vmul.f32 %v463, %v3431
    %v3458 = vmul.f32 %v464, %v3435
    %v3459 = vmul.f32 %v463, %v3439
    %v3460 = vmul.f32 %v464, %v3443
    %v3461 = vsel %vm273, %v3445, 0.0
    %v3462 = vsel %vm273, %v3446, 0.0
    %v3463 = vadd.f32 %v3461, %v3462
    %v3464 = vrot.slane %v3463, 4
    %v3465 = vadd.f32 %v3463, %v3464
    %v3466 = vrot.slane %v3465, 2
    %v3467 = vadd.f32 %v3465, %v3466
    %v3468 = vrot.slane %v3467, 1
    %v3469 = vadd.f32 %v3467, %v3468
    %v3470 = vsel %vm273, %v3447, 0.0
    %v3471 = vsel %vm273, %v3448, 0.0
    %v3472 = vadd.f32 %v3470, %v3471
    %v3473 = vrot.slane %v3472, 4
    %v3474 = vadd.f32 %v3472, %v3473
    %v3475 = vrot.slane %v3474, 2
    %v3476 = vadd.f32 %v3474, %v3475
    %v3477 = vrot.slane %v3476, 1
    %v3478 = vadd.f32 %v3476, %v3477
    %v3479 = vsel %vm273, %v3449, 0.0
    %v3480 = vsel %vm273, %v3450, 0.0
    %v3481 = vadd.f32 %v3479, %v3480
    %v3482 = vrot.slane %v3481, 4
    %v3483 = vadd.f32 %v3481, %v3482
    %v3484 = vrot.slane %v3483, 2
    %v3485 = vadd.f32 %v3483, %v3484
    %v3486 = vrot.slane %v3485, 1
    %v3487 = vadd.f32 %v3485, %v3486
    %v3488 = vsel %vm273, %v3451, 0.0
    %v3489 = vsel %vm273, %v3452, 0.0
    %v3490 = vadd.f32 %v3488, %v3489
    %v3491 = vrot.slane %v3490, 4
    %v3492 = vadd.f32 %v3490, %v3491
    %v3493 = vrot.slane %v3492, 2
    %v3494 = vadd.f32 %v3492, %v3493
    %v3495 = vrot.slane %v3494, 1
    %v3496 = vadd.f32 %v3494, %v3495
    %v3497 = vsel %vm273, %v3453, 0.0
    %v3498 = vsel %vm273, %v3454, 0.0
    %v3499 = vadd.f32 %v3497, %v3498
    %v3500 = vrot.slane %v3499, 4
    %v3501 = vadd.f32 %v3499, %v3500
    %v3502 = vrot.slane %v3501, 2
    %v3503 = vadd.f32 %v3501, %v3502
    %v3504 = vrot.slane %v3503, 1
    %v3505 = vadd.f32 %v3503, %v3504
    %v3506 = vsel %vm273, %v3455, 0.0
    %v3507 = vsel %vm273, %v3456, 0.0
    %v3508 = vadd.f32 %v3506, %v3507
    %v3509 = vrot.slane %v3508, 4
    %v3510 = vadd.f32 %v3508, %v3509
    %v3511 = vrot.slane %v3510, 2
    %v3512 = vadd.f32 %v3510, %v3511
    %v3513 = vrot.slane %v3512, 1
    %v3514 = vadd.f32 %v3512, %v3513
    %v3515 = vsel %vm273, %v3457, 0.0
    %v3516 = vsel %vm273, %v3458, 0.0
    %v3517 = vadd.f32 %v3515, %v3516
    %v3518 = vrot.slane %v3517, 4
    %v3519 = vadd.f32 %v3517, %v3518
    %v3520 = vrot.slane %v3519, 2
    %v3521 = vadd.f32 %v3519, %v3520
    %v3522 = vrot.slane %v3521, 1
    %v3523 = vadd.f32 %v3521, %v3522
    %v3524 = vsel %vm273, %v3459, 0.0
    %v3525 = vsel %vm273, %v3460, 0.0
    %v3526 = vadd.f32 %v3524, %v3525
    %v3527 = vrot.slane %v3526, 4
    %v3528 = vadd.f32 %v3526, %v3527
    %v3529 = vrot.slane %v3528, 2
    %v3530 = vadd.f32 %v3528, %v3529
    %v3531 = vrot.slane %v3530, 1
    %v3532 = vadd.f32 %v3530, %v3531
    %3533 = vset.pattern.permute.xlu0 3
    %3534 = vperm.xlu0 %3533, %v407
    %v3535 = vpop.permute.xlu0 %3534
    %3537 = vset.pattern.permute.xlu0 3
    %3538 = vperm.xlu0 %3537, %v410
    %v3539 = vpop.permute.xlu0 %3538
    %3541 = vset.pattern.permute.xlu0 3
    %3542 = vperm.xlu0 %3541, %v413
    %v3543 = vpop.permute.xlu0 %3542
    %3545 = vset.pattern.permute.xlu0 3
    %3546 = vperm.xlu0 %3545, %v416
    %v3547 = vpop.permute.xlu0 %3546
    %3549 = vset.pattern.permute.xlu0 3
    %3550 = vperm.xlu0 %3549, %v419
    %v3551 = vpop.permute.xlu0 %3550
    %3553 = vset.pattern.permute.xlu0 3
    %3554 = vperm.xlu0 %3553, %v422
    %v3555 = vpop.permute.xlu0 %3554
    %3557 = vset.pattern.permute.xlu0 3
    %3558 = vperm.xlu0 %3557, %v425
    %v3559 = vpop.permute.xlu0 %3558
    %3561 = vset.pattern.permute.xlu0 3
    %3562 = vperm.xlu0 %3561, %v428
    %v3563 = vpop.permute.xlu0 %3562
    %3565 = vset.pattern.permute.xlu0 3
    %3566 = vperm.xlu0 %3565, %v431
    %v3567 = vpop.permute.xlu0 %3566
    %3569 = vset.pattern.permute.xlu0 3
    %3570 = vperm.xlu0 %3569, %v434
    %v3571 = vpop.permute.xlu0 %3570
    %3573 = vset.pattern.permute.xlu0 3
    %3574 = vperm.xlu0 %3573, %v437
    %v3575 = vpop.permute.xlu0 %3574
    %3577 = vset.pattern.permute.xlu0 3
    %3578 = vperm.xlu0 %3577, %v440
    %v3579 = vpop.permute.xlu0 %3578
    %3581 = vset.pattern.permute.xlu0 3
    %3582 = vperm.xlu0 %3581, %v443
    %v3583 = vpop.permute.xlu0 %3582
    %3585 = vset.pattern.permute.xlu0 3
    %3586 = vperm.xlu0 %3585, %v446
    %v3587 = vpop.permute.xlu0 %3586
    %3589 = vset.pattern.permute.xlu0 3
    %3590 = vperm.xlu0 %3589, %v449
    %v3591 = vpop.permute.xlu0 %3590
    %3593 = vset.pattern.permute.xlu0 3
    %3594 = vperm.xlu0 %3593, %v452
    %v3595 = vpop.permute.xlu0 %3594
    %v3597 = vadd.f32 %v3535, %v3469
    %v3598 = vadd.f32 %v3539, %v3469
    %v3599 = vadd.f32 %v3543, %v3478
    %v3600 = vadd.f32 %v3547, %v3478
    %v3601 = vadd.f32 %v3551, %v3487
    %v3602 = vadd.f32 %v3555, %v3487
    %v3603 = vadd.f32 %v3559, %v3496
    %v3604 = vadd.f32 %v3563, %v3496
    %v3605 = vadd.f32 %v3567, %v3505
    %v3606 = vadd.f32 %v3571, %v3505
    %v3607 = vadd.f32 %v3575, %v3514
    %v3608 = vadd.f32 %v3579, %v3514
    %v3609 = vadd.f32 %v3583, %v3523
    %v3610 = vadd.f32 %v3587, %v3523
    %v3611 = vadd.f32 %v3591, %v3532
    %v3612 = vadd.f32 %v3595, %v3532
    %v3613 = vmul.f32 %v58, %v3597
    %v3614 = vmul.f32 %v59, %v3598
    %v3615 = vmul.f32 %v60, %v3599
    %v3616 = vmul.f32 %v61, %v3600
    %v3617 = vmul.f32 %v62, %v3601
    %v3618 = vmul.f32 %v63, %v3602
    %v3619 = vmul.f32 %v64, %v3603
    %v3620 = vmul.f32 %v65, %v3604
    %v3621 = vmul.f32 %v66, %v3605
    %v3622 = vmul.f32 %v67, %v3606
    %v3623 = vmul.f32 %v68, %v3607
    %v3624 = vmul.f32 %v69, %v3608
    %v3625 = vmul.f32 %v70, %v3609
    %v3626 = vmul.f32 %v71, %v3610
    %v3627 = vmul.f32 %v72, %v3611
    %v3628 = vmul.f32 %v73, %v3612
    %vm3629 = vcmp.gt.f32.partialorder %v3613, 0.0
    %vm3630 = vcmp.gt.f32.partialorder %v3614, 0.0
    %vm3631 = vcmp.gt.f32.partialorder %v3615, 0.0
    %vm3632 = vcmp.gt.f32.partialorder %v3616, 0.0
    %vm3633 = vcmp.gt.f32.partialorder %v3617, 0.0
    %vm3634 = vcmp.gt.f32.partialorder %v3618, 0.0
    %vm3635 = vcmp.gt.f32.partialorder %v3619, 0.0
    %vm3636 = vcmp.gt.f32.partialorder %v3620, 0.0
    %vm3637 = vcmp.gt.f32.partialorder %v3621, 0.0
    %vm3638 = vcmp.gt.f32.partialorder %v3622, 0.0
    %vm3639 = vcmp.gt.f32.partialorder %v3623, 0.0
    %vm3640 = vcmp.gt.f32.partialorder %v3624, 0.0
    %vm3641 = vcmp.gt.f32.partialorder %v3625, 0.0
    %vm3642 = vcmp.gt.f32.partialorder %v3626, 0.0
    %vm3643 = vcmp.gt.f32.partialorder %v3627, 0.0
    %vm3644 = vcmp.gt.f32.partialorder %v3628, 0.0
    %v3645 = vmul.f32 %v3613, 0.2
    %v3646 = vmul.f32 %v3614, 0.2
    %v3647 = vmul.f32 %v3615, 0.2
    %v3648 = vmul.f32 %v3616, 0.2
    %v3649 = vmul.f32 %v3617, 0.2
    %v3650 = vmul.f32 %v3618, 0.2
    %v3651 = vmul.f32 %v3619, 0.2
    %v3652 = vmul.f32 %v3620, 0.2
    %v3653 = vmul.f32 %v3621, 0.2
    %v3654 = vmul.f32 %v3622, 0.2
    %v3655 = vmul.f32 %v3623, 0.2
    %v3656 = vmul.f32 %v3624, 0.2
    %v3657 = vmul.f32 %v3625, 0.2
    %v3658 = vmul.f32 %v3626, 0.2
    %v3659 = vmul.f32 %v3627, 0.2
    %v3660 = vmul.f32 %v3628, 0.2
    %v3661 = vsel %vm3629, %v3613, %v3645
    %v3662 = vsel %vm3630, %v3614, %v3646
    %v3663 = vsel %vm3631, %v3615, %v3647
    %v3664 = vsel %vm3632, %v3616, %v3648
    %v3665 = vsel %vm3633, %v3617, %v3649
    %v3666 = vsel %vm3634, %v3618, %v3650
    %v3667 = vsel %vm3635, %v3619, %v3651
    %v3668 = vsel %vm3636, %v3620, %v3652
    %v3669 = vsel %vm3637, %v3621, %v3653
    %v3670 = vsel %vm3638, %v3622, %v3654
    %v3671 = vsel %vm3639, %v3623, %v3655
    %v3672 = vsel %vm3640, %v3624, %v3656
    %v3673 = vsel %vm3641, %v3625, %v3657
    %v3674 = vsel %vm3642, %v3626, %v3658
    %v3675 = vsel %vm3643, %v3627, %v3659
    %v3676 = vsel %vm3644, %v3628, %v3660
    %v3677 = vsel %vm813, %v3661, -1e+09
    %v3678 = vsel %vm814, %v3662, -1e+09
    %v3679 = vsel %vm815, %v3663, -1e+09
    %v3680 = vsel %vm816, %v3664, -1e+09
    %v3681 = vsel %vm817, %v3665, -1e+09
    %v3682 = vsel %vm818, %v3666, -1e+09
    %v3683 = vsel %vm819, %v3667, -1e+09
    %v3684 = vsel %vm820, %v3668, -1e+09
    %v3685 = vsel %vm821, %v3669, -1e+09
    %v3686 = vsel %vm822, %v3670, -1e+09
    %v3687 = vsel %vm823, %v3671, -1e+09
    %v3688 = vsel %vm824, %v3672, -1e+09
    %v3689 = vsel %vm825, %v3673, -1e+09
    %v3690 = vsel %vm826, %v3674, -1e+09
    %v3691 = vsel %vm827, %v3675, -1e+09
    %v3692 = vsel %vm828, %v3676, -1e+09
    %v3693 = vsel %vm273, %v3677, -inf
    %3694 = vmax.xlane.f32.xlu0 %v3693
    %v3695 = vpop.xlane.xlu0 %3694
    %v3696 = vsel %vm273, %v3678, -inf
    %3697 = vmax.xlane.f32.xlu0 %v3696
    %v3698 = vpop.xlane.xlu0 %3697
    %v3699 = vsel %vm273, %v3679, -inf
    %3700 = vmax.xlane.f32.xlu0 %v3699
    %v3701 = vpop.xlane.xlu0 %3700
    %v3702 = vsel %vm273, %v3680, -inf
    %3703 = vmax.xlane.f32.xlu0 %v3702
    %v3704 = vpop.xlane.xlu0 %3703
    %v3705 = vsel %vm273, %v3681, -inf
    %3706 = vmax.xlane.f32.xlu0 %v3705
    %v3707 = vpop.xlane.xlu0 %3706
    %v3708 = vsel %vm273, %v3682, -inf
    %3709 = vmax.xlane.f32.xlu0 %v3708
    %v3710 = vpop.xlane.xlu0 %3709
    %v3711 = vsel %vm273, %v3683, -inf
    %3712 = vmax.xlane.f32.xlu0 %v3711
    %v3713 = vpop.xlane.xlu0 %3712
    %v3714 = vsel %vm273, %v3684, -inf
    %3715 = vmax.xlane.f32.xlu0 %v3714
    %v3716 = vpop.xlane.xlu0 %3715
    %v3717 = vsel %vm273, %v3685, -inf
    %3718 = vmax.xlane.f32.xlu0 %v3717
    %v3719 = vpop.xlane.xlu0 %3718
    %v3720 = vsel %vm273, %v3686, -inf
    %3721 = vmax.xlane.f32.xlu0 %v3720
    %v3722 = vpop.xlane.xlu0 %3721
    %v3723 = vsel %vm273, %v3687, -inf
    %3724 = vmax.xlane.f32.xlu0 %v3723
    %v3725 = vpop.xlane.xlu0 %3724
    %v3726 = vsel %vm273, %v3688, -inf
    %3727 = vmax.xlane.f32.xlu0 %v3726
    %v3728 = vpop.xlane.xlu0 %3727
    %v3729 = vsel %vm273, %v3689, -inf
    %3730 = vmax.xlane.f32.xlu0 %v3729
    %v3731 = vpop.xlane.xlu0 %3730
    %v3732 = vsel %vm273, %v3690, -inf
    %3733 = vmax.xlane.f32.xlu0 %v3732
    %v3734 = vpop.xlane.xlu0 %3733
    %v3735 = vsel %vm273, %v3691, -inf
    %3736 = vmax.xlane.f32.xlu0 %v3735
    %v3737 = vpop.xlane.xlu0 %3736
    %v3738 = vsel %vm273, %v3692, -inf
    %3739 = vmax.xlane.f32.xlu0 %v3738
    %v3740 = vpop.xlane.xlu0 %3739
    %v3741 = vsub.f32 %v3677, %v3695
    %v3742 = vsub.f32 %v3678, %v3698
    %v3743 = vsub.f32 %v3679, %v3701
    %v3744 = vsub.f32 %v3680, %v3704
    %v3745 = vsub.f32 %v3681, %v3707
    %v3746 = vsub.f32 %v3682, %v3710
    %v3747 = vsub.f32 %v3683, %v3713
    %v3748 = vsub.f32 %v3684, %v3716
    %v3749 = vsub.f32 %v3685, %v3719
    %v3750 = vsub.f32 %v3686, %v3722
    %v3751 = vsub.f32 %v3687, %v3725
    %v3752 = vsub.f32 %v3688, %v3728
    %v3753 = vsub.f32 %v3689, %v3731
    %v3754 = vsub.f32 %v3690, %v3734
    %v3755 = vsub.f32 %v3691, %v3737
    %v3756 = vsub.f32 %v3692, %v3740
    %v3757 = vmul.f32 %v3741, 1.442695
    %v3758 = vpow.pop %v3757
    %v3759 = vmul.f32 %v3742, 1.442695
    %v3760 = vpow.pop %v3759
    %v3761 = vmul.f32 %v3743, 1.442695
    %v3762 = vpow.pop %v3761
    %v3763 = vmul.f32 %v3744, 1.442695
    %v3764 = vpow.pop %v3763
    %v3765 = vmul.f32 %v3745, 1.442695
    %v3766 = vpow.pop %v3765
    %v3767 = vmul.f32 %v3746, 1.442695
    %v3768 = vpow.pop %v3767
    %v3769 = vmul.f32 %v3747, 1.442695
    %v3770 = vpow.pop %v3769
    %v3771 = vmul.f32 %v3748, 1.442695
    %v3772 = vpow.pop %v3771
    %v3773 = vmul.f32 %v3749, 1.442695
    %v3774 = vpow.pop %v3773
    %v3775 = vmul.f32 %v3750, 1.442695
    %v3776 = vpow.pop %v3775
    %v3777 = vmul.f32 %v3751, 1.442695
    %v3778 = vpow.pop %v3777
    %v3779 = vmul.f32 %v3752, 1.442695
    %v3780 = vpow.pop %v3779
    %v3781 = vmul.f32 %v3753, 1.442695
    %v3782 = vpow.pop %v3781
    %v3783 = vmul.f32 %v3754, 1.442695
    %v3784 = vpow.pop %v3783
    %v3785 = vmul.f32 %v3755, 1.442695
    %v3786 = vpow.pop %v3785
    %v3787 = vmul.f32 %v3756, 1.442695
    %v3788 = vpow.pop %v3787
    %v3789 = vsel %vm273, %v3758, 0.0
    %3790 = vadd.xlane.f32.xlu0 %v3789
    %v3791 = vpop.xlane.xlu0 %3790
    %v3792 = vsel %vm273, %v3760, 0.0
    %3793 = vadd.xlane.f32.xlu0 %v3792
    %v3794 = vpop.xlane.xlu0 %3793
    %v3795 = vsel %vm273, %v3762, 0.0
    %3796 = vadd.xlane.f32.xlu0 %v3795
    %v3797 = vpop.xlane.xlu0 %3796
    %v3798 = vsel %vm273, %v3764, 0.0
    %3799 = vadd.xlane.f32.xlu0 %v3798
    %v3800 = vpop.xlane.xlu0 %3799
    %v3801 = vsel %vm273, %v3766, 0.0
    %3802 = vadd.xlane.f32.xlu0 %v3801
    %v3803 = vpop.xlane.xlu0 %3802
    %v3804 = vsel %vm273, %v3768, 0.0
    %3805 = vadd.xlane.f32.xlu0 %v3804
    %v3806 = vpop.xlane.xlu0 %3805
    %v3807 = vsel %vm273, %v3770, 0.0
    %3808 = vadd.xlane.f32.xlu0 %v3807
    %v3809 = vpop.xlane.xlu0 %3808
    %v3810 = vsel %vm273, %v3772, 0.0
    %3811 = vadd.xlane.f32.xlu0 %v3810
    %v3812 = vpop.xlane.xlu0 %3811
    %v3813 = vsel %vm273, %v3774, 0.0
    %3814 = vadd.xlane.f32.xlu0 %v3813
    %v3815 = vpop.xlane.xlu0 %3814
    %v3816 = vsel %vm273, %v3776, 0.0
    %3817 = vadd.xlane.f32.xlu0 %v3816
    %v3818 = vpop.xlane.xlu0 %3817
    %v3819 = vsel %vm273, %v3778, 0.0
    %3820 = vadd.xlane.f32.xlu0 %v3819
    %v3821 = vpop.xlane.xlu0 %3820
    %v3822 = vsel %vm273, %v3780, 0.0
    %3823 = vadd.xlane.f32.xlu0 %v3822
    %v3824 = vpop.xlane.xlu0 %3823
    %v3825 = vsel %vm273, %v3782, 0.0
    %3826 = vadd.xlane.f32.xlu0 %v3825
    %v3827 = vpop.xlane.xlu0 %3826
    %v3828 = vsel %vm273, %v3784, 0.0
    %3829 = vadd.xlane.f32.xlu0 %v3828
    %v3830 = vpop.xlane.xlu0 %3829
    %v3831 = vsel %vm273, %v3786, 0.0
    %3832 = vadd.xlane.f32.xlu0 %v3831
    %v3833 = vpop.xlane.xlu0 %3832
    %v3834 = vsel %vm273, %v3788, 0.0
    %3835 = vadd.xlane.f32.xlu0 %v3834
    %v3836 = vpop.xlane.xlu0 %3835
    %v3837 = vrcp.pop %v3791
    %v3838 = vmul.f32 %v3791, %v3837
    %v3839 = vsub.f32 1.0, %v3838
    %v3840 = vmul.f32 %v3837, %v3839
    %v3841 = vadd.f32 %v3837, %v3840
    %vm3842 = vweird.f32 %v3791
    %vm3843 = vweird.f32 %v3837
    %vm3844 = vmor %vm3842, %vm3843
    %v3845 = vsel %vm3844, %v3837, %v3841
    %v3846 = vand.u32 2147483647, %v3791
    %vm3847 = vcmp.eq.f32.partialorder %v3846, 8.507059e+37
    %v3848 = vand.u32 %v3791, 2147483648
    %v3849 = vor.u32 1.1754944e-38, %v3848
    %v3850 = vsel %vm3847, %v3849, %v3845
    %v3851 = vrcp.pop %v3794
    %v3852 = vmul.f32 %v3794, %v3851
    %v3853 = vsub.f32 1.0, %v3852
    %v3854 = vmul.f32 %v3851, %v3853
    %v3855 = vadd.f32 %v3851, %v3854
    %vm3856 = vweird.f32 %v3794
    %vm3857 = vweird.f32 %v3851
    %vm3858 = vmor %vm3856, %vm3857
    %v3859 = vsel %vm3858, %v3851, %v3855
    %v3860 = vand.u32 2147483647, %v3794
    %vm3861 = vcmp.eq.f32.partialorder %v3860, 8.507059e+37
    %v3862 = vand.u32 %v3794, 2147483648
    %v3863 = vor.u32 1.1754944e-38, %v3862
    %v3864 = vsel %vm3861, %v3863, %v3859
    %v3865 = vrcp.pop %v3797
    %v3866 = vmul.f32 %v3797, %v3865
    %v3867 = vsub.f32 1.0, %v3866
    %v3868 = vmul.f32 %v3865, %v3867
    %v3869 = vadd.f32 %v3865, %v3868
    %vm3870 = vweird.f32 %v3797
    %vm3871 = vweird.f32 %v3865
    %vm3872 = vmor %vm3870, %vm3871
    %v3873 = vsel %vm3872, %v3865, %v3869
    %v3874 = vand.u32 2147483647, %v3797
    %vm3875 = vcmp.eq.f32.partialorder %v3874, 8.507059e+37
    %v3876 = vand.u32 %v3797, 2147483648
    %v3877 = vor.u32 1.1754944e-38, %v3876
    %v3878 = vsel %vm3875, %v3877, %v3873
    %v3879 = vrcp.pop %v3800
    %v3880 = vmul.f32 %v3800, %v3879
    %v3881 = vsub.f32 1.0, %v3880
    %v3882 = vmul.f32 %v3879, %v3881
    %v3883 = vadd.f32 %v3879, %v3882
    %vm3884 = vweird.f32 %v3800
    %vm3885 = vweird.f32 %v3879
    %vm3886 = vmor %vm3884, %vm3885
    %v3887 = vsel %vm3886, %v3879, %v3883
    %v3888 = vand.u32 2147483647, %v3800
    %vm3889 = vcmp.eq.f32.partialorder %v3888, 8.507059e+37
    %v3890 = vand.u32 %v3800, 2147483648
    %v3891 = vor.u32 1.1754944e-38, %v3890
    %v3892 = vsel %vm3889, %v3891, %v3887
    %v3893 = vrcp.pop %v3803
    %v3894 = vmul.f32 %v3803, %v3893
    %v3895 = vsub.f32 1.0, %v3894
    %v3896 = vmul.f32 %v3893, %v3895
    %v3897 = vadd.f32 %v3893, %v3896
    %vm3898 = vweird.f32 %v3803
    %vm3899 = vweird.f32 %v3893
    %vm3900 = vmor %vm3898, %vm3899
    %v3901 = vsel %vm3900, %v3893, %v3897
    %v3902 = vand.u32 2147483647, %v3803
    %vm3903 = vcmp.eq.f32.partialorder %v3902, 8.507059e+37
    %v3904 = vand.u32 %v3803, 2147483648
    %v3905 = vor.u32 1.1754944e-38, %v3904
    %v3906 = vsel %vm3903, %v3905, %v3901
    %v3907 = vrcp.pop %v3806
    %v3908 = vmul.f32 %v3806, %v3907
    %v3909 = vsub.f32 1.0, %v3908
    %v3910 = vmul.f32 %v3907, %v3909
    %v3911 = vadd.f32 %v3907, %v3910
    %vm3912 = vweird.f32 %v3806
    %vm3913 = vweird.f32 %v3907
    %vm3914 = vmor %vm3912, %vm3913
    %v3915 = vsel %vm3914, %v3907, %v3911
    %v3916 = vand.u32 2147483647, %v3806
    %vm3917 = vcmp.eq.f32.partialorder %v3916, 8.507059e+37
    %v3918 = vand.u32 %v3806, 2147483648
    %v3919 = vor.u32 1.1754944e-38, %v3918
    %v3920 = vsel %vm3917, %v3919, %v3915
    %v3921 = vrcp.pop %v3809
    %v3922 = vmul.f32 %v3809, %v3921
    %v3923 = vsub.f32 1.0, %v3922
    %v3924 = vmul.f32 %v3921, %v3923
    %v3925 = vadd.f32 %v3921, %v3924
    %vm3926 = vweird.f32 %v3809
    %vm3927 = vweird.f32 %v3921
    %vm3928 = vmor %vm3926, %vm3927
    %v3929 = vsel %vm3928, %v3921, %v3925
    %v3930 = vand.u32 2147483647, %v3809
    %vm3931 = vcmp.eq.f32.partialorder %v3930, 8.507059e+37
    %v3932 = vand.u32 %v3809, 2147483648
    %v3933 = vor.u32 1.1754944e-38, %v3932
    %v3934 = vsel %vm3931, %v3933, %v3929
    %v3935 = vrcp.pop %v3812
    %v3936 = vmul.f32 %v3812, %v3935
    %v3937 = vsub.f32 1.0, %v3936
    %v3938 = vmul.f32 %v3935, %v3937
    %v3939 = vadd.f32 %v3935, %v3938
    %vm3940 = vweird.f32 %v3812
    %vm3941 = vweird.f32 %v3935
    %vm3942 = vmor %vm3940, %vm3941
    %v3943 = vsel %vm3942, %v3935, %v3939
    %v3944 = vand.u32 2147483647, %v3812
    %vm3945 = vcmp.eq.f32.partialorder %v3944, 8.507059e+37
    %v3946 = vand.u32 %v3812, 2147483648
    %v3947 = vor.u32 1.1754944e-38, %v3946
    %v3948 = vsel %vm3945, %v3947, %v3943
    %v3949 = vrcp.pop %v3815
    %v3950 = vmul.f32 %v3815, %v3949
    %v3951 = vsub.f32 1.0, %v3950
    %v3952 = vmul.f32 %v3949, %v3951
    %v3953 = vadd.f32 %v3949, %v3952
    %vm3954 = vweird.f32 %v3815
    %vm3955 = vweird.f32 %v3949
    %vm3956 = vmor %vm3954, %vm3955
    %v3957 = vsel %vm3956, %v3949, %v3953
    %v3958 = vand.u32 2147483647, %v3815
    %vm3959 = vcmp.eq.f32.partialorder %v3958, 8.507059e+37
    %v3960 = vand.u32 %v3815, 2147483648
    %v3961 = vor.u32 1.1754944e-38, %v3960
    %v3962 = vsel %vm3959, %v3961, %v3957
    %v3963 = vrcp.pop %v3818
    %v3964 = vmul.f32 %v3818, %v3963
    %v3965 = vsub.f32 1.0, %v3964
    %v3966 = vmul.f32 %v3963, %v3965
    %v3967 = vadd.f32 %v3963, %v3966
    %vm3968 = vweird.f32 %v3818
    %vm3969 = vweird.f32 %v3963
    %vm3970 = vmor %vm3968, %vm3969
    %v3971 = vsel %vm3970, %v3963, %v3967
    %v3972 = vand.u32 2147483647, %v3818
    %vm3973 = vcmp.eq.f32.partialorder %v3972, 8.507059e+37
    %v3974 = vand.u32 %v3818, 2147483648
    %v3975 = vor.u32 1.1754944e-38, %v3974
    %v3976 = vsel %vm3973, %v3975, %v3971
    %v3977 = vrcp.pop %v3821
    %v3978 = vmul.f32 %v3821, %v3977
    %v3979 = vsub.f32 1.0, %v3978
    %v3980 = vmul.f32 %v3977, %v3979
    %v3981 = vadd.f32 %v3977, %v3980
    %vm3982 = vweird.f32 %v3821
    %vm3983 = vweird.f32 %v3977
    %vm3984 = vmor %vm3982, %vm3983
    %v3985 = vsel %vm3984, %v3977, %v3981
    %v3986 = vand.u32 2147483647, %v3821
    %vm3987 = vcmp.eq.f32.partialorder %v3986, 8.507059e+37
    %v3988 = vand.u32 %v3821, 2147483648
    %v3989 = vor.u32 1.1754944e-38, %v3988
    %v3990 = vsel %vm3987, %v3989, %v3985
    %v3991 = vrcp.pop %v3824
    %v3992 = vmul.f32 %v3824, %v3991
    %v3993 = vsub.f32 1.0, %v3992
    %v3994 = vmul.f32 %v3991, %v3993
    %v3995 = vadd.f32 %v3991, %v3994
    %vm3996 = vweird.f32 %v3824
    %vm3997 = vweird.f32 %v3991
    %vm3998 = vmor %vm3996, %vm3997
    %v3999 = vsel %vm3998, %v3991, %v3995
    %v4000 = vand.u32 2147483647, %v3824
    %vm4001 = vcmp.eq.f32.partialorder %v4000, 8.507059e+37
    %v4002 = vand.u32 %v3824, 2147483648
    %v4003 = vor.u32 1.1754944e-38, %v4002
    %v4004 = vsel %vm4001, %v4003, %v3999
    %v4005 = vrcp.pop %v3827
    %v4006 = vmul.f32 %v3827, %v4005
    %v4007 = vsub.f32 1.0, %v4006
    %v4008 = vmul.f32 %v4005, %v4007
    %v4009 = vadd.f32 %v4005, %v4008
    %vm4010 = vweird.f32 %v3827
    %vm4011 = vweird.f32 %v4005
    %vm4012 = vmor %vm4010, %vm4011
    %v4013 = vsel %vm4012, %v4005, %v4009
    %v4014 = vand.u32 2147483647, %v3827
    %vm4015 = vcmp.eq.f32.partialorder %v4014, 8.507059e+37
    %v4016 = vand.u32 %v3827, 2147483648
    %v4017 = vor.u32 1.1754944e-38, %v4016
    %v4018 = vsel %vm4015, %v4017, %v4013
    %v4019 = vrcp.pop %v3830
    %v4020 = vmul.f32 %v3830, %v4019
    %v4021 = vsub.f32 1.0, %v4020
    %v4022 = vmul.f32 %v4019, %v4021
    %v4023 = vadd.f32 %v4019, %v4022
    %vm4024 = vweird.f32 %v3830
    %vm4025 = vweird.f32 %v4019
    %vm4026 = vmor %vm4024, %vm4025
    %v4027 = vsel %vm4026, %v4019, %v4023
    %v4028 = vand.u32 2147483647, %v3830
    %vm4029 = vcmp.eq.f32.partialorder %v4028, 8.507059e+37
    %v4030 = vand.u32 %v3830, 2147483648
    %v4031 = vor.u32 1.1754944e-38, %v4030
    %v4032 = vsel %vm4029, %v4031, %v4027
    %v4033 = vrcp.pop %v3833
    %v4034 = vmul.f32 %v3833, %v4033
    %v4035 = vsub.f32 1.0, %v4034
    %v4036 = vmul.f32 %v4033, %v4035
    %v4037 = vadd.f32 %v4033, %v4036
    %vm4038 = vweird.f32 %v3833
    %vm4039 = vweird.f32 %v4033
    %vm4040 = vmor %vm4038, %vm4039
    %v4041 = vsel %vm4040, %v4033, %v4037
    %v4042 = vand.u32 2147483647, %v3833
    %vm4043 = vcmp.eq.f32.partialorder %v4042, 8.507059e+37
    %v4044 = vand.u32 %v3833, 2147483648
    %v4045 = vor.u32 1.1754944e-38, %v4044
    %v4046 = vsel %vm4043, %v4045, %v4041
    %v4047 = vrcp.pop %v3836
    %v4048 = vmul.f32 %v3836, %v4047
    %v4049 = vsub.f32 1.0, %v4048
    %v4050 = vmul.f32 %v4047, %v4049
    %v4051 = vadd.f32 %v4047, %v4050
    %vm4052 = vweird.f32 %v3836
    %vm4053 = vweird.f32 %v4047
    %vm4054 = vmor %vm4052, %vm4053
    %v4055 = vsel %vm4054, %v4047, %v4051
    %v4056 = vand.u32 2147483647, %v3836
    %vm4057 = vcmp.eq.f32.partialorder %v4056, 8.507059e+37
    %v4058 = vand.u32 %v3836, 2147483648
    %v4059 = vor.u32 1.1754944e-38, %v4058
    %v4060 = vsel %vm4057, %v4059, %v4055
    %v4061 = vmul.f32 %v3758, %v3850
    %v4062 = vmul.f32 %v3760, %v3864
    %v4063 = vmul.f32 %v3762, %v3878
    %v4064 = vmul.f32 %v3764, %v3892
    %v4065 = vmul.f32 %v3766, %v3906
    %v4066 = vmul.f32 %v3768, %v3920
    %v4067 = vmul.f32 %v3770, %v3934
    %v4068 = vmul.f32 %v3772, %v3948
    %v4069 = vmul.f32 %v3774, %v3962
    %v4070 = vmul.f32 %v3776, %v3976
    %v4071 = vmul.f32 %v3778, %v3990
    %v4072 = vmul.f32 %v3780, %v4004
    %v4073 = vmul.f32 %v3782, %v4018
    %v4074 = vmul.f32 %v3784, %v4032
    %v4075 = vmul.f32 %v3786, %v4046
    %v4076 = vmul.f32 %v3788, %v4060
    %v4077 = vmul.f32 %v158, %v484
    %v4078 = vmul.f32 %v161, %v484
    %v4079 = vmul.f32 %v164, %v484
    %v4080 = vmul.f32 %v167, %v484
    %v4081 = vmul.f32 %v170, %v484
    %v4082 = vmul.f32 %v173, %v484
    %v4083 = vmul.f32 %v176, %v484
    %v4084 = vmul.f32 %v179, %v484
    %v4085 = vmul.f32 %v182, %v484
    %v4086 = vmul.f32 %v185, %v484
    %v4087 = vmul.f32 %v188, %v484
    %v4088 = vmul.f32 %v191, %v484
    %v4089 = vmul.f32 %v194, %v484
    %v4090 = vmul.f32 %v197, %v484
    %v4091 = vmul.f32 %v200, %v484
    %v4092 = vmul.f32 %v203, %v484
    %v4094 = vsel %vm273, %v4061, 0
    %v4097 = vsel %vm273, %v4062, 0
    %4099 = vmatpush.msra.mxu0 0.0
    %4100 = vmatpush.msra.mxu0 0.0
    %4101 = vmatpush.msra.mxu0 0.0
    %4102 = vmatpush.msra.mxu0 0.0
    %4103 = vmatpush.msra.mxu0 0.0
    %4104 = vmatpush.msra.mxu0 0.0
    %4105 = vmatpush.msra.mxu0 0.0
    %4106 = vmatpush.msra.mxu0 0.0
    %4107 = vmatpush.msra.mxu0 0.0
    %4108 = vmatpush.msra.mxu0 0.0
    %4109 = vmatpush.msra.mxu0 0.0
    %4110 = vmatpush.msra.mxu0 0.0
    %4111 = vmatpush.msra.mxu0 0.0
    %4112 = vmatpush.msra.mxu0 0.0
    %4113 = vmatpush.msra.mxu0 %v4078
    %4114 = vmatpush.msra.mxu0 %v4077
    %4115 = vmatmul.f32.gmra.mxu0 %v4094
    %v4116 = vpop.f32.mrf.mxu0
    %v4117 = vadd.f32 0.0, %v4116
    %4118 = vmatmul.f32.gmra.mxu0 %v4097
    %v4119 = vpop.f32.mrf.mxu0
    %v4120 = vadd.f32 0.0, %v4119
    %4121 = vdwg.mxu0
    %v4123 = vsel %vm273, %v4063, 0
    %v4126 = vsel %vm273, %v4064, 0
    %4128 = vmatpush.msra.mxu0 0.0
    %4129 = vmatpush.msra.mxu0 0.0
    %4130 = vmatpush.msra.mxu0 0.0
    %4131 = vmatpush.msra.mxu0 0.0
    %4132 = vmatpush.msra.mxu0 0.0
    %4133 = vmatpush.msra.mxu0 0.0
    %4134 = vmatpush.msra.mxu0 0.0
    %4135 = vmatpush.msra.mxu0 0.0
    %4136 = vmatpush.msra.mxu0 0.0
    %4137 = vmatpush.msra.mxu0 0.0
    %4138 = vmatpush.msra.mxu0 0.0
    %4139 = vmatpush.msra.mxu0 0.0
    %4140 = vmatpush.msra.mxu0 0.0
    %4141 = vmatpush.msra.mxu0 0.0
    %4142 = vmatpush.msra.mxu0 %v4080
    %4143 = vmatpush.msra.mxu0 %v4079
    %4144 = vmatmul.f32.gmra.mxu0 %v4123
    %v4145 = vpop.f32.mrf.mxu0
    %v4146 = vadd.f32 0.0, %v4145
    %4147 = vmatmul.f32.gmra.mxu0 %v4126
    %v4148 = vpop.f32.mrf.mxu0
    %v4149 = vadd.f32 0.0, %v4148
    %4150 = vdwg.mxu0
    %v4152 = vsel %vm273, %v4065, 0
    %v4155 = vsel %vm273, %v4066, 0
    %4157 = vmatpush.msra.mxu0 0.0
    %4158 = vmatpush.msra.mxu0 0.0
    %4159 = vmatpush.msra.mxu0 0.0
    %4160 = vmatpush.msra.mxu0 0.0
    %4161 = vmatpush.msra.mxu0 0.0
    %4162 = vmatpush.msra.mxu0 0.0
    %4163 = vmatpush.msra.mxu0 0.0
    %4164 = vmatpush.msra.mxu0 0.0
    %4165 = vmatpush.msra.mxu0 0.0
    %4166 = vmatpush.msra.mxu0 0.0
    %4167 = vmatpush.msra.mxu0 0.0
    %4168 = vmatpush.msra.mxu0 0.0
    %4169 = vmatpush.msra.mxu0 0.0
    %4170 = vmatpush.msra.mxu0 0.0
    %4171 = vmatpush.msra.mxu0 %v4082
    %4172 = vmatpush.msra.mxu0 %v4081
    %4173 = vmatmul.f32.gmra.mxu0 %v4152
    %v4174 = vpop.f32.mrf.mxu0
    %v4175 = vadd.f32 0.0, %v4174
    %4176 = vmatmul.f32.gmra.mxu0 %v4155
    %v4177 = vpop.f32.mrf.mxu0
    %v4178 = vadd.f32 0.0, %v4177
    %4179 = vdwg.mxu0
    %v4181 = vsel %vm273, %v4067, 0
    %v4184 = vsel %vm273, %v4068, 0
    %4186 = vmatpush.msra.mxu0 0.0
    %4187 = vmatpush.msra.mxu0 0.0
    %4188 = vmatpush.msra.mxu0 0.0
    %4189 = vmatpush.msra.mxu0 0.0
    %4190 = vmatpush.msra.mxu0 0.0
    %4191 = vmatpush.msra.mxu0 0.0
    %4192 = vmatpush.msra.mxu0 0.0
    %4193 = vmatpush.msra.mxu0 0.0
    %4194 = vmatpush.msra.mxu0 0.0
    %4195 = vmatpush.msra.mxu0 0.0
    %4196 = vmatpush.msra.mxu0 0.0
    %4197 = vmatpush.msra.mxu0 0.0
    %4198 = vmatpush.msra.mxu0 0.0
    %4199 = vmatpush.msra.mxu0 0.0
    %4200 = vmatpush.msra.mxu0 %v4084
    %4201 = vmatpush.msra.mxu0 %v4083
    %4202 = vmatmul.f32.gmra.mxu0 %v4181
    %v4203 = vpop.f32.mrf.mxu0
    %v4204 = vadd.f32 0.0, %v4203
    %4205 = vmatmul.f32.gmra.mxu0 %v4184
    %v4206 = vpop.f32.mrf.mxu0
    %v4207 = vadd.f32 0.0, %v4206
    %4208 = vdwg.mxu0
    %v4210 = vsel %vm273, %v4069, 0
    %v4213 = vsel %vm273, %v4070, 0
    %4215 = vmatpush.msra.mxu0 0.0
    %4216 = vmatpush.msra.mxu0 0.0
    %4217 = vmatpush.msra.mxu0 0.0
    %4218 = vmatpush.msra.mxu0 0.0
    %4219 = vmatpush.msra.mxu0 0.0
    %4220 = vmatpush.msra.mxu0 0.0
    %4221 = vmatpush.msra.mxu0 0.0
    %4222 = vmatpush.msra.mxu0 0.0
    %4223 = vmatpush.msra.mxu0 0.0
    %4224 = vmatpush.msra.mxu0 0.0
    %4225 = vmatpush.msra.mxu0 0.0
    %4226 = vmatpush.msra.mxu0 0.0
    %4227 = vmatpush.msra.mxu0 0.0
    %4228 = vmatpush.msra.mxu0 0.0
    %4229 = vmatpush.msra.mxu0 %v4086
    %4230 = vmatpush.msra.mxu0 %v4085
    %4231 = vmatmul.f32.gmra.mxu0 %v4210
    %v4232 = vpop.f32.mrf.mxu0
    %v4233 = vadd.f32 0.0, %v4232
    %4234 = vmatmul.f32.gmra.mxu0 %v4213
    %v4235 = vpop.f32.mrf.mxu0
    %v4236 = vadd.f32 0.0, %v4235
    %4237 = vdwg.mxu0
    %v4239 = vsel %vm273, %v4071, 0
    %v4242 = vsel %vm273, %v4072, 0
    %4244 = vmatpush.msra.mxu0 0.0
    %4245 = vmatpush.msra.mxu0 0.0
    %4246 = vmatpush.msra.mxu0 0.0
    %4247 = vmatpush.msra.mxu0 0.0
    %4248 = vmatpush.msra.mxu0 0.0
    %4249 = vmatpush.msra.mxu0 0.0
    %4250 = vmatpush.msra.mxu0 0.0
    %4251 = vmatpush.msra.mxu0 0.0
    %4252 = vmatpush.msra.mxu0 0.0
    %4253 = vmatpush.msra.mxu0 0.0
    %4254 = vmatpush.msra.mxu0 0.0
    %4255 = vmatpush.msra.mxu0 0.0
    %4256 = vmatpush.msra.mxu0 0.0
    %4257 = vmatpush.msra.mxu0 0.0
    %4258 = vmatpush.msra.mxu0 %v4088
    %4259 = vmatpush.msra.mxu0 %v4087
    %4260 = vmatmul.f32.gmra.mxu0 %v4239
    %v4261 = vpop.f32.mrf.mxu0
    %v4262 = vadd.f32 0.0, %v4261
    %4263 = vmatmul.f32.gmra.mxu0 %v4242
    %v4264 = vpop.f32.mrf.mxu0
    %v4265 = vadd.f32 0.0, %v4264
    %4266 = vdwg.mxu0
    %v4268 = vsel %vm273, %v4073, 0
    %v4271 = vsel %vm273, %v4074, 0
    %4273 = vmatpush.msra.mxu0 0.0
    %4274 = vmatpush.msra.mxu0 0.0
    %4275 = vmatpush.msra.mxu0 0.0
    %4276 = vmatpush.msra.mxu0 0.0
    %4277 = vmatpush.msra.mxu0 0.0
    %4278 = vmatpush.msra.mxu0 0.0
    %4279 = vmatpush.msra.mxu0 0.0
    %4280 = vmatpush.msra.mxu0 0.0
    %4281 = vmatpush.msra.mxu0 0.0
    %4282 = vmatpush.msra.mxu0 0.0
    %4283 = vmatpush.msra.mxu0 0.0
    %4284 = vmatpush.msra.mxu0 0.0
    %4285 = vmatpush.msra.mxu0 0.0
    %4286 = vmatpush.msra.mxu0 0.0
    %4287 = vmatpush.msra.mxu0 %v4090
    %4288 = vmatpush.msra.mxu0 %v4089
    %4289 = vmatmul.f32.gmra.mxu0 %v4268
    %v4290 = vpop.f32.mrf.mxu0
    %v4291 = vadd.f32 0.0, %v4290
    %4292 = vmatmul.f32.gmra.mxu0 %v4271
    %v4293 = vpop.f32.mrf.mxu0
    %v4294 = vadd.f32 0.0, %v4293
    %4295 = vdwg.mxu0
    %v4297 = vsel %vm273, %v4075, 0
    %v4300 = vsel %vm273, %v4076, 0
    %4302 = vmatpush.msra.mxu0 0.0
    %4303 = vmatpush.msra.mxu0 0.0
    %4304 = vmatpush.msra.mxu0 0.0
    %4305 = vmatpush.msra.mxu0 0.0
    %4306 = vmatpush.msra.mxu0 0.0
    %4307 = vmatpush.msra.mxu0 0.0
    %4308 = vmatpush.msra.mxu0 0.0
    %4309 = vmatpush.msra.mxu0 0.0
    %4310 = vmatpush.msra.mxu0 0.0
    %4311 = vmatpush.msra.mxu0 0.0
    %4312 = vmatpush.msra.mxu0 0.0
    %4313 = vmatpush.msra.mxu0 0.0
    %4314 = vmatpush.msra.mxu0 0.0
    %4315 = vmatpush.msra.mxu0 0.0
    %4316 = vmatpush.msra.mxu0 %v4092
    %4317 = vmatpush.msra.mxu0 %v4091
    %4318 = vmatmul.f32.gmra.mxu0 %v4297
    %v4319 = vpop.f32.mrf.mxu0
    %v4320 = vadd.f32 0.0, %v4319
    %4321 = vmatmul.f32.gmra.mxu0 %v4300
    %v4322 = vpop.f32.mrf.mxu0
    %v4323 = vadd.f32 0.0, %v4322
    %4324 = vdwg.mxu0
    %v4325 = vadd.f32 %v3365, %v4117
    %v4326 = vadd.f32 %v3366, %v4120
    %v4327 = vadd.f32 %v3367, %v4146
    %v4328 = vadd.f32 %v3368, %v4149
    %v4329 = vadd.f32 %v3369, %v4175
    %v4330 = vadd.f32 %v3370, %v4178
    %v4331 = vadd.f32 %v3371, %v4204
    %v4332 = vadd.f32 %v3372, %v4207
    %v4333 = vadd.f32 %v3373, %v4233
    %v4334 = vadd.f32 %v3374, %v4236
    %v4335 = vadd.f32 %v3375, %v4262
    %v4336 = vadd.f32 %v3376, %v4265
    %v4337 = vadd.f32 %v3377, %v4291
    %v4338 = vadd.f32 %v3378, %v4294
    %v4339 = vadd.f32 %v3379, %v4320
    %v4340 = vadd.f32 %v3380, %v4323
    %vm4341 = vcmp.gt.f32.partialorder %v4325, 0.0
    %vm4342 = vcmp.gt.f32.partialorder %v4326, 0.0
    %vm4343 = vcmp.gt.f32.partialorder %v4327, 0.0
    %vm4344 = vcmp.gt.f32.partialorder %v4328, 0.0
    %vm4345 = vcmp.gt.f32.partialorder %v4329, 0.0
    %vm4346 = vcmp.gt.f32.partialorder %v4330, 0.0
    %vm4347 = vcmp.gt.f32.partialorder %v4331, 0.0
    %vm4348 = vcmp.gt.f32.partialorder %v4332, 0.0
    %vm4349 = vcmp.gt.f32.partialorder %v4333, 0.0
    %vm4350 = vcmp.gt.f32.partialorder %v4334, 0.0
    %vm4351 = vcmp.gt.f32.partialorder %v4335, 0.0
    %vm4352 = vcmp.gt.f32.partialorder %v4336, 0.0
    %vm4353 = vcmp.gt.f32.partialorder %v4337, 0.0
    %vm4354 = vcmp.gt.f32.partialorder %v4338, 0.0
    %vm4355 = vcmp.gt.f32.partialorder %v4339, 0.0
    %vm4356 = vcmp.gt.f32.partialorder %v4340, 0.0
    %v4357 = vmul.f32 %v4325, 1.442695
    %v4358 = vpow.pop %v4357
    %v4359 = vmul.f32 %v4326, 1.442695
    %v4360 = vpow.pop %v4359
    %v4361 = vmul.f32 %v4327, 1.442695
    %v4362 = vpow.pop %v4361
    %v4363 = vmul.f32 %v4328, 1.442695
    %v4364 = vpow.pop %v4363
    %v4365 = vmul.f32 %v4329, 1.442695
    %v4366 = vpow.pop %v4365
    %v4367 = vmul.f32 %v4330, 1.442695
    %v4368 = vpow.pop %v4367
    %v4369 = vmul.f32 %v4331, 1.442695
    %v4370 = vpow.pop %v4369
    %v4371 = vmul.f32 %v4332, 1.442695
    %v4372 = vpow.pop %v4371
    %v4373 = vmul.f32 %v4333, 1.442695
    %v4374 = vpow.pop %v4373
    %v4375 = vmul.f32 %v4334, 1.442695
    %v4376 = vpow.pop %v4375
    %v4377 = vmul.f32 %v4335, 1.442695
    %v4378 = vpow.pop %v4377
    %v4379 = vmul.f32 %v4336, 1.442695
    %v4380 = vpow.pop %v4379
    %v4381 = vmul.f32 %v4337, 1.442695
    %v4382 = vpow.pop %v4381
    %v4383 = vmul.f32 %v4338, 1.442695
    %v4384 = vpow.pop %v4383
    %v4385 = vmul.f32 %v4339, 1.442695
    %v4386 = vpow.pop %v4385
    %v4387 = vmul.f32 %v4340, 1.442695
    %v4388 = vpow.pop %v4387
    %v4389 = vsub.f32 %v4358, 1.0
    %v4390 = vsub.f32 %v4360, 1.0
    %v4391 = vsub.f32 %v4362, 1.0
    %v4392 = vsub.f32 %v4364, 1.0
    %v4393 = vsub.f32 %v4366, 1.0
    %v4394 = vsub.f32 %v4368, 1.0
    %v4395 = vsub.f32 %v4370, 1.0
    %v4396 = vsub.f32 %v4372, 1.0
    %v4397 = vsub.f32 %v4374, 1.0
    %v4398 = vsub.f32 %v4376, 1.0
    %v4399 = vsub.f32 %v4378, 1.0
    %v4400 = vsub.f32 %v4380, 1.0
    %v4401 = vsub.f32 %v4382, 1.0
    %v4402 = vsub.f32 %v4384, 1.0
    %v4403 = vsub.f32 %v4386, 1.0
    %v4404 = vsub.f32 %v4388, 1.0
    %v4405 = vsel %vm4341, %v4325, %v4389
    %v4406 = vsel %vm4342, %v4326, %v4390
    %v4407 = vsel %vm4343, %v4327, %v4391
    %v4408 = vsel %vm4344, %v4328, %v4392
    %v4409 = vsel %vm4345, %v4329, %v4393
    %v4410 = vsel %vm4346, %v4330, %v4394
    %v4411 = vsel %vm4347, %v4331, %v4395
    %v4412 = vsel %vm4348, %v4332, %v4396
    %v4413 = vsel %vm4349, %v4333, %v4397
    %v4414 = vsel %vm4350, %v4334, %v4398
    %v4415 = vsel %vm4351, %v4335, %v4399
    %v4416 = vsel %vm4352, %v4336, %v4400
    %v4417 = vsel %vm4353, %v4337, %v4401
    %v4418 = vsel %vm4354, %v4338, %v4402
    %v4419 = vsel %vm4355, %v4339, %v4403
    %v4420 = vsel %vm4356, %v4340, %v4404
    %v4421 = vadd.f32 %v4405, %v224
    %v4422 = vadd.f32 %v4406, %v227
    %v4423 = vadd.f32 %v4407, %v230
    %v4424 = vadd.f32 %v4408, %v233
    %v4425 = vadd.f32 %v4409, %v236
    %v4426 = vadd.f32 %v4410, %v239
    %v4427 = vadd.f32 %v4411, %v242
    %v4428 = vadd.f32 %v4412, %v245
    %v4429 = vadd.f32 %v4413, %v248
    %v4430 = vadd.f32 %v4414, %v251
    %v4431 = vadd.f32 %v4415, %v254
    %v4432 = vadd.f32 %v4416, %v257
    %v4433 = vadd.f32 %v4417, %v260
    %v4434 = vadd.f32 %v4418, %v263
    %v4435 = vadd.f32 %v4419, %v266
    %v4436 = vadd.f32 %v4420, %v269
    %v4437 = vld [vmem:[%s7] sm:$0xff]
    %v4438 = vld [vmem:[%s7 + $0x8] sm:$0xff]
    %v4439 = vld [vmem:[%s7 + $0x10] sm:$0xff]
    %v4440 = vld [vmem:[%s7 + $0x18] sm:$0xff]
    %v4441 = vld [vmem:[%s7 + $0x20] sm:$0xff]
    %v4442 = vld [vmem:[%s7 + $0x28] sm:$0xff]
    %v4443 = vld [vmem:[%s7 + $0x30] sm:$0xff]
    %v4444 = vld [vmem:[%s7 + $0x38] sm:$0xff]
    %v4445 = vld [vmem:[%s7 + $0x40] sm:$0xff]
    %v4446 = vld [vmem:[%s7 + $0x48] sm:$0xff]
    %v4447 = vld [vmem:[%s7 + $0x50] sm:$0xff]
    %v4448 = vld [vmem:[%s7 + $0x58] sm:$0xff]
    %v4449 = vld [vmem:[%s7 + $0x60] sm:$0xff]
    %v4450 = vld [vmem:[%s7 + $0x68] sm:$0xff]
    %v4451 = vld [vmem:[%s7 + $0x70] sm:$0xff]
    %v4452 = vld [vmem:[%s7 + $0x78] sm:$0xff]
    %v4453 = vadd.f32 %v4421, %v4437
    %v4454 = vadd.f32 %v4422, %v4438
    %v4455 = vadd.f32 %v4423, %v4439
    %v4456 = vadd.f32 %v4424, %v4440
    %v4457 = vadd.f32 %v4425, %v4441
    %v4458 = vadd.f32 %v4426, %v4442
    %v4459 = vadd.f32 %v4427, %v4443
    %v4460 = vadd.f32 %v4428, %v4444
    %v4461 = vadd.f32 %v4429, %v4445
    %v4462 = vadd.f32 %v4430, %v4446
    %v4463 = vadd.f32 %v4431, %v4447
    %v4464 = vadd.f32 %v4432, %v4448
    %v4465 = vadd.f32 %v4433, %v4449
    %v4466 = vadd.f32 %v4434, %v4450
    %v4467 = vadd.f32 %v4435, %v4451
    %v4468 = vadd.f32 %v4436, %v4452
    %v4469 = vld [vmem:[%s8] sm:$0xff]
    %v4470 = vld [vmem:[%s8 + $0x8] sm:$0xff]
    %v4471 = vld [vmem:[%s8 + $0x10] sm:$0xff]
    %v4472 = vld [vmem:[%s8 + $0x18] sm:$0xff]
    %v4473 = vld [vmem:[%s8 + $0x20] sm:$0xff]
    %v4474 = vld [vmem:[%s8 + $0x28] sm:$0xff]
    %v4475 = vld [vmem:[%s8 + $0x30] sm:$0xff]
    %v4476 = vld [vmem:[%s8 + $0x38] sm:$0xff]
    %v4477 = vld [vmem:[%s8 + $0x40] sm:$0xff]
    %v4478 = vld [vmem:[%s8 + $0x48] sm:$0xff]
    %v4479 = vld [vmem:[%s8 + $0x50] sm:$0xff]
    %v4480 = vld [vmem:[%s8 + $0x58] sm:$0xff]
    %v4481 = vld [vmem:[%s8 + $0x60] sm:$0xff]
    %v4482 = vld [vmem:[%s8 + $0x68] sm:$0xff]
    %v4483 = vld [vmem:[%s8 + $0x70] sm:$0xff]
    %v4484 = vld [vmem:[%s8 + $0x78] sm:$0xff]
    %v4485 = vpack.c.bf16 %v4453, %v4453
    %v4486 = vpack.c.bf16 %v4454, %v4454
    %v4487 = vpack.c.bf16 %v4455, %v4455
    %v4488 = vpack.c.bf16 %v4456, %v4456
    %v4489 = vpack.c.bf16 %v4457, %v4457
    %v4490 = vpack.c.bf16 %v4458, %v4458
    %v4491 = vpack.c.bf16 %v4459, %v4459
    %v4492 = vpack.c.bf16 %v4460, %v4460
    %v4493 = vpack.c.bf16 %v4461, %v4461
    %v4494 = vpack.c.bf16 %v4462, %v4462
    %v4495 = vpack.c.bf16 %v4463, %v4463
    %v4496 = vpack.c.bf16 %v4464, %v4464
    %v4497 = vpack.c.bf16 %v4465, %v4465
    %v4498 = vpack.c.bf16 %v4466, %v4466
    %v4499 = vpack.c.bf16 %v4467, %v4467
    %v4500 = vpack.c.bf16 %v4468, %v4468
    %v4501 = vunpack.c.l.bf16 %v4485
    %v4502 = vunpack.c.l.bf16 %v4486
    %v4503 = vunpack.c.l.bf16 %v4487
    %v4504 = vunpack.c.l.bf16 %v4488
    %v4505 = vunpack.c.l.bf16 %v4489
    %v4506 = vunpack.c.l.bf16 %v4490
    %v4507 = vunpack.c.l.bf16 %v4491
    %v4508 = vunpack.c.l.bf16 %v4492
    %v4509 = vunpack.c.l.bf16 %v4493
    %v4510 = vunpack.c.l.bf16 %v4494
    %v4511 = vunpack.c.l.bf16 %v4495
    %v4512 = vunpack.c.l.bf16 %v4496
    %v4513 = vunpack.c.l.bf16 %v4497
    %v4514 = vunpack.c.l.bf16 %v4498
    %v4515 = vunpack.c.l.bf16 %v4499
    %v4516 = vunpack.c.l.bf16 %v4500
    %v4517 = vsub.f32 %v4453, %v4501
    %v4518 = vsub.f32 %v4454, %v4502
    %v4519 = vsub.f32 %v4455, %v4503
    %v4520 = vsub.f32 %v4456, %v4504
    %v4521 = vsub.f32 %v4457, %v4505
    %v4522 = vsub.f32 %v4458, %v4506
    %v4523 = vsub.f32 %v4459, %v4507
    %v4524 = vsub.f32 %v4460, %v4508
    %v4525 = vsub.f32 %v4461, %v4509
    %v4526 = vsub.f32 %v4462, %v4510
    %v4527 = vsub.f32 %v4463, %v4511
    %v4528 = vsub.f32 %v4464, %v4512
    %v4529 = vsub.f32 %v4465, %v4513
    %v4530 = vsub.f32 %v4466, %v4514
    %v4531 = vsub.f32 %v4467, %v4515
    %v4532 = vsub.f32 %v4468, %v4516
    %4533 = vmatpush.msra.mxu0 %v4532
    %4534 = vmatpush.msra.mxu0 %v4531
    %4535 = vmatpush.msra.mxu0 %v4530
    %4536 = vmatpush.msra.mxu0 %v4529
    %4537 = vmatpush.msra.mxu0 %v4528
    %4538 = vmatpush.msra.mxu0 %v4527
    %4539 = vmatpush.msra.mxu0 %v4526
    %4540 = vmatpush.msra.mxu0 %v4525
    %4541 = vmatpush.msra.mxu0 %v4524
    %4542 = vmatpush.msra.mxu0 %v4523
    %4543 = vmatpush.msra.mxu0 %v4522
    %4544 = vmatpush.msra.mxu0 %v4521
    %4545 = vmatpush.msra.mxu0 %v4520
    %4546 = vmatpush.msra.mxu0 %v4519
    %4547 = vmatpush.msra.mxu0 %v4518
    %4548 = vmatpush.msra.mxu0 %v4517
    %4549 = vmatmul.f32.gmra.mxu0 %v4469
    %v4550 = vpop.f32.mrf.mxu0
    %v4551 = vadd.f32 0.0, %v4550
    %4552 = vmatmul.f32.gmra.mxu0 %v4470
    %v4553 = vpop.f32.mrf.mxu0
    %v4554 = vadd.f32 0.0, %v4553
    %4555 = vmatmul.f32.gmra.mxu0 %v4471
    %v4556 = vpop.f32.mrf.mxu0
    %v4557 = vadd.f32 0.0, %v4556
    %4558 = vmatmul.f32.gmra.mxu0 %v4472
    %v4559 = vpop.f32.mrf.mxu0
    %v4560 = vadd.f32 0.0, %v4559
    %4561 = vmatmul.f32.gmra.mxu0 %v4473
    %v4562 = vpop.f32.mrf.mxu0
    %v4563 = vadd.f32 0.0, %v4562
    %4564 = vmatmul.f32.gmra.mxu0 %v4474
    %v4565 = vpop.f32.mrf.mxu0
    %v4566 = vadd.f32 0.0, %v4565
    %4567 = vmatmul.f32.gmra.mxu0 %v4475
    %v4568 = vpop.f32.mrf.mxu0
    %v4569 = vadd.f32 0.0, %v4568
    %4570 = vmatmul.f32.gmra.mxu0 %v4476
    %v4571 = vpop.f32.mrf.mxu0
    %v4572 = vadd.f32 0.0, %v4571
    %4573 = vmatmul.f32.gmra.mxu0 %v4477
    %v4574 = vpop.f32.mrf.mxu0
    %v4575 = vadd.f32 0.0, %v4574
    %4576 = vmatmul.f32.gmra.mxu0 %v4478
    %v4577 = vpop.f32.mrf.mxu0
    %v4578 = vadd.f32 0.0, %v4577
    %4579 = vmatmul.f32.gmra.mxu0 %v4479
    %v4580 = vpop.f32.mrf.mxu0
    %v4581 = vadd.f32 0.0, %v4580
    %4582 = vmatmul.f32.gmra.mxu0 %v4480
    %v4583 = vpop.f32.mrf.mxu0
    %v4584 = vadd.f32 0.0, %v4583
    %4585 = vmatmul.f32.gmra.mxu0 %v4481
    %v4586 = vpop.f32.mrf.mxu0
    %v4587 = vadd.f32 0.0, %v4586
    %4588 = vmatmul.f32.gmra.mxu0 %v4482
    %v4589 = vpop.f32.mrf.mxu0
    %v4590 = vadd.f32 0.0, %v4589
    %4591 = vmatmul.f32.gmra.mxu0 %v4483
    %v4592 = vpop.f32.mrf.mxu0
    %v4593 = vadd.f32 0.0, %v4592
    %4594 = vmatmul.f32.gmra.mxu0 %v4484
    %v4595 = vpop.f32.mrf.mxu0
    %v4596 = vadd.f32 0.0, %v4595
    %4597 = vdwg.mxu0
    %4598 = vmatpush.msra.mxu0 %v4516
    %4599 = vmatpush.msra.mxu0 %v4515
    %4600 = vmatpush.msra.mxu0 %v4514
    %4601 = vmatpush.msra.mxu0 %v4513
    %4602 = vmatpush.msra.mxu0 %v4512
    %4603 = vmatpush.msra.mxu0 %v4511
    %4604 = vmatpush.msra.mxu0 %v4510
    %4605 = vmatpush.msra.mxu0 %v4509
    %4606 = vmatpush.msra.mxu0 %v4508
    %4607 = vmatpush.msra.mxu0 %v4507
    %4608 = vmatpush.msra.mxu0 %v4506
    %4609 = vmatpush.msra.mxu0 %v4505
    %4610 = vmatpush.msra.mxu0 %v4504
    %4611 = vmatpush.msra.mxu0 %v4503
    %4612 = vmatpush.msra.mxu0 %v4502
    %4613 = vmatpush.msra.mxu0 %v4501
    %4614 = vmatmul.f32.gmra.mxu0 %v4469
    %v4615 = vpop.f32.mrf.mxu0
    %v4616 = vadd.f32 %v4551, %v4615
    %4617 = vmatmul.f32.gmra.mxu0 %v4470
    %v4618 = vpop.f32.mrf.mxu0
    %v4619 = vadd.f32 %v4554, %v4618
    %4620 = vmatmul.f32.gmra.mxu0 %v4471
    %v4621 = vpop.f32.mrf.mxu0
    %v4622 = vadd.f32 %v4557, %v4621
    %4623 = vmatmul.f32.gmra.mxu0 %v4472
    %v4624 = vpop.f32.mrf.mxu0
    %v4625 = vadd.f32 %v4560, %v4624
    %4626 = vmatmul.f32.gmra.mxu0 %v4473
    %v4627 = vpop.f32.mrf.mxu0
    %v4628 = vadd.f32 %v4563, %v4627
    %4629 = vmatmul.f32.gmra.mxu0 %v4474
    %v4630 = vpop.f32.mrf.mxu0
    %v4631 = vadd.f32 %v4566, %v4630
    %4632 = vmatmul.f32.gmra.mxu0 %v4475
    %v4633 = vpop.f32.mrf.mxu0
    %v4634 = vadd.f32 %v4569, %v4633
    %4635 = vmatmul.f32.gmra.mxu0 %v4476
    %v4636 = vpop.f32.mrf.mxu0
    %v4637 = vadd.f32 %v4572, %v4636
    %4638 = vmatmul.f32.gmra.mxu0 %v4477
    %v4639 = vpop.f32.mrf.mxu0
    %v4640 = vadd.f32 %v4575, %v4639
    %4641 = vmatmul.f32.gmra.mxu0 %v4478
    %v4642 = vpop.f32.mrf.mxu0
    %v4643 = vadd.f32 %v4578, %v4642
    %4644 = vmatmul.f32.gmra.mxu0 %v4479
    %v4645 = vpop.f32.mrf.mxu0
    %v4646 = vadd.f32 %v4581, %v4645
    %4647 = vmatmul.f32.gmra.mxu0 %v4480
    %v4648 = vpop.f32.mrf.mxu0
    %v4649 = vadd.f32 %v4584, %v4648
    %4650 = vmatmul.f32.gmra.mxu0 %v4481
    %v4651 = vpop.f32.mrf.mxu0
    %v4652 = vadd.f32 %v4587, %v4651
    %4653 = vmatmul.f32.gmra.mxu0 %v4482
    %v4654 = vpop.f32.mrf.mxu0
    %v4655 = vadd.f32 %v4590, %v4654
    %4656 = vmatmul.f32.gmra.mxu0 %v4483
    %v4657 = vpop.f32.mrf.mxu0
    %v4658 = vadd.f32 %v4593, %v4657
    %4659 = vmatmul.f32.gmra.mxu0 %v4484
    %v4660 = vpop.f32.mrf.mxu0
    %v4661 = vadd.f32 %v4596, %v4660
    %4662 = vdwg.mxu0
    %v4663 = vld [vmem:[%s9] sm:$0xff]
    %v4664 = vld [vmem:[%s9 + $0x8] sm:$0xff]
    %v4666 = vsel %vm273, %v4616, 0
    %v4669 = vsel %vm273, %v4619, 0
    %v4672 = vsel %vm273, %v4622, 0
    %v4675 = vsel %vm273, %v4625, 0
    %v4678 = vsel %vm273, %v4628, 0
    %v4681 = vsel %vm273, %v4631, 0
    %v4684 = vsel %vm273, %v4634, 0
    %v4687 = vsel %vm273, %v4637, 0
    %v4690 = vsel %vm273, %v4640, 0
    %v4693 = vsel %vm273, %v4643, 0
    %v4696 = vsel %vm273, %v4646, 0
    %v4699 = vsel %vm273, %v4649, 0
    %v4702 = vsel %vm273, %v4652, 0
    %v4705 = vsel %vm273, %v4655, 0
    %v4708 = vsel %vm273, %v4658, 0
    %v4711 = vsel %vm273, %v4661, 0
    %4713 = vmatpush.msra.mxu0 0.0
    %4714 = vmatpush.msra.mxu0 0.0
    %4715 = vmatpush.msra.mxu0 0.0
    %4716 = vmatpush.msra.mxu0 0.0
    %4717 = vmatpush.msra.mxu0 0.0
    %4718 = vmatpush.msra.mxu0 0.0
    %4719 = vmatpush.msra.mxu0 0.0
    %4720 = vmatpush.msra.mxu0 0.0
    %4721 = vmatpush.msra.mxu0 0.0
    %4722 = vmatpush.msra.mxu0 0.0
    %4723 = vmatpush.msra.mxu0 0.0
    %4724 = vmatpush.msra.mxu0 0.0
    %4725 = vmatpush.msra.mxu0 0.0
    %4726 = vmatpush.msra.mxu0 0.0
    %4727 = vmatpush.msra.mxu0 %v4664
    %4728 = vmatpush.msra.mxu0 %v4663
    %4729 = vmatmul.f32.gmra.mxu0 %v4666
    %v4730 = vpop.f32.mrf.mxu0
    %v4731 = vadd.f32 0.0, %v4730
    %4732 = vmatmul.f32.gmra.mxu0 %v4669
    %v4733 = vpop.f32.mrf.mxu0
    %v4734 = vadd.f32 0.0, %v4733
    %4735 = vmatmul.f32.gmra.mxu0 %v4672
    %v4736 = vpop.f32.mrf.mxu0
    %v4737 = vadd.f32 0.0, %v4736
    %4738 = vmatmul.f32.gmra.mxu0 %v4675
    %v4739 = vpop.f32.mrf.mxu0
    %v4740 = vadd.f32 0.0, %v4739
    %4741 = vmatmul.f32.gmra.mxu0 %v4678
    %v4742 = vpop.f32.mrf.mxu0
    %v4743 = vadd.f32 0.0, %v4742
    %4744 = vmatmul.f32.gmra.mxu0 %v4681
    %v4745 = vpop.f32.mrf.mxu0
    %v4746 = vadd.f32 0.0, %v4745
    %4747 = vmatmul.f32.gmra.mxu0 %v4684
    %v4748 = vpop.f32.mrf.mxu0
    %v4749 = vadd.f32 0.0, %v4748
    %4750 = vmatmul.f32.gmra.mxu0 %v4687
    %v4751 = vpop.f32.mrf.mxu0
    %v4752 = vadd.f32 0.0, %v4751
    %4753 = vmatmul.f32.gmra.mxu0 %v4690
    %v4754 = vpop.f32.mrf.mxu0
    %v4755 = vadd.f32 0.0, %v4754
    %4756 = vmatmul.f32.gmra.mxu0 %v4693
    %v4757 = vpop.f32.mrf.mxu0
    %v4758 = vadd.f32 0.0, %v4757
    %4759 = vmatmul.f32.gmra.mxu0 %v4696
    %v4760 = vpop.f32.mrf.mxu0
    %v4761 = vadd.f32 0.0, %v4760
    %4762 = vmatmul.f32.gmra.mxu0 %v4699
    %v4763 = vpop.f32.mrf.mxu0
    %v4764 = vadd.f32 0.0, %v4763
    %4765 = vmatmul.f32.gmra.mxu0 %v4702
    %v4766 = vpop.f32.mrf.mxu0
    %v4767 = vadd.f32 0.0, %v4766
    %4768 = vmatmul.f32.gmra.mxu0 %v4705
    %v4769 = vpop.f32.mrf.mxu0
    %v4770 = vadd.f32 0.0, %v4769
    %4771 = vmatmul.f32.gmra.mxu0 %v4708
    %v4772 = vpop.f32.mrf.mxu0
    %v4773 = vadd.f32 0.0, %v4772
    %4774 = vmatmul.f32.gmra.mxu0 %v4711
    %v4775 = vpop.f32.mrf.mxu0
    %v4776 = vadd.f32 0.0, %v4775
    %4777 = vdwg.mxu0
    %vm4778 = vcmp.ge.s32.totalorder %v455, %v458
    %4780 = vrot.lane.b32.xlu0 %v469, 16
    %v4781 = vpop.permute.xlu0 %4780
    %v4783 = vmul.f32 %v4731, %v4781
    %v4784 = vmul.f32 %v4734, %v4781
    %v4785 = vmul.f32 %v4737, %v4781
    %v4786 = vmul.f32 %v4740, %v4781
    %v4787 = vmul.f32 %v4743, %v4781
    %v4788 = vmul.f32 %v4746, %v4781
    %v4789 = vmul.f32 %v4749, %v4781
    %v4790 = vmul.f32 %v4752, %v4781
    %v4791 = vmul.f32 %v4755, %v4781
    %v4792 = vmul.f32 %v4758, %v4781
    %v4793 = vmul.f32 %v4761, %v4781
    %v4794 = vmul.f32 %v4764, %v4781
    %v4795 = vmul.f32 %v4767, %v4781
    %v4796 = vmul.f32 %v4770, %v4781
    %v4797 = vmul.f32 %v4773, %v4781
    %v4798 = vmul.f32 %v4776, %v4781
    %4799 = vrot.lane.b32.xlu0 %v469, 32
    %v4800 = vpop.permute.xlu0 %4799
    %v4802 = vmul.f32 %v4731, %v4800
    %v4803 = vmul.f32 %v4734, %v4800
    %v4804 = vmul.f32 %v4737, %v4800
    %v4805 = vmul.f32 %v4740, %v4800
    %v4806 = vmul.f32 %v4743, %v4800
    %v4807 = vmul.f32 %v4746, %v4800
    %v4808 = vmul.f32 %v4749, %v4800
    %v4809 = vmul.f32 %v4752, %v4800
    %v4810 = vmul.f32 %v4755, %v4800
    %v4811 = vmul.f32 %v4758, %v4800
    %v4812 = vmul.f32 %v4761, %v4800
    %v4813 = vmul.f32 %v4764, %v4800
    %v4814 = vmul.f32 %v4767, %v4800
    %v4815 = vmul.f32 %v4770, %v4800
    %v4816 = vmul.f32 %v4773, %v4800
    %v4817 = vmul.f32 %v4776, %v4800
    %4819 = vrot.lane.b32.xlu0 %v4783, 112
    %v4820 = vpop.permute.xlu0 %4819
    %v4822 = vsel %vm273, %v4731, 0
    %v4824 = vsel %vm273, %v4820, 0
    %4826 = vmatpush.xpose.msra.mxu0 0.0
    %4827 = vmatpush.xpose.msra.mxu0 0.0
    %4828 = vmatpush.xpose.msra.mxu0 0.0
    %4829 = vmatpush.xpose.msra.mxu0 0.0
    %4830 = vmatpush.xpose.msra.mxu0 0.0
    %4831 = vmatpush.xpose.msra.mxu0 0.0
    %4832 = vmatpush.xpose.msra.mxu0 0.0
    %4833 = vmatpush.xpose.msra.mxu0 0.0
    %4834 = vmatpush.xpose.msra.mxu0 0.0
    %4835 = vmatpush.xpose.msra.mxu0 0.0
    %4836 = vmatpush.xpose.msra.mxu0 0.0
    %4837 = vmatpush.xpose.msra.mxu0 0.0
    %4838 = vmatpush.xpose.msra.mxu0 0.0
    %4839 = vmatpush.xpose.msra.mxu0 0.0
    %4840 = vmatpush.xpose.msra.mxu0 0.0
    %4841 = vmatpush.xpose.msra.mxu0 %v4824
    %4842 = vmatmul.f32.gmra.mxu0 %v4822
    %v4843 = vpop.f32.mrf.mxu0
    %v4844 = vadd.f32 0.0, %v4843
    %4845 = vdwg.mxu0
    %4847 = vrot.lane.b32.xlu0 %v4784, 112
    %v4848 = vpop.permute.xlu0 %4847
    %v4850 = vsel %vm273, %v4734, 0
    %v4852 = vsel %vm273, %v4848, 0
    %4854 = vmatpush.xpose.msra.mxu0 0.0
    %4855 = vmatpush.xpose.msra.mxu0 0.0
    %4856 = vmatpush.xpose.msra.mxu0 0.0
    %4857 = vmatpush.xpose.msra.mxu0 0.0
    %4858 = vmatpush.xpose.msra.mxu0 0.0
    %4859 = vmatpush.xpose.msra.mxu0 0.0
    %4860 = vmatpush.xpose.msra.mxu0 0.0
    %4861 = vmatpush.xpose.msra.mxu0 0.0
    %4862 = vmatpush.xpose.msra.mxu0 0.0
    %4863 = vmatpush.xpose.msra.mxu0 0.0
    %4864 = vmatpush.xpose.msra.mxu0 0.0
    %4865 = vmatpush.xpose.msra.mxu0 0.0
    %4866 = vmatpush.xpose.msra.mxu0 0.0
    %4867 = vmatpush.xpose.msra.mxu0 0.0
    %4868 = vmatpush.xpose.msra.mxu0 0.0
    %4869 = vmatpush.xpose.msra.mxu0 %v4852
    %4870 = vmatmul.f32.gmra.mxu0 %v4850
    %v4871 = vpop.f32.mrf.mxu0
    %v4872 = vadd.f32 0.0, %v4871
    %4873 = vdwg.mxu0
    %4875 = vrot.lane.b32.xlu0 %v4785, 112
    %v4876 = vpop.permute.xlu0 %4875
    %v4878 = vsel %vm273, %v4737, 0
    %v4880 = vsel %vm273, %v4876, 0
    %4882 = vmatpush.xpose.msra.mxu0 0.0
    %4883 = vmatpush.xpose.msra.mxu0 0.0
    %4884 = vmatpush.xpose.msra.mxu0 0.0
    %4885 = vmatpush.xpose.msra.mxu0 0.0
    %4886 = vmatpush.xpose.msra.mxu0 0.0
    %4887 = vmatpush.xpose.msra.mxu0 0.0
    %4888 = vmatpush.xpose.msra.mxu0 0.0
    %4889 = vmatpush.xpose.msra.mxu0 0.0
    %4890 = vmatpush.xpose.msra.mxu0 0.0
    %4891 = vmatpush.xpose.msra.mxu0 0.0
    %4892 = vmatpush.xpose.msra.mxu0 0.0
    %4893 = vmatpush.xpose.msra.mxu0 0.0
    %4894 = vmatpush.xpose.msra.mxu0 0.0
    %4895 = vmatpush.xpose.msra.mxu0 0.0
    %4896 = vmatpush.xpose.msra.mxu0 0.0
    %4897 = vmatpush.xpose.msra.mxu0 %v4880
    %4898 = vmatmul.f32.gmra.mxu0 %v4878
    %v4899 = vpop.f32.mrf.mxu0
    %v4900 = vadd.f32 0.0, %v4899
    %4901 = vdwg.mxu0
    %4903 = vrot.lane.b32.xlu0 %v4786, 112
    %v4904 = vpop.permute.xlu0 %4903
    %v4906 = vsel %vm273, %v4740, 0
    %v4908 = vsel %vm273, %v4904, 0
    %4910 = vmatpush.xpose.msra.mxu0 0.0
    %4911 = vmatpush.xpose.msra.mxu0 0.0
    %4912 = vmatpush.xpose.msra.mxu0 0.0
    %4913 = vmatpush.xpose.msra.mxu0 0.0
    %4914 = vmatpush.xpose.msra.mxu0 0.0
    %4915 = vmatpush.xpose.msra.mxu0 0.0
    %4916 = vmatpush.xpose.msra.mxu0 0.0
    %4917 = vmatpush.xpose.msra.mxu0 0.0
    %4918 = vmatpush.xpose.msra.mxu0 0.0
    %4919 = vmatpush.xpose.msra.mxu0 0.0
    %4920 = vmatpush.xpose.msra.mxu0 0.0
    %4921 = vmatpush.xpose.msra.mxu0 0.0
    %4922 = vmatpush.xpose.msra.mxu0 0.0
    %4923 = vmatpush.xpose.msra.mxu0 0.0
    %4924 = vmatpush.xpose.msra.mxu0 0.0
    %4925 = vmatpush.xpose.msra.mxu0 %v4908
    %4926 = vmatmul.f32.gmra.mxu0 %v4906
    %v4927 = vpop.f32.mrf.mxu0
    %v4928 = vadd.f32 0.0, %v4927
    %4929 = vdwg.mxu0
    %4931 = vrot.lane.b32.xlu0 %v4787, 112
    %v4932 = vpop.permute.xlu0 %4931
    %v4934 = vsel %vm273, %v4743, 0
    %v4936 = vsel %vm273, %v4932, 0
    %4938 = vmatpush.xpose.msra.mxu0 0.0
    %4939 = vmatpush.xpose.msra.mxu0 0.0
    %4940 = vmatpush.xpose.msra.mxu0 0.0
    %4941 = vmatpush.xpose.msra.mxu0 0.0
    %4942 = vmatpush.xpose.msra.mxu0 0.0
    %4943 = vmatpush.xpose.msra.mxu0 0.0
    %4944 = vmatpush.xpose.msra.mxu0 0.0
    %4945 = vmatpush.xpose.msra.mxu0 0.0
    %4946 = vmatpush.xpose.msra.mxu0 0.0
    %4947 = vmatpush.xpose.msra.mxu0 0.0
    %4948 = vmatpush.xpose.msra.mxu0 0.0
    %4949 = vmatpush.xpose.msra.mxu0 0.0
    %4950 = vmatpush.xpose.msra.mxu0 0.0
    %4951 = vmatpush.xpose.msra.mxu0 0.0
    %4952 = vmatpush.xpose.msra.mxu0 0.0
    %4953 = vmatpush.xpose.msra.mxu0 %v4936
    %4954 = vmatmul.f32.gmra.mxu0 %v4934
    %v4955 = vpop.f32.mrf.mxu0
    %v4956 = vadd.f32 0.0, %v4955
    %4957 = vdwg.mxu0
    %4959 = vrot.lane.b32.xlu0 %v4788, 112
    %v4960 = vpop.permute.xlu0 %4959
    %v4962 = vsel %vm273, %v4746, 0
    %v4964 = vsel %vm273, %v4960, 0
    %4966 = vmatpush.xpose.msra.mxu0 0.0
    %4967 = vmatpush.xpose.msra.mxu0 0.0
    %4968 = vmatpush.xpose.msra.mxu0 0.0
    %4969 = vmatpush.xpose.msra.mxu0 0.0
    %4970 = vmatpush.xpose.msra.mxu0 0.0
    %4971 = vmatpush.xpose.msra.mxu0 0.0
    %4972 = vmatpush.xpose.msra.mxu0 0.0
    %4973 = vmatpush.xpose.msra.mxu0 0.0
    %4974 = vmatpush.xpose.msra.mxu0 0.0
    %4975 = vmatpush.xpose.msra.mxu0 0.0
    %4976 = vmatpush.xpose.msra.mxu0 0.0
    %4977 = vmatpush.xpose.msra.mxu0 0.0
    %4978 = vmatpush.xpose.msra.mxu0 0.0
    %4979 = vmatpush.xpose.msra.mxu0 0.0
    %4980 = vmatpush.xpose.msra.mxu0 0.0
    %4981 = vmatpush.xpose.msra.mxu0 %v4964
    %4982 = vmatmul.f32.gmra.mxu0 %v4962
    %v4983 = vpop.f32.mrf.mxu0
    %v4984 = vadd.f32 0.0, %v4983
    %4985 = vdwg.mxu0
    %4987 = vrot.lane.b32.xlu0 %v4789, 112
    %v4988 = vpop.permute.xlu0 %4987
    %v4990 = vsel %vm273, %v4749, 0
    %v4992 = vsel %vm273, %v4988, 0
    %4994 = vmatpush.xpose.msra.mxu0 0.0
    %4995 = vmatpush.xpose.msra.mxu0 0.0
    %4996 = vmatpush.xpose.msra.mxu0 0.0
    %4997 = vmatpush.xpose.msra.mxu0 0.0
    %4998 = vmatpush.xpose.msra.mxu0 0.0
    %4999 = vmatpush.xpose.msra.mxu0 0.0
    %5000 = vmatpush.xpose.msra.mxu0 0.0
    %5001 = vmatpush.xpose.msra.mxu0 0.0
    %5002 = vmatpush.xpose.msra.mxu0 0.0
    %5003 = vmatpush.xpose.msra.mxu0 0.0
    %5004 = vmatpush.xpose.msra.mxu0 0.0
    %5005 = vmatpush.xpose.msra.mxu0 0.0
    %5006 = vmatpush.xpose.msra.mxu0 0.0
    %5007 = vmatpush.xpose.msra.mxu0 0.0
    %5008 = vmatpush.xpose.msra.mxu0 0.0
    %5009 = vmatpush.xpose.msra.mxu0 %v4992
    %5010 = vmatmul.f32.gmra.mxu0 %v4990
    %v5011 = vpop.f32.mrf.mxu0
    %v5012 = vadd.f32 0.0, %v5011
    %5013 = vdwg.mxu0
    %5015 = vrot.lane.b32.xlu0 %v4790, 112
    %v5016 = vpop.permute.xlu0 %5015
    %v5018 = vsel %vm273, %v4752, 0
    %v5020 = vsel %vm273, %v5016, 0
    %5022 = vmatpush.xpose.msra.mxu0 0.0
    %5023 = vmatpush.xpose.msra.mxu0 0.0
    %5024 = vmatpush.xpose.msra.mxu0 0.0
    %5025 = vmatpush.xpose.msra.mxu0 0.0
    %5026 = vmatpush.xpose.msra.mxu0 0.0
    %5027 = vmatpush.xpose.msra.mxu0 0.0
    %5028 = vmatpush.xpose.msra.mxu0 0.0
    %5029 = vmatpush.xpose.msra.mxu0 0.0
    %5030 = vmatpush.xpose.msra.mxu0 0.0
    %5031 = vmatpush.xpose.msra.mxu0 0.0
    %5032 = vmatpush.xpose.msra.mxu0 0.0
    %5033 = vmatpush.xpose.msra.mxu0 0.0
    %5034 = vmatpush.xpose.msra.mxu0 0.0
    %5035 = vmatpush.xpose.msra.mxu0 0.0
    %5036 = vmatpush.xpose.msra.mxu0 0.0
    %5037 = vmatpush.xpose.msra.mxu0 %v5020
    %5038 = vmatmul.f32.gmra.mxu0 %v5018
    %v5039 = vpop.f32.mrf.mxu0
    %v5040 = vadd.f32 0.0, %v5039
    %5041 = vdwg.mxu0
    %5043 = vrot.lane.b32.xlu0 %v4791, 112
    %v5044 = vpop.permute.xlu0 %5043
    %v5046 = vsel %vm273, %v4755, 0
    %v5048 = vsel %vm273, %v5044, 0
    %5050 = vmatpush.xpose.msra.mxu0 0.0
    %5051 = vmatpush.xpose.msra.mxu0 0.0
    %5052 = vmatpush.xpose.msra.mxu0 0.0
    %5053 = vmatpush.xpose.msra.mxu0 0.0
    %5054 = vmatpush.xpose.msra.mxu0 0.0
    %5055 = vmatpush.xpose.msra.mxu0 0.0
    %5056 = vmatpush.xpose.msra.mxu0 0.0
    %5057 = vmatpush.xpose.msra.mxu0 0.0
    %5058 = vmatpush.xpose.msra.mxu0 0.0
    %5059 = vmatpush.xpose.msra.mxu0 0.0
    %5060 = vmatpush.xpose.msra.mxu0 0.0
    %5061 = vmatpush.xpose.msra.mxu0 0.0
    %5062 = vmatpush.xpose.msra.mxu0 0.0
    %5063 = vmatpush.xpose.msra.mxu0 0.0
    %5064 = vmatpush.xpose.msra.mxu0 0.0
    %5065 = vmatpush.xpose.msra.mxu0 %v5048
    %5066 = vmatmul.f32.gmra.mxu0 %v5046
    %v5067 = vpop.f32.mrf.mxu0
    %v5068 = vadd.f32 0.0, %v5067
    %5069 = vdwg.mxu0
    %5071 = vrot.lane.b32.xlu0 %v4792, 112
    %v5072 = vpop.permute.xlu0 %5071
    %v5074 = vsel %vm273, %v4758, 0
    %v5076 = vsel %vm273, %v5072, 0
    %5078 = vmatpush.xpose.msra.mxu0 0.0
    %5079 = vmatpush.xpose.msra.mxu0 0.0
    %5080 = vmatpush.xpose.msra.mxu0 0.0
    %5081 = vmatpush.xpose.msra.mxu0 0.0
    %5082 = vmatpush.xpose.msra.mxu0 0.0
    %5083 = vmatpush.xpose.msra.mxu0 0.0
    %5084 = vmatpush.xpose.msra.mxu0 0.0
    %5085 = vmatpush.xpose.msra.mxu0 0.0
    %5086 = vmatpush.xpose.msra.mxu0 0.0
    %5087 = vmatpush.xpose.msra.mxu0 0.0
    %5088 = vmatpush.xpose.msra.mxu0 0.0
    %5089 = vmatpush.xpose.msra.mxu0 0.0
    %5090 = vmatpush.xpose.msra.mxu0 0.0
    %5091 = vmatpush.xpose.msra.mxu0 0.0
    %5092 = vmatpush.xpose.msra.mxu0 0.0
    %5093 = vmatpush.xpose.msra.mxu0 %v5076
    %5094 = vmatmul.f32.gmra.mxu0 %v5074
    %v5095 = vpop.f32.mrf.mxu0
    %v5096 = vadd.f32 0.0, %v5095
    %5097 = vdwg.mxu0
    %5099 = vrot.lane.b32.xlu0 %v4793, 112
    %v5100 = vpop.permute.xlu0 %5099
    %v5102 = vsel %vm273, %v4761, 0
    %v5104 = vsel %vm273, %v5100, 0
    %5106 = vmatpush.xpose.msra.mxu0 0.0
    %5107 = vmatpush.xpose.msra.mxu0 0.0
    %5108 = vmatpush.xpose.msra.mxu0 0.0
    %5109 = vmatpush.xpose.msra.mxu0 0.0
    %5110 = vmatpush.xpose.msra.mxu0 0.0
    %5111 = vmatpush.xpose.msra.mxu0 0.0
    %5112 = vmatpush.xpose.msra.mxu0 0.0
    %5113 = vmatpush.xpose.msra.mxu0 0.0
    %5114 = vmatpush.xpose.msra.mxu0 0.0
    %5115 = vmatpush.xpose.msra.mxu0 0.0
    %5116 = vmatpush.xpose.msra.mxu0 0.0
    %5117 = vmatpush.xpose.msra.mxu0 0.0
    %5118 = vmatpush.xpose.msra.mxu0 0.0
    %5119 = vmatpush.xpose.msra.mxu0 0.0
    %5120 = vmatpush.xpose.msra.mxu0 0.0
    %5121 = vmatpush.xpose.msra.mxu0 %v5104
    %5122 = vmatmul.f32.gmra.mxu0 %v5102
    %v5123 = vpop.f32.mrf.mxu0
    %v5124 = vadd.f32 0.0, %v5123
    %5125 = vdwg.mxu0
    %5127 = vrot.lane.b32.xlu0 %v4794, 112
    %v5128 = vpop.permute.xlu0 %5127
    %v5130 = vsel %vm273, %v4764, 0
    %v5132 = vsel %vm273, %v5128, 0
    %5134 = vmatpush.xpose.msra.mxu0 0.0
    %5135 = vmatpush.xpose.msra.mxu0 0.0
    %5136 = vmatpush.xpose.msra.mxu0 0.0
    %5137 = vmatpush.xpose.msra.mxu0 0.0
    %5138 = vmatpush.xpose.msra.mxu0 0.0
    %5139 = vmatpush.xpose.msra.mxu0 0.0
    %5140 = vmatpush.xpose.msra.mxu0 0.0
    %5141 = vmatpush.xpose.msra.mxu0 0.0
    %5142 = vmatpush.xpose.msra.mxu0 0.0
    %5143 = vmatpush.xpose.msra.mxu0 0.0
    %5144 = vmatpush.xpose.msra.mxu0 0.0
    %5145 = vmatpush.xpose.msra.mxu0 0.0
    %5146 = vmatpush.xpose.msra.mxu0 0.0
    %5147 = vmatpush.xpose.msra.mxu0 0.0
    %5148 = vmatpush.xpose.msra.mxu0 0.0
    %5149 = vmatpush.xpose.msra.mxu0 %v5132
    %5150 = vmatmul.f32.gmra.mxu0 %v5130
    %v5151 = vpop.f32.mrf.mxu0
    %v5152 = vadd.f32 0.0, %v5151
    %5153 = vdwg.mxu0
    %5155 = vrot.lane.b32.xlu0 %v4795, 112
    %v5156 = vpop.permute.xlu0 %5155
    %v5158 = vsel %vm273, %v4767, 0
    %v5160 = vsel %vm273, %v5156, 0
    %5162 = vmatpush.xpose.msra.mxu0 0.0
    %5163 = vmatpush.xpose.msra.mxu0 0.0
    %5164 = vmatpush.xpose.msra.mxu0 0.0
    %5165 = vmatpush.xpose.msra.mxu0 0.0
    %5166 = vmatpush.xpose.msra.mxu0 0.0
    %5167 = vmatpush.xpose.msra.mxu0 0.0
    %5168 = vmatpush.xpose.msra.mxu0 0.0
    %5169 = vmatpush.xpose.msra.mxu0 0.0
    %5170 = vmatpush.xpose.msra.mxu0 0.0
    %5171 = vmatpush.xpose.msra.mxu0 0.0
    %5172 = vmatpush.xpose.msra.mxu0 0.0
    %5173 = vmatpush.xpose.msra.mxu0 0.0
    %5174 = vmatpush.xpose.msra.mxu0 0.0
    %5175 = vmatpush.xpose.msra.mxu0 0.0
    %5176 = vmatpush.xpose.msra.mxu0 0.0
    %5177 = vmatpush.xpose.msra.mxu0 %v5160
    %5178 = vmatmul.f32.gmra.mxu0 %v5158
    %v5179 = vpop.f32.mrf.mxu0
    %v5180 = vadd.f32 0.0, %v5179
    %5181 = vdwg.mxu0
    %5183 = vrot.lane.b32.xlu0 %v4796, 112
    %v5184 = vpop.permute.xlu0 %5183
    %v5186 = vsel %vm273, %v4770, 0
    %v5188 = vsel %vm273, %v5184, 0
    %5190 = vmatpush.xpose.msra.mxu0 0.0
    %5191 = vmatpush.xpose.msra.mxu0 0.0
    %5192 = vmatpush.xpose.msra.mxu0 0.0
    %5193 = vmatpush.xpose.msra.mxu0 0.0
    %5194 = vmatpush.xpose.msra.mxu0 0.0
    %5195 = vmatpush.xpose.msra.mxu0 0.0
    %5196 = vmatpush.xpose.msra.mxu0 0.0
    %5197 = vmatpush.xpose.msra.mxu0 0.0
    %5198 = vmatpush.xpose.msra.mxu0 0.0
    %5199 = vmatpush.xpose.msra.mxu0 0.0
    %5200 = vmatpush.xpose.msra.mxu0 0.0
    %5201 = vmatpush.xpose.msra.mxu0 0.0
    %5202 = vmatpush.xpose.msra.mxu0 0.0
    %5203 = vmatpush.xpose.msra.mxu0 0.0
    %5204 = vmatpush.xpose.msra.mxu0 0.0
    %5205 = vmatpush.xpose.msra.mxu0 %v5188
    %5206 = vmatmul.f32.gmra.mxu0 %v5186
    %v5207 = vpop.f32.mrf.mxu0
    %v5208 = vadd.f32 0.0, %v5207
    %5209 = vdwg.mxu0
    %5211 = vrot.lane.b32.xlu0 %v4797, 112
    %v5212 = vpop.permute.xlu0 %5211
    %v5214 = vsel %vm273, %v4773, 0
    %v5216 = vsel %vm273, %v5212, 0
    %5218 = vmatpush.xpose.msra.mxu0 0.0
    %5219 = vmatpush.xpose.msra.mxu0 0.0
    %5220 = vmatpush.xpose.msra.mxu0 0.0
    %5221 = vmatpush.xpose.msra.mxu0 0.0
    %5222 = vmatpush.xpose.msra.mxu0 0.0
    %5223 = vmatpush.xpose.msra.mxu0 0.0
    %5224 = vmatpush.xpose.msra.mxu0 0.0
    %5225 = vmatpush.xpose.msra.mxu0 0.0
    %5226 = vmatpush.xpose.msra.mxu0 0.0
    %5227 = vmatpush.xpose.msra.mxu0 0.0
    %5228 = vmatpush.xpose.msra.mxu0 0.0
    %5229 = vmatpush.xpose.msra.mxu0 0.0
    %5230 = vmatpush.xpose.msra.mxu0 0.0
    %5231 = vmatpush.xpose.msra.mxu0 0.0
    %5232 = vmatpush.xpose.msra.mxu0 0.0
    %5233 = vmatpush.xpose.msra.mxu0 %v5216
    %5234 = vmatmul.f32.gmra.mxu0 %v5214
    %v5235 = vpop.f32.mrf.mxu0
    %v5236 = vadd.f32 0.0, %v5235
    %5237 = vdwg.mxu0
    %5239 = vrot.lane.b32.xlu0 %v4798, 112
    %v5240 = vpop.permute.xlu0 %5239
    %v5242 = vsel %vm273, %v4776, 0
    %v5244 = vsel %vm273, %v5240, 0
    %5246 = vmatpush.xpose.msra.mxu0 0.0
    %5247 = vmatpush.xpose.msra.mxu0 0.0
    %5248 = vmatpush.xpose.msra.mxu0 0.0
    %5249 = vmatpush.xpose.msra.mxu0 0.0
    %5250 = vmatpush.xpose.msra.mxu0 0.0
    %5251 = vmatpush.xpose.msra.mxu0 0.0
    %5252 = vmatpush.xpose.msra.mxu0 0.0
    %5253 = vmatpush.xpose.msra.mxu0 0.0
    %5254 = vmatpush.xpose.msra.mxu0 0.0
    %5255 = vmatpush.xpose.msra.mxu0 0.0
    %5256 = vmatpush.xpose.msra.mxu0 0.0
    %5257 = vmatpush.xpose.msra.mxu0 0.0
    %5258 = vmatpush.xpose.msra.mxu0 0.0
    %5259 = vmatpush.xpose.msra.mxu0 0.0
    %5260 = vmatpush.xpose.msra.mxu0 0.0
    %5261 = vmatpush.xpose.msra.mxu0 %v5244
    %5262 = vmatmul.f32.gmra.mxu0 %v5242
    %v5263 = vpop.f32.mrf.mxu0
    %v5264 = vadd.f32 0.0, %v5263
    %5265 = vdwg.mxu0
    %v5266 = vmul.f32 %v4844, 0.35355338
    %v5267 = vmul.f32 %v4872, 0.35355338
    %v5268 = vmul.f32 %v4900, 0.35355338
    %v5269 = vmul.f32 %v4928, 0.35355338
    %v5270 = vmul.f32 %v4956, 0.35355338
    %v5271 = vmul.f32 %v4984, 0.35355338
    %v5272 = vmul.f32 %v5012, 0.35355338
    %v5273 = vmul.f32 %v5040, 0.35355338
    %v5274 = vmul.f32 %v5068, 0.35355338
    %v5275 = vmul.f32 %v5096, 0.35355338
    %v5276 = vmul.f32 %v5124, 0.35355338
    %v5277 = vmul.f32 %v5152, 0.35355338
    %v5278 = vmul.f32 %v5180, 0.35355338
    %v5279 = vmul.f32 %v5208, 0.35355338
    %v5280 = vmul.f32 %v5236, 0.35355338
    %v5281 = vmul.f32 %v5264, 0.35355338
    %v5282 = vsel %vm4778, 1, 0
    %vm5283 = vcmp.eq.s32.totalorder %v5282, 1
    %v5284 = vsel %vm5283, %v5266, -4.2949673e+09
    %v5285 = vsel %vm5283, %v5267, -4.2949673e+09
    %v5286 = vsel %vm5283, %v5268, -4.2949673e+09
    %v5287 = vsel %vm5283, %v5269, -4.2949673e+09
    %v5288 = vsel %vm5283, %v5270, -4.2949673e+09
    %v5289 = vsel %vm5283, %v5271, -4.2949673e+09
    %v5290 = vsel %vm5283, %v5272, -4.2949673e+09
    %v5291 = vsel %vm5283, %v5273, -4.2949673e+09
    %v5292 = vsel %vm5283, %v5274, -4.2949673e+09
    %v5293 = vsel %vm5283, %v5275, -4.2949673e+09
    %v5294 = vsel %vm5283, %v5276, -4.2949673e+09
    %v5295 = vsel %vm5283, %v5277, -4.2949673e+09
    %v5296 = vsel %vm5283, %v5278, -4.2949673e+09
    %v5297 = vsel %vm5283, %v5279, -4.2949673e+09
    %v5298 = vsel %vm5283, %v5280, -4.2949673e+09
    %v5299 = vsel %vm5283, %v5281, -4.2949673e+09
    %v5300 = vsel %vm91, %v5284, -inf
    %5301 = vmax.xlane.f32.xlu0 %v5300
    %v5302 = vpop.xlane.xlu0 %5301
    %v5303 = vsel %vm91, %v5285, -inf
    %5304 = vmax.xlane.f32.xlu0 %v5303
    %v5305 = vpop.xlane.xlu0 %5304
    %v5306 = vsel %vm91, %v5286, -inf
    %5307 = vmax.xlane.f32.xlu0 %v5306
    %v5308 = vpop.xlane.xlu0 %5307
    %v5309 = vsel %vm91, %v5287, -inf
    %5310 = vmax.xlane.f32.xlu0 %v5309
    %v5311 = vpop.xlane.xlu0 %5310
    %v5312 = vsel %vm91, %v5288, -inf
    %5313 = vmax.xlane.f32.xlu0 %v5312
    %v5314 = vpop.xlane.xlu0 %5313
    %v5315 = vsel %vm91, %v5289, -inf
    %5316 = vmax.xlane.f32.xlu0 %v5315
    %v5317 = vpop.xlane.xlu0 %5316
    %v5318 = vsel %vm91, %v5290, -inf
    %5319 = vmax.xlane.f32.xlu0 %v5318
    %v5320 = vpop.xlane.xlu0 %5319
    %v5321 = vsel %vm91, %v5291, -inf
    %5322 = vmax.xlane.f32.xlu0 %v5321
    %v5323 = vpop.xlane.xlu0 %5322
    %v5324 = vsel %vm91, %v5292, -inf
    %5325 = vmax.xlane.f32.xlu0 %v5324
    %v5326 = vpop.xlane.xlu0 %5325
    %v5327 = vsel %vm91, %v5293, -inf
    %5328 = vmax.xlane.f32.xlu0 %v5327
    %v5329 = vpop.xlane.xlu0 %5328
    %v5330 = vsel %vm91, %v5294, -inf
    %5331 = vmax.xlane.f32.xlu0 %v5330
    %v5332 = vpop.xlane.xlu0 %5331
    %v5333 = vsel %vm91, %v5295, -inf
    %5334 = vmax.xlane.f32.xlu0 %v5333
    %v5335 = vpop.xlane.xlu0 %5334
    %v5336 = vsel %vm91, %v5296, -inf
    %5337 = vmax.xlane.f32.xlu0 %v5336
    %v5338 = vpop.xlane.xlu0 %5337
    %v5339 = vsel %vm91, %v5297, -inf
    %5340 = vmax.xlane.f32.xlu0 %v5339
    %v5341 = vpop.xlane.xlu0 %5340
    %v5342 = vsel %vm91, %v5298, -inf
    %5343 = vmax.xlane.f32.xlu0 %v5342
    %v5344 = vpop.xlane.xlu0 %5343
    %v5345 = vsel %vm91, %v5299, -inf
    %5346 = vmax.xlane.f32.xlu0 %v5345
    %v5347 = vpop.xlane.xlu0 %5346
    %v5348 = vsub.f32 %v5284, %v5302
    %v5349 = vsub.f32 %v5285, %v5305
    %v5350 = vsub.f32 %v5286, %v5308
    %v5351 = vsub.f32 %v5287, %v5311
    %v5352 = vsub.f32 %v5288, %v5314
    %v5353 = vsub.f32 %v5289, %v5317
    %v5354 = vsub.f32 %v5290, %v5320
    %v5355 = vsub.f32 %v5291, %v5323
    %v5356 = vsub.f32 %v5292, %v5326
    %v5357 = vsub.f32 %v5293, %v5329
    %v5358 = vsub.f32 %v5294, %v5332
    %v5359 = vsub.f32 %v5295, %v5335
    %v5360 = vsub.f32 %v5296, %v5338
    %v5361 = vsub.f32 %v5297, %v5341
    %v5362 = vsub.f32 %v5298, %v5344
    %v5363 = vsub.f32 %v5299, %v5347
    %v5364 = vmul.f32 %v5348, 1.442695
    %v5365 = vpow.pop %v5364
    %v5366 = vmul.f32 %v5349, 1.442695
    %v5367 = vpow.pop %v5366
    %v5368 = vmul.f32 %v5350, 1.442695
    %v5369 = vpow.pop %v5368
    %v5370 = vmul.f32 %v5351, 1.442695
    %v5371 = vpow.pop %v5370
    %v5372 = vmul.f32 %v5352, 1.442695
    %v5373 = vpow.pop %v5372
    %v5374 = vmul.f32 %v5353, 1.442695
    %v5375 = vpow.pop %v5374
    %v5376 = vmul.f32 %v5354, 1.442695
    %v5377 = vpow.pop %v5376
    %v5378 = vmul.f32 %v5355, 1.442695
    %v5379 = vpow.pop %v5378
    %v5380 = vmul.f32 %v5356, 1.442695
    %v5381 = vpow.pop %v5380
    %v5382 = vmul.f32 %v5357, 1.442695
    %v5383 = vpow.pop %v5382
    %v5384 = vmul.f32 %v5358, 1.442695
    %v5385 = vpow.pop %v5384
    %v5386 = vmul.f32 %v5359, 1.442695
    %v5387 = vpow.pop %v5386
    %v5388 = vmul.f32 %v5360, 1.442695
    %v5389 = vpow.pop %v5388
    %v5390 = vmul.f32 %v5361, 1.442695
    %v5391 = vpow.pop %v5390
    %v5392 = vmul.f32 %v5362, 1.442695
    %v5393 = vpow.pop %v5392
    %v5394 = vmul.f32 %v5363, 1.442695
    %v5395 = vpow.pop %v5394
    %v5396 = vsel %vm91, %v5365, 0.0
    %5397 = vadd.xlane.f32.xlu0 %v5396
    %v5398 = vpop.xlane.xlu0 %5397
    %v5399 = vsel %vm91, %v5367, 0.0
    %5400 = vadd.xlane.f32.xlu0 %v5399
    %v5401 = vpop.xlane.xlu0 %5400
    %v5402 = vsel %vm91, %v5369, 0.0
    %5403 = vadd.xlane.f32.xlu0 %v5402
    %v5404 = vpop.xlane.xlu0 %5403
    %v5405 = vsel %vm91, %v5371, 0.0
    %5406 = vadd.xlane.f32.xlu0 %v5405
    %v5407 = vpop.xlane.xlu0 %5406
    %v5408 = vsel %vm91, %v5373, 0.0
    %5409 = vadd.xlane.f32.xlu0 %v5408
    %v5410 = vpop.xlane.xlu0 %5409
    %v5411 = vsel %vm91, %v5375, 0.0
    %5412 = vadd.xlane.f32.xlu0 %v5411
    %v5413 = vpop.xlane.xlu0 %5412
    %v5414 = vsel %vm91, %v5377, 0.0
    %5415 = vadd.xlane.f32.xlu0 %v5414
    %v5416 = vpop.xlane.xlu0 %5415
    %v5417 = vsel %vm91, %v5379, 0.0
    %5418 = vadd.xlane.f32.xlu0 %v5417
    %v5419 = vpop.xlane.xlu0 %5418
    %v5420 = vsel %vm91, %v5381, 0.0
    %5421 = vadd.xlane.f32.xlu0 %v5420
    %v5422 = vpop.xlane.xlu0 %5421
    %v5423 = vsel %vm91, %v5383, 0.0
    %5424 = vadd.xlane.f32.xlu0 %v5423
    %v5425 = vpop.xlane.xlu0 %5424
    %v5426 = vsel %vm91, %v5385, 0.0
    %5427 = vadd.xlane.f32.xlu0 %v5426
    %v5428 = vpop.xlane.xlu0 %5427
    %v5429 = vsel %vm91, %v5387, 0.0
    %5430 = vadd.xlane.f32.xlu0 %v5429
    %v5431 = vpop.xlane.xlu0 %5430
    %v5432 = vsel %vm91, %v5389, 0.0
    %5433 = vadd.xlane.f32.xlu0 %v5432
    %v5434 = vpop.xlane.xlu0 %5433
    %v5435 = vsel %vm91, %v5391, 0.0
    %5436 = vadd.xlane.f32.xlu0 %v5435
    %v5437 = vpop.xlane.xlu0 %5436
    %v5438 = vsel %vm91, %v5393, 0.0
    %5439 = vadd.xlane.f32.xlu0 %v5438
    %v5440 = vpop.xlane.xlu0 %5439
    %v5441 = vsel %vm91, %v5395, 0.0
    %5442 = vadd.xlane.f32.xlu0 %v5441
    %v5443 = vpop.xlane.xlu0 %5442
    %v5444 = vrcp.pop %v5398
    %v5445 = vmul.f32 %v5398, %v5444
    %v5446 = vsub.f32 1.0, %v5445
    %v5447 = vmul.f32 %v5444, %v5446
    %v5448 = vadd.f32 %v5444, %v5447
    %vm5449 = vweird.f32 %v5398
    %vm5450 = vweird.f32 %v5444
    %vm5451 = vmor %vm5449, %vm5450
    %v5452 = vsel %vm5451, %v5444, %v5448
    %v5453 = vand.u32 2147483647, %v5398
    %vm5454 = vcmp.eq.f32.partialorder %v5453, 8.507059e+37
    %v5455 = vand.u32 %v5398, 2147483648
    %v5456 = vor.u32 1.1754944e-38, %v5455
    %v5457 = vsel %vm5454, %v5456, %v5452
    %v5458 = vrcp.pop %v5401
    %v5459 = vmul.f32 %v5401, %v5458
    %v5460 = vsub.f32 1.0, %v5459
    %v5461 = vmul.f32 %v5458, %v5460
    %v5462 = vadd.f32 %v5458, %v5461
    %vm5463 = vweird.f32 %v5401
    %vm5464 = vweird.f32 %v5458
    %vm5465 = vmor %vm5463, %vm5464
    %v5466 = vsel %vm5465, %v5458, %v5462
    %v5467 = vand.u32 2147483647, %v5401
    %vm5468 = vcmp.eq.f32.partialorder %v5467, 8.507059e+37
    %v5469 = vand.u32 %v5401, 2147483648
    %v5470 = vor.u32 1.1754944e-38, %v5469
    %v5471 = vsel %vm5468, %v5470, %v5466
    %v5472 = vrcp.pop %v5404
    %v5473 = vmul.f32 %v5404, %v5472
    %v5474 = vsub.f32 1.0, %v5473
    %v5475 = vmul.f32 %v5472, %v5474
    %v5476 = vadd.f32 %v5472, %v5475
    %vm5477 = vweird.f32 %v5404
    %vm5478 = vweird.f32 %v5472
    %vm5479 = vmor %vm5477, %vm5478
    %v5480 = vsel %vm5479, %v5472, %v5476
    %v5481 = vand.u32 2147483647, %v5404
    %vm5482 = vcmp.eq.f32.partialorder %v5481, 8.507059e+37
    %v5483 = vand.u32 %v5404, 2147483648
    %v5484 = vor.u32 1.1754944e-38, %v5483
    %v5485 = vsel %vm5482, %v5484, %v5480
    %v5486 = vrcp.pop %v5407
    %v5487 = vmul.f32 %v5407, %v5486
    %v5488 = vsub.f32 1.0, %v5487
    %v5489 = vmul.f32 %v5486, %v5488
    %v5490 = vadd.f32 %v5486, %v5489
    %vm5491 = vweird.f32 %v5407
    %vm5492 = vweird.f32 %v5486
    %vm5493 = vmor %vm5491, %vm5492
    %v5494 = vsel %vm5493, %v5486, %v5490
    %v5495 = vand.u32 2147483647, %v5407
    %vm5496 = vcmp.eq.f32.partialorder %v5495, 8.507059e+37
    %v5497 = vand.u32 %v5407, 2147483648
    %v5498 = vor.u32 1.1754944e-38, %v5497
    %v5499 = vsel %vm5496, %v5498, %v5494
    %v5500 = vrcp.pop %v5410
    %v5501 = vmul.f32 %v5410, %v5500
    %v5502 = vsub.f32 1.0, %v5501
    %v5503 = vmul.f32 %v5500, %v5502
    %v5504 = vadd.f32 %v5500, %v5503
    %vm5505 = vweird.f32 %v5410
    %vm5506 = vweird.f32 %v5500
    %vm5507 = vmor %vm5505, %vm5506
    %v5508 = vsel %vm5507, %v5500, %v5504
    %v5509 = vand.u32 2147483647, %v5410
    %vm5510 = vcmp.eq.f32.partialorder %v5509, 8.507059e+37
    %v5511 = vand.u32 %v5410, 2147483648
    %v5512 = vor.u32 1.1754944e-38, %v5511
    %v5513 = vsel %vm5510, %v5512, %v5508
    %v5514 = vrcp.pop %v5413
    %v5515 = vmul.f32 %v5413, %v5514
    %v5516 = vsub.f32 1.0, %v5515
    %v5517 = vmul.f32 %v5514, %v5516
    %v5518 = vadd.f32 %v5514, %v5517
    %vm5519 = vweird.f32 %v5413
    %vm5520 = vweird.f32 %v5514
    %vm5521 = vmor %vm5519, %vm5520
    %v5522 = vsel %vm5521, %v5514, %v5518
    %v5523 = vand.u32 2147483647, %v5413
    %vm5524 = vcmp.eq.f32.partialorder %v5523, 8.507059e+37
    %v5525 = vand.u32 %v5413, 2147483648
    %v5526 = vor.u32 1.1754944e-38, %v5525
    %v5527 = vsel %vm5524, %v5526, %v5522
    %v5528 = vrcp.pop %v5416
    %v5529 = vmul.f32 %v5416, %v5528
    %v5530 = vsub.f32 1.0, %v5529
    %v5531 = vmul.f32 %v5528, %v5530
    %v5532 = vadd.f32 %v5528, %v5531
    %vm5533 = vweird.f32 %v5416
    %vm5534 = vweird.f32 %v5528
    %vm5535 = vmor %vm5533, %vm5534
    %v5536 = vsel %vm5535, %v5528, %v5532
    %v5537 = vand.u32 2147483647, %v5416
    %vm5538 = vcmp.eq.f32.partialorder %v5537, 8.507059e+37
    %v5539 = vand.u32 %v5416, 2147483648
    %v5540 = vor.u32 1.1754944e-38, %v5539
    %v5541 = vsel %vm5538, %v5540, %v5536
    %v5542 = vrcp.pop %v5419
    %v5543 = vmul.f32 %v5419, %v5542
    %v5544 = vsub.f32 1.0, %v5543
    %v5545 = vmul.f32 %v5542, %v5544
    %v5546 = vadd.f32 %v5542, %v5545
    %vm5547 = vweird.f32 %v5419
    %vm5548 = vweird.f32 %v5542
    %vm5549 = vmor %vm5547, %vm5548
    %v5550 = vsel %vm5549, %v5542, %v5546
    %v5551 = vand.u32 2147483647, %v5419
    %vm5552 = vcmp.eq.f32.partialorder %v5551, 8.507059e+37
    %v5553 = vand.u32 %v5419, 2147483648
    %v5554 = vor.u32 1.1754944e-38, %v5553
    %v5555 = vsel %vm5552, %v5554, %v5550
    %v5556 = vrcp.pop %v5422
    %v5557 = vmul.f32 %v5422, %v5556
    %v5558 = vsub.f32 1.0, %v5557
    %v5559 = vmul.f32 %v5556, %v5558
    %v5560 = vadd.f32 %v5556, %v5559
    %vm5561 = vweird.f32 %v5422
    %vm5562 = vweird.f32 %v5556
    %vm5563 = vmor %vm5561, %vm5562
    %v5564 = vsel %vm5563, %v5556, %v5560
    %v5565 = vand.u32 2147483647, %v5422
    %vm5566 = vcmp.eq.f32.partialorder %v5565, 8.507059e+37
    %v5567 = vand.u32 %v5422, 2147483648
    %v5568 = vor.u32 1.1754944e-38, %v5567
    %v5569 = vsel %vm5566, %v5568, %v5564
    %v5570 = vrcp.pop %v5425
    %v5571 = vmul.f32 %v5425, %v5570
    %v5572 = vsub.f32 1.0, %v5571
    %v5573 = vmul.f32 %v5570, %v5572
    %v5574 = vadd.f32 %v5570, %v5573
    %vm5575 = vweird.f32 %v5425
    %vm5576 = vweird.f32 %v5570
    %vm5577 = vmor %vm5575, %vm5576
    %v5578 = vsel %vm5577, %v5570, %v5574
    %v5579 = vand.u32 2147483647, %v5425
    %vm5580 = vcmp.eq.f32.partialorder %v5579, 8.507059e+37
    %v5581 = vand.u32 %v5425, 2147483648
    %v5582 = vor.u32 1.1754944e-38, %v5581
    %v5583 = vsel %vm5580, %v5582, %v5578
    %v5584 = vrcp.pop %v5428
    %v5585 = vmul.f32 %v5428, %v5584
    %v5586 = vsub.f32 1.0, %v5585
    %v5587 = vmul.f32 %v5584, %v5586
    %v5588 = vadd.f32 %v5584, %v5587
    %vm5589 = vweird.f32 %v5428
    %vm5590 = vweird.f32 %v5584
    %vm5591 = vmor %vm5589, %vm5590
    %v5592 = vsel %vm5591, %v5584, %v5588
    %v5593 = vand.u32 2147483647, %v5428
    %vm5594 = vcmp.eq.f32.partialorder %v5593, 8.507059e+37
    %v5595 = vand.u32 %v5428, 2147483648
    %v5596 = vor.u32 1.1754944e-38, %v5595
    %v5597 = vsel %vm5594, %v5596, %v5592
    %v5598 = vrcp.pop %v5431
    %v5599 = vmul.f32 %v5431, %v5598
    %v5600 = vsub.f32 1.0, %v5599
    %v5601 = vmul.f32 %v5598, %v5600
    %v5602 = vadd.f32 %v5598, %v5601
    %vm5603 = vweird.f32 %v5431
    %vm5604 = vweird.f32 %v5598
    %vm5605 = vmor %vm5603, %vm5604
    %v5606 = vsel %vm5605, %v5598, %v5602
    %v5607 = vand.u32 2147483647, %v5431
    %vm5608 = vcmp.eq.f32.partialorder %v5607, 8.507059e+37
    %v5609 = vand.u32 %v5431, 2147483648
    %v5610 = vor.u32 1.1754944e-38, %v5609
    %v5611 = vsel %vm5608, %v5610, %v5606
    %v5612 = vrcp.pop %v5434
    %v5613 = vmul.f32 %v5434, %v5612
    %v5614 = vsub.f32 1.0, %v5613
    %v5615 = vmul.f32 %v5612, %v5614
    %v5616 = vadd.f32 %v5612, %v5615
    %vm5617 = vweird.f32 %v5434
    %vm5618 = vweird.f32 %v5612
    %vm5619 = vmor %vm5617, %vm5618
    %v5620 = vsel %vm5619, %v5612, %v5616
    %v5621 = vand.u32 2147483647, %v5434
    %vm5622 = vcmp.eq.f32.partialorder %v5621, 8.507059e+37
    %v5623 = vand.u32 %v5434, 2147483648
    %v5624 = vor.u32 1.1754944e-38, %v5623
    %v5625 = vsel %vm5622, %v5624, %v5620
    %v5626 = vrcp.pop %v5437
    %v5627 = vmul.f32 %v5437, %v5626
    %v5628 = vsub.f32 1.0, %v5627
    %v5629 = vmul.f32 %v5626, %v5628
    %v5630 = vadd.f32 %v5626, %v5629
    %vm5631 = vweird.f32 %v5437
    %vm5632 = vweird.f32 %v5626
    %vm5633 = vmor %vm5631, %vm5632
    %v5634 = vsel %vm5633, %v5626, %v5630
    %v5635 = vand.u32 2147483647, %v5437
    %vm5636 = vcmp.eq.f32.partialorder %v5635, 8.507059e+37
    %v5637 = vand.u32 %v5437, 2147483648
    %v5638 = vor.u32 1.1754944e-38, %v5637
    %v5639 = vsel %vm5636, %v5638, %v5634
    %v5640 = vrcp.pop %v5440
    %v5641 = vmul.f32 %v5440, %v5640
    %v5642 = vsub.f32 1.0, %v5641
    %v5643 = vmul.f32 %v5640, %v5642
    %v5644 = vadd.f32 %v5640, %v5643
    %vm5645 = vweird.f32 %v5440
    %vm5646 = vweird.f32 %v5640
    %vm5647 = vmor %vm5645, %vm5646
    %v5648 = vsel %vm5647, %v5640, %v5644
    %v5649 = vand.u32 2147483647, %v5440
    %vm5650 = vcmp.eq.f32.partialorder %v5649, 8.507059e+37
    %v5651 = vand.u32 %v5440, 2147483648
    %v5652 = vor.u32 1.1754944e-38, %v5651
    %v5653 = vsel %vm5650, %v5652, %v5648
    %v5654 = vrcp.pop %v5443
    %v5655 = vmul.f32 %v5443, %v5654
    %v5656 = vsub.f32 1.0, %v5655
    %v5657 = vmul.f32 %v5654, %v5656
    %v5658 = vadd.f32 %v5654, %v5657
    %vm5659 = vweird.f32 %v5443
    %vm5660 = vweird.f32 %v5654
    %vm5661 = vmor %vm5659, %vm5660
    %v5662 = vsel %vm5661, %v5654, %v5658
    %v5663 = vand.u32 2147483647, %v5443
    %vm5664 = vcmp.eq.f32.partialorder %v5663, 8.507059e+37
    %v5665 = vand.u32 %v5443, 2147483648
    %v5666 = vor.u32 1.1754944e-38, %v5665
    %v5667 = vsel %vm5664, %v5666, %v5662
    %v5668 = vmul.f32 %v5365, %v5457
    %v5669 = vmul.f32 %v5367, %v5471
    %v5670 = vmul.f32 %v5369, %v5485
    %v5671 = vmul.f32 %v5371, %v5499
    %v5672 = vmul.f32 %v5373, %v5513
    %v5673 = vmul.f32 %v5375, %v5527
    %v5674 = vmul.f32 %v5377, %v5541
    %v5675 = vmul.f32 %v5379, %v5555
    %v5676 = vmul.f32 %v5381, %v5569
    %v5677 = vmul.f32 %v5383, %v5583
    %v5678 = vmul.f32 %v5385, %v5597
    %v5679 = vmul.f32 %v5387, %v5611
    %v5680 = vmul.f32 %v5389, %v5625
    %v5681 = vmul.f32 %v5391, %v5639
    %v5682 = vmul.f32 %v5393, %v5653
    %v5683 = vmul.f32 %v5395, %v5667
    %5685 = vrot.lane.b32.xlu0 %v474, 16
    %v5686 = vpop.permute.xlu0 %5685
    %v5688 = vmul.f32 %v4731, %v5686
    %v5689 = vmul.f32 %v4734, %v5686
    %v5690 = vmul.f32 %v4737, %v5686
    %v5691 = vmul.f32 %v4740, %v5686
    %v5692 = vmul.f32 %v4743, %v5686
    %v5693 = vmul.f32 %v4746, %v5686
    %v5694 = vmul.f32 %v4749, %v5686
    %v5695 = vmul.f32 %v4752, %v5686
    %v5696 = vmul.f32 %v4755, %v5686
    %v5697 = vmul.f32 %v4758, %v5686
    %v5698 = vmul.f32 %v4761, %v5686
    %v5699 = vmul.f32 %v4764, %v5686
    %v5700 = vmul.f32 %v4767, %v5686
    %v5701 = vmul.f32 %v4770, %v5686
    %v5702 = vmul.f32 %v4773, %v5686
    %v5703 = vmul.f32 %v4776, %v5686
    %5704 = vrot.lane.b32.xlu0 %v474, 32
    %v5705 = vpop.permute.xlu0 %5704
    %v5707 = vmul.f32 %v4731, %v5705
    %v5708 = vmul.f32 %v4734, %v5705
    %v5709 = vmul.f32 %v4737, %v5705
    %v5710 = vmul.f32 %v4740, %v5705
    %v5711 = vmul.f32 %v4743, %v5705
    %v5712 = vmul.f32 %v4746, %v5705
    %v5713 = vmul.f32 %v4749, %v5705
    %v5714 = vmul.f32 %v4752, %v5705
    %v5715 = vmul.f32 %v4755, %v5705
    %v5716 = vmul.f32 %v4758, %v5705
    %v5717 = vmul.f32 %v4761, %v5705
    %v5718 = vmul.f32 %v4764, %v5705
    %v5719 = vmul.f32 %v4767, %v5705
    %v5720 = vmul.f32 %v4770, %v5705
    %v5721 = vmul.f32 %v4773, %v5705
    %v5722 = vmul.f32 %v4776, %v5705
    %5724 = vrot.lane.b32.xlu0 %v5688, 112
    %v5725 = vpop.permute.xlu0 %5724
    %v5726 = vsel %vm273, %v5725, 0
    %5728 = vmatpush.xpose.msra.mxu0 0.0
    %5729 = vmatpush.xpose.msra.mxu0 0.0
    %5730 = vmatpush.xpose.msra.mxu0 0.0
    %5731 = vmatpush.xpose.msra.mxu0 0.0
    %5732 = vmatpush.xpose.msra.mxu0 0.0
    %5733 = vmatpush.xpose.msra.mxu0 0.0
    %5734 = vmatpush.xpose.msra.mxu0 0.0
    %5735 = vmatpush.xpose.msra.mxu0 0.0
    %5736 = vmatpush.xpose.msra.mxu0 0.0
    %5737 = vmatpush.xpose.msra.mxu0 0.0
    %5738 = vmatpush.xpose.msra.mxu0 0.0
    %5739 = vmatpush.xpose.msra.mxu0 0.0
    %5740 = vmatpush.xpose.msra.mxu0 0.0
    %5741 = vmatpush.xpose.msra.mxu0 0.0
    %5742 = vmatpush.xpose.msra.mxu0 0.0
    %5743 = vmatpush.xpose.msra.mxu0 %v5726
    %5744 = vmatmul.f32.gmra.mxu0 %v4822
    %v5745 = vpop.f32.mrf.mxu0
    %v5746 = vadd.f32 0.0, %v5745
    %5747 = vdwg.mxu0
    %5749 = vrot.lane.b32.xlu0 %v5689, 112
    %v5750 = vpop.permute.xlu0 %5749
    %v5751 = vsel %vm273, %v5750, 0
    %5753 = vmatpush.xpose.msra.mxu0 0.0
    %5754 = vmatpush.xpose.msra.mxu0 0.0
    %5755 = vmatpush.xpose.msra.mxu0 0.0
    %5756 = vmatpush.xpose.msra.mxu0 0.0
    %5757 = vmatpush.xpose.msra.mxu0 0.0
    %5758 = vmatpush.xpose.msra.mxu0 0.0
    %5759 = vmatpush.xpose.msra.mxu0 0.0
    %5760 = vmatpush.xpose.msra.mxu0 0.0
    %5761 = vmatpush.xpose.msra.mxu0 0.0
    %5762 = vmatpush.xpose.msra.mxu0 0.0
    %5763 = vmatpush.xpose.msra.mxu0 0.0
    %5764 = vmatpush.xpose.msra.mxu0 0.0
    %5765 = vmatpush.xpose.msra.mxu0 0.0
    %5766 = vmatpush.xpose.msra.mxu0 0.0
    %5767 = vmatpush.xpose.msra.mxu0 0.0
    %5768 = vmatpush.xpose.msra.mxu0 %v5751
    %5769 = vmatmul.f32.gmra.mxu0 %v4850
    %v5770 = vpop.f32.mrf.mxu0
    %v5771 = vadd.f32 0.0, %v5770
    %5772 = vdwg.mxu0
    %5774 = vrot.lane.b32.xlu0 %v5690, 112
    %v5775 = vpop.permute.xlu0 %5774
    %v5776 = vsel %vm273, %v5775, 0
    %5778 = vmatpush.xpose.msra.mxu0 0.0
    %5779 = vmatpush.xpose.msra.mxu0 0.0
    %5780 = vmatpush.xpose.msra.mxu0 0.0
    %5781 = vmatpush.xpose.msra.mxu0 0.0
    %5782 = vmatpush.xpose.msra.mxu0 0.0
    %5783 = vmatpush.xpose.msra.mxu0 0.0
    %5784 = vmatpush.xpose.msra.mxu0 0.0
    %5785 = vmatpush.xpose.msra.mxu0 0.0
    %5786 = vmatpush.xpose.msra.mxu0 0.0
    %5787 = vmatpush.xpose.msra.mxu0 0.0
    %5788 = vmatpush.xpose.msra.mxu0 0.0
    %5789 = vmatpush.xpose.msra.mxu0 0.0
    %5790 = vmatpush.xpose.msra.mxu0 0.0
    %5791 = vmatpush.xpose.msra.mxu0 0.0
    %5792 = vmatpush.xpose.msra.mxu0 0.0
    %5793 = vmatpush.xpose.msra.mxu0 %v5776
    %5794 = vmatmul.f32.gmra.mxu0 %v4878
    %v5795 = vpop.f32.mrf.mxu0
    %v5796 = vadd.f32 0.0, %v5795
    %5797 = vdwg.mxu0
    %5799 = vrot.lane.b32.xlu0 %v5691, 112
    %v5800 = vpop.permute.xlu0 %5799
    %v5801 = vsel %vm273, %v5800, 0
    %5803 = vmatpush.xpose.msra.mxu0 0.0
    %5804 = vmatpush.xpose.msra.mxu0 0.0
    %5805 = vmatpush.xpose.msra.mxu0 0.0
    %5806 = vmatpush.xpose.msra.mxu0 0.0
    %5807 = vmatpush.xpose.msra.mxu0 0.0
    %5808 = vmatpush.xpose.msra.mxu0 0.0
    %5809 = vmatpush.xpose.msra.mxu0 0.0
    %5810 = vmatpush.xpose.msra.mxu0 0.0
    %5811 = vmatpush.xpose.msra.mxu0 0.0
    %5812 = vmatpush.xpose.msra.mxu0 0.0
    %5813 = vmatpush.xpose.msra.mxu0 0.0
    %5814 = vmatpush.xpose.msra.mxu0 0.0
    %5815 = vmatpush.xpose.msra.mxu0 0.0
    %5816 = vmatpush.xpose.msra.mxu0 0.0
    %5817 = vmatpush.xpose.msra.mxu0 0.0
    %5818 = vmatpush.xpose.msra.mxu0 %v5801
    %5819 = vmatmul.f32.gmra.mxu0 %v4906
    %v5820 = vpop.f32.mrf.mxu0
    %v5821 = vadd.f32 0.0, %v5820
    %5822 = vdwg.mxu0
    %5824 = vrot.lane.b32.xlu0 %v5692, 112
    %v5825 = vpop.permute.xlu0 %5824
    %v5826 = vsel %vm273, %v5825, 0
    %5828 = vmatpush.xpose.msra.mxu0 0.0
    %5829 = vmatpush.xpose.msra.mxu0 0.0
    %5830 = vmatpush.xpose.msra.mxu0 0.0
    %5831 = vmatpush.xpose.msra.mxu0 0.0
    %5832 = vmatpush.xpose.msra.mxu0 0.0
    %5833 = vmatpush.xpose.msra.mxu0 0.0
    %5834 = vmatpush.xpose.msra.mxu0 0.0
    %5835 = vmatpush.xpose.msra.mxu0 0.0
    %5836 = vmatpush.xpose.msra.mxu0 0.0
    %5837 = vmatpush.xpose.msra.mxu0 0.0
    %5838 = vmatpush.xpose.msra.mxu0 0.0
    %5839 = vmatpush.xpose.msra.mxu0 0.0
    %5840 = vmatpush.xpose.msra.mxu0 0.0
    %5841 = vmatpush.xpose.msra.mxu0 0.0
    %5842 = vmatpush.xpose.msra.mxu0 0.0
    %5843 = vmatpush.xpose.msra.mxu0 %v5826
    %5844 = vmatmul.f32.gmra.mxu0 %v4934
    %v5845 = vpop.f32.mrf.mxu0
    %v5846 = vadd.f32 0.0, %v5845
    %5847 = vdwg.mxu0
    %5849 = vrot.lane.b32.xlu0 %v5693, 112
    %v5850 = vpop.permute.xlu0 %5849
    %v5851 = vsel %vm273, %v5850, 0
    %5853 = vmatpush.xpose.msra.mxu0 0.0
    %5854 = vmatpush.xpose.msra.mxu0 0.0
    %5855 = vmatpush.xpose.msra.mxu0 0.0
    %5856 = vmatpush.xpose.msra.mxu0 0.0
    %5857 = vmatpush.xpose.msra.mxu0 0.0
    %5858 = vmatpush.xpose.msra.mxu0 0.0
    %5859 = vmatpush.xpose.msra.mxu0 0.0
    %5860 = vmatpush.xpose.msra.mxu0 0.0
    %5861 = vmatpush.xpose.msra.mxu0 0.0
    %5862 = vmatpush.xpose.msra.mxu0 0.0
    %5863 = vmatpush.xpose.msra.mxu0 0.0
    %5864 = vmatpush.xpose.msra.mxu0 0.0
    %5865 = vmatpush.xpose.msra.mxu0 0.0
    %5866 = vmatpush.xpose.msra.mxu0 0.0
    %5867 = vmatpush.xpose.msra.mxu0 0.0
    %5868 = vmatpush.xpose.msra.mxu0 %v5851
    %5869 = vmatmul.f32.gmra.mxu0 %v4962
    %v5870 = vpop.f32.mrf.mxu0
    %v5871 = vadd.f32 0.0, %v5870
    %5872 = vdwg.mxu0
    %5874 = vrot.lane.b32.xlu0 %v5694, 112
    %v5875 = vpop.permute.xlu0 %5874
    %v5876 = vsel %vm273, %v5875, 0
    %5878 = vmatpush.xpose.msra.mxu0 0.0
    %5879 = vmatpush.xpose.msra.mxu0 0.0
    %5880 = vmatpush.xpose.msra.mxu0 0.0
    %5881 = vmatpush.xpose.msra.mxu0 0.0
    %5882 = vmatpush.xpose.msra.mxu0 0.0
    %5883 = vmatpush.xpose.msra.mxu0 0.0
    %5884 = vmatpush.xpose.msra.mxu0 0.0
    %5885 = vmatpush.xpose.msra.mxu0 0.0
    %5886 = vmatpush.xpose.msra.mxu0 0.0
    %5887 = vmatpush.xpose.msra.mxu0 0.0
    %5888 = vmatpush.xpose.msra.mxu0 0.0
    %5889 = vmatpush.xpose.msra.mxu0 0.0
    %5890 = vmatpush.xpose.msra.mxu0 0.0
    %5891 = vmatpush.xpose.msra.mxu0 0.0
    %5892 = vmatpush.xpose.msra.mxu0 0.0
    %5893 = vmatpush.xpose.msra.mxu0 %v5876
    %5894 = vmatmul.f32.gmra.mxu0 %v4990
    %v5895 = vpop.f32.mrf.mxu0
    %v5896 = vadd.f32 0.0, %v5895
    %5897 = vdwg.mxu0
    %5899 = vrot.lane.b32.xlu0 %v5695, 112
    %v5900 = vpop.permute.xlu0 %5899
    %v5901 = vsel %vm273, %v5900, 0
    %5903 = vmatpush.xpose.msra.mxu0 0.0
    %5904 = vmatpush.xpose.msra.mxu0 0.0
    %5905 = vmatpush.xpose.msra.mxu0 0.0
    %5906 = vmatpush.xpose.msra.mxu0 0.0
    %5907 = vmatpush.xpose.msra.mxu0 0.0
    %5908 = vmatpush.xpose.msra.mxu0 0.0
    %5909 = vmatpush.xpose.msra.mxu0 0.0
    %5910 = vmatpush.xpose.msra.mxu0 0.0
    %5911 = vmatpush.xpose.msra.mxu0 0.0
    %5912 = vmatpush.xpose.msra.mxu0 0.0
    %5913 = vmatpush.xpose.msra.mxu0 0.0
    %5914 = vmatpush.xpose.msra.mxu0 0.0
    %5915 = vmatpush.xpose.msra.mxu0 0.0
    %5916 = vmatpush.xpose.msra.mxu0 0.0
    %5917 = vmatpush.xpose.msra.mxu0 0.0
    %5918 = vmatpush.xpose.msra.mxu0 %v5901
    %5919 = vmatmul.f32.gmra.mxu0 %v5018
    %v5920 = vpop.f32.mrf.mxu0
    %v5921 = vadd.f32 0.0, %v5920
    %5922 = vdwg.mxu0
    %5924 = vrot.lane.b32.xlu0 %v5696, 112
    %v5925 = vpop.permute.xlu0 %5924
    %v5926 = vsel %vm273, %v5925, 0
    %5928 = vmatpush.xpose.msra.mxu0 0.0
    %5929 = vmatpush.xpose.msra.mxu0 0.0
    %5930 = vmatpush.xpose.msra.mxu0 0.0
    %5931 = vmatpush.xpose.msra.mxu0 0.0
    %5932 = vmatpush.xpose.msra.mxu0 0.0
    %5933 = vmatpush.xpose.msra.mxu0 0.0
    %5934 = vmatpush.xpose.msra.mxu0 0.0
    %5935 = vmatpush.xpose.msra.mxu0 0.0
    %5936 = vmatpush.xpose.msra.mxu0 0.0
    %5937 = vmatpush.xpose.msra.mxu0 0.0
    %5938 = vmatpush.xpose.msra.mxu0 0.0
    %5939 = vmatpush.xpose.msra.mxu0 0.0
    %5940 = vmatpush.xpose.msra.mxu0 0.0
    %5941 = vmatpush.xpose.msra.mxu0 0.0
    %5942 = vmatpush.xpose.msra.mxu0 0.0
    %5943 = vmatpush.xpose.msra.mxu0 %v5926
    %5944 = vmatmul.f32.gmra.mxu0 %v5046
    %v5945 = vpop.f32.mrf.mxu0
    %v5946 = vadd.f32 0.0, %v5945
    %5947 = vdwg.mxu0
    %5949 = vrot.lane.b32.xlu0 %v5697, 112
    %v5950 = vpop.permute.xlu0 %5949
    %v5951 = vsel %vm273, %v5950, 0
    %5953 = vmatpush.xpose.msra.mxu0 0.0
    %5954 = vmatpush.xpose.msra.mxu0 0.0
    %5955 = vmatpush.xpose.msra.mxu0 0.0
    %5956 = vmatpush.xpose.msra.mxu0 0.0
    %5957 = vmatpush.xpose.msra.mxu0 0.0
    %5958 = vmatpush.xpose.msra.mxu0 0.0
    %5959 = vmatpush.xpose.msra.mxu0 0.0
    %5960 = vmatpush.xpose.msra.mxu0 0.0
    %5961 = vmatpush.xpose.msra.mxu0 0.0
    %5962 = vmatpush.xpose.msra.mxu0 0.0
    %5963 = vmatpush.xpose.msra.mxu0 0.0
    %5964 = vmatpush.xpose.msra.mxu0 0.0
    %5965 = vmatpush.xpose.msra.mxu0 0.0
    %5966 = vmatpush.xpose.msra.mxu0 0.0
    %5967 = vmatpush.xpose.msra.mxu0 0.0
    %5968 = vmatpush.xpose.msra.mxu0 %v5951
    %5969 = vmatmul.f32.gmra.mxu0 %v5074
    %v5970 = vpop.f32.mrf.mxu0
    %v5971 = vadd.f32 0.0, %v5970
    %5972 = vdwg.mxu0
    %5974 = vrot.lane.b32.xlu0 %v5698, 112
    %v5975 = vpop.permute.xlu0 %5974
    %v5976 = vsel %vm273, %v5975, 0
    %5978 = vmatpush.xpose.msra.mxu0 0.0
    %5979 = vmatpush.xpose.msra.mxu0 0.0
    %5980 = vmatpush.xpose.msra.mxu0 0.0
    %5981 = vmatpush.xpose.msra.mxu0 0.0
    %5982 = vmatpush.xpose.msra.mxu0 0.0
    %5983 = vmatpush.xpose.msra.mxu0 0.0
    %5984 = vmatpush.xpose.msra.mxu0 0.0
    %5985 = vmatpush.xpose.msra.mxu0 0.0
    %5986 = vmatpush.xpose.msra.mxu0 0.0
    %5987 = vmatpush.xpose.msra.mxu0 0.0
    %5988 = vmatpush.xpose.msra.mxu0 0.0
    %5989 = vmatpush.xpose.msra.mxu0 0.0
    %5990 = vmatpush.xpose.msra.mxu0 0.0
    %5991 = vmatpush.xpose.msra.mxu0 0.0
    %5992 = vmatpush.xpose.msra.mxu0 0.0
    %5993 = vmatpush.xpose.msra.mxu0 %v5976
    %5994 = vmatmul.f32.gmra.mxu0 %v5102
    %v5995 = vpop.f32.mrf.mxu0
    %v5996 = vadd.f32 0.0, %v5995
    %5997 = vdwg.mxu0
    %5999 = vrot.lane.b32.xlu0 %v5699, 112
    %v6000 = vpop.permute.xlu0 %5999
    %v6001 = vsel %vm273, %v6000, 0
    %6003 = vmatpush.xpose.msra.mxu0 0.0
    %6004 = vmatpush.xpose.msra.mxu0 0.0
    %6005 = vmatpush.xpose.msra.mxu0 0.0
    %6006 = vmatpush.xpose.msra.mxu0 0.0
    %6007 = vmatpush.xpose.msra.mxu0 0.0
    %6008 = vmatpush.xpose.msra.mxu0 0.0
    %6009 = vmatpush.xpose.msra.mxu0 0.0
    %6010 = vmatpush.xpose.msra.mxu0 0.0
    %6011 = vmatpush.xpose.msra.mxu0 0.0
    %6012 = vmatpush.xpose.msra.mxu0 0.0
    %6013 = vmatpush.xpose.msra.mxu0 0.0
    %6014 = vmatpush.xpose.msra.mxu0 0.0
    %6015 = vmatpush.xpose.msra.mxu0 0.0
    %6016 = vmatpush.xpose.msra.mxu0 0.0
    %6017 = vmatpush.xpose.msra.mxu0 0.0
    %6018 = vmatpush.xpose.msra.mxu0 %v6001
    %6019 = vmatmul.f32.gmra.mxu0 %v5130
    %v6020 = vpop.f32.mrf.mxu0
    %v6021 = vadd.f32 0.0, %v6020
    %6022 = vdwg.mxu0
    %6024 = vrot.lane.b32.xlu0 %v5700, 112
    %v6025 = vpop.permute.xlu0 %6024
    %v6026 = vsel %vm273, %v6025, 0
    %6028 = vmatpush.xpose.msra.mxu0 0.0
    %6029 = vmatpush.xpose.msra.mxu0 0.0
    %6030 = vmatpush.xpose.msra.mxu0 0.0
    %6031 = vmatpush.xpose.msra.mxu0 0.0
    %6032 = vmatpush.xpose.msra.mxu0 0.0
    %6033 = vmatpush.xpose.msra.mxu0 0.0
    %6034 = vmatpush.xpose.msra.mxu0 0.0
    %6035 = vmatpush.xpose.msra.mxu0 0.0
    %6036 = vmatpush.xpose.msra.mxu0 0.0
    %6037 = vmatpush.xpose.msra.mxu0 0.0
    %6038 = vmatpush.xpose.msra.mxu0 0.0
    %6039 = vmatpush.xpose.msra.mxu0 0.0
    %6040 = vmatpush.xpose.msra.mxu0 0.0
    %6041 = vmatpush.xpose.msra.mxu0 0.0
    %6042 = vmatpush.xpose.msra.mxu0 0.0
    %6043 = vmatpush.xpose.msra.mxu0 %v6026
    %6044 = vmatmul.f32.gmra.mxu0 %v5158
    %v6045 = vpop.f32.mrf.mxu0
    %v6046 = vadd.f32 0.0, %v6045
    %6047 = vdwg.mxu0
    %6049 = vrot.lane.b32.xlu0 %v5701, 112
    %v6050 = vpop.permute.xlu0 %6049
    %v6051 = vsel %vm273, %v6050, 0
    %6053 = vmatpush.xpose.msra.mxu0 0.0
    %6054 = vmatpush.xpose.msra.mxu0 0.0
    %6055 = vmatpush.xpose.msra.mxu0 0.0
    %6056 = vmatpush.xpose.msra.mxu0 0.0
    %6057 = vmatpush.xpose.msra.mxu0 0.0
    %6058 = vmatpush.xpose.msra.mxu0 0.0
    %6059 = vmatpush.xpose.msra.mxu0 0.0
    %6060 = vmatpush.xpose.msra.mxu0 0.0
    %6061 = vmatpush.xpose.msra.mxu0 0.0
    %6062 = vmatpush.xpose.msra.mxu0 0.0
    %6063 = vmatpush.xpose.msra.mxu0 0.0
    %6064 = vmatpush.xpose.msra.mxu0 0.0
    %6065 = vmatpush.xpose.msra.mxu0 0.0
    %6066 = vmatpush.xpose.msra.mxu0 0.0
    %6067 = vmatpush.xpose.msra.mxu0 0.0
    %6068 = vmatpush.xpose.msra.mxu0 %v6051
    %6069 = vmatmul.f32.gmra.mxu0 %v5186
    %v6070 = vpop.f32.mrf.mxu0
    %v6071 = vadd.f32 0.0, %v6070
    %6072 = vdwg.mxu0
    %6074 = vrot.lane.b32.xlu0 %v5702, 112
    %v6075 = vpop.permute.xlu0 %6074
    %v6076 = vsel %vm273, %v6075, 0
    %6078 = vmatpush.xpose.msra.mxu0 0.0
    %6079 = vmatpush.xpose.msra.mxu0 0.0
    %6080 = vmatpush.xpose.msra.mxu0 0.0
    %6081 = vmatpush.xpose.msra.mxu0 0.0
    %6082 = vmatpush.xpose.msra.mxu0 0.0
    %6083 = vmatpush.xpose.msra.mxu0 0.0
    %6084 = vmatpush.xpose.msra.mxu0 0.0
    %6085 = vmatpush.xpose.msra.mxu0 0.0
    %6086 = vmatpush.xpose.msra.mxu0 0.0
    %6087 = vmatpush.xpose.msra.mxu0 0.0
    %6088 = vmatpush.xpose.msra.mxu0 0.0
    %6089 = vmatpush.xpose.msra.mxu0 0.0
    %6090 = vmatpush.xpose.msra.mxu0 0.0
    %6091 = vmatpush.xpose.msra.mxu0 0.0
    %6092 = vmatpush.xpose.msra.mxu0 0.0
    %6093 = vmatpush.xpose.msra.mxu0 %v6076
    %6094 = vmatmul.f32.gmra.mxu0 %v5214
    %v6095 = vpop.f32.mrf.mxu0
    %v6096 = vadd.f32 0.0, %v6095
    %6097 = vdwg.mxu0
    %6099 = vrot.lane.b32.xlu0 %v5703, 112
    %v6100 = vpop.permute.xlu0 %6099
    %v6101 = vsel %vm273, %v6100, 0
    %6103 = vmatpush.xpose.msra.mxu0 0.0
    %6104 = vmatpush.xpose.msra.mxu0 0.0
    %6105 = vmatpush.xpose.msra.mxu0 0.0
    %6106 = vmatpush.xpose.msra.mxu0 0.0
    %6107 = vmatpush.xpose.msra.mxu0 0.0
    %6108 = vmatpush.xpose.msra.mxu0 0.0
    %6109 = vmatpush.xpose.msra.mxu0 0.0
    %6110 = vmatpush.xpose.msra.mxu0 0.0
    %6111 = vmatpush.xpose.msra.mxu0 0.0
    %6112 = vmatpush.xpose.msra.mxu0 0.0
    %6113 = vmatpush.xpose.msra.mxu0 0.0
    %6114 = vmatpush.xpose.msra.mxu0 0.0
    %6115 = vmatpush.xpose.msra.mxu0 0.0
    %6116 = vmatpush.xpose.msra.mxu0 0.0
    %6117 = vmatpush.xpose.msra.mxu0 0.0
    %6118 = vmatpush.xpose.msra.mxu0 %v6101
    %6119 = vmatmul.f32.gmra.mxu0 %v5242
    %v6120 = vpop.f32.mrf.mxu0
    %v6121 = vadd.f32 0.0, %v6120
    %6122 = vdwg.mxu0
    %v6123 = vmul.f32 %v5746, 0.35355338
    %v6124 = vmul.f32 %v5771, 0.35355338
    %v6125 = vmul.f32 %v5796, 0.35355338
    %v6126 = vmul.f32 %v5821, 0.35355338
    %v6127 = vmul.f32 %v5846, 0.35355338
    %v6128 = vmul.f32 %v5871, 0.35355338
    %v6129 = vmul.f32 %v5896, 0.35355338
    %v6130 = vmul.f32 %v5921, 0.35355338
    %v6131 = vmul.f32 %v5946, 0.35355338
    %v6132 = vmul.f32 %v5971, 0.35355338
    %v6133 = vmul.f32 %v5996, 0.35355338
    %v6134 = vmul.f32 %v6021, 0.35355338
    %v6135 = vmul.f32 %v6046, 0.35355338
    %v6136 = vmul.f32 %v6071, 0.35355338
    %v6137 = vmul.f32 %v6096, 0.35355338
    %v6138 = vmul.f32 %v6121, 0.35355338
    %v6139 = vsel %vm5283, %v6123, -4.2949673e+09
    %v6140 = vsel %vm5283, %v6124, -4.2949673e+09
    %v6141 = vsel %vm5283, %v6125, -4.2949673e+09
    %v6142 = vsel %vm5283, %v6126, -4.2949673e+09
    %v6143 = vsel %vm5283, %v6127, -4.2949673e+09
    %v6144 = vsel %vm5283, %v6128, -4.2949673e+09
    %v6145 = vsel %vm5283, %v6129, -4.2949673e+09
    %v6146 = vsel %vm5283, %v6130, -4.2949673e+09
    %v6147 = vsel %vm5283, %v6131, -4.2949673e+09
    %v6148 = vsel %vm5283, %v6132, -4.2949673e+09
    %v6149 = vsel %vm5283, %v6133, -4.2949673e+09
    %v6150 = vsel %vm5283, %v6134, -4.2949673e+09
    %v6151 = vsel %vm5283, %v6135, -4.2949673e+09
    %v6152 = vsel %vm5283, %v6136, -4.2949673e+09
    %v6153 = vsel %vm5283, %v6137, -4.2949673e+09
    %v6154 = vsel %vm5283, %v6138, -4.2949673e+09
    %v6155 = vsel %vm91, %v6139, -inf
    %6156 = vmax.xlane.f32.xlu0 %v6155
    %v6157 = vpop.xlane.xlu0 %6156
    %v6158 = vsel %vm91, %v6140, -inf
    %6159 = vmax.xlane.f32.xlu0 %v6158
    %v6160 = vpop.xlane.xlu0 %6159
    %v6161 = vsel %vm91, %v6141, -inf
    %6162 = vmax.xlane.f32.xlu0 %v6161
    %v6163 = vpop.xlane.xlu0 %6162
    %v6164 = vsel %vm91, %v6142, -inf
    %6165 = vmax.xlane.f32.xlu0 %v6164
    %v6166 = vpop.xlane.xlu0 %6165
    %v6167 = vsel %vm91, %v6143, -inf
    %6168 = vmax.xlane.f32.xlu0 %v6167
    %v6169 = vpop.xlane.xlu0 %6168
    %v6170 = vsel %vm91, %v6144, -inf
    %6171 = vmax.xlane.f32.xlu0 %v6170
    %v6172 = vpop.xlane.xlu0 %6171
    %v6173 = vsel %vm91, %v6145, -inf
    %6174 = vmax.xlane.f32.xlu0 %v6173
    %v6175 = vpop.xlane.xlu0 %6174
    %v6176 = vsel %vm91, %v6146, -inf
    %6177 = vmax.xlane.f32.xlu0 %v6176
    %v6178 = vpop.xlane.xlu0 %6177
    %v6179 = vsel %vm91, %v6147, -inf
    %6180 = vmax.xlane.f32.xlu0 %v6179
    %v6181 = vpop.xlane.xlu0 %6180
    %v6182 = vsel %vm91, %v6148, -inf
    %6183 = vmax.xlane.f32.xlu0 %v6182
    %v6184 = vpop.xlane.xlu0 %6183
    %v6185 = vsel %vm91, %v6149, -inf
    %6186 = vmax.xlane.f32.xlu0 %v6185
    %v6187 = vpop.xlane.xlu0 %6186
    %v6188 = vsel %vm91, %v6150, -inf
    %6189 = vmax.xlane.f32.xlu0 %v6188
    %v6190 = vpop.xlane.xlu0 %6189
    %v6191 = vsel %vm91, %v6151, -inf
    %6192 = vmax.xlane.f32.xlu0 %v6191
    %v6193 = vpop.xlane.xlu0 %6192
    %v6194 = vsel %vm91, %v6152, -inf
    %6195 = vmax.xlane.f32.xlu0 %v6194
    %v6196 = vpop.xlane.xlu0 %6195
    %v6197 = vsel %vm91, %v6153, -inf
    %6198 = vmax.xlane.f32.xlu0 %v6197
    %v6199 = vpop.xlane.xlu0 %6198
    %v6200 = vsel %vm91, %v6154, -inf
    %6201 = vmax.xlane.f32.xlu0 %v6200
    %v6202 = vpop.xlane.xlu0 %6201
    %v6203 = vsub.f32 %v6139, %v6157
    %v6204 = vsub.f32 %v6140, %v6160
    %v6205 = vsub.f32 %v6141, %v6163
    %v6206 = vsub.f32 %v6142, %v6166
    %v6207 = vsub.f32 %v6143, %v6169
    %v6208 = vsub.f32 %v6144, %v6172
    %v6209 = vsub.f32 %v6145, %v6175
    %v6210 = vsub.f32 %v6146, %v6178
    %v6211 = vsub.f32 %v6147, %v6181
    %v6212 = vsub.f32 %v6148, %v6184
    %v6213 = vsub.f32 %v6149, %v6187
    %v6214 = vsub.f32 %v6150, %v6190
    %v6215 = vsub.f32 %v6151, %v6193
    %v6216 = vsub.f32 %v6152, %v6196
    %v6217 = vsub.f32 %v6153, %v6199
    %v6218 = vsub.f32 %v6154, %v6202
    %v6219 = vmul.f32 %v6203, 1.442695
    %v6220 = vpow.pop %v6219
    %v6221 = vmul.f32 %v6204, 1.442695
    %v6222 = vpow.pop %v6221
    %v6223 = vmul.f32 %v6205, 1.442695
    %v6224 = vpow.pop %v6223
    %v6225 = vmul.f32 %v6206, 1.442695
    %v6226 = vpow.pop %v6225
    %v6227 = vmul.f32 %v6207, 1.442695
    %v6228 = vpow.pop %v6227
    %v6229 = vmul.f32 %v6208, 1.442695
    %v6230 = vpow.pop %v6229
    %v6231 = vmul.f32 %v6209, 1.442695
    %v6232 = vpow.pop %v6231
    %v6233 = vmul.f32 %v6210, 1.442695
    %v6234 = vpow.pop %v6233
    %v6235 = vmul.f32 %v6211, 1.442695
    %v6236 = vpow.pop %v6235
    %v6237 = vmul.f32 %v6212, 1.442695
    %v6238 = vpow.pop %v6237
    %v6239 = vmul.f32 %v6213, 1.442695
    %v6240 = vpow.pop %v6239
    %v6241 = vmul.f32 %v6214, 1.442695
    %v6242 = vpow.pop %v6241
    %v6243 = vmul.f32 %v6215, 1.442695
    %v6244 = vpow.pop %v6243
    %v6245 = vmul.f32 %v6216, 1.442695
    %v6246 = vpow.pop %v6245
    %v6247 = vmul.f32 %v6217, 1.442695
    %v6248 = vpow.pop %v6247
    %v6249 = vmul.f32 %v6218, 1.442695
    %v6250 = vpow.pop %v6249
    %v6251 = vsel %vm91, %v6220, 0.0
    %6252 = vadd.xlane.f32.xlu0 %v6251
    %v6253 = vpop.xlane.xlu0 %6252
    %v6254 = vsel %vm91, %v6222, 0.0
    %6255 = vadd.xlane.f32.xlu0 %v6254
    %v6256 = vpop.xlane.xlu0 %6255
    %v6257 = vsel %vm91, %v6224, 0.0
    %6258 = vadd.xlane.f32.xlu0 %v6257
    %v6259 = vpop.xlane.xlu0 %6258
    %v6260 = vsel %vm91, %v6226, 0.0
    %6261 = vadd.xlane.f32.xlu0 %v6260
    %v6262 = vpop.xlane.xlu0 %6261
    %v6263 = vsel %vm91, %v6228, 0.0
    %6264 = vadd.xlane.f32.xlu0 %v6263
    %v6265 = vpop.xlane.xlu0 %6264
    %v6266 = vsel %vm91, %v6230, 0.0
    %6267 = vadd.xlane.f32.xlu0 %v6266
    %v6268 = vpop.xlane.xlu0 %6267
    %v6269 = vsel %vm91, %v6232, 0.0
    %6270 = vadd.xlane.f32.xlu0 %v6269
    %v6271 = vpop.xlane.xlu0 %6270
    %v6272 = vsel %vm91, %v6234, 0.0
    %6273 = vadd.xlane.f32.xlu0 %v6272
    %v6274 = vpop.xlane.xlu0 %6273
    %v6275 = vsel %vm91, %v6236, 0.0
    %6276 = vadd.xlane.f32.xlu0 %v6275
    %v6277 = vpop.xlane.xlu0 %6276
    %v6278 = vsel %vm91, %v6238, 0.0
    %6279 = vadd.xlane.f32.xlu0 %v6278
    %v6280 = vpop.xlane.xlu0 %6279
    %v6281 = vsel %vm91, %v6240, 0.0
    %6282 = vadd.xlane.f32.xlu0 %v6281
    %v6283 = vpop.xlane.xlu0 %6282
    %v6284 = vsel %vm91, %v6242, 0.0
    %6285 = vadd.xlane.f32.xlu0 %v6284
    %v6286 = vpop.xlane.xlu0 %6285
    %v6287 = vsel %vm91, %v6244, 0.0
    %6288 = vadd.xlane.f32.xlu0 %v6287
    %v6289 = vpop.xlane.xlu0 %6288
    %v6290 = vsel %vm91, %v6246, 0.0
    %6291 = vadd.xlane.f32.xlu0 %v6290
    %v6292 = vpop.xlane.xlu0 %6291
    %v6293 = vsel %vm91, %v6248, 0.0
    %6294 = vadd.xlane.f32.xlu0 %v6293
    %v6295 = vpop.xlane.xlu0 %6294
    %v6296 = vsel %vm91, %v6250, 0.0
    %6297 = vadd.xlane.f32.xlu0 %v6296
    %v6298 = vpop.xlane.xlu0 %6297
    %v6299 = vrcp.pop %v6253
    %v6300 = vmul.f32 %v6253, %v6299
    %v6301 = vsub.f32 1.0, %v6300
    %v6302 = vmul.f32 %v6299, %v6301
    %v6303 = vadd.f32 %v6299, %v6302
    %vm6304 = vweird.f32 %v6253
    %vm6305 = vweird.f32 %v6299
    %vm6306 = vmor %vm6304, %vm6305
    %v6307 = vsel %vm6306, %v6299, %v6303
    %v6308 = vand.u32 2147483647, %v6253
    %vm6309 = vcmp.eq.f32.partialorder %v6308, 8.507059e+37
    %v6310 = vand.u32 %v6253, 2147483648
    %v6311 = vor.u32 1.1754944e-38, %v6310
    %v6312 = vsel %vm6309, %v6311, %v6307
    %v6313 = vrcp.pop %v6256
    %v6314 = vmul.f32 %v6256, %v6313
    %v6315 = vsub.f32 1.0, %v6314
    %v6316 = vmul.f32 %v6313, %v6315
    %v6317 = vadd.f32 %v6313, %v6316
    %vm6318 = vweird.f32 %v6256
    %vm6319 = vweird.f32 %v6313
    %vm6320 = vmor %vm6318, %vm6319
    %v6321 = vsel %vm6320, %v6313, %v6317
    %v6322 = vand.u32 2147483647, %v6256
    %vm6323 = vcmp.eq.f32.partialorder %v6322, 8.507059e+37
    %v6324 = vand.u32 %v6256, 2147483648
    %v6325 = vor.u32 1.1754944e-38, %v6324
    %v6326 = vsel %vm6323, %v6325, %v6321
    %v6327 = vrcp.pop %v6259
    %v6328 = vmul.f32 %v6259, %v6327
    %v6329 = vsub.f32 1.0, %v6328
    %v6330 = vmul.f32 %v6327, %v6329
    %v6331 = vadd.f32 %v6327, %v6330
    %vm6332 = vweird.f32 %v6259
    %vm6333 = vweird.f32 %v6327
    %vm6334 = vmor %vm6332, %vm6333
    %v6335 = vsel %vm6334, %v6327, %v6331
    %v6336 = vand.u32 2147483647, %v6259
    %vm6337 = vcmp.eq.f32.partialorder %v6336, 8.507059e+37
    %v6338 = vand.u32 %v6259, 2147483648
    %v6339 = vor.u32 1.1754944e-38, %v6338
    %v6340 = vsel %vm6337, %v6339, %v6335
    %v6341 = vrcp.pop %v6262
    %v6342 = vmul.f32 %v6262, %v6341
    %v6343 = vsub.f32 1.0, %v6342
    %v6344 = vmul.f32 %v6341, %v6343
    %v6345 = vadd.f32 %v6341, %v6344
    %vm6346 = vweird.f32 %v6262
    %vm6347 = vweird.f32 %v6341
    %vm6348 = vmor %vm6346, %vm6347
    %v6349 = vsel %vm6348, %v6341, %v6345
    %v6350 = vand.u32 2147483647, %v6262
    %vm6351 = vcmp.eq.f32.partialorder %v6350, 8.507059e+37
    %v6352 = vand.u32 %v6262, 2147483648
    %v6353 = vor.u32 1.1754944e-38, %v6352
    %v6354 = vsel %vm6351, %v6353, %v6349
    %v6355 = vrcp.pop %v6265
    %v6356 = vmul.f32 %v6265, %v6355
    %v6357 = vsub.f32 1.0, %v6356
    %v6358 = vmul.f32 %v6355, %v6357
    %v6359 = vadd.f32 %v6355, %v6358
    %vm6360 = vweird.f32 %v6265
    %vm6361 = vweird.f32 %v6355
    %vm6362 = vmor %vm6360, %vm6361
    %v6363 = vsel %vm6362, %v6355, %v6359
    %v6364 = vand.u32 2147483647, %v6265
    %vm6365 = vcmp.eq.f32.partialorder %v6364, 8.507059e+37
    %v6366 = vand.u32 %v6265, 2147483648
    %v6367 = vor.u32 1.1754944e-38, %v6366
    %v6368 = vsel %vm6365, %v6367, %v6363
    %v6369 = vrcp.pop %v6268
    %v6370 = vmul.f32 %v6268, %v6369
    %v6371 = vsub.f32 1.0, %v6370
    %v6372 = vmul.f32 %v6369, %v6371
    %v6373 = vadd.f32 %v6369, %v6372
    %vm6374 = vweird.f32 %v6268
    %vm6375 = vweird.f32 %v6369
    %vm6376 = vmor %vm6374, %vm6375
    %v6377 = vsel %vm6376, %v6369, %v6373
    %v6378 = vand.u32 2147483647, %v6268
    %vm6379 = vcmp.eq.f32.partialorder %v6378, 8.507059e+37
    %v6380 = vand.u32 %v6268, 2147483648
    %v6381 = vor.u32 1.1754944e-38, %v6380
    %v6382 = vsel %vm6379, %v6381, %v6377
    %v6383 = vrcp.pop %v6271
    %v6384 = vmul.f32 %v6271, %v6383
    %v6385 = vsub.f32 1.0, %v6384
    %v6386 = vmul.f32 %v6383, %v6385
    %v6387 = vadd.f32 %v6383, %v6386
    %vm6388 = vweird.f32 %v6271
    %vm6389 = vweird.f32 %v6383
    %vm6390 = vmor %vm6388, %vm6389
    %v6391 = vsel %vm6390, %v6383, %v6387
    %v6392 = vand.u32 2147483647, %v6271
    %vm6393 = vcmp.eq.f32.partialorder %v6392, 8.507059e+37
    %v6394 = vand.u32 %v6271, 2147483648
    %v6395 = vor.u32 1.1754944e-38, %v6394
    %v6396 = vsel %vm6393, %v6395, %v6391
    %v6397 = vrcp.pop %v6274
    %v6398 = vmul.f32 %v6274, %v6397
    %v6399 = vsub.f32 1.0, %v6398
    %v6400 = vmul.f32 %v6397, %v6399
    %v6401 = vadd.f32 %v6397, %v6400
    %vm6402 = vweird.f32 %v6274
    %vm6403 = vweird.f32 %v6397
    %vm6404 = vmor %vm6402, %vm6403
    %v6405 = vsel %vm6404, %v6397, %v6401
    %v6406 = vand.u32 2147483647, %v6274
    %vm6407 = vcmp.eq.f32.partialorder %v6406, 8.507059e+37
    %v6408 = vand.u32 %v6274, 2147483648
    %v6409 = vor.u32 1.1754944e-38, %v6408
    %v6410 = vsel %vm6407, %v6409, %v6405
    %v6411 = vrcp.pop %v6277
    %v6412 = vmul.f32 %v6277, %v6411
    %v6413 = vsub.f32 1.0, %v6412
    %v6414 = vmul.f32 %v6411, %v6413
    %v6415 = vadd.f32 %v6411, %v6414
    %vm6416 = vweird.f32 %v6277
    %vm6417 = vweird.f32 %v6411
    %vm6418 = vmor %vm6416, %vm6417
    %v6419 = vsel %vm6418, %v6411, %v6415
    %v6420 = vand.u32 2147483647, %v6277
    %vm6421 = vcmp.eq.f32.partialorder %v6420, 8.507059e+37
    %v6422 = vand.u32 %v6277, 2147483648
    %v6423 = vor.u32 1.1754944e-38, %v6422
    %v6424 = vsel %vm6421, %v6423, %v6419
    %v6425 = vrcp.pop %v6280
    %v6426 = vmul.f32 %v6280, %v6425
    %v6427 = vsub.f32 1.0, %v6426
    %v6428 = vmul.f32 %v6425, %v6427
    %v6429 = vadd.f32 %v6425, %v6428
    %vm6430 = vweird.f32 %v6280
    %vm6431 = vweird.f32 %v6425
    %vm6432 = vmor %vm6430, %vm6431
    %v6433 = vsel %vm6432, %v6425, %v6429
    %v6434 = vand.u32 2147483647, %v6280
    %vm6435 = vcmp.eq.f32.partialorder %v6434, 8.507059e+37
    %v6436 = vand.u32 %v6280, 2147483648
    %v6437 = vor.u32 1.1754944e-38, %v6436
    %v6438 = vsel %vm6435, %v6437, %v6433
    %v6439 = vrcp.pop %v6283
    %v6440 = vmul.f32 %v6283, %v6439
    %v6441 = vsub.f32 1.0, %v6440
    %v6442 = vmul.f32 %v6439, %v6441
    %v6443 = vadd.f32 %v6439, %v6442
    %vm6444 = vweird.f32 %v6283
    %vm6445 = vweird.f32 %v6439
    %vm6446 = vmor %vm6444, %vm6445
    %v6447 = vsel %vm6446, %v6439, %v6443
    %v6448 = vand.u32 2147483647, %v6283
    %vm6449 = vcmp.eq.f32.partialorder %v6448, 8.507059e+37
    %v6450 = vand.u32 %v6283, 2147483648
    %v6451 = vor.u32 1.1754944e-38, %v6450
    %v6452 = vsel %vm6449, %v6451, %v6447
    %v6453 = vrcp.pop %v6286
    %v6454 = vmul.f32 %v6286, %v6453
    %v6455 = vsub.f32 1.0, %v6454
    %v6456 = vmul.f32 %v6453, %v6455
    %v6457 = vadd.f32 %v6453, %v6456
    %vm6458 = vweird.f32 %v6286
    %vm6459 = vweird.f32 %v6453
    %vm6460 = vmor %vm6458, %vm6459
    %v6461 = vsel %vm6460, %v6453, %v6457
    %v6462 = vand.u32 2147483647, %v6286
    %vm6463 = vcmp.eq.f32.partialorder %v6462, 8.507059e+37
    %v6464 = vand.u32 %v6286, 2147483648
    %v6465 = vor.u32 1.1754944e-38, %v6464
    %v6466 = vsel %vm6463, %v6465, %v6461
    %v6467 = vrcp.pop %v6289
    %v6468 = vmul.f32 %v6289, %v6467
    %v6469 = vsub.f32 1.0, %v6468
    %v6470 = vmul.f32 %v6467, %v6469
    %v6471 = vadd.f32 %v6467, %v6470
    %vm6472 = vweird.f32 %v6289
    %vm6473 = vweird.f32 %v6467
    %vm6474 = vmor %vm6472, %vm6473
    %v6475 = vsel %vm6474, %v6467, %v6471
    %v6476 = vand.u32 2147483647, %v6289
    %vm6477 = vcmp.eq.f32.partialorder %v6476, 8.507059e+37
    %v6478 = vand.u32 %v6289, 2147483648
    %v6479 = vor.u32 1.1754944e-38, %v6478
    %v6480 = vsel %vm6477, %v6479, %v6475
    %v6481 = vrcp.pop %v6292
    %v6482 = vmul.f32 %v6292, %v6481
    %v6483 = vsub.f32 1.0, %v6482
    %v6484 = vmul.f32 %v6481, %v6483
    %v6485 = vadd.f32 %v6481, %v6484
    %vm6486 = vweird.f32 %v6292
    %vm6487 = vweird.f32 %v6481
    %vm6488 = vmor %vm6486, %vm6487
    %v6489 = vsel %vm6488, %v6481, %v6485
    %v6490 = vand.u32 2147483647, %v6292
    %vm6491 = vcmp.eq.f32.partialorder %v6490, 8.507059e+37
    %v6492 = vand.u32 %v6292, 2147483648
    %v6493 = vor.u32 1.1754944e-38, %v6492
    %v6494 = vsel %vm6491, %v6493, %v6489
    %v6495 = vrcp.pop %v6295
    %v6496 = vmul.f32 %v6295, %v6495
    %v6497 = vsub.f32 1.0, %v6496
    %v6498 = vmul.f32 %v6495, %v6497
    %v6499 = vadd.f32 %v6495, %v6498
    %vm6500 = vweird.f32 %v6295
    %vm6501 = vweird.f32 %v6495
    %vm6502 = vmor %vm6500, %vm6501
    %v6503 = vsel %vm6502, %v6495, %v6499
    %v6504 = vand.u32 2147483647, %v6295
    %vm6505 = vcmp.eq.f32.partialorder %v6504, 8.507059e+37
    %v6506 = vand.u32 %v6295, 2147483648
    %v6507 = vor.u32 1.1754944e-38, %v6506
    %v6508 = vsel %vm6505, %v6507, %v6503
    %v6509 = vrcp.pop %v6298
    %v6510 = vmul.f32 %v6298, %v6509
    %v6511 = vsub.f32 1.0, %v6510
    %v6512 = vmul.f32 %v6509, %v6511
    %v6513 = vadd.f32 %v6509, %v6512
    %vm6514 = vweird.f32 %v6298
    %vm6515 = vweird.f32 %v6509
    %vm6516 = vmor %vm6514, %vm6515
    %v6517 = vsel %vm6516, %v6509, %v6513
    %v6518 = vand.u32 2147483647, %v6298
    %vm6519 = vcmp.eq.f32.partialorder %v6518, 8.507059e+37
    %v6520 = vand.u32 %v6298, 2147483648
    %v6521 = vor.u32 1.1754944e-38, %v6520
    %v6522 = vsel %vm6519, %v6521, %v6517
    %v6523 = vmul.f32 %v6220, %v6312
    %v6524 = vmul.f32 %v6222, %v6326
    %v6525 = vmul.f32 %v6224, %v6340
    %v6526 = vmul.f32 %v6226, %v6354
    %v6527 = vmul.f32 %v6228, %v6368
    %v6528 = vmul.f32 %v6230, %v6382
    %v6529 = vmul.f32 %v6232, %v6396
    %v6530 = vmul.f32 %v6234, %v6410
    %v6531 = vmul.f32 %v6236, %v6424
    %v6532 = vmul.f32 %v6238, %v6438
    %v6533 = vmul.f32 %v6240, %v6452
    %v6534 = vmul.f32 %v6242, %v6466
    %v6535 = vmul.f32 %v6244, %v6480
    %v6536 = vmul.f32 %v6246, %v6494
    %v6537 = vmul.f32 %v6248, %v6508
    %v6538 = vmul.f32 %v6250, %v6522
    %6540 = vrot.lane.b32.xlu0 %v5707, 96
    %v6541 = vpop.permute.xlu0 %6540
    %v6544 = vsel %vm91, %v6523, 0
    %6546 = vmatpush.msra.mxu0 0.0
    %6547 = vmatpush.msra.mxu0 0.0
    %6548 = vmatpush.msra.mxu0 0.0
    %6549 = vmatpush.msra.mxu0 0.0
    %6550 = vmatpush.msra.mxu0 0.0
    %6551 = vmatpush.msra.mxu0 0.0
    %6552 = vmatpush.msra.mxu0 0.0
    %6553 = vmatpush.msra.mxu0 0.0
    %6554 = vmatpush.msra.mxu0 0.0
    %6555 = vmatpush.msra.mxu0 0.0
    %6556 = vmatpush.msra.mxu0 0.0
    %6557 = vmatpush.msra.mxu0 0.0
    %6558 = vmatpush.msra.mxu0 0.0
    %6559 = vmatpush.msra.mxu0 0.0
    %6560 = vmatpush.msra.mxu0 0.0
    %6561 = vmatpush.msra.mxu0 %v6541
    %6562 = vmatmul.f32.gmra.mxu0 %v6544
    %v6563 = vpop.f32.mrf.mxu0
    %v6564 = vadd.f32 0.0, %v6563
    %6565 = vdwg.mxu0
    %6567 = vrot.lane.b32.xlu0 %v5708, 96
    %v6568 = vpop.permute.xlu0 %6567
    %v6571 = vsel %vm91, %v6524, 0
    %6573 = vmatpush.msra.mxu0 0.0
    %6574 = vmatpush.msra.mxu0 0.0
    %6575 = vmatpush.msra.mxu0 0.0
    %6576 = vmatpush.msra.mxu0 0.0
    %6577 = vmatpush.msra.mxu0 0.0
    %6578 = vmatpush.msra.mxu0 0.0
    %6579 = vmatpush.msra.mxu0 0.0
    %6580 = vmatpush.msra.mxu0 0.0
    %6581 = vmatpush.msra.mxu0 0.0
    %6582 = vmatpush.msra.mxu0 0.0
    %6583 = vmatpush.msra.mxu0 0.0
    %6584 = vmatpush.msra.mxu0 0.0
    %6585 = vmatpush.msra.mxu0 0.0
    %6586 = vmatpush.msra.mxu0 0.0
    %6587 = vmatpush.msra.mxu0 0.0
    %6588 = vmatpush.msra.mxu0 %v6568
    %6589 = vmatmul.f32.gmra.mxu0 %v6571
    %v6590 = vpop.f32.mrf.mxu0
    %v6591 = vadd.f32 0.0, %v6590
    %6592 = vdwg.mxu0
    %6594 = vrot.lane.b32.xlu0 %v5709, 96
    %v6595 = vpop.permute.xlu0 %6594
    %v6598 = vsel %vm91, %v6525, 0
    %6600 = vmatpush.msra.mxu0 0.0
    %6601 = vmatpush.msra.mxu0 0.0
    %6602 = vmatpush.msra.mxu0 0.0
    %6603 = vmatpush.msra.mxu0 0.0
    %6604 = vmatpush.msra.mxu0 0.0
    %6605 = vmatpush.msra.mxu0 0.0
    %6606 = vmatpush.msra.mxu0 0.0
    %6607 = vmatpush.msra.mxu0 0.0
    %6608 = vmatpush.msra.mxu0 0.0
    %6609 = vmatpush.msra.mxu0 0.0
    %6610 = vmatpush.msra.mxu0 0.0
    %6611 = vmatpush.msra.mxu0 0.0
    %6612 = vmatpush.msra.mxu0 0.0
    %6613 = vmatpush.msra.mxu0 0.0
    %6614 = vmatpush.msra.mxu0 0.0
    %6615 = vmatpush.msra.mxu0 %v6595
    %6616 = vmatmul.f32.gmra.mxu0 %v6598
    %v6617 = vpop.f32.mrf.mxu0
    %v6618 = vadd.f32 0.0, %v6617
    %6619 = vdwg.mxu0
    %6621 = vrot.lane.b32.xlu0 %v5710, 96
    %v6622 = vpop.permute.xlu0 %6621
    %v6625 = vsel %vm91, %v6526, 0
    %6627 = vmatpush.msra.mxu0 0.0
    %6628 = vmatpush.msra.mxu0 0.0
    %6629 = vmatpush.msra.mxu0 0.0
    %6630 = vmatpush.msra.mxu0 0.0
    %6631 = vmatpush.msra.mxu0 0.0
    %6632 = vmatpush.msra.mxu0 0.0
    %6633 = vmatpush.msra.mxu0 0.0
    %6634 = vmatpush.msra.mxu0 0.0
    %6635 = vmatpush.msra.mxu0 0.0
    %6636 = vmatpush.msra.mxu0 0.0
    %6637 = vmatpush.msra.mxu0 0.0
    %6638 = vmatpush.msra.mxu0 0.0
    %6639 = vmatpush.msra.mxu0 0.0
    %6640 = vmatpush.msra.mxu0 0.0
    %6641 = vmatpush.msra.mxu0 0.0
    %6642 = vmatpush.msra.mxu0 %v6622
    %6643 = vmatmul.f32.gmra.mxu0 %v6625
    %v6644 = vpop.f32.mrf.mxu0
    %v6645 = vadd.f32 0.0, %v6644
    %6646 = vdwg.mxu0
    %6648 = vrot.lane.b32.xlu0 %v5711, 96
    %v6649 = vpop.permute.xlu0 %6648
    %v6652 = vsel %vm91, %v6527, 0
    %6654 = vmatpush.msra.mxu0 0.0
    %6655 = vmatpush.msra.mxu0 0.0
    %6656 = vmatpush.msra.mxu0 0.0
    %6657 = vmatpush.msra.mxu0 0.0
    %6658 = vmatpush.msra.mxu0 0.0
    %6659 = vmatpush.msra.mxu0 0.0
    %6660 = vmatpush.msra.mxu0 0.0
    %6661 = vmatpush.msra.mxu0 0.0
    %6662 = vmatpush.msra.mxu0 0.0
    %6663 = vmatpush.msra.mxu0 0.0
    %6664 = vmatpush.msra.mxu0 0.0
    %6665 = vmatpush.msra.mxu0 0.0
    %6666 = vmatpush.msra.mxu0 0.0
    %6667 = vmatpush.msra.mxu0 0.0
    %6668 = vmatpush.msra.mxu0 0.0
    %6669 = vmatpush.msra.mxu0 %v6649
    %6670 = vmatmul.f32.gmra.mxu0 %v6652
    %v6671 = vpop.f32.mrf.mxu0
    %v6672 = vadd.f32 0.0, %v6671
    %6673 = vdwg.mxu0
    %6675 = vrot.lane.b32.xlu0 %v5712, 96
    %v6676 = vpop.permute.xlu0 %6675
    %v6679 = vsel %vm91, %v6528, 0
    %6681 = vmatpush.msra.mxu0 0.0
    %6682 = vmatpush.msra.mxu0 0.0
    %6683 = vmatpush.msra.mxu0 0.0
    %6684 = vmatpush.msra.mxu0 0.0
    %6685 = vmatpush.msra.mxu0 0.0
    %6686 = vmatpush.msra.mxu0 0.0
    %6687 = vmatpush.msra.mxu0 0.0
    %6688 = vmatpush.msra.mxu0 0.0
    %6689 = vmatpush.msra.mxu0 0.0
    %6690 = vmatpush.msra.mxu0 0.0
    %6691 = vmatpush.msra.mxu0 0.0
    %6692 = vmatpush.msra.mxu0 0.0
    %6693 = vmatpush.msra.mxu0 0.0
    %6694 = vmatpush.msra.mxu0 0.0
    %6695 = vmatpush.msra.mxu0 0.0
    %6696 = vmatpush.msra.mxu0 %v6676
    %6697 = vmatmul.f32.gmra.mxu0 %v6679
    %v6698 = vpop.f32.mrf.mxu0
    %v6699 = vadd.f32 0.0, %v6698
    %6700 = vdwg.mxu0
    %6702 = vrot.lane.b32.xlu0 %v5713, 96
    %v6703 = vpop.permute.xlu0 %6702
    %v6706 = vsel %vm91, %v6529, 0
    %6708 = vmatpush.msra.mxu0 0.0
    %6709 = vmatpush.msra.mxu0 0.0
    %6710 = vmatpush.msra.mxu0 0.0
    %6711 = vmatpush.msra.mxu0 0.0
    %6712 = vmatpush.msra.mxu0 0.0
    %6713 = vmatpush.msra.mxu0 0.0
    %6714 = vmatpush.msra.mxu0 0.0
    %6715 = vmatpush.msra.mxu0 0.0
    %6716 = vmatpush.msra.mxu0 0.0
    %6717 = vmatpush.msra.mxu0 0.0
    %6718 = vmatpush.msra.mxu0 0.0
    %6719 = vmatpush.msra.mxu0 0.0
    %6720 = vmatpush.msra.mxu0 0.0
    %6721 = vmatpush.msra.mxu0 0.0
    %6722 = vmatpush.msra.mxu0 0.0
    %6723 = vmatpush.msra.mxu0 %v6703
    %6724 = vmatmul.f32.gmra.mxu0 %v6706
    %v6725 = vpop.f32.mrf.mxu0
    %v6726 = vadd.f32 0.0, %v6725
    %6727 = vdwg.mxu0
    %6729 = vrot.lane.b32.xlu0 %v5714, 96
    %v6730 = vpop.permute.xlu0 %6729
    %v6733 = vsel %vm91, %v6530, 0
    %6735 = vmatpush.msra.mxu0 0.0
    %6736 = vmatpush.msra.mxu0 0.0
    %6737 = vmatpush.msra.mxu0 0.0
    %6738 = vmatpush.msra.mxu0 0.0
    %6739 = vmatpush.msra.mxu0 0.0
    %6740 = vmatpush.msra.mxu0 0.0
    %6741 = vmatpush.msra.mxu0 0.0
    %6742 = vmatpush.msra.mxu0 0.0
    %6743 = vmatpush.msra.mxu0 0.0
    %6744 = vmatpush.msra.mxu0 0.0
    %6745 = vmatpush.msra.mxu0 0.0
    %6746 = vmatpush.msra.mxu0 0.0
    %6747 = vmatpush.msra.mxu0 0.0
    %6748 = vmatpush.msra.mxu0 0.0
    %6749 = vmatpush.msra.mxu0 0.0
    %6750 = vmatpush.msra.mxu0 %v6730
    %6751 = vmatmul.f32.gmra.mxu0 %v6733
    %v6752 = vpop.f32.mrf.mxu0
    %v6753 = vadd.f32 0.0, %v6752
    %6754 = vdwg.mxu0
    %6756 = vrot.lane.b32.xlu0 %v5715, 96
    %v6757 = vpop.permute.xlu0 %6756
    %v6760 = vsel %vm91, %v6531, 0
    %6762 = vmatpush.msra.mxu0 0.0
    %6763 = vmatpush.msra.mxu0 0.0
    %6764 = vmatpush.msra.mxu0 0.0
    %6765 = vmatpush.msra.mxu0 0.0
    %6766 = vmatpush.msra.mxu0 0.0
    %6767 = vmatpush.msra.mxu0 0.0
    %6768 = vmatpush.msra.mxu0 0.0
    %6769 = vmatpush.msra.mxu0 0.0
    %6770 = vmatpush.msra.mxu0 0.0
    %6771 = vmatpush.msra.mxu0 0.0
    %6772 = vmatpush.msra.mxu0 0.0
    %6773 = vmatpush.msra.mxu0 0.0
    %6774 = vmatpush.msra.mxu0 0.0
    %6775 = vmatpush.msra.mxu0 0.0
    %6776 = vmatpush.msra.mxu0 0.0
    %6777 = vmatpush.msra.mxu0 %v6757
    %6778 = vmatmul.f32.gmra.mxu0 %v6760
    %v6779 = vpop.f32.mrf.mxu0
    %v6780 = vadd.f32 0.0, %v6779
    %6781 = vdwg.mxu0
    %6783 = vrot.lane.b32.xlu0 %v5716, 96
    %v6784 = vpop.permute.xlu0 %6783
    %v6787 = vsel %vm91, %v6532, 0
    %6789 = vmatpush.msra.mxu0 0.0
    %6790 = vmatpush.msra.mxu0 0.0
    %6791 = vmatpush.msra.mxu0 0.0
    %6792 = vmatpush.msra.mxu0 0.0
    %6793 = vmatpush.msra.mxu0 0.0
    %6794 = vmatpush.msra.mxu0 0.0
    %6795 = vmatpush.msra.mxu0 0.0
    %6796 = vmatpush.msra.mxu0 0.0
    %6797 = vmatpush.msra.mxu0 0.0
    %6798 = vmatpush.msra.mxu0 0.0
    %6799 = vmatpush.msra.mxu0 0.0
    %6800 = vmatpush.msra.mxu0 0.0
    %6801 = vmatpush.msra.mxu0 0.0
    %6802 = vmatpush.msra.mxu0 0.0
    %6803 = vmatpush.msra.mxu0 0.0
    %6804 = vmatpush.msra.mxu0 %v6784
    %6805 = vmatmul.f32.gmra.mxu0 %v6787
    %v6806 = vpop.f32.mrf.mxu0
    %v6807 = vadd.f32 0.0, %v6806
    %6808 = vdwg.mxu0
    %6810 = vrot.lane.b32.xlu0 %v5717, 96
    %v6811 = vpop.permute.xlu0 %6810
    %v6814 = vsel %vm91, %v6533, 0
    %6816 = vmatpush.msra.mxu0 0.0
    %6817 = vmatpush.msra.mxu0 0.0
    %6818 = vmatpush.msra.mxu0 0.0
    %6819 = vmatpush.msra.mxu0 0.0
    %6820 = vmatpush.msra.mxu0 0.0
    %6821 = vmatpush.msra.mxu0 0.0
    %6822 = vmatpush.msra.mxu0 0.0
    %6823 = vmatpush.msra.mxu0 0.0
    %6824 = vmatpush.msra.mxu0 0.0
    %6825 = vmatpush.msra.mxu0 0.0
    %6826 = vmatpush.msra.mxu0 0.0
    %6827 = vmatpush.msra.mxu0 0.0
    %6828 = vmatpush.msra.mxu0 0.0
    %6829 = vmatpush.msra.mxu0 0.0
    %6830 = vmatpush.msra.mxu0 0.0
    %6831 = vmatpush.msra.mxu0 %v6811
    %6832 = vmatmul.f32.gmra.mxu0 %v6814
    %v6833 = vpop.f32.mrf.mxu0
    %v6834 = vadd.f32 0.0, %v6833
    %6835 = vdwg.mxu0
    %6837 = vrot.lane.b32.xlu0 %v5718, 96
    %v6838 = vpop.permute.xlu0 %6837
    %v6841 = vsel %vm91, %v6534, 0
    %6843 = vmatpush.msra.mxu0 0.0
    %6844 = vmatpush.msra.mxu0 0.0
    %6845 = vmatpush.msra.mxu0 0.0
    %6846 = vmatpush.msra.mxu0 0.0
    %6847 = vmatpush.msra.mxu0 0.0
    %6848 = vmatpush.msra.mxu0 0.0
    %6849 = vmatpush.msra.mxu0 0.0
    %6850 = vmatpush.msra.mxu0 0.0
    %6851 = vmatpush.msra.mxu0 0.0
    %6852 = vmatpush.msra.mxu0 0.0
    %6853 = vmatpush.msra.mxu0 0.0
    %6854 = vmatpush.msra.mxu0 0.0
    %6855 = vmatpush.msra.mxu0 0.0
    %6856 = vmatpush.msra.mxu0 0.0
    %6857 = vmatpush.msra.mxu0 0.0
    %6858 = vmatpush.msra.mxu0 %v6838
    %6859 = vmatmul.f32.gmra.mxu0 %v6841
    %v6860 = vpop.f32.mrf.mxu0
    %v6861 = vadd.f32 0.0, %v6860
    %6862 = vdwg.mxu0
    %6864 = vrot.lane.b32.xlu0 %v5719, 96
    %v6865 = vpop.permute.xlu0 %6864
    %v6868 = vsel %vm91, %v6535, 0
    %6870 = vmatpush.msra.mxu0 0.0
    %6871 = vmatpush.msra.mxu0 0.0
    %6872 = vmatpush.msra.mxu0 0.0
    %6873 = vmatpush.msra.mxu0 0.0
    %6874 = vmatpush.msra.mxu0 0.0
    %6875 = vmatpush.msra.mxu0 0.0
    %6876 = vmatpush.msra.mxu0 0.0
    %6877 = vmatpush.msra.mxu0 0.0
    %6878 = vmatpush.msra.mxu0 0.0
    %6879 = vmatpush.msra.mxu0 0.0
    %6880 = vmatpush.msra.mxu0 0.0
    %6881 = vmatpush.msra.mxu0 0.0
    %6882 = vmatpush.msra.mxu0 0.0
    %6883 = vmatpush.msra.mxu0 0.0
    %6884 = vmatpush.msra.mxu0 0.0
    %6885 = vmatpush.msra.mxu0 %v6865
    %6886 = vmatmul.f32.gmra.mxu0 %v6868
    %v6887 = vpop.f32.mrf.mxu0
    %v6888 = vadd.f32 0.0, %v6887
    %6889 = vdwg.mxu0
    %6891 = vrot.lane.b32.xlu0 %v5720, 96
    %v6892 = vpop.permute.xlu0 %6891
    %v6895 = vsel %vm91, %v6536, 0
    %6897 = vmatpush.msra.mxu0 0.0
    %6898 = vmatpush.msra.mxu0 0.0
    %6899 = vmatpush.msra.mxu0 0.0
    %6900 = vmatpush.msra.mxu0 0.0
    %6901 = vmatpush.msra.mxu0 0.0
    %6902 = vmatpush.msra.mxu0 0.0
    %6903 = vmatpush.msra.mxu0 0.0
    %6904 = vmatpush.msra.mxu0 0.0
    %6905 = vmatpush.msra.mxu0 0.0
    %6906 = vmatpush.msra.mxu0 0.0
    %6907 = vmatpush.msra.mxu0 0.0
    %6908 = vmatpush.msra.mxu0 0.0
    %6909 = vmatpush.msra.mxu0 0.0
    %6910 = vmatpush.msra.mxu0 0.0
    %6911 = vmatpush.msra.mxu0 0.0
    %6912 = vmatpush.msra.mxu0 %v6892
    %6913 = vmatmul.f32.gmra.mxu0 %v6895
    %v6914 = vpop.f32.mrf.mxu0
    %v6915 = vadd.f32 0.0, %v6914
    %6916 = vdwg.mxu0
    %6918 = vrot.lane.b32.xlu0 %v5721, 96
    %v6919 = vpop.permute.xlu0 %6918
    %v6922 = vsel %vm91, %v6537, 0
    %6924 = vmatpush.msra.mxu0 0.0
    %6925 = vmatpush.msra.mxu0 0.0
    %6926 = vmatpush.msra.mxu0 0.0
    %6927 = vmatpush.msra.mxu0 0.0
    %6928 = vmatpush.msra.mxu0 0.0
    %6929 = vmatpush.msra.mxu0 0.0
    %6930 = vmatpush.msra.mxu0 0.0
    %6931 = vmatpush.msra.mxu0 0.0
    %6932 = vmatpush.msra.mxu0 0.0
    %6933 = vmatpush.msra.mxu0 0.0
    %6934 = vmatpush.msra.mxu0 0.0
    %6935 = vmatpush.msra.mxu0 0.0
    %6936 = vmatpush.msra.mxu0 0.0
    %6937 = vmatpush.msra.mxu0 0.0
    %6938 = vmatpush.msra.mxu0 0.0
    %6939 = vmatpush.msra.mxu0 %v6919
    %6940 = vmatmul.f32.gmra.mxu0 %v6922
    %v6941 = vpop.f32.mrf.mxu0
    %v6942 = vadd.f32 0.0, %v6941
    %6943 = vdwg.mxu0
    %6945 = vrot.lane.b32.xlu0 %v5722, 96
    %v6946 = vpop.permute.xlu0 %6945
    %v6949 = vsel %vm91, %v6538, 0
    %6951 = vmatpush.msra.mxu0 0.0
    %6952 = vmatpush.msra.mxu0 0.0
    %6953 = vmatpush.msra.mxu0 0.0
    %6954 = vmatpush.msra.mxu0 0.0
    %6955 = vmatpush.msra.mxu0 0.0
    %6956 = vmatpush.msra.mxu0 0.0
    %6957 = vmatpush.msra.mxu0 0.0
    %6958 = vmatpush.msra.mxu0 0.0
    %6959 = vmatpush.msra.mxu0 0.0
    %6960 = vmatpush.msra.mxu0 0.0
    %6961 = vmatpush.msra.mxu0 0.0
    %6962 = vmatpush.msra.mxu0 0.0
    %6963 = vmatpush.msra.mxu0 0.0
    %6964 = vmatpush.msra.mxu0 0.0
    %6965 = vmatpush.msra.mxu0 0.0
    %6966 = vmatpush.msra.mxu0 %v6946
    %6967 = vmatmul.f32.gmra.mxu0 %v6949
    %v6968 = vpop.f32.mrf.mxu0
    %v6969 = vadd.f32 0.0, %v6968
    %6970 = vdwg.mxu0
    %6972 = vrot.lane.b32.xlu0 %v4802, 96
    %v6973 = vpop.permute.xlu0 %6972
    %v6976 = vsel %vm91, %v5668, 0
    %6978 = vmatpush.msra.mxu0 0.0
    %6979 = vmatpush.msra.mxu0 0.0
    %6980 = vmatpush.msra.mxu0 0.0
    %6981 = vmatpush.msra.mxu0 0.0
    %6982 = vmatpush.msra.mxu0 0.0
    %6983 = vmatpush.msra.mxu0 0.0
    %6984 = vmatpush.msra.mxu0 0.0
    %6985 = vmatpush.msra.mxu0 0.0
    %6986 = vmatpush.msra.mxu0 0.0
    %6987 = vmatpush.msra.mxu0 0.0
    %6988 = vmatpush.msra.mxu0 0.0
    %6989 = vmatpush.msra.mxu0 0.0
    %6990 = vmatpush.msra.mxu0 0.0
    %6991 = vmatpush.msra.mxu0 0.0
    %6992 = vmatpush.msra.mxu0 0.0
    %6993 = vmatpush.msra.mxu0 %v6973
    %6994 = vmatmul.f32.gmra.mxu0 %v6976
    %v6995 = vpop.f32.mrf.mxu0
    %v6996 = vadd.f32 %v6564, %v6995
    %6997 = vdwg.mxu0
    %6999 = vrot.lane.b32.xlu0 %v4803, 96
    %v7000 = vpop.permute.xlu0 %6999
    %v7003 = vsel %vm91, %v5669, 0
    %7005 = vmatpush.msra.mxu0 0.0
    %7006 = vmatpush.msra.mxu0 0.0
    %7007 = vmatpush.msra.mxu0 0.0
    %7008 = vmatpush.msra.mxu0 0.0
    %7009 = vmatpush.msra.mxu0 0.0
    %7010 = vmatpush.msra.mxu0 0.0
    %7011 = vmatpush.msra.mxu0 0.0
    %7012 = vmatpush.msra.mxu0 0.0
    %7013 = vmatpush.msra.mxu0 0.0
    %7014 = vmatpush.msra.mxu0 0.0
    %7015 = vmatpush.msra.mxu0 0.0
    %7016 = vmatpush.msra.mxu0 0.0
    %7017 = vmatpush.msra.mxu0 0.0
    %7018 = vmatpush.msra.mxu0 0.0
    %7019 = vmatpush.msra.mxu0 0.0
    %7020 = vmatpush.msra.mxu0 %v7000
    %7021 = vmatmul.f32.gmra.mxu0 %v7003
    %v7022 = vpop.f32.mrf.mxu0
    %v7023 = vadd.f32 %v6591, %v7022
    %7024 = vdwg.mxu0
    %7026 = vrot.lane.b32.xlu0 %v4804, 96
    %v7027 = vpop.permute.xlu0 %7026
    %v7030 = vsel %vm91, %v5670, 0
    %7032 = vmatpush.msra.mxu0 0.0
    %7033 = vmatpush.msra.mxu0 0.0
    %7034 = vmatpush.msra.mxu0 0.0
    %7035 = vmatpush.msra.mxu0 0.0
    %7036 = vmatpush.msra.mxu0 0.0
    %7037 = vmatpush.msra.mxu0 0.0
    %7038 = vmatpush.msra.mxu0 0.0
    %7039 = vmatpush.msra.mxu0 0.0
    %7040 = vmatpush.msra.mxu0 0.0
    %7041 = vmatpush.msra.mxu0 0.0
    %7042 = vmatpush.msra.mxu0 0.0
    %7043 = vmatpush.msra.mxu0 0.0
    %7044 = vmatpush.msra.mxu0 0.0
    %7045 = vmatpush.msra.mxu0 0.0
    %7046 = vmatpush.msra.mxu0 0.0
    %7047 = vmatpush.msra.mxu0 %v7027
    %7048 = vmatmul.f32.gmra.mxu0 %v7030
    %v7049 = vpop.f32.mrf.mxu0
    %v7050 = vadd.f32 %v6618, %v7049
    %7051 = vdwg.mxu0
    %7053 = vrot.lane.b32.xlu0 %v4805, 96
    %v7054 = vpop.permute.xlu0 %7053
    %v7057 = vsel %vm91, %v5671, 0
    %7059 = vmatpush.msra.mxu0 0.0
    %7060 = vmatpush.msra.mxu0 0.0
    %7061 = vmatpush.msra.mxu0 0.0
    %7062 = vmatpush.msra.mxu0 0.0
    %7063 = vmatpush.msra.mxu0 0.0
    %7064 = vmatpush.msra.mxu0 0.0
    %7065 = vmatpush.msra.mxu0 0.0
    %7066 = vmatpush.msra.mxu0 0.0
    %7067 = vmatpush.msra.mxu0 0.0
    %7068 = vmatpush.msra.mxu0 0.0
    %7069 = vmatpush.msra.mxu0 0.0
    %7070 = vmatpush.msra.mxu0 0.0
    %7071 = vmatpush.msra.mxu0 0.0
    %7072 = vmatpush.msra.mxu0 0.0
    %7073 = vmatpush.msra.mxu0 0.0
    %7074 = vmatpush.msra.mxu0 %v7054
    %7075 = vmatmul.f32.gmra.mxu0 %v7057
    %v7076 = vpop.f32.mrf.mxu0
    %v7077 = vadd.f32 %v6645, %v7076
    %7078 = vdwg.mxu0
    %7080 = vrot.lane.b32.xlu0 %v4806, 96
    %v7081 = vpop.permute.xlu0 %7080
    %v7084 = vsel %vm91, %v5672, 0
    %7086 = vmatpush.msra.mxu0 0.0
    %7087 = vmatpush.msra.mxu0 0.0
    %7088 = vmatpush.msra.mxu0 0.0
    %7089 = vmatpush.msra.mxu0 0.0
    %7090 = vmatpush.msra.mxu0 0.0
    %7091 = vmatpush.msra.mxu0 0.0
    %7092 = vmatpush.msra.mxu0 0.0
    %7093 = vmatpush.msra.mxu0 0.0
    %7094 = vmatpush.msra.mxu0 0.0
    %7095 = vmatpush.msra.mxu0 0.0
    %7096 = vmatpush.msra.mxu0 0.0
    %7097 = vmatpush.msra.mxu0 0.0
    %7098 = vmatpush.msra.mxu0 0.0
    %7099 = vmatpush.msra.mxu0 0.0
    %7100 = vmatpush.msra.mxu0 0.0
    %7101 = vmatpush.msra.mxu0 %v7081
    %7102 = vmatmul.f32.gmra.mxu0 %v7084
    %v7103 = vpop.f32.mrf.mxu0
    %v7104 = vadd.f32 %v6672, %v7103
    %7105 = vdwg.mxu0
    %7107 = vrot.lane.b32.xlu0 %v4807, 96
    %v7108 = vpop.permute.xlu0 %7107
    %v7111 = vsel %vm91, %v5673, 0
    %7113 = vmatpush.msra.mxu0 0.0
    %7114 = vmatpush.msra.mxu0 0.0
    %7115 = vmatpush.msra.mxu0 0.0
    %7116 = vmatpush.msra.mxu0 0.0
    %7117 = vmatpush.msra.mxu0 0.0
    %7118 = vmatpush.msra.mxu0 0.0
    %7119 = vmatpush.msra.mxu0 0.0
    %7120 = vmatpush.msra.mxu0 0.0
    %7121 = vmatpush.msra.mxu0 0.0
    %7122 = vmatpush.msra.mxu0 0.0
    %7123 = vmatpush.msra.mxu0 0.0
    %7124 = vmatpush.msra.mxu0 0.0
    %7125 = vmatpush.msra.mxu0 0.0
    %7126 = vmatpush.msra.mxu0 0.0
    %7127 = vmatpush.msra.mxu0 0.0
    %7128 = vmatpush.msra.mxu0 %v7108
    %7129 = vmatmul.f32.gmra.mxu0 %v7111
    %v7130 = vpop.f32.mrf.mxu0
    %v7131 = vadd.f32 %v6699, %v7130
    %7132 = vdwg.mxu0
    %7134 = vrot.lane.b32.xlu0 %v4808, 96
    %v7135 = vpop.permute.xlu0 %7134
    %v7138 = vsel %vm91, %v5674, 0
    %7140 = vmatpush.msra.mxu0 0.0
    %7141 = vmatpush.msra.mxu0 0.0
    %7142 = vmatpush.msra.mxu0 0.0
    %7143 = vmatpush.msra.mxu0 0.0
    %7144 = vmatpush.msra.mxu0 0.0
    %7145 = vmatpush.msra.mxu0 0.0
    %7146 = vmatpush.msra.mxu0 0.0
    %7147 = vmatpush.msra.mxu0 0.0
    %7148 = vmatpush.msra.mxu0 0.0
    %7149 = vmatpush.msra.mxu0 0.0
    %7150 = vmatpush.msra.mxu0 0.0
    %7151 = vmatpush.msra.mxu0 0.0
    %7152 = vmatpush.msra.mxu0 0.0
    %7153 = vmatpush.msra.mxu0 0.0
    %7154 = vmatpush.msra.mxu0 0.0
    %7155 = vmatpush.msra.mxu0 %v7135
    %7156 = vmatmul.f32.gmra.mxu0 %v7138
    %v7157 = vpop.f32.mrf.mxu0
    %v7158 = vadd.f32 %v6726, %v7157
    %7159 = vdwg.mxu0
    %7161 = vrot.lane.b32.xlu0 %v4809, 96
    %v7162 = vpop.permute.xlu0 %7161
    %v7165 = vsel %vm91, %v5675, 0
    %7167 = vmatpush.msra.mxu0 0.0
    %7168 = vmatpush.msra.mxu0 0.0
    %7169 = vmatpush.msra.mxu0 0.0
    %7170 = vmatpush.msra.mxu0 0.0
    %7171 = vmatpush.msra.mxu0 0.0
    %7172 = vmatpush.msra.mxu0 0.0
    %7173 = vmatpush.msra.mxu0 0.0
    %7174 = vmatpush.msra.mxu0 0.0
    %7175 = vmatpush.msra.mxu0 0.0
    %7176 = vmatpush.msra.mxu0 0.0
    %7177 = vmatpush.msra.mxu0 0.0
    %7178 = vmatpush.msra.mxu0 0.0
    %7179 = vmatpush.msra.mxu0 0.0
    %7180 = vmatpush.msra.mxu0 0.0
    %7181 = vmatpush.msra.mxu0 0.0
    %7182 = vmatpush.msra.mxu0 %v7162
    %7183 = vmatmul.f32.gmra.mxu0 %v7165
    %v7184 = vpop.f32.mrf.mxu0
    %v7185 = vadd.f32 %v6753, %v7184
    %7186 = vdwg.mxu0
    %7188 = vrot.lane.b32.xlu0 %v4810, 96
    %v7189 = vpop.permute.xlu0 %7188
    %v7192 = vsel %vm91, %v5676, 0
    %7194 = vmatpush.msra.mxu0 0.0
    %7195 = vmatpush.msra.mxu0 0.0
    %7196 = vmatpush.msra.mxu0 0.0
    %7197 = vmatpush.msra.mxu0 0.0
    %7198 = vmatpush.msra.mxu0 0.0
    %7199 = vmatpush.msra.mxu0 0.0
    %7200 = vmatpush.msra.mxu0 0.0
    %7201 = vmatpush.msra.mxu0 0.0
    %7202 = vmatpush.msra.mxu0 0.0
    %7203 = vmatpush.msra.mxu0 0.0
    %7204 = vmatpush.msra.mxu0 0.0
    %7205 = vmatpush.msra.mxu0 0.0
    %7206 = vmatpush.msra.mxu0 0.0
    %7207 = vmatpush.msra.mxu0 0.0
    %7208 = vmatpush.msra.mxu0 0.0
    %7209 = vmatpush.msra.mxu0 %v7189
    %7210 = vmatmul.f32.gmra.mxu0 %v7192
    %v7211 = vpop.f32.mrf.mxu0
    %v7212 = vadd.f32 %v6780, %v7211
    %7213 = vdwg.mxu0
    %7215 = vrot.lane.b32.xlu0 %v4811, 96
    %v7216 = vpop.permute.xlu0 %7215
    %v7219 = vsel %vm91, %v5677, 0
    %7221 = vmatpush.msra.mxu0 0.0
    %7222 = vmatpush.msra.mxu0 0.0
    %7223 = vmatpush.msra.mxu0 0.0
    %7224 = vmatpush.msra.mxu0 0.0
    %7225 = vmatpush.msra.mxu0 0.0
    %7226 = vmatpush.msra.mxu0 0.0
    %7227 = vmatpush.msra.mxu0 0.0
    %7228 = vmatpush.msra.mxu0 0.0
    %7229 = vmatpush.msra.mxu0 0.0
    %7230 = vmatpush.msra.mxu0 0.0
    %7231 = vmatpush.msra.mxu0 0.0
    %7232 = vmatpush.msra.mxu0 0.0
    %7233 = vmatpush.msra.mxu0 0.0
    %7234 = vmatpush.msra.mxu0 0.0
    %7235 = vmatpush.msra.mxu0 0.0
    %7236 = vmatpush.msra.mxu0 %v7216
    %7237 = vmatmul.f32.gmra.mxu0 %v7219
    %v7238 = vpop.f32.mrf.mxu0
    %v7239 = vadd.f32 %v6807, %v7238
    %7240 = vdwg.mxu0
    %7242 = vrot.lane.b32.xlu0 %v4812, 96
    %v7243 = vpop.permute.xlu0 %7242
    %v7246 = vsel %vm91, %v5678, 0
    %7248 = vmatpush.msra.mxu0 0.0
    %7249 = vmatpush.msra.mxu0 0.0
    %7250 = vmatpush.msra.mxu0 0.0
    %7251 = vmatpush.msra.mxu0 0.0
    %7252 = vmatpush.msra.mxu0 0.0
    %7253 = vmatpush.msra.mxu0 0.0
    %7254 = vmatpush.msra.mxu0 0.0
    %7255 = vmatpush.msra.mxu0 0.0
    %7256 = vmatpush.msra.mxu0 0.0
    %7257 = vmatpush.msra.mxu0 0.0
    %7258 = vmatpush.msra.mxu0 0.0
    %7259 = vmatpush.msra.mxu0 0.0
    %7260 = vmatpush.msra.mxu0 0.0
    %7261 = vmatpush.msra.mxu0 0.0
    %7262 = vmatpush.msra.mxu0 0.0
    %7263 = vmatpush.msra.mxu0 %v7243
    %7264 = vmatmul.f32.gmra.mxu0 %v7246
    %v7265 = vpop.f32.mrf.mxu0
    %v7266 = vadd.f32 %v6834, %v7265
    %7267 = vdwg.mxu0
    %7269 = vrot.lane.b32.xlu0 %v4813, 96
    %v7270 = vpop.permute.xlu0 %7269
    %v7273 = vsel %vm91, %v5679, 0
    %7275 = vmatpush.msra.mxu0 0.0
    %7276 = vmatpush.msra.mxu0 0.0
    %7277 = vmatpush.msra.mxu0 0.0
    %7278 = vmatpush.msra.mxu0 0.0
    %7279 = vmatpush.msra.mxu0 0.0
    %7280 = vmatpush.msra.mxu0 0.0
    %7281 = vmatpush.msra.mxu0 0.0
    %7282 = vmatpush.msra.mxu0 0.0
    %7283 = vmatpush.msra.mxu0 0.0
    %7284 = vmatpush.msra.mxu0 0.0
    %7285 = vmatpush.msra.mxu0 0.0
    %7286 = vmatpush.msra.mxu0 0.0
    %7287 = vmatpush.msra.mxu0 0.0
    %7288 = vmatpush.msra.mxu0 0.0
    %7289 = vmatpush.msra.mxu0 0.0
    %7290 = vmatpush.msra.mxu0 %v7270
    %7291 = vmatmul.f32.gmra.mxu0 %v7273
    %v7292 = vpop.f32.mrf.mxu0
    %v7293 = vadd.f32 %v6861, %v7292
    %7294 = vdwg.mxu0
    %7296 = vrot.lane.b32.xlu0 %v4814, 96
    %v7297 = vpop.permute.xlu0 %7296
    %v7300 = vsel %vm91, %v5680, 0
    %7302 = vmatpush.msra.mxu0 0.0
    %7303 = vmatpush.msra.mxu0 0.0
    %7304 = vmatpush.msra.mxu0 0.0
    %7305 = vmatpush.msra.mxu0 0.0
    %7306 = vmatpush.msra.mxu0 0.0
    %7307 = vmatpush.msra.mxu0 0.0
    %7308 = vmatpush.msra.mxu0 0.0
    %7309 = vmatpush.msra.mxu0 0.0
    %7310 = vmatpush.msra.mxu0 0.0
    %7311 = vmatpush.msra.mxu0 0.0
    %7312 = vmatpush.msra.mxu0 0.0
    %7313 = vmatpush.msra.mxu0 0.0
    %7314 = vmatpush.msra.mxu0 0.0
    %7315 = vmatpush.msra.mxu0 0.0
    %7316 = vmatpush.msra.mxu0 0.0
    %7317 = vmatpush.msra.mxu0 %v7297
    %7318 = vmatmul.f32.gmra.mxu0 %v7300
    %v7319 = vpop.f32.mrf.mxu0
    %v7320 = vadd.f32 %v6888, %v7319
    %7321 = vdwg.mxu0
    %7323 = vrot.lane.b32.xlu0 %v4815, 96
    %v7324 = vpop.permute.xlu0 %7323
    %v7327 = vsel %vm91, %v5681, 0
    %7329 = vmatpush.msra.mxu0 0.0
    %7330 = vmatpush.msra.mxu0 0.0
    %7331 = vmatpush.msra.mxu0 0.0
    %7332 = vmatpush.msra.mxu0 0.0
    %7333 = vmatpush.msra.mxu0 0.0
    %7334 = vmatpush.msra.mxu0 0.0
    %7335 = vmatpush.msra.mxu0 0.0
    %7336 = vmatpush.msra.mxu0 0.0
    %7337 = vmatpush.msra.mxu0 0.0
    %7338 = vmatpush.msra.mxu0 0.0
    %7339 = vmatpush.msra.mxu0 0.0
    %7340 = vmatpush.msra.mxu0 0.0
    %7341 = vmatpush.msra.mxu0 0.0
    %7342 = vmatpush.msra.mxu0 0.0
    %7343 = vmatpush.msra.mxu0 0.0
    %7344 = vmatpush.msra.mxu0 %v7324
    %7345 = vmatmul.f32.gmra.mxu0 %v7327
    %v7346 = vpop.f32.mrf.mxu0
    %v7347 = vadd.f32 %v6915, %v7346
    %7348 = vdwg.mxu0
    %7350 = vrot.lane.b32.xlu0 %v4816, 96
    %v7351 = vpop.permute.xlu0 %7350
    %v7354 = vsel %vm91, %v5682, 0
    %7356 = vmatpush.msra.mxu0 0.0
    %7357 = vmatpush.msra.mxu0 0.0
    %7358 = vmatpush.msra.mxu0 0.0
    %7359 = vmatpush.msra.mxu0 0.0
    %7360 = vmatpush.msra.mxu0 0.0
    %7361 = vmatpush.msra.mxu0 0.0
    %7362 = vmatpush.msra.mxu0 0.0
    %7363 = vmatpush.msra.mxu0 0.0
    %7364 = vmatpush.msra.mxu0 0.0
    %7365 = vmatpush.msra.mxu0 0.0
    %7366 = vmatpush.msra.mxu0 0.0
    %7367 = vmatpush.msra.mxu0 0.0
    %7368 = vmatpush.msra.mxu0 0.0
    %7369 = vmatpush.msra.mxu0 0.0
    %7370 = vmatpush.msra.mxu0 0.0
    %7371 = vmatpush.msra.mxu0 %v7351
    %7372 = vmatmul.f32.gmra.mxu0 %v7354
    %v7373 = vpop.f32.mrf.mxu0
    %v7374 = vadd.f32 %v6942, %v7373
    %7375 = vdwg.mxu0
    %7377 = vrot.lane.b32.xlu0 %v4817, 96
    %v7378 = vpop.permute.xlu0 %7377
    %v7381 = vsel %vm91, %v5683, 0
    %7383 = vmatpush.msra.mxu0 0.0
    %7384 = vmatpush.msra.mxu0 0.0
    %7385 = vmatpush.msra.mxu0 0.0
    %7386 = vmatpush.msra.mxu0 0.0
    %7387 = vmatpush.msra.mxu0 0.0
    %7388 = vmatpush.msra.mxu0 0.0
    %7389 = vmatpush.msra.mxu0 0.0
    %7390 = vmatpush.msra.mxu0 0.0
    %7391 = vmatpush.msra.mxu0 0.0
    %7392 = vmatpush.msra.mxu0 0.0
    %7393 = vmatpush.msra.mxu0 0.0
    %7394 = vmatpush.msra.mxu0 0.0
    %7395 = vmatpush.msra.mxu0 0.0
    %7396 = vmatpush.msra.mxu0 0.0
    %7397 = vmatpush.msra.mxu0 0.0
    %7398 = vmatpush.msra.mxu0 %v7378
    %7399 = vmatmul.f32.gmra.mxu0 %v7381
    %v7400 = vpop.f32.mrf.mxu0
    %v7401 = vadd.f32 %v6969, %v7400
    %7402 = vdwg.mxu0
    %7404 = vrot.lane.b32.xlu0 %v479, 16
    %v7405 = vpop.permute.xlu0 %7404
    %v7407 = vmul.f32 %v4731, %v7405
    %v7408 = vmul.f32 %v4734, %v7405
    %v7409 = vmul.f32 %v4737, %v7405
    %v7410 = vmul.f32 %v4740, %v7405
    %v7411 = vmul.f32 %v4743, %v7405
    %v7412 = vmul.f32 %v4746, %v7405
    %v7413 = vmul.f32 %v4749, %v7405
    %v7414 = vmul.f32 %v4752, %v7405
    %v7415 = vmul.f32 %v4755, %v7405
    %v7416 = vmul.f32 %v4758, %v7405
    %v7417 = vmul.f32 %v4761, %v7405
    %v7418 = vmul.f32 %v4764, %v7405
    %v7419 = vmul.f32 %v4767, %v7405
    %v7420 = vmul.f32 %v4770, %v7405
    %v7421 = vmul.f32 %v4773, %v7405
    %v7422 = vmul.f32 %v4776, %v7405
    %7423 = vrot.lane.b32.xlu0 %v479, 32
    %v7424 = vpop.permute.xlu0 %7423
    %v7426 = vmul.f32 %v4731, %v7424
    %v7427 = vmul.f32 %v4734, %v7424
    %v7428 = vmul.f32 %v4737, %v7424
    %v7429 = vmul.f32 %v4740, %v7424
    %v7430 = vmul.f32 %v4743, %v7424
    %v7431 = vmul.f32 %v4746, %v7424
    %v7432 = vmul.f32 %v4749, %v7424
    %v7433 = vmul.f32 %v4752, %v7424
    %v7434 = vmul.f32 %v4755, %v7424
    %v7435 = vmul.f32 %v4758, %v7424
    %v7436 = vmul.f32 %v4761, %v7424
    %v7437 = vmul.f32 %v4764, %v7424
    %v7438 = vmul.f32 %v4767, %v7424
    %v7439 = vmul.f32 %v4770, %v7424
    %v7440 = vmul.f32 %v4773, %v7424
    %v7441 = vmul.f32 %v4776, %v7424
    %7443 = vrot.lane.b32.xlu0 %v7407, 112
    %v7444 = vpop.permute.xlu0 %7443
    %v7445 = vsel %vm273, %v7444, 0
    %7447 = vmatpush.xpose.msra.mxu0 0.0
    %7448 = vmatpush.xpose.msra.mxu0 0.0
    %7449 = vmatpush.xpose.msra.mxu0 0.0
    %7450 = vmatpush.xpose.msra.mxu0 0.0
    %7451 = vmatpush.xpose.msra.mxu0 0.0
    %7452 = vmatpush.xpose.msra.mxu0 0.0
    %7453 = vmatpush.xpose.msra.mxu0 0.0
    %7454 = vmatpush.xpose.msra.mxu0 0.0
    %7455 = vmatpush.xpose.msra.mxu0 0.0
    %7456 = vmatpush.xpose.msra.mxu0 0.0
    %7457 = vmatpush.xpose.msra.mxu0 0.0
    %7458 = vmatpush.xpose.msra.mxu0 0.0
    %7459 = vmatpush.xpose.msra.mxu0 0.0
    %7460 = vmatpush.xpose.msra.mxu0 0.0
    %7461 = vmatpush.xpose.msra.mxu0 0.0
    %7462 = vmatpush.xpose.msra.mxu0 %v7445
    %7463 = vmatmul.f32.gmra.mxu0 %v4822
    %v7464 = vpop.f32.mrf.mxu0
    %v7465 = vadd.f32 0.0, %v7464
    %7466 = vdwg.mxu0
    %7468 = vrot.lane.b32.xlu0 %v7408, 112
    %v7469 = vpop.permute.xlu0 %7468
    %v7470 = vsel %vm273, %v7469, 0
    %7472 = vmatpush.xpose.msra.mxu0 0.0
    %7473 = vmatpush.xpose.msra.mxu0 0.0
    %7474 = vmatpush.xpose.msra.mxu0 0.0
    %7475 = vmatpush.xpose.msra.mxu0 0.0
    %7476 = vmatpush.xpose.msra.mxu0 0.0
    %7477 = vmatpush.xpose.msra.mxu0 0.0
    %7478 = vmatpush.xpose.msra.mxu0 0.0
    %7479 = vmatpush.xpose.msra.mxu0 0.0
    %7480 = vmatpush.xpose.msra.mxu0 0.0
    %7481 = vmatpush.xpose.msra.mxu0 0.0
    %7482 = vmatpush.xpose.msra.mxu0 0.0
    %7483 = vmatpush.xpose.msra.mxu0 0.0
    %7484 = vmatpush.xpose.msra.mxu0 0.0
    %7485 = vmatpush.xpose.msra.mxu0 0.0
    %7486 = vmatpush.xpose.msra.mxu0 0.0
    %7487 = vmatpush.xpose.msra.mxu0 %v7470
    %7488 = vmatmul.f32.gmra.mxu0 %v4850
    %v7489 = vpop.f32.mrf.mxu0
    %v7490 = vadd.f32 0.0, %v7489
    %7491 = vdwg.mxu0
    %7493 = vrot.lane.b32.xlu0 %v7409, 112
    %v7494 = vpop.permute.xlu0 %7493
    %v7495 = vsel %vm273, %v7494, 0
    %7497 = vmatpush.xpose.msra.mxu0 0.0
    %7498 = vmatpush.xpose.msra.mxu0 0.0
    %7499 = vmatpush.xpose.msra.mxu0 0.0
    %7500 = vmatpush.xpose.msra.mxu0 0.0
    %7501 = vmatpush.xpose.msra.mxu0 0.0
    %7502 = vmatpush.xpose.msra.mxu0 0.0
    %7503 = vmatpush.xpose.msra.mxu0 0.0
    %7504 = vmatpush.xpose.msra.mxu0 0.0
    %7505 = vmatpush.xpose.msra.mxu0 0.0
    %7506 = vmatpush.xpose.msra.mxu0 0.0
    %7507 = vmatpush.xpose.msra.mxu0 0.0
    %7508 = vmatpush.xpose.msra.mxu0 0.0
    %7509 = vmatpush.xpose.msra.mxu0 0.0
    %7510 = vmatpush.xpose.msra.mxu0 0.0
    %7511 = vmatpush.xpose.msra.mxu0 0.0
    %7512 = vmatpush.xpose.msra.mxu0 %v7495
    %7513 = vmatmul.f32.gmra.mxu0 %v4878
    %v7514 = vpop.f32.mrf.mxu0
    %v7515 = vadd.f32 0.0, %v7514
    %7516 = vdwg.mxu0
    %7518 = vrot.lane.b32.xlu0 %v7410, 112
    %v7519 = vpop.permute.xlu0 %7518
    %v7520 = vsel %vm273, %v7519, 0
    %7522 = vmatpush.xpose.msra.mxu0 0.0
    %7523 = vmatpush.xpose.msra.mxu0 0.0
    %7524 = vmatpush.xpose.msra.mxu0 0.0
    %7525 = vmatpush.xpose.msra.mxu0 0.0
    %7526 = vmatpush.xpose.msra.mxu0 0.0
    %7527 = vmatpush.xpose.msra.mxu0 0.0
    %7528 = vmatpush.xpose.msra.mxu0 0.0
    %7529 = vmatpush.xpose.msra.mxu0 0.0
    %7530 = vmatpush.xpose.msra.mxu0 0.0
    %7531 = vmatpush.xpose.msra.mxu0 0.0
    %7532 = vmatpush.xpose.msra.mxu0 0.0
    %7533 = vmatpush.xpose.msra.mxu0 0.0
    %7534 = vmatpush.xpose.msra.mxu0 0.0
    %7535 = vmatpush.xpose.msra.mxu0 0.0
    %7536 = vmatpush.xpose.msra.mxu0 0.0
    %7537 = vmatpush.xpose.msra.mxu0 %v7520
    %7538 = vmatmul.f32.gmra.mxu0 %v4906
    %v7539 = vpop.f32.mrf.mxu0
    %v7540 = vadd.f32 0.0, %v7539
    %7541 = vdwg.mxu0
    %7543 = vrot.lane.b32.xlu0 %v7411, 112
    %v7544 = vpop.permute.xlu0 %7543
    %v7545 = vsel %vm273, %v7544, 0
    %7547 = vmatpush.xpose.msra.mxu0 0.0
    %7548 = vmatpush.xpose.msra.mxu0 0.0
    %7549 = vmatpush.xpose.msra.mxu0 0.0
    %7550 = vmatpush.xpose.msra.mxu0 0.0
    %7551 = vmatpush.xpose.msra.mxu0 0.0
    %7552 = vmatpush.xpose.msra.mxu0 0.0
    %7553 = vmatpush.xpose.msra.mxu0 0.0
    %7554 = vmatpush.xpose.msra.mxu0 0.0
    %7555 = vmatpush.xpose.msra.mxu0 0.0
    %7556 = vmatpush.xpose.msra.mxu0 0.0
    %7557 = vmatpush.xpose.msra.mxu0 0.0
    %7558 = vmatpush.xpose.msra.mxu0 0.0
    %7559 = vmatpush.xpose.msra.mxu0 0.0
    %7560 = vmatpush.xpose.msra.mxu0 0.0
    %7561 = vmatpush.xpose.msra.mxu0 0.0
    %7562 = vmatpush.xpose.msra.mxu0 %v7545
    %7563 = vmatmul.f32.gmra.mxu0 %v4934
    %v7564 = vpop.f32.mrf.mxu0
    %v7565 = vadd.f32 0.0, %v7564
    %7566 = vdwg.mxu0
    %7568 = vrot.lane.b32.xlu0 %v7412, 112
    %v7569 = vpop.permute.xlu0 %7568
    %v7570 = vsel %vm273, %v7569, 0
    %7572 = vmatpush.xpose.msra.mxu0 0.0
    %7573 = vmatpush.xpose.msra.mxu0 0.0
    %7574 = vmatpush.xpose.msra.mxu0 0.0
    %7575 = vmatpush.xpose.msra.mxu0 0.0
    %7576 = vmatpush.xpose.msra.mxu0 0.0
    %7577 = vmatpush.xpose.msra.mxu0 0.0
    %7578 = vmatpush.xpose.msra.mxu0 0.0
    %7579 = vmatpush.xpose.msra.mxu0 0.0
    %7580 = vmatpush.xpose.msra.mxu0 0.0
    %7581 = vmatpush.xpose.msra.mxu0 0.0
    %7582 = vmatpush.xpose.msra.mxu0 0.0
    %7583 = vmatpush.xpose.msra.mxu0 0.0
    %7584 = vmatpush.xpose.msra.mxu0 0.0
    %7585 = vmatpush.xpose.msra.mxu0 0.0
    %7586 = vmatpush.xpose.msra.mxu0 0.0
    %7587 = vmatpush.xpose.msra.mxu0 %v7570
    %7588 = vmatmul.f32.gmra.mxu0 %v4962
    %v7589 = vpop.f32.mrf.mxu0
    %v7590 = vadd.f32 0.0, %v7589
    %7591 = vdwg.mxu0
    %7593 = vrot.lane.b32.xlu0 %v7413, 112
    %v7594 = vpop.permute.xlu0 %7593
    %v7595 = vsel %vm273, %v7594, 0
    %7597 = vmatpush.xpose.msra.mxu0 0.0
    %7598 = vmatpush.xpose.msra.mxu0 0.0
    %7599 = vmatpush.xpose.msra.mxu0 0.0
    %7600 = vmatpush.xpose.msra.mxu0 0.0
    %7601 = vmatpush.xpose.msra.mxu0 0.0
    %7602 = vmatpush.xpose.msra.mxu0 0.0
    %7603 = vmatpush.xpose.msra.mxu0 0.0
    %7604 = vmatpush.xpose.msra.mxu0 0.0
    %7605 = vmatpush.xpose.msra.mxu0 0.0
    %7606 = vmatpush.xpose.msra.mxu0 0.0
    %7607 = vmatpush.xpose.msra.mxu0 0.0
    %7608 = vmatpush.xpose.msra.mxu0 0.0
    %7609 = vmatpush.xpose.msra.mxu0 0.0
    %7610 = vmatpush.xpose.msra.mxu0 0.0
    %7611 = vmatpush.xpose.msra.mxu0 0.0
    %7612 = vmatpush.xpose.msra.mxu0 %v7595
    %7613 = vmatmul.f32.gmra.mxu0 %v4990
    %v7614 = vpop.f32.mrf.mxu0
    %v7615 = vadd.f32 0.0, %v7614
    %7616 = vdwg.mxu0
    %7618 = vrot.lane.b32.xlu0 %v7414, 112
    %v7619 = vpop.permute.xlu0 %7618
    %v7620 = vsel %vm273, %v7619, 0
    %7622 = vmatpush.xpose.msra.mxu0 0.0
    %7623 = vmatpush.xpose.msra.mxu0 0.0
    %7624 = vmatpush.xpose.msra.mxu0 0.0
    %7625 = vmatpush.xpose.msra.mxu0 0.0
    %7626 = vmatpush.xpose.msra.mxu0 0.0
    %7627 = vmatpush.xpose.msra.mxu0 0.0
    %7628 = vmatpush.xpose.msra.mxu0 0.0
    %7629 = vmatpush.xpose.msra.mxu0 0.0
    %7630 = vmatpush.xpose.msra.mxu0 0.0
    %7631 = vmatpush.xpose.msra.mxu0 0.0
    %7632 = vmatpush.xpose.msra.mxu0 0.0
    %7633 = vmatpush.xpose.msra.mxu0 0.0
    %7634 = vmatpush.xpose.msra.mxu0 0.0
    %7635 = vmatpush.xpose.msra.mxu0 0.0
    %7636 = vmatpush.xpose.msra.mxu0 0.0
    %7637 = vmatpush.xpose.msra.mxu0 %v7620
    %7638 = vmatmul.f32.gmra.mxu0 %v5018
    %v7639 = vpop.f32.mrf.mxu0
    %v7640 = vadd.f32 0.0, %v7639
    %7641 = vdwg.mxu0
    %7643 = vrot.lane.b32.xlu0 %v7415, 112
    %v7644 = vpop.permute.xlu0 %7643
    %v7645 = vsel %vm273, %v7644, 0
    %7647 = vmatpush.xpose.msra.mxu0 0.0
    %7648 = vmatpush.xpose.msra.mxu0 0.0
    %7649 = vmatpush.xpose.msra.mxu0 0.0
    %7650 = vmatpush.xpose.msra.mxu0 0.0
    %7651 = vmatpush.xpose.msra.mxu0 0.0
    %7652 = vmatpush.xpose.msra.mxu0 0.0
    %7653 = vmatpush.xpose.msra.mxu0 0.0
    %7654 = vmatpush.xpose.msra.mxu0 0.0
    %7655 = vmatpush.xpose.msra.mxu0 0.0
    %7656 = vmatpush.xpose.msra.mxu0 0.0
    %7657 = vmatpush.xpose.msra.mxu0 0.0
    %7658 = vmatpush.xpose.msra.mxu0 0.0
    %7659 = vmatpush.xpose.msra.mxu0 0.0
    %7660 = vmatpush.xpose.msra.mxu0 0.0
    %7661 = vmatpush.xpose.msra.mxu0 0.0
    %7662 = vmatpush.xpose.msra.mxu0 %v7645
    %7663 = vmatmul.f32.gmra.mxu0 %v5046
    %v7664 = vpop.f32.mrf.mxu0
    %v7665 = vadd.f32 0.0, %v7664
    %7666 = vdwg.mxu0
    %7668 = vrot.lane.b32.xlu0 %v7416, 112
    %v7669 = vpop.permute.xlu0 %7668
    %v7670 = vsel %vm273, %v7669, 0
    %7672 = vmatpush.xpose.msra.mxu0 0.0
    %7673 = vmatpush.xpose.msra.mxu0 0.0
    %7674 = vmatpush.xpose.msra.mxu0 0.0
    %7675 = vmatpush.xpose.msra.mxu0 0.0
    %7676 = vmatpush.xpose.msra.mxu0 0.0
    %7677 = vmatpush.xpose.msra.mxu0 0.0
    %7678 = vmatpush.xpose.msra.mxu0 0.0
    %7679 = vmatpush.xpose.msra.mxu0 0.0
    %7680 = vmatpush.xpose.msra.mxu0 0.0
    %7681 = vmatpush.xpose.msra.mxu0 0.0
    %7682 = vmatpush.xpose.msra.mxu0 0.0
    %7683 = vmatpush.xpose.msra.mxu0 0.0
    %7684 = vmatpush.xpose.msra.mxu0 0.0
    %7685 = vmatpush.xpose.msra.mxu0 0.0
    %7686 = vmatpush.xpose.msra.mxu0 0.0
    %7687 = vmatpush.xpose.msra.mxu0 %v7670
    %7688 = vmatmul.f32.gmra.mxu0 %v5074
    %v7689 = vpop.f32.mrf.mxu0
    %v7690 = vadd.f32 0.0, %v7689
    %7691 = vdwg.mxu0
    %7693 = vrot.lane.b32.xlu0 %v7417, 112
    %v7694 = vpop.permute.xlu0 %7693
    %v7695 = vsel %vm273, %v7694, 0
    %7697 = vmatpush.xpose.msra.mxu0 0.0
    %7698 = vmatpush.xpose.msra.mxu0 0.0
    %7699 = vmatpush.xpose.msra.mxu0 0.0
    %7700 = vmatpush.xpose.msra.mxu0 0.0
    %7701 = vmatpush.xpose.msra.mxu0 0.0
    %7702 = vmatpush.xpose.msra.mxu0 0.0
    %7703 = vmatpush.xpose.msra.mxu0 0.0
    %7704 = vmatpush.xpose.msra.mxu0 0.0
    %7705 = vmatpush.xpose.msra.mxu0 0.0
    %7706 = vmatpush.xpose.msra.mxu0 0.0
    %7707 = vmatpush.xpose.msra.mxu0 0.0
    %7708 = vmatpush.xpose.msra.mxu0 0.0
    %7709 = vmatpush.xpose.msra.mxu0 0.0
    %7710 = vmatpush.xpose.msra.mxu0 0.0
    %7711 = vmatpush.xpose.msra.mxu0 0.0
    %7712 = vmatpush.xpose.msra.mxu0 %v7695
    %7713 = vmatmul.f32.gmra.mxu0 %v5102
    %v7714 = vpop.f32.mrf.mxu0
    %v7715 = vadd.f32 0.0, %v7714
    %7716 = vdwg.mxu0
    %7718 = vrot.lane.b32.xlu0 %v7418, 112
    %v7719 = vpop.permute.xlu0 %7718
    %v7720 = vsel %vm273, %v7719, 0
    %7722 = vmatpush.xpose.msra.mxu0 0.0
    %7723 = vmatpush.xpose.msra.mxu0 0.0
    %7724 = vmatpush.xpose.msra.mxu0 0.0
    %7725 = vmatpush.xpose.msra.mxu0 0.0
    %7726 = vmatpush.xpose.msra.mxu0 0.0
    %7727 = vmatpush.xpose.msra.mxu0 0.0
    %7728 = vmatpush.xpose.msra.mxu0 0.0
    %7729 = vmatpush.xpose.msra.mxu0 0.0
    %7730 = vmatpush.xpose.msra.mxu0 0.0
    %7731 = vmatpush.xpose.msra.mxu0 0.0
    %7732 = vmatpush.xpose.msra.mxu0 0.0
    %7733 = vmatpush.xpose.msra.mxu0 0.0
    %7734 = vmatpush.xpose.msra.mxu0 0.0
    %7735 = vmatpush.xpose.msra.mxu0 0.0
    %7736 = vmatpush.xpose.msra.mxu0 0.0
    %7737 = vmatpush.xpose.msra.mxu0 %v7720
    %7738 = vmatmul.f32.gmra.mxu0 %v5130
    %v7739 = vpop.f32.mrf.mxu0
    %v7740 = vadd.f32 0.0, %v7739
    %7741 = vdwg.mxu0
    %7743 = vrot.lane.b32.xlu0 %v7419, 112
    %v7744 = vpop.permute.xlu0 %7743
    %v7745 = vsel %vm273, %v7744, 0
    %7747 = vmatpush.xpose.msra.mxu0 0.0
    %7748 = vmatpush.xpose.msra.mxu0 0.0
    %7749 = vmatpush.xpose.msra.mxu0 0.0
    %7750 = vmatpush.xpose.msra.mxu0 0.0
    %7751 = vmatpush.xpose.msra.mxu0 0.0
    %7752 = vmatpush.xpose.msra.mxu0 0.0
    %7753 = vmatpush.xpose.msra.mxu0 0.0
    %7754 = vmatpush.xpose.msra.mxu0 0.0
    %7755 = vmatpush.xpose.msra.mxu0 0.0
    %7756 = vmatpush.xpose.msra.mxu0 0.0
    %7757 = vmatpush.xpose.msra.mxu0 0.0
    %7758 = vmatpush.xpose.msra.mxu0 0.0
    %7759 = vmatpush.xpose.msra.mxu0 0.0
    %7760 = vmatpush.xpose.msra.mxu0 0.0
    %7761 = vmatpush.xpose.msra.mxu0 0.0
    %7762 = vmatpush.xpose.msra.mxu0 %v7745
    %7763 = vmatmul.f32.gmra.mxu0 %v5158
    %v7764 = vpop.f32.mrf.mxu0
    %v7765 = vadd.f32 0.0, %v7764
    %7766 = vdwg.mxu0
    %7768 = vrot.lane.b32.xlu0 %v7420, 112
    %v7769 = vpop.permute.xlu0 %7768
    %v7770 = vsel %vm273, %v7769, 0
    %7772 = vmatpush.xpose.msra.mxu0 0.0
    %7773 = vmatpush.xpose.msra.mxu0 0.0
    %7774 = vmatpush.xpose.msra.mxu0 0.0
    %7775 = vmatpush.xpose.msra.mxu0 0.0
    %7776 = vmatpush.xpose.msra.mxu0 0.0
    %7777 = vmatpush.xpose.msra.mxu0 0.0
    %7778 = vmatpush.xpose.msra.mxu0 0.0
    %7779 = vmatpush.xpose.msra.mxu0 0.0
    %7780 = vmatpush.xpose.msra.mxu0 0.0
    %7781 = vmatpush.xpose.msra.mxu0 0.0
    %7782 = vmatpush.xpose.msra.mxu0 0.0
    %7783 = vmatpush.xpose.msra.mxu0 0.0
    %7784 = vmatpush.xpose.msra.mxu0 0.0
    %7785 = vmatpush.xpose.msra.mxu0 0.0
    %7786 = vmatpush.xpose.msra.mxu0 0.0
    %7787 = vmatpush.xpose.msra.mxu0 %v7770
    %7788 = vmatmul.f32.gmra.mxu0 %v5186
    %v7789 = vpop.f32.mrf.mxu0
    %v7790 = vadd.f32 0.0, %v7789
    %7791 = vdwg.mxu0
    %7793 = vrot.lane.b32.xlu0 %v7421, 112
    %v7794 = vpop.permute.xlu0 %7793
    %v7795 = vsel %vm273, %v7794, 0
    %7797 = vmatpush.xpose.msra.mxu0 0.0
    %7798 = vmatpush.xpose.msra.mxu0 0.0
    %7799 = vmatpush.xpose.msra.mxu0 0.0
    %7800 = vmatpush.xpose.msra.mxu0 0.0
    %7801 = vmatpush.xpose.msra.mxu0 0.0
    %7802 = vmatpush.xpose.msra.mxu0 0.0
    %7803 = vmatpush.xpose.msra.mxu0 0.0
    %7804 = vmatpush.xpose.msra.mxu0 0.0
    %7805 = vmatpush.xpose.msra.mxu0 0.0
    %7806 = vmatpush.xpose.msra.mxu0 0.0
    %7807 = vmatpush.xpose.msra.mxu0 0.0
    %7808 = vmatpush.xpose.msra.mxu0 0.0
    %7809 = vmatpush.xpose.msra.mxu0 0.0
    %7810 = vmatpush.xpose.msra.mxu0 0.0
    %7811 = vmatpush.xpose.msra.mxu0 0.0
    %7812 = vmatpush.xpose.msra.mxu0 %v7795
    %7813 = vmatmul.f32.gmra.mxu0 %v5214
    %v7814 = vpop.f32.mrf.mxu0
    %v7815 = vadd.f32 0.0, %v7814
    %7816 = vdwg.mxu0
    %7818 = vrot.lane.b32.xlu0 %v7422, 112
    %v7819 = vpop.permute.xlu0 %7818
    %v7820 = vsel %vm273, %v7819, 0
    %7822 = vmatpush.xpose.msra.mxu0 0.0
    %7823 = vmatpush.xpose.msra.mxu0 0.0
    %7824 = vmatpush.xpose.msra.mxu0 0.0
    %7825 = vmatpush.xpose.msra.mxu0 0.0
    %7826 = vmatpush.xpose.msra.mxu0 0.0
    %7827 = vmatpush.xpose.msra.mxu0 0.0
    %7828 = vmatpush.xpose.msra.mxu0 0.0
    %7829 = vmatpush.xpose.msra.mxu0 0.0
    %7830 = vmatpush.xpose.msra.mxu0 0.0
    %7831 = vmatpush.xpose.msra.mxu0 0.0
    %7832 = vmatpush.xpose.msra.mxu0 0.0
    %7833 = vmatpush.xpose.msra.mxu0 0.0
    %7834 = vmatpush.xpose.msra.mxu0 0.0
    %7835 = vmatpush.xpose.msra.mxu0 0.0
    %7836 = vmatpush.xpose.msra.mxu0 0.0
    %7837 = vmatpush.xpose.msra.mxu0 %v7820
    %7838 = vmatmul.f32.gmra.mxu0 %v5242
    %v7839 = vpop.f32.mrf.mxu0
    %v7840 = vadd.f32 0.0, %v7839
    %7841 = vdwg.mxu0
    %v7842 = vmul.f32 %v7465, 0.35355338
    %v7843 = vmul.f32 %v7490, 0.35355338
    %v7844 = vmul.f32 %v7515, 0.35355338
    %v7845 = vmul.f32 %v7540, 0.35355338
    %v7846 = vmul.f32 %v7565, 0.35355338
    %v7847 = vmul.f32 %v7590, 0.35355338
    %v7848 = vmul.f32 %v7615, 0.35355338
    %v7849 = vmul.f32 %v7640, 0.35355338
    %v7850 = vmul.f32 %v7665, 0.35355338
    %v7851 = vmul.f32 %v7690, 0.35355338
    %v7852 = vmul.f32 %v7715, 0.35355338
    %v7853 = vmul.f32 %v7740, 0.35355338
    %v7854 = vmul.f32 %v7765, 0.35355338
    %v7855 = vmul.f32 %v7790, 0.35355338
    %v7856 = vmul.f32 %v7815, 0.35355338
    %v7857 = vmul.f32 %v7840, 0.35355338
    %v7858 = vsel %vm5283, %v7842, -4.2949673e+09
    %v7859 = vsel %vm5283, %v7843, -4.2949673e+09
    %v7860 = vsel %vm5283, %v7844, -4.2949673e+09
    %v7861 = vsel %vm5283, %v7845, -4.2949673e+09
    %v7862 = vsel %vm5283, %v7846, -4.2949673e+09
    %v7863 = vsel %vm5283, %v7847, -4.2949673e+09
    %v7864 = vsel %vm5283, %v7848, -4.2949673e+09
    %v7865 = vsel %vm5283, %v7849, -4.2949673e+09
    %v7866 = vsel %vm5283, %v7850, -4.2949673e+09
    %v7867 = vsel %vm5283, %v7851, -4.2949673e+09
    %v7868 = vsel %vm5283, %v7852, -4.2949673e+09
    %v7869 = vsel %vm5283, %v7853, -4.2949673e+09
    %v7870 = vsel %vm5283, %v7854, -4.2949673e+09
    %v7871 = vsel %vm5283, %v7855, -4.2949673e+09
    %v7872 = vsel %vm5283, %v7856, -4.2949673e+09
    %v7873 = vsel %vm5283, %v7857, -4.2949673e+09
    %v7874 = vsel %vm91, %v7858, -inf
    %7875 = vmax.xlane.f32.xlu0 %v7874
    %v7876 = vpop.xlane.xlu0 %7875
    %v7877 = vsel %vm91, %v7859, -inf
    %7878 = vmax.xlane.f32.xlu0 %v7877
    %v7879 = vpop.xlane.xlu0 %7878
    %v7880 = vsel %vm91, %v7860, -inf
    %7881 = vmax.xlane.f32.xlu0 %v7880
    %v7882 = vpop.xlane.xlu0 %7881
    %v7883 = vsel %vm91, %v7861, -inf
    %7884 = vmax.xlane.f32.xlu0 %v7883
    %v7885 = vpop.xlane.xlu0 %7884
    %v7886 = vsel %vm91, %v7862, -inf
    %7887 = vmax.xlane.f32.xlu0 %v7886
    %v7888 = vpop.xlane.xlu0 %7887
    %v7889 = vsel %vm91, %v7863, -inf
    %7890 = vmax.xlane.f32.xlu0 %v7889
    %v7891 = vpop.xlane.xlu0 %7890
    %v7892 = vsel %vm91, %v7864, -inf
    %7893 = vmax.xlane.f32.xlu0 %v7892
    %v7894 = vpop.xlane.xlu0 %7893
    %v7895 = vsel %vm91, %v7865, -inf
    %7896 = vmax.xlane.f32.xlu0 %v7895
    %v7897 = vpop.xlane.xlu0 %7896
    %v7898 = vsel %vm91, %v7866, -inf
    %7899 = vmax.xlane.f32.xlu0 %v7898
    %v7900 = vpop.xlane.xlu0 %7899
    %v7901 = vsel %vm91, %v7867, -inf
    %7902 = vmax.xlane.f32.xlu0 %v7901
    %v7903 = vpop.xlane.xlu0 %7902
    %v7904 = vsel %vm91, %v7868, -inf
    %7905 = vmax.xlane.f32.xlu0 %v7904
    %v7906 = vpop.xlane.xlu0 %7905
    %v7907 = vsel %vm91, %v7869, -inf
    %7908 = vmax.xlane.f32.xlu0 %v7907
    %v7909 = vpop.xlane.xlu0 %7908
    %v7910 = vsel %vm91, %v7870, -inf
    %7911 = vmax.xlane.f32.xlu0 %v7910
    %v7912 = vpop.xlane.xlu0 %7911
    %v7913 = vsel %vm91, %v7871, -inf
    %7914 = vmax.xlane.f32.xlu0 %v7913
    %v7915 = vpop.xlane.xlu0 %7914
    %v7916 = vsel %vm91, %v7872, -inf
    %7917 = vmax.xlane.f32.xlu0 %v7916
    %v7918 = vpop.xlane.xlu0 %7917
    %v7919 = vsel %vm91, %v7873, -inf
    %7920 = vmax.xlane.f32.xlu0 %v7919
    %v7921 = vpop.xlane.xlu0 %7920
    %v7922 = vsub.f32 %v7858, %v7876
    %v7923 = vsub.f32 %v7859, %v7879
    %v7924 = vsub.f32 %v7860, %v7882
    %v7925 = vsub.f32 %v7861, %v7885
    %v7926 = vsub.f32 %v7862, %v7888
    %v7927 = vsub.f32 %v7863, %v7891
    %v7928 = vsub.f32 %v7864, %v7894
    %v7929 = vsub.f32 %v7865, %v7897
    %v7930 = vsub.f32 %v7866, %v7900
    %v7931 = vsub.f32 %v7867, %v7903
    %v7932 = vsub.f32 %v7868, %v7906
    %v7933 = vsub.f32 %v7869, %v7909
    %v7934 = vsub.f32 %v7870, %v7912
    %v7935 = vsub.f32 %v7871, %v7915
    %v7936 = vsub.f32 %v7872, %v7918
    %v7937 = vsub.f32 %v7873, %v7921
    %v7938 = vmul.f32 %v7922, 1.442695
    %v7939 = vpow.pop %v7938
    %v7940 = vmul.f32 %v7923, 1.442695
    %v7941 = vpow.pop %v7940
    %v7942 = vmul.f32 %v7924, 1.442695
    %v7943 = vpow.pop %v7942
    %v7944 = vmul.f32 %v7925, 1.442695
    %v7945 = vpow.pop %v7944
    %v7946 = vmul.f32 %v7926, 1.442695
    %v7947 = vpow.pop %v7946
    %v7948 = vmul.f32 %v7927, 1.442695
    %v7949 = vpow.pop %v7948
    %v7950 = vmul.f32 %v7928, 1.442695
    %v7951 = vpow.pop %v7950
    %v7952 = vmul.f32 %v7929, 1.442695
    %v7953 = vpow.pop %v7952
    %v7954 = vmul.f32 %v7930, 1.442695
    %v7955 = vpow.pop %v7954
    %v7956 = vmul.f32 %v7931, 1.442695
    %v7957 = vpow.pop %v7956
    %v7958 = vmul.f32 %v7932, 1.442695
    %v7959 = vpow.pop %v7958
    %v7960 = vmul.f32 %v7933, 1.442695
    %v7961 = vpow.pop %v7960
    %v7962 = vmul.f32 %v7934, 1.442695
    %v7963 = vpow.pop %v7962
    %v7964 = vmul.f32 %v7935, 1.442695
    %v7965 = vpow.pop %v7964
    %v7966 = vmul.f32 %v7936, 1.442695
    %v7967 = vpow.pop %v7966
    %v7968 = vmul.f32 %v7937, 1.442695
    %v7969 = vpow.pop %v7968
    %v7970 = vsel %vm91, %v7939, 0.0
    %7971 = vadd.xlane.f32.xlu0 %v7970
    %v7972 = vpop.xlane.xlu0 %7971
    %v7973 = vsel %vm91, %v7941, 0.0
    %7974 = vadd.xlane.f32.xlu0 %v7973
    %v7975 = vpop.xlane.xlu0 %7974
    %v7976 = vsel %vm91, %v7943, 0.0
    %7977 = vadd.xlane.f32.xlu0 %v7976
    %v7978 = vpop.xlane.xlu0 %7977
    %v7979 = vsel %vm91, %v7945, 0.0
    %7980 = vadd.xlane.f32.xlu0 %v7979
    %v7981 = vpop.xlane.xlu0 %7980
    %v7982 = vsel %vm91, %v7947, 0.0
    %7983 = vadd.xlane.f32.xlu0 %v7982
    %v7984 = vpop.xlane.xlu0 %7983
    %v7985 = vsel %vm91, %v7949, 0.0
    %7986 = vadd.xlane.f32.xlu0 %v7985
    %v7987 = vpop.xlane.xlu0 %7986
    %v7988 = vsel %vm91, %v7951, 0.0
    %7989 = vadd.xlane.f32.xlu0 %v7988
    %v7990 = vpop.xlane.xlu0 %7989
    %v7991 = vsel %vm91, %v7953, 0.0
    %7992 = vadd.xlane.f32.xlu0 %v7991
    %v7993 = vpop.xlane.xlu0 %7992
    %v7994 = vsel %vm91, %v7955, 0.0
    %7995 = vadd.xlane.f32.xlu0 %v7994
    %v7996 = vpop.xlane.xlu0 %7995
    %v7997 = vsel %vm91, %v7957, 0.0
    %7998 = vadd.xlane.f32.xlu0 %v7997
    %v7999 = vpop.xlane.xlu0 %7998
    %v8000 = vsel %vm91, %v7959, 0.0
    %8001 = vadd.xlane.f32.xlu0 %v8000
    %v8002 = vpop.xlane.xlu0 %8001
    %v8003 = vsel %vm91, %v7961, 0.0
    %8004 = vadd.xlane.f32.xlu0 %v8003
    %v8005 = vpop.xlane.xlu0 %8004
    %v8006 = vsel %vm91, %v7963, 0.0
    %8007 = vadd.xlane.f32.xlu0 %v8006
    %v8008 = vpop.xlane.xlu0 %8007
    %v8009 = vsel %vm91, %v7965, 0.0
    %8010 = vadd.xlane.f32.xlu0 %v8009
    %v8011 = vpop.xlane.xlu0 %8010
    %v8012 = vsel %vm91, %v7967, 0.0
    %8013 = vadd.xlane.f32.xlu0 %v8012
    %v8014 = vpop.xlane.xlu0 %8013
    %v8015 = vsel %vm91, %v7969, 0.0
    %8016 = vadd.xlane.f32.xlu0 %v8015
    %v8017 = vpop.xlane.xlu0 %8016
    %v8018 = vrcp.pop %v7972
    %v8019 = vmul.f32 %v7972, %v8018
    %v8020 = vsub.f32 1.0, %v8019
    %v8021 = vmul.f32 %v8018, %v8020
    %v8022 = vadd.f32 %v8018, %v8021
    %vm8023 = vweird.f32 %v7972
    %vm8024 = vweird.f32 %v8018
    %vm8025 = vmor %vm8023, %vm8024
    %v8026 = vsel %vm8025, %v8018, %v8022
    %v8027 = vand.u32 2147483647, %v7972
    %vm8028 = vcmp.eq.f32.partialorder %v8027, 8.507059e+37
    %v8029 = vand.u32 %v7972, 2147483648
    %v8030 = vor.u32 1.1754944e-38, %v8029
    %v8031 = vsel %vm8028, %v8030, %v8026
    %v8032 = vrcp.pop %v7975
    %v8033 = vmul.f32 %v7975, %v8032
    %v8034 = vsub.f32 1.0, %v8033
    %v8035 = vmul.f32 %v8032, %v8034
    %v8036 = vadd.f32 %v8032, %v8035
    %vm8037 = vweird.f32 %v7975
    %vm8038 = vweird.f32 %v8032
    %vm8039 = vmor %vm8037, %vm8038
    %v8040 = vsel %vm8039, %v8032, %v8036
    %v8041 = vand.u32 2147483647, %v7975
    %vm8042 = vcmp.eq.f32.partialorder %v8041, 8.507059e+37
    %v8043 = vand.u32 %v7975, 2147483648
    %v8044 = vor.u32 1.1754944e-38, %v8043
    %v8045 = vsel %vm8042, %v8044, %v8040
    %v8046 = vrcp.pop %v7978
    %v8047 = vmul.f32 %v7978, %v8046
    %v8048 = vsub.f32 1.0, %v8047
    %v8049 = vmul.f32 %v8046, %v8048
    %v8050 = vadd.f32 %v8046, %v8049
    %vm8051 = vweird.f32 %v7978
    %vm8052 = vweird.f32 %v8046
    %vm8053 = vmor %vm8051, %vm8052
    %v8054 = vsel %vm8053, %v8046, %v8050
    %v8055 = vand.u32 2147483647, %v7978
    %vm8056 = vcmp.eq.f32.partialorder %v8055, 8.507059e+37
    %v8057 = vand.u32 %v7978, 2147483648
    %v8058 = vor.u32 1.1754944e-38, %v8057
    %v8059 = vsel %vm8056, %v8058, %v8054
    %v8060 = vrcp.pop %v7981
    %v8061 = vmul.f32 %v7981, %v8060
    %v8062 = vsub.f32 1.0, %v8061
    %v8063 = vmul.f32 %v8060, %v8062
    %v8064 = vadd.f32 %v8060, %v8063
    %vm8065 = vweird.f32 %v7981
    %vm8066 = vweird.f32 %v8060
    %vm8067 = vmor %vm8065, %vm8066
    %v8068 = vsel %vm8067, %v8060, %v8064
    %v8069 = vand.u32 2147483647, %v7981
    %vm8070 = vcmp.eq.f32.partialorder %v8069, 8.507059e+37
    %v8071 = vand.u32 %v7981, 2147483648
    %v8072 = vor.u32 1.1754944e-38, %v8071
    %v8073 = vsel %vm8070, %v8072, %v8068
    %v8074 = vrcp.pop %v7984
    %v8075 = vmul.f32 %v7984, %v8074
    %v8076 = vsub.f32 1.0, %v8075
    %v8077 = vmul.f32 %v8074, %v8076
    %v8078 = vadd.f32 %v8074, %v8077
    %vm8079 = vweird.f32 %v7984
    %vm8080 = vweird.f32 %v8074
    %vm8081 = vmor %vm8079, %vm8080
    %v8082 = vsel %vm8081, %v8074, %v8078
    %v8083 = vand.u32 2147483647, %v7984
    %vm8084 = vcmp.eq.f32.partialorder %v8083, 8.507059e+37
    %v8085 = vand.u32 %v7984, 2147483648
    %v8086 = vor.u32 1.1754944e-38, %v8085
    %v8087 = vsel %vm8084, %v8086, %v8082
    %v8088 = vrcp.pop %v7987
    %v8089 = vmul.f32 %v7987, %v8088
    %v8090 = vsub.f32 1.0, %v8089
    %v8091 = vmul.f32 %v8088, %v8090
    %v8092 = vadd.f32 %v8088, %v8091
    %vm8093 = vweird.f32 %v7987
    %vm8094 = vweird.f32 %v8088
    %vm8095 = vmor %vm8093, %vm8094
    %v8096 = vsel %vm8095, %v8088, %v8092
    %v8097 = vand.u32 2147483647, %v7987
    %vm8098 = vcmp.eq.f32.partialorder %v8097, 8.507059e+37
    %v8099 = vand.u32 %v7987, 2147483648
    %v8100 = vor.u32 1.1754944e-38, %v8099
    %v8101 = vsel %vm8098, %v8100, %v8096
    %v8102 = vrcp.pop %v7990
    %v8103 = vmul.f32 %v7990, %v8102
    %v8104 = vsub.f32 1.0, %v8103
    %v8105 = vmul.f32 %v8102, %v8104
    %v8106 = vadd.f32 %v8102, %v8105
    %vm8107 = vweird.f32 %v7990
    %vm8108 = vweird.f32 %v8102
    %vm8109 = vmor %vm8107, %vm8108
    %v8110 = vsel %vm8109, %v8102, %v8106
    %v8111 = vand.u32 2147483647, %v7990
    %vm8112 = vcmp.eq.f32.partialorder %v8111, 8.507059e+37
    %v8113 = vand.u32 %v7990, 2147483648
    %v8114 = vor.u32 1.1754944e-38, %v8113
    %v8115 = vsel %vm8112, %v8114, %v8110
    %v8116 = vrcp.pop %v7993
    %v8117 = vmul.f32 %v7993, %v8116
    %v8118 = vsub.f32 1.0, %v8117
    %v8119 = vmul.f32 %v8116, %v8118
    %v8120 = vadd.f32 %v8116, %v8119
    %vm8121 = vweird.f32 %v7993
    %vm8122 = vweird.f32 %v8116
    %vm8123 = vmor %vm8121, %vm8122
    %v8124 = vsel %vm8123, %v8116, %v8120
    %v8125 = vand.u32 2147483647, %v7993
    %vm8126 = vcmp.eq.f32.partialorder %v8125, 8.507059e+37
    %v8127 = vand.u32 %v7993, 2147483648
    %v8128 = vor.u32 1.1754944e-38, %v8127
    %v8129 = vsel %vm8126, %v8128, %v8124
    %v8130 = vrcp.pop %v7996
    %v8131 = vmul.f32 %v7996, %v8130
    %v8132 = vsub.f32 1.0, %v8131
    %v8133 = vmul.f32 %v8130, %v8132
    %v8134 = vadd.f32 %v8130, %v8133
    %vm8135 = vweird.f32 %v7996
    %vm8136 = vweird.f32 %v8130
    %vm8137 = vmor %vm8135, %vm8136
    %v8138 = vsel %vm8137, %v8130, %v8134
    %v8139 = vand.u32 2147483647, %v7996
    %vm8140 = vcmp.eq.f32.partialorder %v8139, 8.507059e+37
    %v8141 = vand.u32 %v7996, 2147483648
    %v8142 = vor.u32 1.1754944e-38, %v8141
    %v8143 = vsel %vm8140, %v8142, %v8138
    %v8144 = vrcp.pop %v7999
    %v8145 = vmul.f32 %v7999, %v8144
    %v8146 = vsub.f32 1.0, %v8145
    %v8147 = vmul.f32 %v8144, %v8146
    %v8148 = vadd.f32 %v8144, %v8147
    %vm8149 = vweird.f32 %v7999
    %vm8150 = vweird.f32 %v8144
    %vm8151 = vmor %vm8149, %vm8150
    %v8152 = vsel %vm8151, %v8144, %v8148
    %v8153 = vand.u32 2147483647, %v7999
    %vm8154 = vcmp.eq.f32.partialorder %v8153, 8.507059e+37
    %v8155 = vand.u32 %v7999, 2147483648
    %v8156 = vor.u32 1.1754944e-38, %v8155
    %v8157 = vsel %vm8154, %v8156, %v8152
    %v8158 = vrcp.pop %v8002
    %v8159 = vmul.f32 %v8002, %v8158
    %v8160 = vsub.f32 1.0, %v8159
    %v8161 = vmul.f32 %v8158, %v8160
    %v8162 = vadd.f32 %v8158, %v8161
    %vm8163 = vweird.f32 %v8002
    %vm8164 = vweird.f32 %v8158
    %vm8165 = vmor %vm8163, %vm8164
    %v8166 = vsel %vm8165, %v8158, %v8162
    %v8167 = vand.u32 2147483647, %v8002
    %vm8168 = vcmp.eq.f32.partialorder %v8167, 8.507059e+37
    %v8169 = vand.u32 %v8002, 2147483648
    %v8170 = vor.u32 1.1754944e-38, %v8169
    %v8171 = vsel %vm8168, %v8170, %v8166
    %v8172 = vrcp.pop %v8005
    %v8173 = vmul.f32 %v8005, %v8172
    %v8174 = vsub.f32 1.0, %v8173
    %v8175 = vmul.f32 %v8172, %v8174
    %v8176 = vadd.f32 %v8172, %v8175
    %vm8177 = vweird.f32 %v8005
    %vm8178 = vweird.f32 %v8172
    %vm8179 = vmor %vm8177, %vm8178
    %v8180 = vsel %vm8179, %v8172, %v8176
    %v8181 = vand.u32 2147483647, %v8005
    %vm8182 = vcmp.eq.f32.partialorder %v8181, 8.507059e+37
    %v8183 = vand.u32 %v8005, 2147483648
    %v8184 = vor.u32 1.1754944e-38, %v8183
    %v8185 = vsel %vm8182, %v8184, %v8180
    %v8186 = vrcp.pop %v8008
    %v8187 = vmul.f32 %v8008, %v8186
    %v8188 = vsub.f32 1.0, %v8187
    %v8189 = vmul.f32 %v8186, %v8188
    %v8190 = vadd.f32 %v8186, %v8189
    %vm8191 = vweird.f32 %v8008
    %vm8192 = vweird.f32 %v8186
    %vm8193 = vmor %vm8191, %vm8192
    %v8194 = vsel %vm8193, %v8186, %v8190
    %v8195 = vand.u32 2147483647, %v8008
    %vm8196 = vcmp.eq.f32.partialorder %v8195, 8.507059e+37
    %v8197 = vand.u32 %v8008, 2147483648
    %v8198 = vor.u32 1.1754944e-38, %v8197
    %v8199 = vsel %vm8196, %v8198, %v8194
    %v8200 = vrcp.pop %v8011
    %v8201 = vmul.f32 %v8011, %v8200
    %v8202 = vsub.f32 1.0, %v8201
    %v8203 = vmul.f32 %v8200, %v8202
    %v8204 = vadd.f32 %v8200, %v8203
    %vm8205 = vweird.f32 %v8011
    %vm8206 = vweird.f32 %v8200
    %vm8207 = vmor %vm8205, %vm8206
    %v8208 = vsel %vm8207, %v8200, %v8204
    %v8209 = vand.u32 2147483647, %v8011
    %vm8210 = vcmp.eq.f32.partialorder %v8209, 8.507059e+37
    %v8211 = vand.u32 %v8011, 2147483648
    %v8212 = vor.u32 1.1754944e-38, %v8211
    %v8213 = vsel %vm8210, %v8212, %v8208
    %v8214 = vrcp.pop %v8014
    %v8215 = vmul.f32 %v8014, %v8214
    %v8216 = vsub.f32 1.0, %v8215
    %v8217 = vmul.f32 %v8214, %v8216
    %v8218 = vadd.f32 %v8214, %v8217
    %vm8219 = vweird.f32 %v8014
    %vm8220 = vweird.f32 %v8214
    %vm8221 = vmor %vm8219, %vm8220
    %v8222 = vsel %vm8221, %v8214, %v8218
    %v8223 = vand.u32 2147483647, %v8014
    %vm8224 = vcmp.eq.f32.partialorder %v8223, 8.507059e+37
    %v8225 = vand.u32 %v8014, 2147483648
    %v8226 = vor.u32 1.1754944e-38, %v8225
    %v8227 = vsel %vm8224, %v8226, %v8222
    %v8228 = vrcp.pop %v8017
    %v8229 = vmul.f32 %v8017, %v8228
    %v8230 = vsub.f32 1.0, %v8229
    %v8231 = vmul.f32 %v8228, %v8230
    %v8232 = vadd.f32 %v8228, %v8231
    %vm8233 = vweird.f32 %v8017
    %vm8234 = vweird.f32 %v8228
    %vm8235 = vmor %vm8233, %vm8234
    %v8236 = vsel %vm8235, %v8228, %v8232
    %v8237 = vand.u32 2147483647, %v8017
    %vm8238 = vcmp.eq.f32.partialorder %v8237, 8.507059e+37
    %v8239 = vand.u32 %v8017, 2147483648
    %v8240 = vor.u32 1.1754944e-38, %v8239
    %v8241 = vsel %vm8238, %v8240, %v8236
    %v8242 = vmul.f32 %v7939, %v8031
    %v8243 = vmul.f32 %v7941, %v8045
    %v8244 = vmul.f32 %v7943, %v8059
    %v8245 = vmul.f32 %v7945, %v8073
    %v8246 = vmul.f32 %v7947, %v8087
    %v8247 = vmul.f32 %v7949, %v8101
    %v8248 = vmul.f32 %v7951, %v8115
    %v8249 = vmul.f32 %v7953, %v8129
    %v8250 = vmul.f32 %v7955, %v8143
    %v8251 = vmul.f32 %v7957, %v8157
    %v8252 = vmul.f32 %v7959, %v8171
    %v8253 = vmul.f32 %v7961, %v8185
    %v8254 = vmul.f32 %v7963, %v8199
    %v8255 = vmul.f32 %v7965, %v8213
    %v8256 = vmul.f32 %v7967, %v8227
    %v8257 = vmul.f32 %v7969, %v8241
    %8259 = vrot.lane.b32.xlu0 %v7426, 96
    %v8260 = vpop.permute.xlu0 %8259
    %v8263 = vsel %vm91, %v8242, 0
    %8265 = vmatpush.msra.mxu0 0.0
    %8266 = vmatpush.msra.mxu0 0.0
    %8267 = vmatpush.msra.mxu0 0.0
    %8268 = vmatpush.msra.mxu0 0.0
    %8269 = vmatpush.msra.mxu0 0.0
    %8270 = vmatpush.msra.mxu0 0.0
    %8271 = vmatpush.msra.mxu0 0.0
    %8272 = vmatpush.msra.mxu0 0.0
    %8273 = vmatpush.msra.mxu0 0.0
    %8274 = vmatpush.msra.mxu0 0.0
    %8275 = vmatpush.msra.mxu0 0.0
    %8276 = vmatpush.msra.mxu0 0.0
    %8277 = vmatpush.msra.mxu0 0.0
    %8278 = vmatpush.msra.mxu0 0.0
    %8279 = vmatpush.msra.mxu0 0.0
    %8280 = vmatpush.msra.mxu0 %v8260
    %8281 = vmatmul.f32.gmra.mxu0 %v8263
    %v8282 = vpop.f32.mrf.mxu0
    %v8283 = vadd.f32 0.0, %v8282
    %8284 = vdwg.mxu0
    %8286 = vrot.lane.b32.xlu0 %v7427, 96
    %v8287 = vpop.permute.xlu0 %8286
    %v8290 = vsel %vm91, %v8243, 0
    %8292 = vmatpush.msra.mxu0 0.0
    %8293 = vmatpush.msra.mxu0 0.0
    %8294 = vmatpush.msra.mxu0 0.0
    %8295 = vmatpush.msra.mxu0 0.0
    %8296 = vmatpush.msra.mxu0 0.0
    %8297 = vmatpush.msra.mxu0 0.0
    %8298 = vmatpush.msra.mxu0 0.0
    %8299 = vmatpush.msra.mxu0 0.0
    %8300 = vmatpush.msra.mxu0 0.0
    %8301 = vmatpush.msra.mxu0 0.0
    %8302 = vmatpush.msra.mxu0 0.0
    %8303 = vmatpush.msra.mxu0 0.0
    %8304 = vmatpush.msra.mxu0 0.0
    %8305 = vmatpush.msra.mxu0 0.0
    %8306 = vmatpush.msra.mxu0 0.0
    %8307 = vmatpush.msra.mxu0 %v8287
    %8308 = vmatmul.f32.gmra.mxu0 %v8290
    %v8309 = vpop.f32.mrf.mxu0
    %v8310 = vadd.f32 0.0, %v8309
    %8311 = vdwg.mxu0
    %8313 = vrot.lane.b32.xlu0 %v7428, 96
    %v8314 = vpop.permute.xlu0 %8313
    %v8317 = vsel %vm91, %v8244, 0
    %8319 = vmatpush.msra.mxu0 0.0
    %8320 = vmatpush.msra.mxu0 0.0
    %8321 = vmatpush.msra.mxu0 0.0
    %8322 = vmatpush.msra.mxu0 0.0
    %8323 = vmatpush.msra.mxu0 0.0
    %8324 = vmatpush.msra.mxu0 0.0
    %8325 = vmatpush.msra.mxu0 0.0
    %8326 = vmatpush.msra.mxu0 0.0
    %8327 = vmatpush.msra.mxu0 0.0
    %8328 = vmatpush.msra.mxu0 0.0
    %8329 = vmatpush.msra.mxu0 0.0
    %8330 = vmatpush.msra.mxu0 0.0
    %8331 = vmatpush.msra.mxu0 0.0
    %8332 = vmatpush.msra.mxu0 0.0
    %8333 = vmatpush.msra.mxu0 0.0
    %8334 = vmatpush.msra.mxu0 %v8314
    %8335 = vmatmul.f32.gmra.mxu0 %v8317
    %v8336 = vpop.f32.mrf.mxu0
    %v8337 = vadd.f32 0.0, %v8336
    %8338 = vdwg.mxu0
    %8340 = vrot.lane.b32.xlu0 %v7429, 96
    %v8341 = vpop.permute.xlu0 %8340
    %v8344 = vsel %vm91, %v8245, 0
    %8346 = vmatpush.msra.mxu0 0.0
    %8347 = vmatpush.msra.mxu0 0.0
    %8348 = vmatpush.msra.mxu0 0.0
    %8349 = vmatpush.msra.mxu0 0.0
    %8350 = vmatpush.msra.mxu0 0.0
    %8351 = vmatpush.msra.mxu0 0.0
    %8352 = vmatpush.msra.mxu0 0.0
    %8353 = vmatpush.msra.mxu0 0.0
    %8354 = vmatpush.msra.mxu0 0.0
    %8355 = vmatpush.msra.mxu0 0.0
    %8356 = vmatpush.msra.mxu0 0.0
    %8357 = vmatpush.msra.mxu0 0.0
    %8358 = vmatpush.msra.mxu0 0.0
    %8359 = vmatpush.msra.mxu0 0.0
    %8360 = vmatpush.msra.mxu0 0.0
    %8361 = vmatpush.msra.mxu0 %v8341
    %8362 = vmatmul.f32.gmra.mxu0 %v8344
    %v8363 = vpop.f32.mrf.mxu0
    %v8364 = vadd.f32 0.0, %v8363
    %8365 = vdwg.mxu0
    %8367 = vrot.lane.b32.xlu0 %v7430, 96
    %v8368 = vpop.permute.xlu0 %8367
    %v8371 = vsel %vm91, %v8246, 0
    %8373 = vmatpush.msra.mxu0 0.0
    %8374 = vmatpush.msra.mxu0 0.0
    %8375 = vmatpush.msra.mxu0 0.0
    %8376 = vmatpush.msra.mxu0 0.0
    %8377 = vmatpush.msra.mxu0 0.0
    %8378 = vmatpush.msra.mxu0 0.0
    %8379 = vmatpush.msra.mxu0 0.0
    %8380 = vmatpush.msra.mxu0 0.0
    %8381 = vmatpush.msra.mxu0 0.0
    %8382 = vmatpush.msra.mxu0 0.0
    %8383 = vmatpush.msra.mxu0 0.0
    %8384 = vmatpush.msra.mxu0 0.0
    %8385 = vmatpush.msra.mxu0 0.0
    %8386 = vmatpush.msra.mxu0 0.0
    %8387 = vmatpush.msra.mxu0 0.0
    %8388 = vmatpush.msra.mxu0 %v8368
    %8389 = vmatmul.f32.gmra.mxu0 %v8371
    %v8390 = vpop.f32.mrf.mxu0
    %v8391 = vadd.f32 0.0, %v8390
    %8392 = vdwg.mxu0
    %8394 = vrot.lane.b32.xlu0 %v7431, 96
    %v8395 = vpop.permute.xlu0 %8394
    %v8398 = vsel %vm91, %v8247, 0
    %8400 = vmatpush.msra.mxu0 0.0
    %8401 = vmatpush.msra.mxu0 0.0
    %8402 = vmatpush.msra.mxu0 0.0
    %8403 = vmatpush.msra.mxu0 0.0
    %8404 = vmatpush.msra.mxu0 0.0
    %8405 = vmatpush.msra.mxu0 0.0
    %8406 = vmatpush.msra.mxu0 0.0
    %8407 = vmatpush.msra.mxu0 0.0
    %8408 = vmatpush.msra.mxu0 0.0
    %8409 = vmatpush.msra.mxu0 0.0
    %8410 = vmatpush.msra.mxu0 0.0
    %8411 = vmatpush.msra.mxu0 0.0
    %8412 = vmatpush.msra.mxu0 0.0
    %8413 = vmatpush.msra.mxu0 0.0
    %8414 = vmatpush.msra.mxu0 0.0
    %8415 = vmatpush.msra.mxu0 %v8395
    %8416 = vmatmul.f32.gmra.mxu0 %v8398
    %v8417 = vpop.f32.mrf.mxu0
    %v8418 = vadd.f32 0.0, %v8417
    %8419 = vdwg.mxu0
    %8421 = vrot.lane.b32.xlu0 %v7432, 96
    %v8422 = vpop.permute.xlu0 %8421
    %v8425 = vsel %vm91, %v8248, 0
    %8427 = vmatpush.msra.mxu0 0.0
    %8428 = vmatpush.msra.mxu0 0.0
    %8429 = vmatpush.msra.mxu0 0.0
    %8430 = vmatpush.msra.mxu0 0.0
    %8431 = vmatpush.msra.mxu0 0.0
    %8432 = vmatpush.msra.mxu0 0.0
    %8433 = vmatpush.msra.mxu0 0.0
    %8434 = vmatpush.msra.mxu0 0.0
    %8435 = vmatpush.msra.mxu0 0.0
    %8436 = vmatpush.msra.mxu0 0.0
    %8437 = vmatpush.msra.mxu0 0.0
    %8438 = vmatpush.msra.mxu0 0.0
    %8439 = vmatpush.msra.mxu0 0.0
    %8440 = vmatpush.msra.mxu0 0.0
    %8441 = vmatpush.msra.mxu0 0.0
    %8442 = vmatpush.msra.mxu0 %v8422
    %8443 = vmatmul.f32.gmra.mxu0 %v8425
    %v8444 = vpop.f32.mrf.mxu0
    %v8445 = vadd.f32 0.0, %v8444
    %8446 = vdwg.mxu0
    %8448 = vrot.lane.b32.xlu0 %v7433, 96
    %v8449 = vpop.permute.xlu0 %8448
    %v8452 = vsel %vm91, %v8249, 0
    %8454 = vmatpush.msra.mxu0 0.0
    %8455 = vmatpush.msra.mxu0 0.0
    %8456 = vmatpush.msra.mxu0 0.0
    %8457 = vmatpush.msra.mxu0 0.0
    %8458 = vmatpush.msra.mxu0 0.0
    %8459 = vmatpush.msra.mxu0 0.0
    %8460 = vmatpush.msra.mxu0 0.0
    %8461 = vmatpush.msra.mxu0 0.0
    %8462 = vmatpush.msra.mxu0 0.0
    %8463 = vmatpush.msra.mxu0 0.0
    %8464 = vmatpush.msra.mxu0 0.0
    %8465 = vmatpush.msra.mxu0 0.0
    %8466 = vmatpush.msra.mxu0 0.0
    %8467 = vmatpush.msra.mxu0 0.0
    %8468 = vmatpush.msra.mxu0 0.0
    %8469 = vmatpush.msra.mxu0 %v8449
    %8470 = vmatmul.f32.gmra.mxu0 %v8452
    %v8471 = vpop.f32.mrf.mxu0
    %v8472 = vadd.f32 0.0, %v8471
    %8473 = vdwg.mxu0
    %8475 = vrot.lane.b32.xlu0 %v7434, 96
    %v8476 = vpop.permute.xlu0 %8475
    %v8479 = vsel %vm91, %v8250, 0
    %8481 = vmatpush.msra.mxu0 0.0
    %8482 = vmatpush.msra.mxu0 0.0
    %8483 = vmatpush.msra.mxu0 0.0
    %8484 = vmatpush.msra.mxu0 0.0
    %8485 = vmatpush.msra.mxu0 0.0
    %8486 = vmatpush.msra.mxu0 0.0
    %8487 = vmatpush.msra.mxu0 0.0
    %8488 = vmatpush.msra.mxu0 0.0
    %8489 = vmatpush.msra.mxu0 0.0
    %8490 = vmatpush.msra.mxu0 0.0
    %8491 = vmatpush.msra.mxu0 0.0
    %8492 = vmatpush.msra.mxu0 0.0
    %8493 = vmatpush.msra.mxu0 0.0
    %8494 = vmatpush.msra.mxu0 0.0
    %8495 = vmatpush.msra.mxu0 0.0
    %8496 = vmatpush.msra.mxu0 %v8476
    %8497 = vmatmul.f32.gmra.mxu0 %v8479
    %v8498 = vpop.f32.mrf.mxu0
    %v8499 = vadd.f32 0.0, %v8498
    %8500 = vdwg.mxu0
    %8502 = vrot.lane.b32.xlu0 %v7435, 96
    %v8503 = vpop.permute.xlu0 %8502
    %v8506 = vsel %vm91, %v8251, 0
    %8508 = vmatpush.msra.mxu0 0.0
    %8509 = vmatpush.msra.mxu0 0.0
    %8510 = vmatpush.msra.mxu0 0.0
    %8511 = vmatpush.msra.mxu0 0.0
    %8512 = vmatpush.msra.mxu0 0.0
    %8513 = vmatpush.msra.mxu0 0.0
    %8514 = vmatpush.msra.mxu0 0.0
    %8515 = vmatpush.msra.mxu0 0.0
    %8516 = vmatpush.msra.mxu0 0.0
    %8517 = vmatpush.msra.mxu0 0.0
    %8518 = vmatpush.msra.mxu0 0.0
    %8519 = vmatpush.msra.mxu0 0.0
    %8520 = vmatpush.msra.mxu0 0.0
    %8521 = vmatpush.msra.mxu0 0.0
    %8522 = vmatpush.msra.mxu0 0.0
    %8523 = vmatpush.msra.mxu0 %v8503
    %8524 = vmatmul.f32.gmra.mxu0 %v8506
    %v8525 = vpop.f32.mrf.mxu0
    %v8526 = vadd.f32 0.0, %v8525
    %8527 = vdwg.mxu0
    %8529 = vrot.lane.b32.xlu0 %v7436, 96
    %v8530 = vpop.permute.xlu0 %8529
    %v8533 = vsel %vm91, %v8252, 0
    %8535 = vmatpush.msra.mxu0 0.0
    %8536 = vmatpush.msra.mxu0 0.0
    %8537 = vmatpush.msra.mxu0 0.0
    %8538 = vmatpush.msra.mxu0 0.0
    %8539 = vmatpush.msra.mxu0 0.0
    %8540 = vmatpush.msra.mxu0 0.0
    %8541 = vmatpush.msra.mxu0 0.0
    %8542 = vmatpush.msra.mxu0 0.0
    %8543 = vmatpush.msra.mxu0 0.0
    %8544 = vmatpush.msra.mxu0 0.0
    %8545 = vmatpush.msra.mxu0 0.0
    %8546 = vmatpush.msra.mxu0 0.0
    %8547 = vmatpush.msra.mxu0 0.0
    %8548 = vmatpush.msra.mxu0 0.0
    %8549 = vmatpush.msra.mxu0 0.0
    %8550 = vmatpush.msra.mxu0 %v8530
    %8551 = vmatmul.f32.gmra.mxu0 %v8533
    %v8552 = vpop.f32.mrf.mxu0
    %v8553 = vadd.f32 0.0, %v8552
    %8554 = vdwg.mxu0
    %8556 = vrot.lane.b32.xlu0 %v7437, 96
    %v8557 = vpop.permute.xlu0 %8556
    %v8560 = vsel %vm91, %v8253, 0
    %8562 = vmatpush.msra.mxu0 0.0
    %8563 = vmatpush.msra.mxu0 0.0
    %8564 = vmatpush.msra.mxu0 0.0
    %8565 = vmatpush.msra.mxu0 0.0
    %8566 = vmatpush.msra.mxu0 0.0
    %8567 = vmatpush.msra.mxu0 0.0
    %8568 = vmatpush.msra.mxu0 0.0
    %8569 = vmatpush.msra.mxu0 0.0
    %8570 = vmatpush.msra.mxu0 0.0
    %8571 = vmatpush.msra.mxu0 0.0
    %8572 = vmatpush.msra.mxu0 0.0
    %8573 = vmatpush.msra.mxu0 0.0
    %8574 = vmatpush.msra.mxu0 0.0
    %8575 = vmatpush.msra.mxu0 0.0
    %8576 = vmatpush.msra.mxu0 0.0
    %8577 = vmatpush.msra.mxu0 %v8557
    %8578 = vmatmul.f32.gmra.mxu0 %v8560
    %v8579 = vpop.f32.mrf.mxu0
    %v8580 = vadd.f32 0.0, %v8579
    %8581 = vdwg.mxu0
    %8583 = vrot.lane.b32.xlu0 %v7438, 96
    %v8584 = vpop.permute.xlu0 %8583
    %v8587 = vsel %vm91, %v8254, 0
    %8589 = vmatpush.msra.mxu0 0.0
    %8590 = vmatpush.msra.mxu0 0.0
    %8591 = vmatpush.msra.mxu0 0.0
    %8592 = vmatpush.msra.mxu0 0.0
    %8593 = vmatpush.msra.mxu0 0.0
    %8594 = vmatpush.msra.mxu0 0.0
    %8595 = vmatpush.msra.mxu0 0.0
    %8596 = vmatpush.msra.mxu0 0.0
    %8597 = vmatpush.msra.mxu0 0.0
    %8598 = vmatpush.msra.mxu0 0.0
    %8599 = vmatpush.msra.mxu0 0.0
    %8600 = vmatpush.msra.mxu0 0.0
    %8601 = vmatpush.msra.mxu0 0.0
    %8602 = vmatpush.msra.mxu0 0.0
    %8603 = vmatpush.msra.mxu0 0.0
    %8604 = vmatpush.msra.mxu0 %v8584
    %8605 = vmatmul.f32.gmra.mxu0 %v8587
    %v8606 = vpop.f32.mrf.mxu0
    %v8607 = vadd.f32 0.0, %v8606
    %8608 = vdwg.mxu0
    %8610 = vrot.lane.b32.xlu0 %v7439, 96
    %v8611 = vpop.permute.xlu0 %8610
    %v8614 = vsel %vm91, %v8255, 0
    %8616 = vmatpush.msra.mxu0 0.0
    %8617 = vmatpush.msra.mxu0 0.0
    %8618 = vmatpush.msra.mxu0 0.0
    %8619 = vmatpush.msra.mxu0 0.0
    %8620 = vmatpush.msra.mxu0 0.0
    %8621 = vmatpush.msra.mxu0 0.0
    %8622 = vmatpush.msra.mxu0 0.0
    %8623 = vmatpush.msra.mxu0 0.0
    %8624 = vmatpush.msra.mxu0 0.0
    %8625 = vmatpush.msra.mxu0 0.0
    %8626 = vmatpush.msra.mxu0 0.0
    %8627 = vmatpush.msra.mxu0 0.0
    %8628 = vmatpush.msra.mxu0 0.0
    %8629 = vmatpush.msra.mxu0 0.0
    %8630 = vmatpush.msra.mxu0 0.0
    %8631 = vmatpush.msra.mxu0 %v8611
    %8632 = vmatmul.f32.gmra.mxu0 %v8614
    %v8633 = vpop.f32.mrf.mxu0
    %v8634 = vadd.f32 0.0, %v8633
    %8635 = vdwg.mxu0
    %8637 = vrot.lane.b32.xlu0 %v7440, 96
    %v8638 = vpop.permute.xlu0 %8637
    %v8641 = vsel %vm91, %v8256, 0
    %8643 = vmatpush.msra.mxu0 0.0
    %8644 = vmatpush.msra.mxu0 0.0
    %8645 = vmatpush.msra.mxu0 0.0
    %8646 = vmatpush.msra.mxu0 0.0
    %8647 = vmatpush.msra.mxu0 0.0
    %8648 = vmatpush.msra.mxu0 0.0
    %8649 = vmatpush.msra.mxu0 0.0
    %8650 = vmatpush.msra.mxu0 0.0
    %8651 = vmatpush.msra.mxu0 0.0
    %8652 = vmatpush.msra.mxu0 0.0
    %8653 = vmatpush.msra.mxu0 0.0
    %8654 = vmatpush.msra.mxu0 0.0
    %8655 = vmatpush.msra.mxu0 0.0
    %8656 = vmatpush.msra.mxu0 0.0
    %8657 = vmatpush.msra.mxu0 0.0
    %8658 = vmatpush.msra.mxu0 %v8638
    %8659 = vmatmul.f32.gmra.mxu0 %v8641
    %v8660 = vpop.f32.mrf.mxu0
    %v8661 = vadd.f32 0.0, %v8660
    %8662 = vdwg.mxu0
    %8664 = vrot.lane.b32.xlu0 %v7441, 96
    %v8665 = vpop.permute.xlu0 %8664
    %v8668 = vsel %vm91, %v8257, 0
    %8670 = vmatpush.msra.mxu0 0.0
    %8671 = vmatpush.msra.mxu0 0.0
    %8672 = vmatpush.msra.mxu0 0.0
    %8673 = vmatpush.msra.mxu0 0.0
    %8674 = vmatpush.msra.mxu0 0.0
    %8675 = vmatpush.msra.mxu0 0.0
    %8676 = vmatpush.msra.mxu0 0.0
    %8677 = vmatpush.msra.mxu0 0.0
    %8678 = vmatpush.msra.mxu0 0.0
    %8679 = vmatpush.msra.mxu0 0.0
    %8680 = vmatpush.msra.mxu0 0.0
    %8681 = vmatpush.msra.mxu0 0.0
    %8682 = vmatpush.msra.mxu0 0.0
    %8683 = vmatpush.msra.mxu0 0.0
    %8684 = vmatpush.msra.mxu0 0.0
    %8685 = vmatpush.msra.mxu0 %v8665
    %8686 = vmatmul.f32.gmra.mxu0 %v8668
    %v8687 = vpop.f32.mrf.mxu0
    %v8688 = vadd.f32 0.0, %v8687
    %8689 = vdwg.mxu0
    %v8690 = vadd.f32 %v6996, %v8283
    %v8691 = vadd.f32 %v7023, %v8310
    %v8692 = vadd.f32 %v7050, %v8337
    %v8693 = vadd.f32 %v7077, %v8364
    %v8694 = vadd.f32 %v7104, %v8391
    %v8695 = vadd.f32 %v7131, %v8418
    %v8696 = vadd.f32 %v7158, %v8445
    %v8697 = vadd.f32 %v7185, %v8472
    %v8698 = vadd.f32 %v7212, %v8499
    %v8699 = vadd.f32 %v7239, %v8526
    %v8700 = vadd.f32 %v7266, %v8553
    %v8701 = vadd.f32 %v7293, %v8580
    %v8702 = vadd.f32 %v7320, %v8607
    %v8703 = vadd.f32 %v7347, %v8634
    %v8704 = vadd.f32 %v7374, %v8661
    %v8705 = vadd.f32 %v7401, %v8688
    %8707 = vrot.lane.b32.xlu0 %v484, 16
    %v8708 = vpop.permute.xlu0 %8707
    %v8710 = vmul.f32 %v4731, %v8708
    %v8711 = vmul.f32 %v4734, %v8708
    %v8712 = vmul.f32 %v4737, %v8708
    %v8713 = vmul.f32 %v4740, %v8708
    %v8714 = vmul.f32 %v4743, %v8708
    %v8715 = vmul.f32 %v4746, %v8708
    %v8716 = vmul.f32 %v4749, %v8708
    %v8717 = vmul.f32 %v4752, %v8708
    %v8718 = vmul.f32 %v4755, %v8708
    %v8719 = vmul.f32 %v4758, %v8708
    %v8720 = vmul.f32 %v4761, %v8708
    %v8721 = vmul.f32 %v4764, %v8708
    %v8722 = vmul.f32 %v4767, %v8708
    %v8723 = vmul.f32 %v4770, %v8708
    %v8724 = vmul.f32 %v4773, %v8708
    %v8725 = vmul.f32 %v4776, %v8708
    %8726 = vrot.lane.b32.xlu0 %v484, 32
    %v8727 = vpop.permute.xlu0 %8726
    %v8729 = vmul.f32 %v4731, %v8727
    %v8730 = vmul.f32 %v4734, %v8727
    %v8731 = vmul.f32 %v4737, %v8727
    %v8732 = vmul.f32 %v4740, %v8727
    %v8733 = vmul.f32 %v4743, %v8727
    %v8734 = vmul.f32 %v4746, %v8727
    %v8735 = vmul.f32 %v4749, %v8727
    %v8736 = vmul.f32 %v4752, %v8727
    %v8737 = vmul.f32 %v4755, %v8727
    %v8738 = vmul.f32 %v4758, %v8727
    %v8739 = vmul.f32 %v4761, %v8727
    %v8740 = vmul.f32 %v4764, %v8727
    %v8741 = vmul.f32 %v4767, %v8727
    %v8742 = vmul.f32 %v4770, %v8727
    %v8743 = vmul.f32 %v4773, %v8727
    %v8744 = vmul.f32 %v4776, %v8727
    %8746 = vrot.lane.b32.xlu0 %v8710, 112
    %v8747 = vpop.permute.xlu0 %8746
    %v8748 = vsel %vm273, %v8747, 0
    %8750 = vmatpush.xpose.msra.mxu0 0.0
    %8751 = vmatpush.xpose.msra.mxu0 0.0
    %8752 = vmatpush.xpose.msra.mxu0 0.0
    %8753 = vmatpush.xpose.msra.mxu0 0.0
    %8754 = vmatpush.xpose.msra.mxu0 0.0
    %8755 = vmatpush.xpose.msra.mxu0 0.0
    %8756 = vmatpush.xpose.msra.mxu0 0.0
    %8757 = vmatpush.xpose.msra.mxu0 0.0
    %8758 = vmatpush.xpose.msra.mxu0 0.0
    %8759 = vmatpush.xpose.msra.mxu0 0.0
    %8760 = vmatpush.xpose.msra.mxu0 0.0
    %8761 = vmatpush.xpose.msra.mxu0 0.0
    %8762 = vmatpush.xpose.msra.mxu0 0.0
    %8763 = vmatpush.xpose.msra.mxu0 0.0
    %8764 = vmatpush.xpose.msra.mxu0 0.0
    %8765 = vmatpush.xpose.msra.mxu0 %v8748
    %8766 = vmatmul.f32.gmra.mxu0 %v4822
    %v8767 = vpop.f32.mrf.mxu0
    %v8768 = vadd.f32 0.0, %v8767
    %8769 = vdwg.mxu0
    %8771 = vrot.lane.b32.xlu0 %v8711, 112
    %v8772 = vpop.permute.xlu0 %8771
    %v8773 = vsel %vm273, %v8772, 0
    %8775 = vmatpush.xpose.msra.mxu0 0.0
    %8776 = vmatpush.xpose.msra.mxu0 0.0
    %8777 = vmatpush.xpose.msra.mxu0 0.0
    %8778 = vmatpush.xpose.msra.mxu0 0.0
    %8779 = vmatpush.xpose.msra.mxu0 0.0
    %8780 = vmatpush.xpose.msra.mxu0 0.0
    %8781 = vmatpush.xpose.msra.mxu0 0.0
    %8782 = vmatpush.xpose.msra.mxu0 0.0
    %8783 = vmatpush.xpose.msra.mxu0 0.0
    %8784 = vmatpush.xpose.msra.mxu0 0.0
    %8785 = vmatpush.xpose.msra.mxu0 0.0
    %8786 = vmatpush.xpose.msra.mxu0 0.0
    %8787 = vmatpush.xpose.msra.mxu0 0.0
    %8788 = vmatpush.xpose.msra.mxu0 0.0
    %8789 = vmatpush.xpose.msra.mxu0 0.0
    %8790 = vmatpush.xpose.msra.mxu0 %v8773
    %8791 = vmatmul.f32.gmra.mxu0 %v4850
    %v8792 = vpop.f32.mrf.mxu0
    %v8793 = vadd.f32 0.0, %v8792
    %8794 = vdwg.mxu0
    %8796 = vrot.lane.b32.xlu0 %v8712, 112
    %v8797 = vpop.permute.xlu0 %8796
    %v8798 = vsel %vm273, %v8797, 0
    %8800 = vmatpush.xpose.msra.mxu0 0.0
    %8801 = vmatpush.xpose.msra.mxu0 0.0
    %8802 = vmatpush.xpose.msra.mxu0 0.0
    %8803 = vmatpush.xpose.msra.mxu0 0.0
    %8804 = vmatpush.xpose.msra.mxu0 0.0
    %8805 = vmatpush.xpose.msra.mxu0 0.0
    %8806 = vmatpush.xpose.msra.mxu0 0.0
    %8807 = vmatpush.xpose.msra.mxu0 0.0
    %8808 = vmatpush.xpose.msra.mxu0 0.0
    %8809 = vmatpush.xpose.msra.mxu0 0.0
    %8810 = vmatpush.xpose.msra.mxu0 0.0
    %8811 = vmatpush.xpose.msra.mxu0 0.0
    %8812 = vmatpush.xpose.msra.mxu0 0.0
    %8813 = vmatpush.xpose.msra.mxu0 0.0
    %8814 = vmatpush.xpose.msra.mxu0 0.0
    %8815 = vmatpush.xpose.msra.mxu0 %v8798
    %8816 = vmatmul.f32.gmra.mxu0 %v4878
    %v8817 = vpop.f32.mrf.mxu0
    %v8818 = vadd.f32 0.0, %v8817
    %8819 = vdwg.mxu0
    %8821 = vrot.lane.b32.xlu0 %v8713, 112
    %v8822 = vpop.permute.xlu0 %8821
    %v8823 = vsel %vm273, %v8822, 0
    %8825 = vmatpush.xpose.msra.mxu0 0.0
    %8826 = vmatpush.xpose.msra.mxu0 0.0
    %8827 = vmatpush.xpose.msra.mxu0 0.0
    %8828 = vmatpush.xpose.msra.mxu0 0.0
    %8829 = vmatpush.xpose.msra.mxu0 0.0
    %8830 = vmatpush.xpose.msra.mxu0 0.0
    %8831 = vmatpush.xpose.msra.mxu0 0.0
    %8832 = vmatpush.xpose.msra.mxu0 0.0
    %8833 = vmatpush.xpose.msra.mxu0 0.0
    %8834 = vmatpush.xpose.msra.mxu0 0.0
    %8835 = vmatpush.xpose.msra.mxu0 0.0
    %8836 = vmatpush.xpose.msra.mxu0 0.0
    %8837 = vmatpush.xpose.msra.mxu0 0.0
    %8838 = vmatpush.xpose.msra.mxu0 0.0
    %8839 = vmatpush.xpose.msra.mxu0 0.0
    %8840 = vmatpush.xpose.msra.mxu0 %v8823
    %8841 = vmatmul.f32.gmra.mxu0 %v4906
    %v8842 = vpop.f32.mrf.mxu0
    %v8843 = vadd.f32 0.0, %v8842
    %8844 = vdwg.mxu0
    %8846 = vrot.lane.b32.xlu0 %v8714, 112
    %v8847 = vpop.permute.xlu0 %8846
    %v8848 = vsel %vm273, %v8847, 0
    %8850 = vmatpush.xpose.msra.mxu0 0.0
    %8851 = vmatpush.xpose.msra.mxu0 0.0
    %8852 = vmatpush.xpose.msra.mxu0 0.0
    %8853 = vmatpush.xpose.msra.mxu0 0.0
    %8854 = vmatpush.xpose.msra.mxu0 0.0
    %8855 = vmatpush.xpose.msra.mxu0 0.0
    %8856 = vmatpush.xpose.msra.mxu0 0.0
    %8857 = vmatpush.xpose.msra.mxu0 0.0
    %8858 = vmatpush.xpose.msra.mxu0 0.0
    %8859 = vmatpush.xpose.msra.mxu0 0.0
    %8860 = vmatpush.xpose.msra.mxu0 0.0
    %8861 = vmatpush.xpose.msra.mxu0 0.0
    %8862 = vmatpush.xpose.msra.mxu0 0.0
    %8863 = vmatpush.xpose.msra.mxu0 0.0
    %8864 = vmatpush.xpose.msra.mxu0 0.0
    %8865 = vmatpush.xpose.msra.mxu0 %v8848
    %8866 = vmatmul.f32.gmra.mxu0 %v4934
    %v8867 = vpop.f32.mrf.mxu0
    %v8868 = vadd.f32 0.0, %v8867
    %8869 = vdwg.mxu0
    %8871 = vrot.lane.b32.xlu0 %v8715, 112
    %v8872 = vpop.permute.xlu0 %8871
    %v8873 = vsel %vm273, %v8872, 0
    %8875 = vmatpush.xpose.msra.mxu0 0.0
    %8876 = vmatpush.xpose.msra.mxu0 0.0
    %8877 = vmatpush.xpose.msra.mxu0 0.0
    %8878 = vmatpush.xpose.msra.mxu0 0.0
    %8879 = vmatpush.xpose.msra.mxu0 0.0
    %8880 = vmatpush.xpose.msra.mxu0 0.0
    %8881 = vmatpush.xpose.msra.mxu0 0.0
    %8882 = vmatpush.xpose.msra.mxu0 0.0
    %8883 = vmatpush.xpose.msra.mxu0 0.0
    %8884 = vmatpush.xpose.msra.mxu0 0.0
    %8885 = vmatpush.xpose.msra.mxu0 0.0
    %8886 = vmatpush.xpose.msra.mxu0 0.0
    %8887 = vmatpush.xpose.msra.mxu0 0.0
    %8888 = vmatpush.xpose.msra.mxu0 0.0
    %8889 = vmatpush.xpose.msra.mxu0 0.0
    %8890 = vmatpush.xpose.msra.mxu0 %v8873
    %8891 = vmatmul.f32.gmra.mxu0 %v4962
    %v8892 = vpop.f32.mrf.mxu0
    %v8893 = vadd.f32 0.0, %v8892
    %8894 = vdwg.mxu0
    %8896 = vrot.lane.b32.xlu0 %v8716, 112
    %v8897 = vpop.permute.xlu0 %8896
    %v8898 = vsel %vm273, %v8897, 0
    %8900 = vmatpush.xpose.msra.mxu0 0.0
    %8901 = vmatpush.xpose.msra.mxu0 0.0
    %8902 = vmatpush.xpose.msra.mxu0 0.0
    %8903 = vmatpush.xpose.msra.mxu0 0.0
    %8904 = vmatpush.xpose.msra.mxu0 0.0
    %8905 = vmatpush.xpose.msra.mxu0 0.0
    %8906 = vmatpush.xpose.msra.mxu0 0.0
    %8907 = vmatpush.xpose.msra.mxu0 0.0
    %8908 = vmatpush.xpose.msra.mxu0 0.0
    %8909 = vmatpush.xpose.msra.mxu0 0.0
    %8910 = vmatpush.xpose.msra.mxu0 0.0
    %8911 = vmatpush.xpose.msra.mxu0 0.0
    %8912 = vmatpush.xpose.msra.mxu0 0.0
    %8913 = vmatpush.xpose.msra.mxu0 0.0
    %8914 = vmatpush.xpose.msra.mxu0 0.0
    %8915 = vmatpush.xpose.msra.mxu0 %v8898
    %8916 = vmatmul.f32.gmra.mxu0 %v4990
    %v8917 = vpop.f32.mrf.mxu0
    %v8918 = vadd.f32 0.0, %v8917
    %8919 = vdwg.mxu0
    %8921 = vrot.lane.b32.xlu0 %v8717, 112
    %v8922 = vpop.permute.xlu0 %8921
    %v8923 = vsel %vm273, %v8922, 0
    %8925 = vmatpush.xpose.msra.mxu0 0.0
    %8926 = vmatpush.xpose.msra.mxu0 0.0
    %8927 = vmatpush.xpose.msra.mxu0 0.0
    %8928 = vmatpush.xpose.msra.mxu0 0.0
    %8929 = vmatpush.xpose.msra.mxu0 0.0
    %8930 = vmatpush.xpose.msra.mxu0 0.0
    %8931 = vmatpush.xpose.msra.mxu0 0.0
    %8932 = vmatpush.xpose.msra.mxu0 0.0
    %8933 = vmatpush.xpose.msra.mxu0 0.0
    %8934 = vmatpush.xpose.msra.mxu0 0.0
    %8935 = vmatpush.xpose.msra.mxu0 0.0
    %8936 = vmatpush.xpose.msra.mxu0 0.0
    %8937 = vmatpush.xpose.msra.mxu0 0.0
    %8938 = vmatpush.xpose.msra.mxu0 0.0
    %8939 = vmatpush.xpose.msra.mxu0 0.0
    %8940 = vmatpush.xpose.msra.mxu0 %v8923
    %8941 = vmatmul.f32.gmra.mxu0 %v5018
    %v8942 = vpop.f32.mrf.mxu0
    %v8943 = vadd.f32 0.0, %v8942
    %8944 = vdwg.mxu0
    %8946 = vrot.lane.b32.xlu0 %v8718, 112
    %v8947 = vpop.permute.xlu0 %8946
    %v8948 = vsel %vm273, %v8947, 0
    %8950 = vmatpush.xpose.msra.mxu0 0.0
    %8951 = vmatpush.xpose.msra.mxu0 0.0
    %8952 = vmatpush.xpose.msra.mxu0 0.0
    %8953 = vmatpush.xpose.msra.mxu0 0.0
    %8954 = vmatpush.xpose.msra.mxu0 0.0
    %8955 = vmatpush.xpose.msra.mxu0 0.0
    %8956 = vmatpush.xpose.msra.mxu0 0.0
    %8957 = vmatpush.xpose.msra.mxu0 0.0
    %8958 = vmatpush.xpose.msra.mxu0 0.0
    %8959 = vmatpush.xpose.msra.mxu0 0.0
    %8960 = vmatpush.xpose.msra.mxu0 0.0
    %8961 = vmatpush.xpose.msra.mxu0 0.0
    %8962 = vmatpush.xpose.msra.mxu0 0.0
    %8963 = vmatpush.xpose.msra.mxu0 0.0
    %8964 = vmatpush.xpose.msra.mxu0 0.0
    %8965 = vmatpush.xpose.msra.mxu0 %v8948
    %8966 = vmatmul.f32.gmra.mxu0 %v5046
    %v8967 = vpop.f32.mrf.mxu0
    %v8968 = vadd.f32 0.0, %v8967
    %8969 = vdwg.mxu0
    %8971 = vrot.lane.b32.xlu0 %v8719, 112
    %v8972 = vpop.permute.xlu0 %8971
    %v8973 = vsel %vm273, %v8972, 0
    %8975 = vmatpush.xpose.msra.mxu0 0.0
    %8976 = vmatpush.xpose.msra.mxu0 0.0
    %8977 = vmatpush.xpose.msra.mxu0 0.0
    %8978 = vmatpush.xpose.msra.mxu0 0.0
    %8979 = vmatpush.xpose.msra.mxu0 0.0
    %8980 = vmatpush.xpose.msra.mxu0 0.0
    %8981 = vmatpush.xpose.msra.mxu0 0.0
    %8982 = vmatpush.xpose.msra.mxu0 0.0
    %8983 = vmatpush.xpose.msra.mxu0 0.0
    %8984 = vmatpush.xpose.msra.mxu0 0.0
    %8985 = vmatpush.xpose.msra.mxu0 0.0
    %8986 = vmatpush.xpose.msra.mxu0 0.0
    %8987 = vmatpush.xpose.msra.mxu0 0.0
    %8988 = vmatpush.xpose.msra.mxu0 0.0
    %8989 = vmatpush.xpose.msra.mxu0 0.0
    %8990 = vmatpush.xpose.msra.mxu0 %v8973
    %8991 = vmatmul.f32.gmra.mxu0 %v5074
    %v8992 = vpop.f32.mrf.mxu0
    %v8993 = vadd.f32 0.0, %v8992
    %8994 = vdwg.mxu0
    %8996 = vrot.lane.b32.xlu0 %v8720, 112
    %v8997 = vpop.permute.xlu0 %8996
    %v8998 = vsel %vm273, %v8997, 0
    %9000 = vmatpush.xpose.msra.mxu0 0.0
    %9001 = vmatpush.xpose.msra.mxu0 0.0
    %9002 = vmatpush.xpose.msra.mxu0 0.0
    %9003 = vmatpush.xpose.msra.mxu0 0.0
    %9004 = vmatpush.xpose.msra.mxu0 0.0
    %9005 = vmatpush.xpose.msra.mxu0 0.0
    %9006 = vmatpush.xpose.msra.mxu0 0.0
    %9007 = vmatpush.xpose.msra.mxu0 0.0
    %9008 = vmatpush.xpose.msra.mxu0 0.0
    %9009 = vmatpush.xpose.msra.mxu0 0.0
    %9010 = vmatpush.xpose.msra.mxu0 0.0
    %9011 = vmatpush.xpose.msra.mxu0 0.0
    %9012 = vmatpush.xpose.msra.mxu0 0.0
    %9013 = vmatpush.xpose.msra.mxu0 0.0
    %9014 = vmatpush.xpose.msra.mxu0 0.0
    %9015 = vmatpush.xpose.msra.mxu0 %v8998
    %9016 = vmatmul.f32.gmra.mxu0 %v5102
    %v9017 = vpop.f32.mrf.mxu0
    %v9018 = vadd.f32 0.0, %v9017
    %9019 = vdwg.mxu0
    %9021 = vrot.lane.b32.xlu0 %v8721, 112
    %v9022 = vpop.permute.xlu0 %9021
    %v9023 = vsel %vm273, %v9022, 0
    %9025 = vmatpush.xpose.msra.mxu0 0.0
    %9026 = vmatpush.xpose.msra.mxu0 0.0
    %9027 = vmatpush.xpose.msra.mxu0 0.0
    %9028 = vmatpush.xpose.msra.mxu0 0.0
    %9029 = vmatpush.xpose.msra.mxu0 0.0
    %9030 = vmatpush.xpose.msra.mxu0 0.0
    %9031 = vmatpush.xpose.msra.mxu0 0.0
    %9032 = vmatpush.xpose.msra.mxu0 0.0
    %9033 = vmatpush.xpose.msra.mxu0 0.0
    %9034 = vmatpush.xpose.msra.mxu0 0.0
    %9035 = vmatpush.xpose.msra.mxu0 0.0
    %9036 = vmatpush.xpose.msra.mxu0 0.0
    %9037 = vmatpush.xpose.msra.mxu0 0.0
    %9038 = vmatpush.xpose.msra.mxu0 0.0
    %9039 = vmatpush.xpose.msra.mxu0 0.0
    %9040 = vmatpush.xpose.msra.mxu0 %v9023
    %9041 = vmatmul.f32.gmra.mxu0 %v5130
    %v9042 = vpop.f32.mrf.mxu0
    %v9043 = vadd.f32 0.0, %v9042
    %9044 = vdwg.mxu0
    %9046 = vrot.lane.b32.xlu0 %v8722, 112
    %v9047 = vpop.permute.xlu0 %9046
    %v9048 = vsel %vm273, %v9047, 0
    %9050 = vmatpush.xpose.msra.mxu0 0.0
    %9051 = vmatpush.xpose.msra.mxu0 0.0
    %9052 = vmatpush.xpose.msra.mxu0 0.0
    %9053 = vmatpush.xpose.msra.mxu0 0.0
    %9054 = vmatpush.xpose.msra.mxu0 0.0
    %9055 = vmatpush.xpose.msra.mxu0 0.0
    %9056 = vmatpush.xpose.msra.mxu0 0.0
    %9057 = vmatpush.xpose.msra.mxu0 0.0
    %9058 = vmatpush.xpose.msra.mxu0 0.0
    %9059 = vmatpush.xpose.msra.mxu0 0.0
    %9060 = vmatpush.xpose.msra.mxu0 0.0
    %9061 = vmatpush.xpose.msra.mxu0 0.0
    %9062 = vmatpush.xpose.msra.mxu0 0.0
    %9063 = vmatpush.xpose.msra.mxu0 0.0
    %9064 = vmatpush.xpose.msra.mxu0 0.0
    %9065 = vmatpush.xpose.msra.mxu0 %v9048
    %9066 = vmatmul.f32.gmra.mxu0 %v5158
    %v9067 = vpop.f32.mrf.mxu0
    %v9068 = vadd.f32 0.0, %v9067
    %9069 = vdwg.mxu0
    %9071 = vrot.lane.b32.xlu0 %v8723, 112
    %v9072 = vpop.permute.xlu0 %9071
    %v9073 = vsel %vm273, %v9072, 0
    %9075 = vmatpush.xpose.msra.mxu0 0.0
    %9076 = vmatpush.xpose.msra.mxu0 0.0
    %9077 = vmatpush.xpose.msra.mxu0 0.0
    %9078 = vmatpush.xpose.msra.mxu0 0.0
    %9079 = vmatpush.xpose.msra.mxu0 0.0
    %9080 = vmatpush.xpose.msra.mxu0 0.0
    %9081 = vmatpush.xpose.msra.mxu0 0.0
    %9082 = vmatpush.xpose.msra.mxu0 0.0
    %9083 = vmatpush.xpose.msra.mxu0 0.0
    %9084 = vmatpush.xpose.msra.mxu0 0.0
    %9085 = vmatpush.xpose.msra.mxu0 0.0
    %9086 = vmatpush.xpose.msra.mxu0 0.0
    %9087 = vmatpush.xpose.msra.mxu0 0.0
    %9088 = vmatpush.xpose.msra.mxu0 0.0
    %9089 = vmatpush.xpose.msra.mxu0 0.0
    %9090 = vmatpush.xpose.msra.mxu0 %v9073
    %9091 = vmatmul.f32.gmra.mxu0 %v5186
    %v9092 = vpop.f32.mrf.mxu0
    %v9093 = vadd.f32 0.0, %v9092
    %9094 = vdwg.mxu0
    %9096 = vrot.lane.b32.xlu0 %v8724, 112
    %v9097 = vpop.permute.xlu0 %9096
    %v9098 = vsel %vm273, %v9097, 0
    %9100 = vmatpush.xpose.msra.mxu0 0.0
    %9101 = vmatpush.xpose.msra.mxu0 0.0
    %9102 = vmatpush.xpose.msra.mxu0 0.0
    %9103 = vmatpush.xpose.msra.mxu0 0.0
    %9104 = vmatpush.xpose.msra.mxu0 0.0
    %9105 = vmatpush.xpose.msra.mxu0 0.0
    %9106 = vmatpush.xpose.msra.mxu0 0.0
    %9107 = vmatpush.xpose.msra.mxu0 0.0
    %9108 = vmatpush.xpose.msra.mxu0 0.0
    %9109 = vmatpush.xpose.msra.mxu0 0.0
    %9110 = vmatpush.xpose.msra.mxu0 0.0
    %9111 = vmatpush.xpose.msra.mxu0 0.0
    %9112 = vmatpush.xpose.msra.mxu0 0.0
    %9113 = vmatpush.xpose.msra.mxu0 0.0
    %9114 = vmatpush.xpose.msra.mxu0 0.0
    %9115 = vmatpush.xpose.msra.mxu0 %v9098
    %9116 = vmatmul.f32.gmra.mxu0 %v5214
    %v9117 = vpop.f32.mrf.mxu0
    %v9118 = vadd.f32 0.0, %v9117
    %9119 = vdwg.mxu0
    %9121 = vrot.lane.b32.xlu0 %v8725, 112
    %v9122 = vpop.permute.xlu0 %9121
    %v9123 = vsel %vm273, %v9122, 0
    %9125 = vmatpush.xpose.msra.mxu0 0.0
    %9126 = vmatpush.xpose.msra.mxu0 0.0
    %9127 = vmatpush.xpose.msra.mxu0 0.0
    %9128 = vmatpush.xpose.msra.mxu0 0.0
    %9129 = vmatpush.xpose.msra.mxu0 0.0
    %9130 = vmatpush.xpose.msra.mxu0 0.0
    %9131 = vmatpush.xpose.msra.mxu0 0.0
    %9132 = vmatpush.xpose.msra.mxu0 0.0
    %9133 = vmatpush.xpose.msra.mxu0 0.0
    %9134 = vmatpush.xpose.msra.mxu0 0.0
    %9135 = vmatpush.xpose.msra.mxu0 0.0
    %9136 = vmatpush.xpose.msra.mxu0 0.0
    %9137 = vmatpush.xpose.msra.mxu0 0.0
    %9138 = vmatpush.xpose.msra.mxu0 0.0
    %9139 = vmatpush.xpose.msra.mxu0 0.0
    %9140 = vmatpush.xpose.msra.mxu0 %v9123
    %9141 = vmatmul.f32.gmra.mxu0 %v5242
    %v9142 = vpop.f32.mrf.mxu0
    %v9143 = vadd.f32 0.0, %v9142
    %9144 = vdwg.mxu0
    %v9145 = vmul.f32 %v8768, 0.35355338
    %v9146 = vmul.f32 %v8793, 0.35355338
    %v9147 = vmul.f32 %v8818, 0.35355338
    %v9148 = vmul.f32 %v8843, 0.35355338
    %v9149 = vmul.f32 %v8868, 0.35355338
    %v9150 = vmul.f32 %v8893, 0.35355338
    %v9151 = vmul.f32 %v8918, 0.35355338
    %v9152 = vmul.f32 %v8943, 0.35355338
    %v9153 = vmul.f32 %v8968, 0.35355338
    %v9154 = vmul.f32 %v8993, 0.35355338
    %v9155 = vmul.f32 %v9018, 0.35355338
    %v9156 = vmul.f32 %v9043, 0.35355338
    %v9157 = vmul.f32 %v9068, 0.35355338
    %v9158 = vmul.f32 %v9093, 0.35355338
    %v9159 = vmul.f32 %v9118, 0.35355338
    %v9160 = vmul.f32 %v9143, 0.35355338
    %v9161 = vsel %vm5283, %v9145, -4.2949673e+09
    %v9162 = vsel %vm5283, %v9146, -4.2949673e+09
    %v9163 = vsel %vm5283, %v9147, -4.2949673e+09
    %v9164 = vsel %vm5283, %v9148, -4.2949673e+09
    %v9165 = vsel %vm5283, %v9149, -4.2949673e+09
    %v9166 = vsel %vm5283, %v9150, -4.2949673e+09
    %v9167 = vsel %vm5283, %v9151, -4.2949673e+09
    %v9168 = vsel %vm5283, %v9152, -4.2949673e+09
    %v9169 = vsel %vm5283, %v9153, -4.2949673e+09
    %v9170 = vsel %vm5283, %v9154, -4.2949673e+09
    %v9171 = vsel %vm5283, %v9155, -4.2949673e+09
    %v9172 = vsel %vm5283, %v9156, -4.2949673e+09
    %v9173 = vsel %vm5283, %v9157, -4.2949673e+09
    %v9174 = vsel %vm5283, %v9158, -4.2949673e+09
    %v9175 = vsel %vm5283, %v9159, -4.2949673e+09
    %v9176 = vsel %vm5283, %v9160, -4.2949673e+09
    %v9177 = vsel %vm91, %v9161, -inf
    %9178 = vmax.xlane.f32.xlu0 %v9177
    %v9179 = vpop.xlane.xlu0 %9178
    %v9180 = vsel %vm91, %v9162, -inf
    %9181 = vmax.xlane.f32.xlu0 %v9180
    %v9182 = vpop.xlane.xlu0 %9181
    %v9183 = vsel %vm91, %v9163, -inf
    %9184 = vmax.xlane.f32.xlu0 %v9183
    %v9185 = vpop.xlane.xlu0 %9184
    %v9186 = vsel %vm91, %v9164, -inf
    %9187 = vmax.xlane.f32.xlu0 %v9186
    %v9188 = vpop.xlane.xlu0 %9187
    %v9189 = vsel %vm91, %v9165, -inf
    %9190 = vmax.xlane.f32.xlu0 %v9189
    %v9191 = vpop.xlane.xlu0 %9190
    %v9192 = vsel %vm91, %v9166, -inf
    %9193 = vmax.xlane.f32.xlu0 %v9192
    %v9194 = vpop.xlane.xlu0 %9193
    %v9195 = vsel %vm91, %v9167, -inf
    %9196 = vmax.xlane.f32.xlu0 %v9195
    %v9197 = vpop.xlane.xlu0 %9196
    %v9198 = vsel %vm91, %v9168, -inf
    %9199 = vmax.xlane.f32.xlu0 %v9198
    %v9200 = vpop.xlane.xlu0 %9199
    %v9201 = vsel %vm91, %v9169, -inf
    %9202 = vmax.xlane.f32.xlu0 %v9201
    %v9203 = vpop.xlane.xlu0 %9202
    %v9204 = vsel %vm91, %v9170, -inf
    %9205 = vmax.xlane.f32.xlu0 %v9204
    %v9206 = vpop.xlane.xlu0 %9205
    %v9207 = vsel %vm91, %v9171, -inf
    %9208 = vmax.xlane.f32.xlu0 %v9207
    %v9209 = vpop.xlane.xlu0 %9208
    %v9210 = vsel %vm91, %v9172, -inf
    %9211 = vmax.xlane.f32.xlu0 %v9210
    %v9212 = vpop.xlane.xlu0 %9211
    %v9213 = vsel %vm91, %v9173, -inf
    %9214 = vmax.xlane.f32.xlu0 %v9213
    %v9215 = vpop.xlane.xlu0 %9214
    %v9216 = vsel %vm91, %v9174, -inf
    %9217 = vmax.xlane.f32.xlu0 %v9216
    %v9218 = vpop.xlane.xlu0 %9217
    %v9219 = vsel %vm91, %v9175, -inf
    %9220 = vmax.xlane.f32.xlu0 %v9219
    %v9221 = vpop.xlane.xlu0 %9220
    %v9222 = vsel %vm91, %v9176, -inf
    %9223 = vmax.xlane.f32.xlu0 %v9222
    %v9224 = vpop.xlane.xlu0 %9223
    %v9225 = vsub.f32 %v9161, %v9179
    %v9226 = vsub.f32 %v9162, %v9182
    %v9227 = vsub.f32 %v9163, %v9185
    %v9228 = vsub.f32 %v9164, %v9188
    %v9229 = vsub.f32 %v9165, %v9191
    %v9230 = vsub.f32 %v9166, %v9194
    %v9231 = vsub.f32 %v9167, %v9197
    %v9232 = vsub.f32 %v9168, %v9200
    %v9233 = vsub.f32 %v9169, %v9203
    %v9234 = vsub.f32 %v9170, %v9206
    %v9235 = vsub.f32 %v9171, %v9209
    %v9236 = vsub.f32 %v9172, %v9212
    %v9237 = vsub.f32 %v9173, %v9215
    %v9238 = vsub.f32 %v9174, %v9218
    %v9239 = vsub.f32 %v9175, %v9221
    %v9240 = vsub.f32 %v9176, %v9224
    %v9241 = vmul.f32 %v9225, 1.442695
    %v9242 = vpow.pop %v9241
    %v9243 = vmul.f32 %v9226, 1.442695
    %v9244 = vpow.pop %v9243
    %v9245 = vmul.f32 %v9227, 1.442695
    %v9246 = vpow.pop %v9245
    %v9247 = vmul.f32 %v9228, 1.442695
    %v9248 = vpow.pop %v9247
    %v9249 = vmul.f32 %v9229, 1.442695
    %v9250 = vpow.pop %v9249
    %v9251 = vmul.f32 %v9230, 1.442695
    %v9252 = vpow.pop %v9251
    %v9253 = vmul.f32 %v9231, 1.442695
    %v9254 = vpow.pop %v9253
    %v9255 = vmul.f32 %v9232, 1.442695
    %v9256 = vpow.pop %v9255
    %v9257 = vmul.f32 %v9233, 1.442695
    %v9258 = vpow.pop %v9257
    %v9259 = vmul.f32 %v9234, 1.442695
    %v9260 = vpow.pop %v9259
    %v9261 = vmul.f32 %v9235, 1.442695
    %v9262 = vpow.pop %v9261
    %v9263 = vmul.f32 %v9236, 1.442695
    %v9264 = vpow.pop %v9263
    %v9265 = vmul.f32 %v9237, 1.442695
    %v9266 = vpow.pop %v9265
    %v9267 = vmul.f32 %v9238, 1.442695
    %v9268 = vpow.pop %v9267
    %v9269 = vmul.f32 %v9239, 1.442695
    %v9270 = vpow.pop %v9269
    %v9271 = vmul.f32 %v9240, 1.442695
    %v9272 = vpow.pop %v9271
    %v9273 = vsel %vm91, %v9242, 0.0
    %9274 = vadd.xlane.f32.xlu0 %v9273
    %v9275 = vpop.xlane.xlu0 %9274
    %v9276 = vsel %vm91, %v9244, 0.0
    %9277 = vadd.xlane.f32.xlu0 %v9276
    %v9278 = vpop.xlane.xlu0 %9277
    %v9279 = vsel %vm91, %v9246, 0.0
    %9280 = vadd.xlane.f32.xlu0 %v9279
    %v9281 = vpop.xlane.xlu0 %9280
    %v9282 = vsel %vm91, %v9248, 0.0
    %9283 = vadd.xlane.f32.xlu0 %v9282
    %v9284 = vpop.xlane.xlu0 %9283
    %v9285 = vsel %vm91, %v9250, 0.0
    %9286 = vadd.xlane.f32.xlu0 %v9285
    %v9287 = vpop.xlane.xlu0 %9286
    %v9288 = vsel %vm91, %v9252, 0.0
    %9289 = vadd.xlane.f32.xlu0 %v9288
    %v9290 = vpop.xlane.xlu0 %9289
    %v9291 = vsel %vm91, %v9254, 0.0
    %9292 = vadd.xlane.f32.xlu0 %v9291
    %v9293 = vpop.xlane.xlu0 %9292
    %v9294 = vsel %vm91, %v9256, 0.0
    %9295 = vadd.xlane.f32.xlu0 %v9294
    %v9296 = vpop.xlane.xlu0 %9295
    %v9297 = vsel %vm91, %v9258, 0.0
    %9298 = vadd.xlane.f32.xlu0 %v9297
    %v9299 = vpop.xlane.xlu0 %9298
    %v9300 = vsel %vm91, %v9260, 0.0
    %9301 = vadd.xlane.f32.xlu0 %v9300
    %v9302 = vpop.xlane.xlu0 %9301
    %v9303 = vsel %vm91, %v9262, 0.0
    %9304 = vadd.xlane.f32.xlu0 %v9303
    %v9305 = vpop.xlane.xlu0 %9304
    %v9306 = vsel %vm91, %v9264, 0.0
    %9307 = vadd.xlane.f32.xlu0 %v9306
    %v9308 = vpop.xlane.xlu0 %9307
    %v9309 = vsel %vm91, %v9266, 0.0
    %9310 = vadd.xlane.f32.xlu0 %v9309
    %v9311 = vpop.xlane.xlu0 %9310
    %v9312 = vsel %vm91, %v9268, 0.0
    %9313 = vadd.xlane.f32.xlu0 %v9312
    %v9314 = vpop.xlane.xlu0 %9313
    %v9315 = vsel %vm91, %v9270, 0.0
    %9316 = vadd.xlane.f32.xlu0 %v9315
    %v9317 = vpop.xlane.xlu0 %9316
    %v9318 = vsel %vm91, %v9272, 0.0
    %9319 = vadd.xlane.f32.xlu0 %v9318
    %v9320 = vpop.xlane.xlu0 %9319
    %v9321 = vrcp.pop %v9275
    %v9322 = vmul.f32 %v9275, %v9321
    %v9323 = vsub.f32 1.0, %v9322
    %v9324 = vmul.f32 %v9321, %v9323
    %v9325 = vadd.f32 %v9321, %v9324
    %vm9326 = vweird.f32 %v9275
    %vm9327 = vweird.f32 %v9321
    %vm9328 = vmor %vm9326, %vm9327
    %v9329 = vsel %vm9328, %v9321, %v9325
    %v9330 = vand.u32 2147483647, %v9275
    %vm9331 = vcmp.eq.f32.partialorder %v9330, 8.507059e+37
    %v9332 = vand.u32 %v9275, 2147483648
    %v9333 = vor.u32 1.1754944e-38, %v9332
    %v9334 = vsel %vm9331, %v9333, %v9329
    %v9335 = vrcp.pop %v9278
    %v9336 = vmul.f32 %v9278, %v9335
    %v9337 = vsub.f32 1.0, %v9336
    %v9338 = vmul.f32 %v9335, %v9337
    %v9339 = vadd.f32 %v9335, %v9338
    %vm9340 = vweird.f32 %v9278
    %vm9341 = vweird.f32 %v9335
    %vm9342 = vmor %vm9340, %vm9341
    %v9343 = vsel %vm9342, %v9335, %v9339
    %v9344 = vand.u32 2147483647, %v9278
    %vm9345 = vcmp.eq.f32.partialorder %v9344, 8.507059e+37
    %v9346 = vand.u32 %v9278, 2147483648
    %v9347 = vor.u32 1.1754944e-38, %v9346
    %v9348 = vsel %vm9345, %v9347, %v9343
    %v9349 = vrcp.pop %v9281
    %v9350 = vmul.f32 %v9281, %v9349
    %v9351 = vsub.f32 1.0, %v9350
    %v9352 = vmul.f32 %v9349, %v9351
    %v9353 = vadd.f32 %v9349, %v9352
    %vm9354 = vweird.f32 %v9281
    %vm9355 = vweird.f32 %v9349
    %vm9356 = vmor %vm9354, %vm9355
    %v9357 = vsel %vm9356, %v9349, %v9353
    %v9358 = vand.u32 2147483647, %v9281
    %vm9359 = vcmp.eq.f32.partialorder %v9358, 8.507059e+37
    %v9360 = vand.u32 %v9281, 2147483648
    %v9361 = vor.u32 1.1754944e-38, %v9360
    %v9362 = vsel %vm9359, %v9361, %v9357
    %v9363 = vrcp.pop %v9284
    %v9364 = vmul.f32 %v9284, %v9363
    %v9365 = vsub.f32 1.0, %v9364
    %v9366 = vmul.f32 %v9363, %v9365
    %v9367 = vadd.f32 %v9363, %v9366
    %vm9368 = vweird.f32 %v9284
    %vm9369 = vweird.f32 %v9363
    %vm9370 = vmor %vm9368, %vm9369
    %v9371 = vsel %vm9370, %v9363, %v9367
    %v9372 = vand.u32 2147483647, %v9284
    %vm9373 = vcmp.eq.f32.partialorder %v9372, 8.507059e+37
    %v9374 = vand.u32 %v9284, 2147483648
    %v9375 = vor.u32 1.1754944e-38, %v9374
    %v9376 = vsel %vm9373, %v9375, %v9371
    %v9377 = vrcp.pop %v9287
    %v9378 = vmul.f32 %v9287, %v9377
    %v9379 = vsub.f32 1.0, %v9378
    %v9380 = vmul.f32 %v9377, %v9379
    %v9381 = vadd.f32 %v9377, %v9380
    %vm9382 = vweird.f32 %v9287
    %vm9383 = vweird.f32 %v9377
    %vm9384 = vmor %vm9382, %vm9383
    %v9385 = vsel %vm9384, %v9377, %v9381
    %v9386 = vand.u32 2147483647, %v9287
    %vm9387 = vcmp.eq.f32.partialorder %v9386, 8.507059e+37
    %v9388 = vand.u32 %v9287, 2147483648
    %v9389 = vor.u32 1.1754944e-38, %v9388
    %v9390 = vsel %vm9387, %v9389, %v9385
    %v9391 = vrcp.pop %v9290
    %v9392 = vmul.f32 %v9290, %v9391
    %v9393 = vsub.f32 1.0, %v9392
    %v9394 = vmul.f32 %v9391, %v9393
    %v9395 = vadd.f32 %v9391, %v9394
    %vm9396 = vweird.f32 %v9290
    %vm9397 = vweird.f32 %v9391
    %vm9398 = vmor %vm9396, %vm9397
    %v9399 = vsel %vm9398, %v9391, %v9395
    %v9400 = vand.u32 2147483647, %v9290
    %vm9401 = vcmp.eq.f32.partialorder %v9400, 8.507059e+37
    %v9402 = vand.u32 %v9290, 2147483648
    %v9403 = vor.u32 1.1754944e-38, %v9402
    %v9404 = vsel %vm9401, %v9403, %v9399
    %v9405 = vrcp.pop %v9293
    %v9406 = vmul.f32 %v9293, %v9405
    %v9407 = vsub.f32 1.0, %v9406
    %v9408 = vmul.f32 %v9405, %v9407
    %v9409 = vadd.f32 %v9405, %v9408
    %vm9410 = vweird.f32 %v9293
    %vm9411 = vweird.f32 %v9405
    %vm9412 = vmor %vm9410, %vm9411
    %v9413 = vsel %vm9412, %v9405, %v9409
    %v9414 = vand.u32 2147483647, %v9293
    %vm9415 = vcmp.eq.f32.partialorder %v9414, 8.507059e+37
    %v9416 = vand.u32 %v9293, 2147483648
    %v9417 = vor.u32 1.1754944e-38, %v9416
    %v9418 = vsel %vm9415, %v9417, %v9413
    %v9419 = vrcp.pop %v9296
    %v9420 = vmul.f32 %v9296, %v9419
    %v9421 = vsub.f32 1.0, %v9420
    %v9422 = vmul.f32 %v9419, %v9421
    %v9423 = vadd.f32 %v9419, %v9422
    %vm9424 = vweird.f32 %v9296
    %vm9425 = vweird.f32 %v9419
    %vm9426 = vmor %vm9424, %vm9425
    %v9427 = vsel %vm9426, %v9419, %v9423
    %v9428 = vand.u32 2147483647, %v9296
    %vm9429 = vcmp.eq.f32.partialorder %v9428, 8.507059e+37
    %v9430 = vand.u32 %v9296, 2147483648
    %v9431 = vor.u32 1.1754944e-38, %v9430
    %v9432 = vsel %vm9429, %v9431, %v9427
    %v9433 = vrcp.pop %v9299
    %v9434 = vmul.f32 %v9299, %v9433
    %v9435 = vsub.f32 1.0, %v9434
    %v9436 = vmul.f32 %v9433, %v9435
    %v9437 = vadd.f32 %v9433, %v9436
    %vm9438 = vweird.f32 %v9299
    %vm9439 = vweird.f32 %v9433
    %vm9440 = vmor %vm9438, %vm9439
    %v9441 = vsel %vm9440, %v9433, %v9437
    %v9442 = vand.u32 2147483647, %v9299
    %vm9443 = vcmp.eq.f32.partialorder %v9442, 8.507059e+37
    %v9444 = vand.u32 %v9299, 2147483648
    %v9445 = vor.u32 1.1754944e-38, %v9444
    %v9446 = vsel %vm9443, %v9445, %v9441
    %v9447 = vrcp.pop %v9302
    %v9448 = vmul.f32 %v9302, %v9447
    %v9449 = vsub.f32 1.0, %v9448
    %v9450 = vmul.f32 %v9447, %v9449
    %v9451 = vadd.f32 %v9447, %v9450
    %vm9452 = vweird.f32 %v9302
    %vm9453 = vweird.f32 %v9447
    %vm9454 = vmor %vm9452, %vm9453
    %v9455 = vsel %vm9454, %v9447, %v9451
    %v9456 = vand.u32 2147483647, %v9302
    %vm9457 = vcmp.eq.f32.partialorder %v9456, 8.507059e+37
    %v9458 = vand.u32 %v9302, 2147483648
    %v9459 = vor.u32 1.1754944e-38, %v9458
    %v9460 = vsel %vm9457, %v9459, %v9455
    %v9461 = vrcp.pop %v9305
    %v9462 = vmul.f32 %v9305, %v9461
    %v9463 = vsub.f32 1.0, %v9462
    %v9464 = vmul.f32 %v9461, %v9463
    %v9465 = vadd.f32 %v9461, %v9464
    %vm9466 = vweird.f32 %v9305
    %vm9467 = vweird.f32 %v9461
    %vm9468 = vmor %vm9466, %vm9467
    %v9469 = vsel %vm9468, %v9461, %v9465
    %v9470 = vand.u32 2147483647, %v9305
    %vm9471 = vcmp.eq.f32.partialorder %v9470, 8.507059e+37
    %v9472 = vand.u32 %v9305, 2147483648
    %v9473 = vor.u32 1.1754944e-38, %v9472
    %v9474 = vsel %vm9471, %v9473, %v9469
    %v9475 = vrcp.pop %v9308
    %v9476 = vmul.f32 %v9308, %v9475
    %v9477 = vsub.f32 1.0, %v9476
    %v9478 = vmul.f32 %v9475, %v9477
    %v9479 = vadd.f32 %v9475, %v9478
    %vm9480 = vweird.f32 %v9308
    %vm9481 = vweird.f32 %v9475
    %vm9482 = vmor %vm9480, %vm9481
    %v9483 = vsel %vm9482, %v9475, %v9479
    %v9484 = vand.u32 2147483647, %v9308
    %vm9485 = vcmp.eq.f32.partialorder %v9484, 8.507059e+37
    %v9486 = vand.u32 %v9308, 2147483648
    %v9487 = vor.u32 1.1754944e-38, %v9486
    %v9488 = vsel %vm9485, %v9487, %v9483
    %v9489 = vrcp.pop %v9311
    %v9490 = vmul.f32 %v9311, %v9489
    %v9491 = vsub.f32 1.0, %v9490
    %v9492 = vmul.f32 %v9489, %v9491
    %v9493 = vadd.f32 %v9489, %v9492
    %vm9494 = vweird.f32 %v9311
    %vm9495 = vweird.f32 %v9489
    %vm9496 = vmor %vm9494, %vm9495
    %v9497 = vsel %vm9496, %v9489, %v9493
    %v9498 = vand.u32 2147483647, %v9311
    %vm9499 = vcmp.eq.f32.partialorder %v9498, 8.507059e+37
    %v9500 = vand.u32 %v9311, 2147483648
    %v9501 = vor.u32 1.1754944e-38, %v9500
    %v9502 = vsel %vm9499, %v9501, %v9497
    %v9503 = vrcp.pop %v9314
    %v9504 = vmul.f32 %v9314, %v9503
    %v9505 = vsub.f32 1.0, %v9504
    %v9506 = vmul.f32 %v9503, %v9505
    %v9507 = vadd.f32 %v9503, %v9506
    %vm9508 = vweird.f32 %v9314
    %vm9509 = vweird.f32 %v9503
    %vm9510 = vmor %vm9508, %vm9509
    %v9511 = vsel %vm9510, %v9503, %v9507
    %v9512 = vand.u32 2147483647, %v9314
    %vm9513 = vcmp.eq.f32.partialorder %v9512, 8.507059e+37
    %v9514 = vand.u32 %v9314, 2147483648
    %v9515 = vor.u32 1.1754944e-38, %v9514
    %v9516 = vsel %vm9513, %v9515, %v9511
    %v9517 = vrcp.pop %v9317
    %v9518 = vmul.f32 %v9317, %v9517
    %v9519 = vsub.f32 1.0, %v9518
    %v9520 = vmul.f32 %v9517, %v9519
    %v9521 = vadd.f32 %v9517, %v9520
    %vm9522 = vweird.f32 %v9317
    %vm9523 = vweird.f32 %v9517
    %vm9524 = vmor %vm9522, %vm9523
    %v9525 = vsel %vm9524, %v9517, %v9521
    %v9526 = vand.u32 2147483647, %v9317
    %vm9527 = vcmp.eq.f32.partialorder %v9526, 8.507059e+37
    %v9528 = vand.u32 %v9317, 2147483648
    %v9529 = vor.u32 1.1754944e-38, %v9528
    %v9530 = vsel %vm9527, %v9529, %v9525
    %v9531 = vrcp.pop %v9320
    %v9532 = vmul.f32 %v9320, %v9531
    %v9533 = vsub.f32 1.0, %v9532
    %v9534 = vmul.f32 %v9531, %v9533
    %v9535 = vadd.f32 %v9531, %v9534
    %vm9536 = vweird.f32 %v9320
    %vm9537 = vweird.f32 %v9531
    %vm9538 = vmor %vm9536, %vm9537
    %v9539 = vsel %vm9538, %v9531, %v9535
    %v9540 = vand.u32 2147483647, %v9320
    %vm9541 = vcmp.eq.f32.partialorder %v9540, 8.507059e+37
    %v9542 = vand.u32 %v9320, 2147483648
    %v9543 = vor.u32 1.1754944e-38, %v9542
    %v9544 = vsel %vm9541, %v9543, %v9539
    %v9545 = vmul.f32 %v9242, %v9334
    %v9546 = vmul.f32 %v9244, %v9348
    %v9547 = vmul.f32 %v9246, %v9362
    %v9548 = vmul.f32 %v9248, %v9376
    %v9549 = vmul.f32 %v9250, %v9390
    %v9550 = vmul.f32 %v9252, %v9404
    %v9551 = vmul.f32 %v9254, %v9418
    %v9552 = vmul.f32 %v9256, %v9432
    %v9553 = vmul.f32 %v9258, %v9446
    %v9554 = vmul.f32 %v9260, %v9460
    %v9555 = vmul.f32 %v9262, %v9474
    %v9556 = vmul.f32 %v9264, %v9488
    %v9557 = vmul.f32 %v9266, %v9502
    %v9558 = vmul.f32 %v9268, %v9516
    %v9559 = vmul.f32 %v9270, %v9530
    %v9560 = vmul.f32 %v9272, %v9544
    %9562 = vrot.lane.b32.xlu0 %v8729, 96
    %v9563 = vpop.permute.xlu0 %9562
    %v9566 = vsel %vm91, %v9545, 0
    %9568 = vmatpush.msra.mxu0 0.0
    %9569 = vmatpush.msra.mxu0 0.0
    %9570 = vmatpush.msra.mxu0 0.0
    %9571 = vmatpush.msra.mxu0 0.0
    %9572 = vmatpush.msra.mxu0 0.0
    %9573 = vmatpush.msra.mxu0 0.0
    %9574 = vmatpush.msra.mxu0 0.0
    %9575 = vmatpush.msra.mxu0 0.0
    %9576 = vmatpush.msra.mxu0 0.0
    %9577 = vmatpush.msra.mxu0 0.0
    %9578 = vmatpush.msra.mxu0 0.0
    %9579 = vmatpush.msra.mxu0 0.0
    %9580 = vmatpush.msra.mxu0 0.0
    %9581 = vmatpush.msra.mxu0 0.0
    %9582 = vmatpush.msra.mxu0 0.0
    %9583 = vmatpush.msra.mxu0 %v9563
    %9584 = vmatmul.f32.gmra.mxu0 %v9566
    %v9585 = vpop.f32.mrf.mxu0
    %v9586 = vadd.f32 0.0, %v9585
    %9587 = vdwg.mxu0
    %9589 = vrot.lane.b32.xlu0 %v8730, 96
    %v9590 = vpop.permute.xlu0 %9589
    %v9593 = vsel %vm91, %v9546, 0
    %9595 = vmatpush.msra.mxu0 0.0
    %9596 = vmatpush.msra.mxu0 0.0
    %9597 = vmatpush.msra.mxu0 0.0
    %9598 = vmatpush.msra.mxu0 0.0
    %9599 = vmatpush.msra.mxu0 0.0
    %9600 = vmatpush.msra.mxu0 0.0
    %9601 = vmatpush.msra.mxu0 0.0
    %9602 = vmatpush.msra.mxu0 0.0
    %9603 = vmatpush.msra.mxu0 0.0
    %9604 = vmatpush.msra.mxu0 0.0
    %9605 = vmatpush.msra.mxu0 0.0
    %9606 = vmatpush.msra.mxu0 0.0
    %9607 = vmatpush.msra.mxu0 0.0
    %9608 = vmatpush.msra.mxu0 0.0
    %9609 = vmatpush.msra.mxu0 0.0
    %9610 = vmatpush.msra.mxu0 %v9590
    %9611 = vmatmul.f32.gmra.mxu0 %v9593
    %v9612 = vpop.f32.mrf.mxu0
    %v9613 = vadd.f32 0.0, %v9612
    %9614 = vdwg.mxu0
    %9616 = vrot.lane.b32.xlu0 %v8731, 96
    %v9617 = vpop.permute.xlu0 %9616
    %v9620 = vsel %vm91, %v9547, 0
    %9622 = vmatpush.msra.mxu0 0.0
    %9623 = vmatpush.msra.mxu0 0.0
    %9624 = vmatpush.msra.mxu0 0.0
    %9625 = vmatpush.msra.mxu0 0.0
    %9626 = vmatpush.msra.mxu0 0.0
    %9627 = vmatpush.msra.mxu0 0.0
    %9628 = vmatpush.msra.mxu0 0.0
    %9629 = vmatpush.msra.mxu0 0.0
    %9630 = vmatpush.msra.mxu0 0.0
    %9631 = vmatpush.msra.mxu0 0.0
    %9632 = vmatpush.msra.mxu0 0.0
    %9633 = vmatpush.msra.mxu0 0.0
    %9634 = vmatpush.msra.mxu0 0.0
    %9635 = vmatpush.msra.mxu0 0.0
    %9636 = vmatpush.msra.mxu0 0.0
    %9637 = vmatpush.msra.mxu0 %v9617
    %9638 = vmatmul.f32.gmra.mxu0 %v9620
    %v9639 = vpop.f32.mrf.mxu0
    %v9640 = vadd.f32 0.0, %v9639
    %9641 = vdwg.mxu0
    %9643 = vrot.lane.b32.xlu0 %v8732, 96
    %v9644 = vpop.permute.xlu0 %9643
    %v9647 = vsel %vm91, %v9548, 0
    %9649 = vmatpush.msra.mxu0 0.0
    %9650 = vmatpush.msra.mxu0 0.0
    %9651 = vmatpush.msra.mxu0 0.0
    %9652 = vmatpush.msra.mxu0 0.0
    %9653 = vmatpush.msra.mxu0 0.0
    %9654 = vmatpush.msra.mxu0 0.0
    %9655 = vmatpush.msra.mxu0 0.0
    %9656 = vmatpush.msra.mxu0 0.0
    %9657 = vmatpush.msra.mxu0 0.0
    %9658 = vmatpush.msra.mxu0 0.0
    %9659 = vmatpush.msra.mxu0 0.0
    %9660 = vmatpush.msra.mxu0 0.0
    %9661 = vmatpush.msra.mxu0 0.0
    %9662 = vmatpush.msra.mxu0 0.0
    %9663 = vmatpush.msra.mxu0 0.0
    %9664 = vmatpush.msra.mxu0 %v9644
    %9665 = vmatmul.f32.gmra.mxu0 %v9647
    %v9666 = vpop.f32.mrf.mxu0
    %v9667 = vadd.f32 0.0, %v9666
    %9668 = vdwg.mxu0
    %9670 = vrot.lane.b32.xlu0 %v8733, 96
    %v9671 = vpop.permute.xlu0 %9670
    %v9674 = vsel %vm91, %v9549, 0
    %9676 = vmatpush.msra.mxu0 0.0
    %9677 = vmatpush.msra.mxu0 0.0
    %9678 = vmatpush.msra.mxu0 0.0
    %9679 = vmatpush.msra.mxu0 0.0
    %9680 = vmatpush.msra.mxu0 0.0
    %9681 = vmatpush.msra.mxu0 0.0
    %9682 = vmatpush.msra.mxu0 0.0
    %9683 = vmatpush.msra.mxu0 0.0
    %9684 = vmatpush.msra.mxu0 0.0
    %9685 = vmatpush.msra.mxu0 0.0
    %9686 = vmatpush.msra.mxu0 0.0
    %9687 = vmatpush.msra.mxu0 0.0
    %9688 = vmatpush.msra.mxu0 0.0
    %9689 = vmatpush.msra.mxu0 0.0
    %9690 = vmatpush.msra.mxu0 0.0
    %9691 = vmatpush.msra.mxu0 %v9671
    %9692 = vmatmul.f32.gmra.mxu0 %v9674
    %v9693 = vpop.f32.mrf.mxu0
    %v9694 = vadd.f32 0.0, %v9693
    %9695 = vdwg.mxu0
    %9697 = vrot.lane.b32.xlu0 %v8734, 96
    %v9698 = vpop.permute.xlu0 %9697
    %v9701 = vsel %vm91, %v9550, 0
    %9703 = vmatpush.msra.mxu0 0.0
    %9704 = vmatpush.msra.mxu0 0.0
    %9705 = vmatpush.msra.mxu0 0.0
    %9706 = vmatpush.msra.mxu0 0.0
    %9707 = vmatpush.msra.mxu0 0.0
    %9708 = vmatpush.msra.mxu0 0.0
    %9709 = vmatpush.msra.mxu0 0.0
    %9710 = vmatpush.msra.mxu0 0.0
    %9711 = vmatpush.msra.mxu0 0.0
    %9712 = vmatpush.msra.mxu0 0.0
    %9713 = vmatpush.msra.mxu0 0.0
    %9714 = vmatpush.msra.mxu0 0.0
    %9715 = vmatpush.msra.mxu0 0.0
    %9716 = vmatpush.msra.mxu0 0.0
    %9717 = vmatpush.msra.mxu0 0.0
    %9718 = vmatpush.msra.mxu0 %v9698
    %9719 = vmatmul.f32.gmra.mxu0 %v9701
    %v9720 = vpop.f32.mrf.mxu0
    %v9721 = vadd.f32 0.0, %v9720
    %9722 = vdwg.mxu0
    %9724 = vrot.lane.b32.xlu0 %v8735, 96
    %v9725 = vpop.permute.xlu0 %9724
    %v9728 = vsel %vm91, %v9551, 0
    %9730 = vmatpush.msra.mxu0 0.0
    %9731 = vmatpush.msra.mxu0 0.0
    %9732 = vmatpush.msra.mxu0 0.0
    %9733 = vmatpush.msra.mxu0 0.0
    %9734 = vmatpush.msra.mxu0 0.0
    %9735 = vmatpush.msra.mxu0 0.0
    %9736 = vmatpush.msra.mxu0 0.0
    %9737 = vmatpush.msra.mxu0 0.0
    %9738 = vmatpush.msra.mxu0 0.0
    %9739 = vmatpush.msra.mxu0 0.0
    %9740 = vmatpush.msra.mxu0 0.0
    %9741 = vmatpush.msra.mxu0 0.0
    %9742 = vmatpush.msra.mxu0 0.0
    %9743 = vmatpush.msra.mxu0 0.0
    %9744 = vmatpush.msra.mxu0 0.0
    %9745 = vmatpush.msra.mxu0 %v9725
    %9746 = vmatmul.f32.gmra.mxu0 %v9728
    %v9747 = vpop.f32.mrf.mxu0
    %v9748 = vadd.f32 0.0, %v9747
    %9749 = vdwg.mxu0
    %9751 = vrot.lane.b32.xlu0 %v8736, 96
    %v9752 = vpop.permute.xlu0 %9751
    %v9755 = vsel %vm91, %v9552, 0
    %9757 = vmatpush.msra.mxu0 0.0
    %9758 = vmatpush.msra.mxu0 0.0
    %9759 = vmatpush.msra.mxu0 0.0
    %9760 = vmatpush.msra.mxu0 0.0
    %9761 = vmatpush.msra.mxu0 0.0
    %9762 = vmatpush.msra.mxu0 0.0
    %9763 = vmatpush.msra.mxu0 0.0
    %9764 = vmatpush.msra.mxu0 0.0
    %9765 = vmatpush.msra.mxu0 0.0
    %9766 = vmatpush.msra.mxu0 0.0
    %9767 = vmatpush.msra.mxu0 0.0
    %9768 = vmatpush.msra.mxu0 0.0
    %9769 = vmatpush.msra.mxu0 0.0
    %9770 = vmatpush.msra.mxu0 0.0
    %9771 = vmatpush.msra.mxu0 0.0
    %9772 = vmatpush.msra.mxu0 %v9752
    %9773 = vmatmul.f32.gmra.mxu0 %v9755
    %v9774 = vpop.f32.mrf.mxu0
    %v9775 = vadd.f32 0.0, %v9774
    %9776 = vdwg.mxu0
    %9778 = vrot.lane.b32.xlu0 %v8737, 96
    %v9779 = vpop.permute.xlu0 %9778
    %v9782 = vsel %vm91, %v9553, 0
    %9784 = vmatpush.msra.mxu0 0.0
    %9785 = vmatpush.msra.mxu0 0.0
    %9786 = vmatpush.msra.mxu0 0.0
    %9787 = vmatpush.msra.mxu0 0.0
    %9788 = vmatpush.msra.mxu0 0.0
    %9789 = vmatpush.msra.mxu0 0.0
    %9790 = vmatpush.msra.mxu0 0.0
    %9791 = vmatpush.msra.mxu0 0.0
    %9792 = vmatpush.msra.mxu0 0.0
    %9793 = vmatpush.msra.mxu0 0.0
    %9794 = vmatpush.msra.mxu0 0.0
    %9795 = vmatpush.msra.mxu0 0.0
    %9796 = vmatpush.msra.mxu0 0.0
    %9797 = vmatpush.msra.mxu0 0.0
    %9798 = vmatpush.msra.mxu0 0.0
    %9799 = vmatpush.msra.mxu0 %v9779
    %9800 = vmatmul.f32.gmra.mxu0 %v9782
    %v9801 = vpop.f32.mrf.mxu0
    %v9802 = vadd.f32 0.0, %v9801
    %9803 = vdwg.mxu0
    %9805 = vrot.lane.b32.xlu0 %v8738, 96
    %v9806 = vpop.permute.xlu0 %9805
    %v9809 = vsel %vm91, %v9554, 0
    %9811 = vmatpush.msra.mxu0 0.0
    %9812 = vmatpush.msra.mxu0 0.0
    %9813 = vmatpush.msra.mxu0 0.0
    %9814 = vmatpush.msra.mxu0 0.0
    %9815 = vmatpush.msra.mxu0 0.0
    %9816 = vmatpush.msra.mxu0 0.0
    %9817 = vmatpush.msra.mxu0 0.0
    %9818 = vmatpush.msra.mxu0 0.0
    %9819 = vmatpush.msra.mxu0 0.0
    %9820 = vmatpush.msra.mxu0 0.0
    %9821 = vmatpush.msra.mxu0 0.0
    %9822 = vmatpush.msra.mxu0 0.0
    %9823 = vmatpush.msra.mxu0 0.0
    %9824 = vmatpush.msra.mxu0 0.0
    %9825 = vmatpush.msra.mxu0 0.0
    %9826 = vmatpush.msra.mxu0 %v9806
    %9827 = vmatmul.f32.gmra.mxu0 %v9809
    %v9828 = vpop.f32.mrf.mxu0
    %v9829 = vadd.f32 0.0, %v9828
    %9830 = vdwg.mxu0
    %9832 = vrot.lane.b32.xlu0 %v8739, 96
    %v9833 = vpop.permute.xlu0 %9832
    %v9836 = vsel %vm91, %v9555, 0
    %9838 = vmatpush.msra.mxu0 0.0
    %9839 = vmatpush.msra.mxu0 0.0
    %9840 = vmatpush.msra.mxu0 0.0
    %9841 = vmatpush.msra.mxu0 0.0
    %9842 = vmatpush.msra.mxu0 0.0
    %9843 = vmatpush.msra.mxu0 0.0
    %9844 = vmatpush.msra.mxu0 0.0
    %9845 = vmatpush.msra.mxu0 0.0
    %9846 = vmatpush.msra.mxu0 0.0
    %9847 = vmatpush.msra.mxu0 0.0
    %9848 = vmatpush.msra.mxu0 0.0
    %9849 = vmatpush.msra.mxu0 0.0
    %9850 = vmatpush.msra.mxu0 0.0
    %9851 = vmatpush.msra.mxu0 0.0
    %9852 = vmatpush.msra.mxu0 0.0
    %9853 = vmatpush.msra.mxu0 %v9833
    %9854 = vmatmul.f32.gmra.mxu0 %v9836
    %v9855 = vpop.f32.mrf.mxu0
    %v9856 = vadd.f32 0.0, %v9855
    %9857 = vdwg.mxu0
    %9859 = vrot.lane.b32.xlu0 %v8740, 96
    %v9860 = vpop.permute.xlu0 %9859
    %v9863 = vsel %vm91, %v9556, 0
    %9865 = vmatpush.msra.mxu0 0.0
    %9866 = vmatpush.msra.mxu0 0.0
    %9867 = vmatpush.msra.mxu0 0.0
    %9868 = vmatpush.msra.mxu0 0.0
    %9869 = vmatpush.msra.mxu0 0.0
    %9870 = vmatpush.msra.mxu0 0.0
    %9871 = vmatpush.msra.mxu0 0.0
    %9872 = vmatpush.msra.mxu0 0.0
    %9873 = vmatpush.msra.mxu0 0.0
    %9874 = vmatpush.msra.mxu0 0.0
    %9875 = vmatpush.msra.mxu0 0.0
    %9876 = vmatpush.msra.mxu0 0.0
    %9877 = vmatpush.msra.mxu0 0.0
    %9878 = vmatpush.msra.mxu0 0.0
    %9879 = vmatpush.msra.mxu0 0.0
    %9880 = vmatpush.msra.mxu0 %v9860
    %9881 = vmatmul.f32.gmra.mxu0 %v9863
    %v9882 = vpop.f32.mrf.mxu0
    %v9883 = vadd.f32 0.0, %v9882
    %9884 = vdwg.mxu0
    %9886 = vrot.lane.b32.xlu0 %v8741, 96
    %v9887 = vpop.permute.xlu0 %9886
    %v9890 = vsel %vm91, %v9557, 0
    %9892 = vmatpush.msra.mxu0 0.0
    %9893 = vmatpush.msra.mxu0 0.0
    %9894 = vmatpush.msra.mxu0 0.0
    %9895 = vmatpush.msra.mxu0 0.0
    %9896 = vmatpush.msra.mxu0 0.0
    %9897 = vmatpush.msra.mxu0 0.0
    %9898 = vmatpush.msra.mxu0 0.0
    %9899 = vmatpush.msra.mxu0 0.0
    %9900 = vmatpush.msra.mxu0 0.0
    %9901 = vmatpush.msra.mxu0 0.0
    %9902 = vmatpush.msra.mxu0 0.0
    %9903 = vmatpush.msra.mxu0 0.0
    %9904 = vmatpush.msra.mxu0 0.0
    %9905 = vmatpush.msra.mxu0 0.0
    %9906 = vmatpush.msra.mxu0 0.0
    %9907 = vmatpush.msra.mxu0 %v9887
    %9908 = vmatmul.f32.gmra.mxu0 %v9890
    %v9909 = vpop.f32.mrf.mxu0
    %v9910 = vadd.f32 0.0, %v9909
    %9911 = vdwg.mxu0
    %9913 = vrot.lane.b32.xlu0 %v8742, 96
    %v9914 = vpop.permute.xlu0 %9913
    %v9917 = vsel %vm91, %v9558, 0
    %9919 = vmatpush.msra.mxu0 0.0
    %9920 = vmatpush.msra.mxu0 0.0
    %9921 = vmatpush.msra.mxu0 0.0
    %9922 = vmatpush.msra.mxu0 0.0
    %9923 = vmatpush.msra.mxu0 0.0
    %9924 = vmatpush.msra.mxu0 0.0
    %9925 = vmatpush.msra.mxu0 0.0
    %9926 = vmatpush.msra.mxu0 0.0
    %9927 = vmatpush.msra.mxu0 0.0
    %9928 = vmatpush.msra.mxu0 0.0
    %9929 = vmatpush.msra.mxu0 0.0
    %9930 = vmatpush.msra.mxu0 0.0
    %9931 = vmatpush.msra.mxu0 0.0
    %9932 = vmatpush.msra.mxu0 0.0
    %9933 = vmatpush.msra.mxu0 0.0
    %9934 = vmatpush.msra.mxu0 %v9914
    %9935 = vmatmul.f32.gmra.mxu0 %v9917
    %v9936 = vpop.f32.mrf.mxu0
    %v9937 = vadd.f32 0.0, %v9936
    %9938 = vdwg.mxu0
    %9940 = vrot.lane.b32.xlu0 %v8743, 96
    %v9941 = vpop.permute.xlu0 %9940
    %v9944 = vsel %vm91, %v9559, 0
    %9946 = vmatpush.msra.mxu0 0.0
    %9947 = vmatpush.msra.mxu0 0.0
    %9948 = vmatpush.msra.mxu0 0.0
    %9949 = vmatpush.msra.mxu0 0.0
    %9950 = vmatpush.msra.mxu0 0.0
    %9951 = vmatpush.msra.mxu0 0.0
    %9952 = vmatpush.msra.mxu0 0.0
    %9953 = vmatpush.msra.mxu0 0.0
    %9954 = vmatpush.msra.mxu0 0.0
    %9955 = vmatpush.msra.mxu0 0.0
    %9956 = vmatpush.msra.mxu0 0.0
    %9957 = vmatpush.msra.mxu0 0.0
    %9958 = vmatpush.msra.mxu0 0.0
    %9959 = vmatpush.msra.mxu0 0.0
    %9960 = vmatpush.msra.mxu0 0.0
    %9961 = vmatpush.msra.mxu0 %v9941
    %9962 = vmatmul.f32.gmra.mxu0 %v9944
    %v9963 = vpop.f32.mrf.mxu0
    %v9964 = vadd.f32 0.0, %v9963
    %9965 = vdwg.mxu0
    %9967 = vrot.lane.b32.xlu0 %v8744, 96
    %v9968 = vpop.permute.xlu0 %9967
    %v9971 = vsel %vm91, %v9560, 0
    %9973 = vmatpush.msra.mxu0 0.0
    %9974 = vmatpush.msra.mxu0 0.0
    %9975 = vmatpush.msra.mxu0 0.0
    %9976 = vmatpush.msra.mxu0 0.0
    %9977 = vmatpush.msra.mxu0 0.0
    %9978 = vmatpush.msra.mxu0 0.0
    %9979 = vmatpush.msra.mxu0 0.0
    %9980 = vmatpush.msra.mxu0 0.0
    %9981 = vmatpush.msra.mxu0 0.0
    %9982 = vmatpush.msra.mxu0 0.0
    %9983 = vmatpush.msra.mxu0 0.0
    %9984 = vmatpush.msra.mxu0 0.0
    %9985 = vmatpush.msra.mxu0 0.0
    %9986 = vmatpush.msra.mxu0 0.0
    %9987 = vmatpush.msra.mxu0 0.0
    %9988 = vmatpush.msra.mxu0 %v9968
    %9989 = vmatmul.f32.gmra.mxu0 %v9971
    %v9990 = vpop.f32.mrf.mxu0
    %v9991 = vadd.f32 0.0, %v9990
    %9992 = vdwg.mxu0
    %v9993 = vadd.f32 %v8690, %v9586
    %v9994 = vadd.f32 %v8691, %v9613
    %v9995 = vadd.f32 %v8692, %v9640
    %v9996 = vadd.f32 %v8693, %v9667
    %v9997 = vadd.f32 %v8694, %v9694
    %v9998 = vadd.f32 %v8695, %v9721
    %v9999 = vadd.f32 %v8696, %v9748
    %v10000 = vadd.f32 %v8697, %v9775
    %v10001 = vadd.f32 %v8698, %v9802
    %v10002 = vadd.f32 %v8699, %v9829
    %v10003 = vadd.f32 %v8700, %v9856
    %v10004 = vadd.f32 %v8701, %v9883
    %v10005 = vadd.f32 %v8702, %v9910
    %v10006 = vadd.f32 %v8703, %v9937
    %v10007 = vadd.f32 %v8704, %v9964
    %v10008 = vadd.f32 %v8705, %v9991
    %v10009 = vld [vmem:[%s10] sm:$0xff]
    %v10010 = vld [vmem:[%s10 + $0x8] sm:$0xff]
    %v10011 = vld [vmem:[%s11] sm:$0x1]
    %v10013 = vperm.slane %v10011, 0
    %v10016 = vsel %vm273, %v9993, 0
    %v10019 = vsel %vm273, %v9994, 0
    %v10022 = vsel %vm273, %v9995, 0
    %v10025 = vsel %vm273, %v9996, 0
    %v10028 = vsel %vm273, %v9997, 0
    %v10031 = vsel %vm273, %v9998, 0
    %v10034 = vsel %vm273, %v9999, 0
    %v10037 = vsel %vm273, %v10000, 0
    %v10040 = vsel %vm273, %v10001, 0
    %v10043 = vsel %vm273, %v10002, 0
    %v10046 = vsel %vm273, %v10003, 0
    %v10049 = vsel %vm273, %v10004, 0
    %v10052 = vsel %vm273, %v10005, 0
    %v10055 = vsel %vm273, %v10006, 0
    %v10058 = vsel %vm273, %v10007, 0
    %v10061 = vsel %vm273, %v10008, 0
    %10063 = vmatpush.msra.mxu0 0.0
    %10064 = vmatpush.msra.mxu0 0.0
    %10065 = vmatpush.msra.mxu0 0.0
    %10066 = vmatpush.msra.mxu0 0.0
    %10067 = vmatpush.msra.mxu0 0.0
    %10068 = vmatpush.msra.mxu0 0.0
    %10069 = vmatpush.msra.mxu0 0.0
    %10070 = vmatpush.msra.mxu0 0.0
    %10071 = vmatpush.msra.mxu0 0.0
    %10072 = vmatpush.msra.mxu0 0.0
    %10073 = vmatpush.msra.mxu0 0.0
    %10074 = vmatpush.msra.mxu0 0.0
    %10075 = vmatpush.msra.mxu0 0.0
    %10076 = vmatpush.msra.mxu0 0.0
    %10077 = vmatpush.msra.mxu0 %v10010
    %10078 = vmatpush.msra.mxu0 %v10009
    %10079 = vmatmul.f32.gmra.mxu0 %v10016
    %v10080 = vpop.f32.mrf.mxu0
    %v10081 = vadd.f32 %v10013, %v10080
    %10082 = vmatmul.f32.gmra.mxu0 %v10019
    %v10083 = vpop.f32.mrf.mxu0
    %v10084 = vadd.f32 %v10013, %v10083
    %10085 = vmatmul.f32.gmra.mxu0 %v10022
    %v10086 = vpop.f32.mrf.mxu0
    %v10087 = vadd.f32 %v10013, %v10086
    %10088 = vmatmul.f32.gmra.mxu0 %v10025
    %v10089 = vpop.f32.mrf.mxu0
    %v10090 = vadd.f32 %v10013, %v10089
    %10091 = vmatmul.f32.gmra.mxu0 %v10028
    %v10092 = vpop.f32.mrf.mxu0
    %v10093 = vadd.f32 %v10013, %v10092
    %10094 = vmatmul.f32.gmra.mxu0 %v10031
    %v10095 = vpop.f32.mrf.mxu0
    %v10096 = vadd.f32 %v10013, %v10095
    %10097 = vmatmul.f32.gmra.mxu0 %v10034
    %v10098 = vpop.f32.mrf.mxu0
    %v10099 = vadd.f32 %v10013, %v10098
    %10100 = vmatmul.f32.gmra.mxu0 %v10037
    %v10101 = vpop.f32.mrf.mxu0
    %v10102 = vadd.f32 %v10013, %v10101
    %10103 = vmatmul.f32.gmra.mxu0 %v10040
    %v10104 = vpop.f32.mrf.mxu0
    %v10105 = vadd.f32 %v10013, %v10104
    %10106 = vmatmul.f32.gmra.mxu0 %v10043
    %v10107 = vpop.f32.mrf.mxu0
    %v10108 = vadd.f32 %v10013, %v10107
    %10109 = vmatmul.f32.gmra.mxu0 %v10046
    %v10110 = vpop.f32.mrf.mxu0
    %v10111 = vadd.f32 %v10013, %v10110
    %10112 = vmatmul.f32.gmra.mxu0 %v10049
    %v10113 = vpop.f32.mrf.mxu0
    %v10114 = vadd.f32 %v10013, %v10113
    %10115 = vmatmul.f32.gmra.mxu0 %v10052
    %v10116 = vpop.f32.mrf.mxu0
    %v10117 = vadd.f32 %v10013, %v10116
    %10118 = vmatmul.f32.gmra.mxu0 %v10055
    %v10119 = vpop.f32.mrf.mxu0
    %v10120 = vadd.f32 %v10013, %v10119
    %10121 = vmatmul.f32.gmra.mxu0 %v10058
    %v10122 = vpop.f32.mrf.mxu0
    %v10123 = vadd.f32 %v10013, %v10122
    %10124 = vmatmul.f32.gmra.mxu0 %v10061
    %v10125 = vpop.f32.mrf.mxu0
    %v10126 = vadd.f32 %v10013, %v10125
    %10127 = vdwg.mxu0
    %v10128 = vmax.f32 %v10081, 0.0
    %v10129 = vmax.f32 %v10084, 0.0
    %v10130 = vmax.f32 %v10087, 0.0
    %v10131 = vmax.f32 %v10090, 0.0
    %v10132 = vmax.f32 %v10093, 0.0
    %v10133 = vmax.f32 %v10096, 0.0
    %v10134 = vmax.f32 %v10099, 0.0
    %v10135 = vmax.f32 %v10102, 0.0
    %v10136 = vmax.f32 %v10105, 0.0
    %v10137 = vmax.f32 %v10108, 0.0
    %v10138 = vmax.f32 %v10111, 0.0
    %v10139 = vmax.f32 %v10114, 0.0
    %v10140 = vmax.f32 %v10117, 0.0
    %v10141 = vmax.f32 %v10120, 0.0
    %v10142 = vmax.f32 %v10123, 0.0
    %v10143 = vmax.f32 %v10126, 0.0
    %v10144 = vadd.f32 %v10128, %v9993
    %v10145 = vadd.f32 %v10129, %v9994
    %v10146 = vadd.f32 %v10130, %v9995
    %v10147 = vadd.f32 %v10131, %v9996
    %v10148 = vadd.f32 %v10132, %v9997
    %v10149 = vadd.f32 %v10133, %v9998
    %v10150 = vadd.f32 %v10134, %v9999
    %v10151 = vadd.f32 %v10135, %v10000
    %v10152 = vadd.f32 %v10136, %v10001
    %v10153 = vadd.f32 %v10137, %v10002
    %v10154 = vadd.f32 %v10138, %v10003
    %v10155 = vadd.f32 %v10139, %v10004
    %v10156 = vadd.f32 %v10140, %v10005
    %v10157 = vadd.f32 %v10141, %v10006
    %v10158 = vadd.f32 %v10142, %v10007
    %v10159 = vadd.f32 %v10143, %v10008
    %v10160 = vadd.f32 %v10144, %v4616
    %v10161 = vadd.f32 %v10145, %v4619
    %v10162 = vadd.f32 %v10146, %v4622
    %v10163 = vadd.f32 %v10147, %v4625
    %v10164 = vadd.f32 %v10148, %v4628
    %v10165 = vadd.f32 %v10149, %v4631
    %v10166 = vadd.f32 %v10150, %v4634
    %v10167 = vadd.f32 %v10151, %v4637
    %v10168 = vadd.f32 %v10152, %v4640
    %v10169 = vadd.f32 %v10153, %v4643
    %v10170 = vadd.f32 %v10154, %v4646
    %v10171 = vadd.f32 %v10155, %v4649
    %v10172 = vadd.f32 %v10156, %v4652
    %v10173 = vadd.f32 %v10157, %v4655
    %v10174 = vadd.f32 %v10158, %v4658
    %v10175 = vadd.f32 %v10159, %v4661
    %10176 = vst.msk [vmem:[#allocation2] sm:$0xff] %vm273, %v10160
    %10177 = vst.msk [vmem:[#allocation2 + $0x8] sm:$0xff] %vm273, %v10161
    %10178 = vst.msk [vmem:[#allocation2 + $0x10] sm:$0xff] %vm273, %v10162
    %10179 = vst.msk [vmem:[#allocation2 + $0x18] sm:$0xff] %vm273, %v10163
    %10180 = vst.msk [vmem:[#allocation2 + $0x20] sm:$0xff] %vm273, %v10164
    %10181 = vst.msk [vmem:[#allocation2 + $0x28] sm:$0xff] %vm273, %v10165
    %10182 = vst.msk [vmem:[#allocation2 + $0x30] sm:$0xff] %vm273, %v10166
    %10183 = vst.msk [vmem:[#allocation2 + $0x38] sm:$0xff] %vm273, %v10167
    %10184 = vst.msk [vmem:[#allocation2 + $0x40] sm:$0xff] %vm273, %v10168
    %10185 = vst.msk [vmem:[#allocation2 + $0x48] sm:$0xff] %vm273, %v10169
    %10186 = vst.msk [vmem:[#allocation2 + $0x50] sm:$0xff] %vm273, %v10170
    %10187 = vst.msk [vmem:[#allocation2 + $0x58] sm:$0xff] %vm273, %v10171
    %10188 = vst.msk [vmem:[#allocation2 + $0x60] sm:$0xff] %vm273, %v10172
    %10189 = vst.msk [vmem:[#allocation2 + $0x68] sm:$0xff] %vm273, %v10173
    %10190 = vst.msk [vmem:[#allocation2 + $0x70] sm:$0xff] %vm273, %v10174
    %10191 = vst.msk [vmem:[#allocation2 + $0x78] sm:$0xff] %vm273, %v10175
    // Predicated region
    $region50: #{dysat_forward.1} parent=1 // pred_check
      _
    $region51: #{dysat_forward.1} parent=1 // pred_check_branch
      %10193 = sbr.rel (0) target = $region53
    $region52: #{dysat_forward.1} parent=1 // pred_region
      %10195 = vsyncadd [#allocation3], 0
      %s10196 = sshll.u32 [#allocation2], 4
      %s10197 = int_to_ptr.vmem [resolvable:$true] %s10196
      %s10198 = sshll.u32 %s12, 4
      %s10199 = int_to_ptr.hbm [resolvable:$true] %s10198
      %10204 = dma.vmem_to_hbm [thread:$0]  %s10197, 2048, %s10199, [#allocation3], 128, 128, 8
    $region53: #{dysat_forward.1} parent=1 // pred_fallthru
      _
    // Predicated region
    $region54: #{dysat_forward.1} parent=1 // pred_check
      _
    $region55: #{dysat_forward.1} parent=1 // pred_check_branch
      %10206 = sbr.rel (0) target = $region57
    $region56: #{dysat_forward.1} parent=1 // pred_region
      %10208 = dma.done [#allocation3], 2048
    $region57: #{dysat_forward.1} parent=1 // pred_fallthru
      _
    %10209 = vsyncpa [#allocation3], 1

</llo_original>
